<compile_context>
chip_gen: v7x
topology: tpu7x:2x2x1
jax: 0.10.0
libtpu: 0.0.40
codegen_flags: <defaults>
</compile_context>

<pallas_src>
import functools

import jax
import jax.numpy as jnp
from jax.experimental import pallas as pl
from jax.experimental.pallas import tpu as pltpu

_BN_EPS = 1e-5
_LRELU_SLOPE = 0.2


def _round_up(x, m):
    return (x + m - 1) // m * m


def _tpu_limits():
    """Per-generation M-tile and VMEM limit."""
    try:
        cap = pltpu.get_tpu_info().vmem_capacity_bytes
    except Exception:  # no TPU info available -> conservative (v7x-sized) defaults
        cap = 64 * 1024 * 1024
    if cap >= 96 * 1024 * 1024:          # v5e / v6e: 128 MiB physical VMEM
        return 2048, 96 * 1024 * 1024
    return 1024, 48 * 1024 * 1024        # v7x: 64 MiB physical VMEM


_TM, _VMEM_LIMIT = _tpu_limits()


# ----------------------------- Pallas kernels ------------------------------

def _lrelu(y):
    # max(y, 0.2*y) == LeakyReLU(0.2) for slope in (0,1); single vmax on the VPU.
    return jnp.maximum(y, _LRELU_SLOPE * y)


def _conv_lrelu_kernel(p_ref, w_ref, o_ref):
    # conv-as-GEMM (bf16 MXU feeds, f32 accumulate) + LeakyReLU(0.2), bf16 store.
    y = jnp.dot(p_ref[...], w_ref[...], preferred_element_type=jnp.float32)
    o_ref[...] = _lrelu(y).astype(o_ref.dtype)


def _conv_bn_lrelu_single_kernel(m_true, p_ref, w_ref, g_ref, b_ref, o_ref):
    # Whole patch matrix in one tile: GEMM + exact training-mode batch stats +
    # BN + LeakyReLU in a single pass (no GEMM recompute, no two-sweep grid).
    # m_true is a trace-time constant (batch/spatial are static per trace);
    # zero-padded rows contribute 0 to sum/sumsq so stats stay exact.
    y = jnp.dot(p_ref[...], w_ref[...], preferred_element_type=jnp.float32)
    inv_m = 1.0 / m_true
    mean = jnp.sum(y, axis=0, keepdims=True) * inv_m
    var = jnp.maximum(jnp.sum(y * y, axis=0, keepdims=True) * inv_m - mean * mean, 0.0)
    scale = g_ref[...] * jax.lax.rsqrt(var + _BN_EPS)
    shift = b_ref[...] - mean * scale
    o_ref[...] = _lrelu(y * scale + shift).astype(o_ref.dtype)


def _conv_bn_lrelu_tiled_kernel(m_true, tm, p_ref, w_ref, g_ref, b_ref, o_ref,
                                y_cache, sum_ref, sq_ref):
    # Two-sweep grid for large M: phase 0 runs each GEMM tile once, caching the
    # f32 result in VMEM while accumulating per-channel sum / sum-of-squares;
    # phase 1 reads the cached GEMM back (no recompute, the patch index_map is
    # pinned to block 0 so no refetch) and applies BN + LeakyReLU.  Output
    # blocks are only produced in phase 1 (out index_map pins phase 0 to block
    # 0, which phase 1 overwrites before any writeback), so no garbage is ever
    # DMA'd to HBM.
    phase = pl.program_id(0)
    i = pl.program_id(1)
    start = pl.multiple_of(i * tm, tm)

    @pl.when(jnp.logical_and(phase == 0, i == 0))
    def _init():
        sum_ref[...] = jnp.zeros_like(sum_ref)
        sq_ref[...] = jnp.zeros_like(sq_ref)

    @pl.when(phase == 0)
    def _stats():
        y = jnp.dot(p_ref[...], w_ref[...], preferred_element_type=jnp.float32)
        y_cache[pl.ds(start, tm), :] = y
        sum_ref[...] += jnp.sum(y, axis=0, keepdims=True)
        sq_ref[...] += jnp.sum(y * y, axis=0, keepdims=True)

    @pl.when(phase == 1)
    def _normalize():
        y = y_cache[pl.ds(start, tm), :]
        inv_m = 1.0 / m_true
        mean = sum_ref[...] * inv_m
        var = jnp.maximum(sq_ref[...] * inv_m - mean * mean, 0.0)
        scale = g_ref[...] * jax.lax.rsqrt(var + _BN_EPS)
        shift = b_ref[...] - mean * scale
        o_ref[...] = _lrelu(y * scale + shift).astype(o_ref.dtype)


def _tail_kernel(m_true, n_pad, spatial,
                 p_ref, w5_ref, g_ref, b_ref, w6_ref, bias_ref, o_ref):
    # Fused cond_logits: conv3x3 GEMM + BN(batch stats) + LReLU, then conv4x4/s4
    # (a full per-sample reduction on the 4x4 map) + bias + sigmoid.
    y = jnp.dot(p_ref[...], w5_ref[...], preferred_element_type=jnp.float32)
    inv_m = 1.0 / m_true
    mean = jnp.sum(y, axis=0, keepdims=True) * inv_m
    var = jnp.maximum(jnp.sum(y * y, axis=0, keepdims=True) * inv_m - mean * mean, 0.0)
    scale = g_ref[...] * jax.lax.rsqrt(var + _BN_EPS)
    shift = b_ref[...] - mean * scale
    a = _lrelu(y * scale + shift)                       # (n_pad*spatial, Cp) f32

    cp = a.shape[-1]
    # conv6: elementwise multiply by the (spatial, Cp) conv6 weight broadcast
    # across samples, then reduce spatial (sublanes) and channels (lanes).
    a3 = a.reshape(n_pad, spatial, cp)                  # major-dim split, no relayout
    contrib = a3 * w6_ref[...].reshape(1, spatial, cp)
    per_chan = jnp.sum(contrib, axis=1)                 # (n_pad, Cp) sublane reduce
    logit = jnp.sum(per_chan, axis=1, keepdims=True)    # (n_pad, 1)  lane reduce
    o_ref[...] = jax.nn.sigmoid(logit + bias_ref[...]).astype(o_ref.dtype)


# ------------------------------ im2col (glue) ------------------------------

def _im2col_nhwc(x, kh, kw, stride, pad):
    """x: (N, H, W, C) -> patches (N*Ho*Wo, kh*kw*C), plus Ho, Wo."""
    n, h, w, c = x.shape
    xp = jnp.pad(x, ((0, 0), (pad, pad), (pad, pad), (0, 0)))
    ho = (h + 2 * pad - kh) // stride + 1
    wo = (w + 2 * pad - kw) // stride + 1
    cols = []
    for i in range(kh):
        for j in range(kw):
            cols.append(xp[:, i:i + stride * ho:stride, j:j + stride * wo:stride, :])
    p = jnp.stack(cols, axis=3)                       # (N, Ho, Wo, kh*kw, C)
    return p.reshape(n * ho * wo, kh * kw * c), ho, wo


# ------------------------------ conv layers --------------------------------

def _conv_layer(x, w, stride, pad, mode, gamma=None, beta=None):
    """x: NHWC bf16, w: (Cout, Cin, kh, kw) f32.  Returns NHWC bf16 conv(+BN)+LReLU."""
    n = x.shape[0]
    cout, _, kh, kw = w.shape
    patches, ho, wo = _im2col_nhwc(x, kh, kw, stride, pad)   # bf16
    m, k = patches.shape
    kp = _round_up(k, 128)            # contraction dim padded to lane grain
    cp = _round_up(cout, 128)         # lane-dense output (no masked vst)
    m8 = _round_up(m, 8)

    wm = jnp.pad(w.transpose(2, 3, 1, 0).reshape(k, cout),
                 ((0, kp - k), (0, cp - cout))).astype(jnp.bfloat16)

    if mode == "bn_lrelu":
        g = jnp.pad(gamma.astype(jnp.float32), (0, cp - cout)).reshape(1, cp)
        b = jnp.pad(beta.astype(jnp.float32), (0, cp - cout)).reshape(1, cp)

    if m8 <= _TM:
        # ---- single-tile path: one grid step, one GEMM, one output write ----
        m_pad = m8
        p = jnp.pad(patches, ((0, m_pad - m), (0, kp - k)))
        if mode == "lrelu":
            kern, extra = _conv_lrelu_kernel, ()
        else:
            kern = functools.partial(_conv_bn_lrelu_single_kernel, float(m))
            extra = (g, b)
        in_specs = [pl.BlockSpec((m_pad, kp), lambda i: (0, 0)),
                    pl.BlockSpec((kp, cp), lambda i: (0, 0))]
        in_specs += [pl.BlockSpec((1, cp), lambda i: (0, 0))] * len(extra)
        out = pl.pallas_call(
            kern,
            out_shape=jax.ShapeDtypeStruct((m_pad, cp), jnp.bfloat16),
            grid=(1,),
            in_specs=in_specs,
            out_specs=pl.BlockSpec((m_pad, cp), lambda i: (0, 0)),
            compiler_params=pltpu.CompilerParams(
                dimension_semantics=("arbitrary",),
                vmem_limit_bytes=_VMEM_LIMIT),
        )(p, wm, *extra)
    else:
        # ---- tiled path over M (double-buffered HBM<->VMEM pipeline) ----
        tm = _TM
        m_pad = _round_up(m8, tm)
        mt = m_pad // tm
        p = jnp.pad(patches, ((0, m_pad - m), (0, kp - k)))
        if mode == "lrelu":
            out = pl.pallas_call(
                _conv_lrelu_kernel,
                out_shape=jax.ShapeDtypeStruct((m_pad, cp), jnp.bfloat16),
                grid=(mt,),
                in_specs=[pl.BlockSpec((tm, kp), lambda i: (i, 0)),
                          pl.BlockSpec((kp, cp), lambda i: (0, 0))],
                out_specs=pl.BlockSpec((tm, cp), lambda i: (i, 0)),
                compiler_params=pltpu.CompilerParams(
                    dimension_semantics=("parallel",),
                    vmem_limit_bytes=_VMEM_LIMIT),
            )(p, wm)
        else:
            out = pl.pallas_call(
                functools.partial(_conv_bn_lrelu_tiled_kernel, float(m), tm),
                out_shape=jax.ShapeDtypeStruct((m_pad, cp), jnp.bfloat16),
                grid=(2, mt),
                in_specs=[
                    # phase 0: fetch patch tile i; phase 1: stay on block 0 (no refetch)
                    pl.BlockSpec((tm, kp), lambda ph, i: (i * (1 - ph), 0)),
                    pl.BlockSpec((kp, cp), lambda ph, i: (0, 0)),
                    pl.BlockSpec((1, cp), lambda ph, i: (0, 0)),
                    pl.BlockSpec((1, cp), lambda ph, i: (0, 0))],
                # phase 0 pins the output to block 0 (never written -> never
                # flushed until phase 1 overwrites it); phase 1 writes tile i.
                out_specs=pl.BlockSpec((tm, cp), lambda ph, i: (i * ph, 0)),
                scratch_shapes=[pltpu.VMEM((m_pad, cp), jnp.float32),
                                pltpu.VMEM((1, cp), jnp.float32),
                                pltpu.VMEM((1, cp), jnp.float32)],
                compiler_params=pltpu.CompilerParams(
                    dimension_semantics=("arbitrary", "arbitrary"),
                    vmem_limit_bytes=_VMEM_LIMIT),
            )(p, wm, g, b)
    return out[:m, :cout].reshape(n, ho, wo, cout)


def _cond_logits_tail(h, params):
    """Fused conv3x3+BN+LReLU+conv4x4/s4(+bias)+sigmoid.  h: NHWC bf16 (N,4,4,C)."""
    n, hh, ww, _ = h.shape
    spatial = hh * ww
    w5 = params["w5"]
    c5 = w5.shape[0]
    patches, _, _ = _im2col_nhwc(h, 3, 3, 1, 1)       # (N*16, 9*Cin) bf16
    m, k = patches.shape
    kp = _round_up(k, 128)
    cp = _round_up(c5, 128)
    n_pad = _round_up(n, 8)
    m_pad = n_pad * spatial

    p = jnp.pad(patches, ((0, m_pad - m), (0, kp - k)))
    w5m = jnp.pad(w5.transpose(2, 3, 1, 0).reshape(k, c5),
                  ((0, kp - k), (0, cp - c5))).astype(jnp.bfloat16)
    g5 = jnp.pad(params["g5"].astype(jnp.float32), (0, cp - c5)).reshape(1, cp)
    b5 = jnp.pad(params["b5"].astype(jnp.float32), (0, cp - c5)).reshape(1, cp)
    # conv6 weight (1, C5, 4, 4) -> (s = h*4 + w, Cp), passed ONCE (no per-sample tiling).
    w6 = jnp.pad(params["w6"][0].transpose(1, 2, 0).reshape(spatial, c5),
                 ((0, 0), (0, cp - c5))).astype(jnp.float32)
    bias_row = jnp.broadcast_to(
        params["bias6"].reshape(1, 1).astype(jnp.float32), (1, 128))

    out = pl.pallas_call(
        functools.partial(_tail_kernel, float(m), n_pad, spatial),
        out_shape=jax.ShapeDtypeStruct((n_pad, 128), jnp.float32),
        grid=(1,),
        in_specs=[pl.BlockSpec(p.shape, lambda i: (0, 0)),
                  pl.BlockSpec(w5m.shape, lambda i: (0, 0)),
                  pl.BlockSpec(g5.shape, lambda i: (0, 0)),
                  pl.BlockSpec(b5.shape, lambda i: (0, 0)),
                  pl.BlockSpec(w6.shape, lambda i: (0, 0)),
                  pl.BlockSpec(bias_row.shape, lambda i: (0, 0))],
        out_specs=pl.BlockSpec((n_pad, 128), lambda i: (0, 0)),
        compiler_params=pltpu.CompilerParams(
            dimension_semantics=("arbitrary",),
            vmem_limit_bytes=_VMEM_LIMIT),
    )(p, w5m, g5, b5, w6, bias_row)
    return out[:n, 0]


# ----------------------------- model definition ----------------------------

def init_params(key, ndf, nef):
    ks = jax.random.split(key, 8)
    rnd = lambda k, shape: (0.02 * jax.random.normal(k, shape)).astype(jnp.float32)
    return {
        # encode_img
        "w1": rnd(ks[0], (ndf, 3, 4, 4)),
        "w2": rnd(ks[1], (ndf * 2, ndf, 4, 4)),
        "g2": jnp.ones((ndf * 2,), jnp.float32), "b2": jnp.zeros((ndf * 2,), jnp.float32),
        "w3": rnd(ks[2], (ndf * 4, ndf * 2, 4, 4)),
        "g3": jnp.ones((ndf * 4,), jnp.float32), "b3": jnp.zeros((ndf * 4,), jnp.float32),
        "w4": rnd(ks[3], (ndf * 8, ndf * 4, 4, 4)),
        "g4": jnp.ones((ndf * 8,), jnp.float32), "b4": jnp.zeros((ndf * 8,), jnp.float32),
        # cond_logits
        "w5": rnd(ks[4], (ndf * 8, ndf * 8 + nef, 3, 3)),
        "g5": jnp.ones((ndf * 8,), jnp.float32), "b5": jnp.zeros((ndf * 8,), jnp.float32),
        "w6": rnd(ks[5], (1, ndf * 8, 4, 4)),
        "bias6": rnd(ks[6], (1,)),
    }


def discriminator1_forward(params, image, c_code=None):
    # encode_img: 4 strided convs, 64x64 -> 4x4 spatial.  NHWC bf16 throughout.
    x = jnp.transpose(image, (0, 2, 3, 1)).astype(jnp.bfloat16)  # one relayout + cast
    x = _conv_layer(x, params["w1"], 2, 1, "lrelu")
    x = _conv_layer(x, params["w2"], 2, 1, "bn_lrelu", params["g2"], params["b2"])
    x = _conv_layer(x, params["w3"], 2, 1, "bn_lrelu", params["g3"], params["b3"])
    x = _conv_layer(x, params["w4"], 2, 1, "bn_lrelu", params["g4"], params["b4"])

    if c_code is not None:
        # c_code.view(-1, 128, 1, 1).repeat(1, 1, 4, 4), concat on channels (NHWC)
        c = jnp.broadcast_to(c_code.reshape(-1, 1, 1, 128).astype(x.dtype),
                             (x.shape[0], x.shape[1], x.shape[2], 128))
        h = jnp.concatenate([x, c], axis=-1)
    else:
        h = x

    # cond_logits: fused conv3x3 + BN + LReLU + conv4x4/s4 (+bias) + Sigmoid
    return _cond_logits_tail(h, params)   # (N,)


# ---------------------------------- main ------------------------------------

if __name__ == "__main__":
    ndf = 8       # small ndf for the example
    nef = 128     # forced to 128 by c_code.view(-1, 128, 1, 1) in the reference
    batch = 2

    key = jax.random.PRNGKey(0)
    k_img, k_code, k_par = jax.random.split(key, 3)

    image = jax.random.normal(k_img, (batch, 3, 64, 64), dtype=jnp.float32)
    c_code = jax.random.normal(k_code, (batch, nef), dtype=jnp.float32)
    params = init_params(k_par, ndf, nef)

    fwd = jax.jit(functools.partial(discriminator1_forward, params))
    out = fwd(image, c_code)
    out = jax.block_until_ready(out)

    assert out.shape == (batch,), out.shape
    assert bool(jnp.all(jnp.isfinite(out)))
    print("KERNEL_OK")
</pallas_src>

<mosaic_0001>
module attributes {stable_mosaic.version = 11 : i64} {
  func.func @_conv_lrelu_kernel(%arg0: i32, %arg1: memref<1024x128xbf16, #tpu.memory_space<vmem>>, %arg2: memref<128x128xbf16, #tpu.memory_space<vmem>>, %arg3: memref<1024x128xbf16, #tpu.memory_space<vmem>>) attributes {dimension_semantics = [#tpu.dimension_semantics<parallel>], iteration_bounds = array<i64: 2>, scalar_prefetch = 0 : i64, scratch_operands = 0 : i64, tpu.core_type = #tpu.core_type<tc>, window_params = [{transform_indices = @transform_0, window_bounds = array<i64: 1024, 128>}, {pipeline_mode = #tpu.pipeline_mode<synchronous>, transform_indices = @transform_1, window_bounds = array<i64: 128, 128>}, {transform_indices = @transform_2, window_bounds = array<i64: 1024, 128>}]} {
    %c0 = arith.constant 0 : index
    %c0_0 = arith.constant 0 : index
    %0 = vector.load %arg1[%c0, %c0_0] : memref<1024x128xbf16, #tpu.memory_space<vmem>>, vector<1024x128xbf16>
    %c0_1 = arith.constant 0 : index
    %c0_2 = arith.constant 0 : index
    %1 = vector.load %arg2[%c0_1, %c0_2] : memref<128x128xbf16, #tpu.memory_space<vmem>>, vector<128x128xbf16>
    %cst = arith.constant dense<0.000000e+00> : vector<1024x128xf32>
    %2 = tpu.matmul %0, %1, %cst {dimension_numbers = #tpu.dot_dimension_numbers<[1], [0], [0], [1], [0, 0, 1, 1], [], []>} : vector<1024x128xbf16>, vector<128x128xbf16>, vector<1024x128xf32> -> vector<1024x128xf32>
    %cst_3 = arith.constant 2.000000e-01 : f32
    %3 = vector.broadcast %cst_3 : f32 to vector<1024x128xf32>
    %4 = arith.mulf %3, %2 : vector<1024x128xf32>
    %5 = arith.maximumf %2, %4 : vector<1024x128xf32>
    %6 = arith.truncf %5 : vector<1024x128xf32> to vector<1024x128xbf16>
    %c0_4 = arith.constant 0 : index
    %c0_5 = arith.constant 0 : index
    %7 = vector.load %arg3[%c0_4, %c0_5] : memref<1024x128xbf16, #tpu.memory_space<vmem>>, vector<1024x128xbf16>
    tpu.vector_store %arg3[%c0_4, %c0_5], %6 {strides = array<i32>} : memref<1024x128xbf16, #tpu.memory_space<vmem>>, vector<1024x128xbf16>,
    return
  }
  func.func @transform_0(%arg0: i32) -> (i32, i32) {
    %c0_i32 = arith.constant 0 : i32
    %c0_i32_0 = arith.constant 0 : i32
    return %arg0, %c0_i32 : i32, i32
  }
  func.func @transform_1(%arg0: i32) -> (i32, i32) {
    %c0_i32 = arith.constant 0 : i32
    %c0_i32_0 = arith.constant 0 : i32
    %c0_i32_1 = arith.constant 0 : i32
    return %c0_i32, %c0_i32_0 : i32, i32
  }
  func.func @transform_2(%arg0: i32) -> (i32, i32) {
    %c0_i32 = arith.constant 0 : i32
    %c0_i32_0 = arith.constant 0 : i32
    return %arg0, %c0_i32 : i32, i32
  }
}

module attributes {stable_mosaic.version = 11 : i64} {
  func.func @_conv_bn_lrelu_single_kernel(%arg0: i32, %arg1: memref<512x128xbf16, #tpu.memory_space<vmem>>, %arg2: memref<128x128xbf16, #tpu.memory_space<vmem>>, %arg3: memref<1x128xf32, #tpu.memory_space<vmem>>, %arg4: memref<1x128xf32, #tpu.memory_space<vmem>>, %arg5: memref<512x128xbf16, #tpu.memory_space<vmem>>) attributes {dimension_semantics = [#tpu.dimension_semantics<arbitrary>], iteration_bounds = array<i64: 1>, scalar_prefetch = 0 : i64, scratch_operands = 0 : i64, tpu.core_type = #tpu.core_type<tc>, window_params = [{pipeline_mode = #tpu.pipeline_mode<synchronous>, transform_indices = @transform_0, window_bounds = array<i64: 512, 128>}, {pipeline_mode = #tpu.pipeline_mode<synchronous>, transform_indices = @transform_1, window_bounds = array<i64: 128, 128>}, {pipeline_mode = #tpu.pipeline_mode<synchronous>, transform_indices = @transform_2, window_bounds = array<i64: 1, 128>}, {pipeline_mode = #tpu.pipeline_mode<synchronous>, transform_indices = @transform_3, window_bounds = array<i64: 1, 128>}, {pipeline_mode = #tpu.pipeline_mode<synchronous>, transform_indices = @transform_4, window_bounds = array<i64: 512, 128>}]} {
    %c0 = arith.constant 0 : index
    %c0_0 = arith.constant 0 : index
    %0 = vector.load %arg1[%c0, %c0_0] : memref<512x128xbf16, #tpu.memory_space<vmem>>, vector<512x128xbf16>
    %c0_1 = arith.constant 0 : index
    %c0_2 = arith.constant 0 : index
    %1 = vector.load %arg2[%c0_1, %c0_2] : memref<128x128xbf16, #tpu.memory_space<vmem>>, vector<128x128xbf16>
    %cst = arith.constant dense<0.000000e+00> : vector<512x128xf32>
    %2 = tpu.matmul %0, %1, %cst {dimension_numbers = #tpu.dot_dimension_numbers<[1], [0], [0], [1], [0, 0, 1, 1], [], []>} : vector<512x128xbf16>, vector<128x128xbf16>, vector<512x128xf32> -> vector<512x128xf32>
    %cst_3 = arith.constant dense<0.000000e+00> : vector<128xf32>
    %3 = vector.multi_reduction <add>, %2, %cst_3 [0] : vector<512x128xf32> to vector<128xf32>
    %4 = vector.shape_cast %3 : vector<128xf32> to vector<1x128xf32>
    %cst_4 = arith.constant 0.001953125 : f32
    %5 = vector.broadcast %cst_4 : f32 to vector<1x128xf32>
    %6 = arith.mulf %4, %5 : vector<1x128xf32>
    %7 = arith.mulf %2, %2 : vector<512x128xf32>
    %cst_5 = arith.constant dense<0.000000e+00> : vector<128xf32>
    %8 = vector.multi_reduction <add>, %7, %cst_5 [0] : vector<512x128xf32> to vector<128xf32>
    %9 = vector.shape_cast %8 : vector<128xf32> to vector<1x128xf32>
    %cst_6 = arith.constant 0.001953125 : f32
    %10 = vector.broadcast %cst_6 : f32 to vector<1x128xf32>
    %11 = arith.mulf %9, %10 : vector<1x128xf32>
    %12 = arith.mulf %6, %6 : vector<1x128xf32>
    %13 = arith.subf %11, %12 : vector<1x128xf32>
    %cst_7 = arith.constant 0.000000e+00 : f32
    %14 = vector.broadcast %cst_7 : f32 to vector<1x128xf32>
    %15 = arith.maximumf %13, %14 : vector<1x128xf32>
    %c0_8 = arith.constant 0 : index
    %c0_9 = arith.constant 0 : index
    %16 = vector.load %arg3[%c0_8, %c0_9] : memref<1x128xf32, #tpu.memory_space<vmem>>, vector<1x128xf32>
    %cst_10 = arith.constant 9.99999974E-6 : f32
    %17 = vector.broadcast %cst_10 : f32 to vector<1x128xf32>
    %18 = arith.addf %15, %17 : vector<1x128xf32>
    %19 = math.rsqrt %18 : vector<1x128xf32>
    %20 = arith.mulf %16, %19 : vector<1x128xf32>
    %c0_11 = arith.constant 0 : index
    %c0_12 = arith.constant 0 : index
    %21 = vector.load %arg4[%c0_11, %c0_12] : memref<1x128xf32, #tpu.memory_space<vmem>>, vector<1x128xf32>
    %22 = arith.mulf %6, %20 : vector<1x128xf32>
    %23 = arith.subf %21, %22 : vector<1x128xf32>
    %24 = vector.broadcast %20 : vector<1x128xf32> to vector<512x128xf32>
    %25 = arith.mulf %2, %24 : vector<512x128xf32>
    %26 = vector.broadcast %23 : vector<1x128xf32> to vector<512x128xf32>
    %27 = arith.addf %25, %26 : vector<512x128xf32>
    %cst_13 = arith.constant 2.000000e-01 : f32
    %28 = vector.broadcast %cst_13 : f32 to vector<512x128xf32>
    %29 = arith.mulf %28, %27 : vector<512x128xf32>
    %30 = arith.maximumf %27, %29 : vector<512x128xf32>
    %31 = arith.truncf %30 : vector<512x128xf32> to vector<512x128xbf16>
    %c0_14 = arith.constant 0 : index
    %c0_15 = arith.constant 0 : index
    %32 = vector.load %arg5[%c0_14, %c0_15] : memref<512x128xbf16, #tpu.memory_space<vmem>>, vector<512x128xbf16>
    tpu.vector_store %arg5[%c0_14, %c0_15], %31 {strides = array<i32>} : memref<512x128xbf16, #tpu.memory_space<vmem>>, vector<512x128xbf16>,
    return
  }
  func.func @transform_0(%arg0: i32) -> (i32, i32) {
    %c0_i32 = arith.constant 0 : i32
    %c0_i32_0 = arith.constant 0 : i32
    %c0_i32_1 = arith.constant 0 : i32
    return %c0_i32, %c0_i32_0 : i32, i32
  }
  func.func @transform_1(%arg0: i32) -> (i32, i32) {
    %c0_i32 = arith.constant 0 : i32
    %c0_i32_0 = arith.constant 0 : i32
    %c0_i32_1 = arith.constant 0 : i32
    return %c0_i32, %c0_i32_0 : i32, i32
  }
  func.func @transform_2(%arg0: i32) -> (i32, i32) {
    %c0_i32 = arith.constant 0 : i32
    %c0_i32_0 = arith.constant 0 : i32
    %c0_i32_1 = arith.constant 0 : i32
    return %c0_i32, %c0_i32_0 : i32, i32
  }
  func.func @transform_3(%arg0: i32) -> (i32, i32) {
    %c0_i32 = arith.constant 0 : i32
    %c0_i32_0 = arith.constant 0 : i32
    %c0_i32_1 = arith.constant 0 : i32
    return %c0_i32, %c0_i32_0 : i32, i32
  }
  func.func @transform_4(%arg0: i32) -> (i32, i32) {
    %c0_i32 = arith.constant 0 : i32
    %c0_i32_0 = arith.constant 0 : i32
    %c0_i32_1 = arith.constant 0 : i32
    return %c0_i32, %c0_i32_0 : i32, i32
  }
}

module attributes {stable_mosaic.version = 11 : i64} {
  func.func @_conv_bn_lrelu_single_kernel(%arg0: i32, %arg1: memref<128x256xbf16, #tpu.memory_space<vmem>>, %arg2: memref<256x128xbf16, #tpu.memory_space<vmem>>, %arg3: memref<1x128xf32, #tpu.memory_space<vmem>>, %arg4: memref<1x128xf32, #tpu.memory_space<vmem>>, %arg5: memref<128x128xbf16, #tpu.memory_space<vmem>>) attributes {dimension_semantics = [#tpu.dimension_semantics<arbitrary>], iteration_bounds = array<i64: 1>, scalar_prefetch = 0 : i64, scratch_operands = 0 : i64, tpu.core_type = #tpu.core_type<tc>, window_params = [{pipeline_mode = #tpu.pipeline_mode<synchronous>, transform_indices = @transform_0, window_bounds = array<i64: 128, 256>}, {pipeline_mode = #tpu.pipeline_mode<synchronous>, transform_indices = @transform_1, window_bounds = array<i64: 256, 128>}, {pipeline_mode = #tpu.pipeline_mode<synchronous>, transform_indices = @transform_2, window_bounds = array<i64: 1, 128>}, {pipeline_mode = #tpu.pipeline_mode<synchronous>, transform_indices = @transform_3, window_bounds = array<i64: 1, 128>}, {pipeline_mode = #tpu.pipeline_mode<synchronous>, transform_indices = @transform_4, window_bounds = array<i64: 128, 128>}]} {
    %c0 = arith.constant 0 : index
    %c0_0 = arith.constant 0 : index
    %0 = vector.load %arg1[%c0, %c0_0] : memref<128x256xbf16, #tpu.memory_space<vmem>>, vector<128x256xbf16>
    %c0_1 = arith.constant 0 : index
    %c0_2 = arith.constant 0 : index
    %1 = vector.load %arg2[%c0_1, %c0_2] : memref<256x128xbf16, #tpu.memory_space<vmem>>, vector<256x128xbf16>
    %cst = arith.constant dense<0.000000e+00> : vector<128x128xf32>
    %2 = tpu.matmul %0, %1, %cst {dimension_numbers = #tpu.dot_dimension_numbers<[1], [0], [0], [1], [0, 0, 1, 1], [], []>} : vector<128x256xbf16>, vector<256x128xbf16>, vector<128x128xf32> -> vector<128x128xf32>
    %cst_3 = arith.constant dense<0.000000e+00> : vector<128xf32>
    %3 = vector.multi_reduction <add>, %2, %cst_3 [0] : vector<128x128xf32> to vector<128xf32>
    %4 = vector.shape_cast %3 : vector<128xf32> to vector<1x128xf32>
    %cst_4 = arith.constant 7.812500e-03 : f32
    %5 = vector.broadcast %cst_4 : f32 to vector<1x128xf32>
    %6 = arith.mulf %4, %5 : vector<1x128xf32>
    %7 = arith.mulf %2, %2 : vector<128x128xf32>
    %cst_5 = arith.constant dense<0.000000e+00> : vector<128xf32>
    %8 = vector.multi_reduction <add>, %7, %cst_5 [0] : vector<128x128xf32> to vector<128xf32>
    %9 = vector.shape_cast %8 : vector<128xf32> to vector<1x128xf32>
    %cst_6 = arith.constant 7.812500e-03 : f32
    %10 = vector.broadcast %cst_6 : f32 to vector<1x128xf32>
    %11 = arith.mulf %9, %10 : vector<1x128xf32>
    %12 = arith.mulf %6, %6 : vector<1x128xf32>
    %13 = arith.subf %11, %12 : vector<1x128xf32>
    %cst_7 = arith.constant 0.000000e+00 : f32
    %14 = vector.broadcast %cst_7 : f32 to vector<1x128xf32>
    %15 = arith.maximumf %13, %14 : vector<1x128xf32>
    %c0_8 = arith.constant 0 : index
    %c0_9 = arith.constant 0 : index
    %16 = vector.load %arg3[%c0_8, %c0_9] : memref<1x128xf32, #tpu.memory_space<vmem>>, vector<1x128xf32>
    %cst_10 = arith.constant 9.99999974E-6 : f32
    %17 = vector.broadcast %cst_10 : f32 to vector<1x128xf32>
    %18 = arith.addf %15, %17 : vector<1x128xf32>
    %19 = math.rsqrt %18 : vector<1x128xf32>
    %20 = arith.mulf %16, %19 : vector<1x128xf32>
    %c0_11 = arith.constant 0 : index
    %c0_12 = arith.constant 0 : index
    %21 = vector.load %arg4[%c0_11, %c0_12] : memref<1x128xf32, #tpu.memory_space<vmem>>, vector<1x128xf32>
    %22 = arith.mulf %6, %20 : vector<1x128xf32>
    %23 = arith.subf %21, %22 : vector<1x128xf32>
    %24 = vector.broadcast %20 : vector<1x128xf32> to vector<128x128xf32>
    %25 = arith.mulf %2, %24 : vector<128x128xf32>
    %26 = vector.broadcast %23 : vector<1x128xf32> to vector<128x128xf32>
    %27 = arith.addf %25, %26 : vector<128x128xf32>
    %cst_13 = arith.constant 2.000000e-01 : f32
    %28 = vector.broadcast %cst_13 : f32 to vector<128x128xf32>
    %29 = arith.mulf %28, %27 : vector<128x128xf32>
    %30 = arith.maximumf %27, %29 : vector<128x128xf32>
    %31 = arith.truncf %30 : vector<128x128xf32> to vector<128x128xbf16>
    %c0_14 = arith.constant 0 : index
    %c0_15 = arith.constant 0 : index
    %32 = vector.load %arg5[%c0_14, %c0_15] : memref<128x128xbf16, #tpu.memory_space<vmem>>, vector<128x128xbf16>
    tpu.vector_store %arg5[%c0_14, %c0_15], %31 {strides = array<i32>} : memref<128x128xbf16, #tpu.memory_space<vmem>>, vector<128x128xbf16>,
    return
  }
  func.func @transform_0(%arg0: i32) -> (i32, i32) {
    %c0_i32 = arith.constant 0 : i32
    %c0_i32_0 = arith.constant 0 : i32
    %c0_i32_1 = arith.constant 0 : i32
    return %c0_i32, %c0_i32_0 : i32, i32
  }
  func.func @transform_1(%arg0: i32) -> (i32, i32) {
    %c0_i32 = arith.constant 0 : i32
    %c0_i32_0 = arith.constant 0 : i32
    %c0_i32_1 = arith.constant 0 : i32
    return %c0_i32, %c0_i32_0 : i32, i32
  }
  func.func @transform_2(%arg0: i32) -> (i32, i32) {
    %c0_i32 = arith.constant 0 : i32
    %c0_i32_0 = arith.constant 0 : i32
    %c0_i32_1 = arith.constant 0 : i32
    return %c0_i32, %c0_i32_0 : i32, i32
  }
  func.func @transform_3(%arg0: i32) -> (i32, i32) {
    %c0_i32 = arith.constant 0 : i32
    %c0_i32_0 = arith.constant 0 : i32
    %c0_i32_1 = arith.constant 0 : i32
    return %c0_i32, %c0_i32_0 : i32, i32
  }
  func.func @transform_4(%arg0: i32) -> (i32, i32) {
    %c0_i32 = arith.constant 0 : i32
    %c0_i32_0 = arith.constant 0 : i32
    %c0_i32_1 = arith.constant 0 : i32
    return %c0_i32, %c0_i32_0 : i32, i32
  }
}

module attributes {stable_mosaic.version = 11 : i64} {
  func.func @_conv_bn_lrelu_single_kernel(%arg0: i32, %arg1: memref<32x512xbf16, #tpu.memory_space<vmem>>, %arg2: memref<512x128xbf16, #tpu.memory_space<vmem>>, %arg3: memref<1x128xf32, #tpu.memory_space<vmem>>, %arg4: memref<1x128xf32, #tpu.memory_space<vmem>>, %arg5: memref<32x128xbf16, #tpu.memory_space<vmem>>) attributes {dimension_semantics = [#tpu.dimension_semantics<arbitrary>], iteration_bounds = array<i64: 1>, scalar_prefetch = 0 : i64, scratch_operands = 0 : i64, tpu.core_type = #tpu.core_type<tc>, window_params = [{pipeline_mode = #tpu.pipeline_mode<synchronous>, transform_indices = @transform_0, window_bounds = array<i64: 32, 512>}, {pipeline_mode = #tpu.pipeline_mode<synchronous>, transform_indices = @transform_1, window_bounds = array<i64: 512, 128>}, {pipeline_mode = #tpu.pipeline_mode<synchronous>, transform_indices = @transform_2, window_bounds = array<i64: 1, 128>}, {pipeline_mode = #tpu.pipeline_mode<synchronous>, transform_indices = @transform_3, window_bounds = array<i64: 1, 128>}, {pipeline_mode = #tpu.pipeline_mode<synchronous>, transform_indices = @transform_4, window_bounds = array<i64: 32, 128>}]} {
    %c0 = arith.constant 0 : index
    %c0_0 = arith.constant 0 : index
    %0 = vector.load %arg1[%c0, %c0_0] : memref<32x512xbf16, #tpu.memory_space<vmem>>, vector<32x512xbf16>
    %c0_1 = arith.constant 0 : index
    %c0_2 = arith.constant 0 : index
    %1 = vector.load %arg2[%c0_1, %c0_2] : memref<512x128xbf16, #tpu.memory_space<vmem>>, vector<512x128xbf16>
    %cst = arith.constant dense<0.000000e+00> : vector<32x128xf32>
    %2 = tpu.matmul %0, %1, %cst {dimension_numbers = #tpu.dot_dimension_numbers<[1], [0], [0], [1], [0, 0, 1, 1], [], []>} : vector<32x512xbf16>, vector<512x128xbf16>, vector<32x128xf32> -> vector<32x128xf32>
    %cst_3 = arith.constant dense<0.000000e+00> : vector<128xf32>
    %3 = vector.multi_reduction <add>, %2, %cst_3 [0] : vector<32x128xf32> to vector<128xf32>
    %4 = vector.shape_cast %3 : vector<128xf32> to vector<1x128xf32>
    %cst_4 = arith.constant 3.125000e-02 : f32
    %5 = vector.broadcast %cst_4 : f32 to vector<1x128xf32>
    %6 = arith.mulf %4, %5 : vector<1x128xf32>
    %7 = arith.mulf %2, %2 : vector<32x128xf32>
    %cst_5 = arith.constant dense<0.000000e+00> : vector<128xf32>
    %8 = vector.multi_reduction <add>, %7, %cst_5 [0] : vector<32x128xf32> to vector<128xf32>
    %9 = vector.shape_cast %8 : vector<128xf32> to vector<1x128xf32>
    %cst_6 = arith.constant 3.125000e-02 : f32
    %10 = vector.broadcast %cst_6 : f32 to vector<1x128xf32>
    %11 = arith.mulf %9, %10 : vector<1x128xf32>
    %12 = arith.mulf %6, %6 : vector<1x128xf32>
    %13 = arith.subf %11, %12 : vector<1x128xf32>
    %cst_7 = arith.constant 0.000000e+00 : f32
    %14 = vector.broadcast %cst_7 : f32 to vector<1x128xf32>
    %15 = arith.maximumf %13, %14 : vector<1x128xf32>
    %c0_8 = arith.constant 0 : index
    %c0_9 = arith.constant 0 : index
    %16 = vector.load %arg3[%c0_8, %c0_9] : memref<1x128xf32, #tpu.memory_space<vmem>>, vector<1x128xf32>
    %cst_10 = arith.constant 9.99999974E-6 : f32
    %17 = vector.broadcast %cst_10 : f32 to vector<1x128xf32>
    %18 = arith.addf %15, %17 : vector<1x128xf32>
    %19 = math.rsqrt %18 : vector<1x128xf32>
    %20 = arith.mulf %16, %19 : vector<1x128xf32>
    %c0_11 = arith.constant 0 : index
    %c0_12 = arith.constant 0 : index
    %21 = vector.load %arg4[%c0_11, %c0_12] : memref<1x128xf32, #tpu.memory_space<vmem>>, vector<1x128xf32>
    %22 = arith.mulf %6, %20 : vector<1x128xf32>
    %23 = arith.subf %21, %22 : vector<1x128xf32>
    %24 = vector.broadcast %20 : vector<1x128xf32> to vector<32x128xf32>
    %25 = arith.mulf %2, %24 : vector<32x128xf32>
    %26 = vector.broadcast %23 : vector<1x128xf32> to vector<32x128xf32>
    %27 = arith.addf %25, %26 : vector<32x128xf32>
    %cst_13 = arith.constant 2.000000e-01 : f32
    %28 = vector.broadcast %cst_13 : f32 to vector<32x128xf32>
    %29 = arith.mulf %28, %27 : vector<32x128xf32>
    %30 = arith.maximumf %27, %29 : vector<32x128xf32>
    %31 = arith.truncf %30 : vector<32x128xf32> to vector<32x128xbf16>
    %c0_14 = arith.constant 0 : index
    %c0_15 = arith.constant 0 : index
    %32 = vector.load %arg5[%c0_14, %c0_15] : memref<32x128xbf16, #tpu.memory_space<vmem>>, vector<32x128xbf16>
    tpu.vector_store %arg5[%c0_14, %c0_15], %31 {strides = array<i32>} : memref<32x128xbf16, #tpu.memory_space<vmem>>, vector<32x128xbf16>,
    return
  }
  func.func @transform_0(%arg0: i32) -> (i32, i32) {
    %c0_i32 = arith.constant 0 : i32
    %c0_i32_0 = arith.constant 0 : i32
    %c0_i32_1 = arith.constant 0 : i32
    return %c0_i32, %c0_i32_0 : i32, i32
  }
  func.func @transform_1(%arg0: i32) -> (i32, i32) {
    %c0_i32 = arith.constant 0 : i32
    %c0_i32_0 = arith.constant 0 : i32
    %c0_i32_1 = arith.constant 0 : i32
    return %c0_i32, %c0_i32_0 : i32, i32
  }
  func.func @transform_2(%arg0: i32) -> (i32, i32) {
    %c0_i32 = arith.constant 0 : i32
    %c0_i32_0 = arith.constant 0 : i32
    %c0_i32_1 = arith.constant 0 : i32
    return %c0_i32, %c0_i32_0 : i32, i32
  }
  func.func @transform_3(%arg0: i32) -> (i32, i32) {
    %c0_i32 = arith.constant 0 : i32
    %c0_i32_0 = arith.constant 0 : i32
    %c0_i32_1 = arith.constant 0 : i32
    return %c0_i32, %c0_i32_0 : i32, i32
  }
  func.func @transform_4(%arg0: i32) -> (i32, i32) {
    %c0_i32 = arith.constant 0 : i32
    %c0_i32_0 = arith.constant 0 : i32
    %c0_i32_1 = arith.constant 0 : i32
    return %c0_i32, %c0_i32_0 : i32, i32
  }
}

module attributes {stable_mosaic.version = 11 : i64} {
  func.func @_tail_kernel(%arg0: i32, %arg1: memref<128x1792xbf16, #tpu.memory_space<vmem>>, %arg2: memref<1792x128xbf16, #tpu.memory_space<vmem>>, %arg3: memref<1x128xf32, #tpu.memory_space<vmem>>, %arg4: memref<1x128xf32, #tpu.memory_space<vmem>>, %arg5: memref<16x128xf32, #tpu.memory_space<vmem>>, %arg6: memref<1x128xf32, #tpu.memory_space<vmem>>, %arg7: memref<8x128xf32, #tpu.memory_space<vmem>>) attributes {dimension_semantics = [#tpu.dimension_semantics<arbitrary>], iteration_bounds = array<i64: 1>, scalar_prefetch = 0 : i64, scratch_operands = 0 : i64, tpu.core_type = #tpu.core_type<tc>, window_params = [{pipeline_mode = #tpu.pipeline_mode<synchronous>, transform_indices = @transform_0, window_bounds = array<i64: 128, 1792>}, {pipeline_mode = #tpu.pipeline_mode<synchronous>, transform_indices = @transform_1, window_bounds = array<i64: 1792, 128>}, {pipeline_mode = #tpu.pipeline_mode<synchronous>, transform_indices = @transform_2, window_bounds = array<i64: 1, 128>}, {pipeline_mode = #tpu.pipeline_mode<synchronous>, transform_indices = @transform_3, window_bounds = array<i64: 1, 128>}, {pipeline_mode = #tpu.pipeline_mode<synchronous>, transform_indices = @transform_4, window_bounds = array<i64: 16, 128>}, {pipeline_mode = #tpu.pipeline_mode<synchronous>, transform_indices = @transform_5, window_bounds = array<i64: 1, 128>}, {pipeline_mode = #tpu.pipeline_mode<synchronous>, transform_indices = @transform_6, window_bounds = array<i64: 8, 128>}]} {
    %c0 = arith.constant 0 : index
    %c0_0 = arith.constant 0 : index
    %0 = vector.load %arg1[%c0, %c0_0] : memref<128x1792xbf16, #tpu.memory_space<vmem>>, vector<128x1792xbf16>
    %c0_1 = arith.constant 0 : index
    %c0_2 = arith.constant 0 : index
    %1 = vector.load %arg2[%c0_1, %c0_2] : memref<1792x128xbf16, #tpu.memory_space<vmem>>, vector<1792x128xbf16>
    %cst = arith.constant dense<0.000000e+00> : vector<128x128xf32>
    %2 = tpu.matmul %0, %1, %cst {dimension_numbers = #tpu.dot_dimension_numbers<[1], [0], [0], [1], [0, 0, 1, 1], [], []>} : vector<128x1792xbf16>, vector<1792x128xbf16>, vector<128x128xf32> -> vector<128x128xf32>
    %cst_3 = arith.constant dense<0.000000e+00> : vector<128xf32>
    %3 = vector.multi_reduction <add>, %2, %cst_3 [0] : vector<128x128xf32> to vector<128xf32>
    %4 = vector.shape_cast %3 : vector<128xf32> to vector<1x128xf32>
    %cst_4 = arith.constant 3.125000e-02 : f32
    %5 = vector.broadcast %cst_4 : f32 to vector<1x128xf32>
    %6 = arith.mulf %4, %5 : vector<1x128xf32>
    %7 = arith.mulf %2, %2 : vector<128x128xf32>
    %cst_5 = arith.constant dense<0.000000e+00> : vector<128xf32>
    %8 = vector.multi_reduction <add>, %7, %cst_5 [0] : vector<128x128xf32> to vector<128xf32>
    %9 = vector.shape_cast %8 : vector<128xf32> to vector<1x128xf32>
    %cst_6 = arith.constant 3.125000e-02 : f32
    %10 = vector.broadcast %cst_6 : f32 to vector<1x128xf32>
    %11 = arith.mulf %9, %10 : vector<1x128xf32>
    %12 = arith.mulf %6, %6 : vector<1x128xf32>
    %13 = arith.subf %11, %12 : vector<1x128xf32>
    %cst_7 = arith.constant 0.000000e+00 : f32
    %14 = vector.broadcast %cst_7 : f32 to vector<1x128xf32>
    %15 = arith.maximumf %13, %14 : vector<1x128xf32>
    %c0_8 = arith.constant 0 : index
    %c0_9 = arith.constant 0 : index
    %16 = vector.load %arg3[%c0_8, %c0_9] : memref<1x128xf32, #tpu.memory_space<vmem>>, vector<1x128xf32>
    %cst_10 = arith.constant 9.99999974E-6 : f32
    %17 = vector.broadcast %cst_10 : f32 to vector<1x128xf32>
    %18 = arith.addf %15, %17 : vector<1x128xf32>
    %19 = math.rsqrt %18 : vector<1x128xf32>
    %20 = arith.mulf %16, %19 : vector<1x128xf32>
    %c0_11 = arith.constant 0 : index
    %c0_12 = arith.constant 0 : index
    %21 = vector.load %arg4[%c0_11, %c0_12] : memref<1x128xf32, #tpu.memory_space<vmem>>, vector<1x128xf32>
    %22 = arith.mulf %6, %20 : vector<1x128xf32>
    %23 = arith.subf %21, %22 : vector<1x128xf32>
    %24 = vector.broadcast %20 : vector<1x128xf32> to vector<128x128xf32>
    %25 = arith.mulf %2, %24 : vector<128x128xf32>
    %26 = vector.broadcast %23 : vector<1x128xf32> to vector<128x128xf32>
    %27 = arith.addf %25, %26 : vector<128x128xf32>
    %cst_13 = arith.constant 2.000000e-01 : f32
    %28 = vector.broadcast %cst_13 : f32 to vector<128x128xf32>
    %29 = arith.mulf %28, %27 : vector<128x128xf32>
    %30 = arith.maximumf %27, %29 : vector<128x128xf32>
    %31 = vector.shape_cast %30 : vector<128x128xf32> to vector<8x16x128xf32>
    %c0_14 = arith.constant 0 : index
    %c0_15 = arith.constant 0 : index
    %32 = vector.load %arg5[%c0_14, %c0_15] : memref<16x128xf32, #tpu.memory_space<vmem>>, vector<16x128xf32>
    %33 = vector.shape_cast %32 : vector<16x128xf32> to vector<1x16x128xf32>
    %34 = vector.broadcast %33 : vector<1x16x128xf32> to vector<8x16x128xf32>
    %35 = arith.mulf %31, %34 : vector<8x16x128xf32>
    %cst_16 = arith.constant dense<0.000000e+00> : vector<8x128xf32>
    %36 = vector.multi_reduction <add>, %35, %cst_16 [1] : vector<8x16x128xf32> to vector<8x128xf32>
    %cst_17 = arith.constant dense<0.000000e+00> : vector<8xf32>
    %37 = vector.multi_reduction <add>, %36, %cst_17 [1] : vector<8x128xf32> to vector<8xf32>
    %38 = vector.shape_cast %37 : vector<8xf32> to vector<8x1xf32>
    %c0_18 = arith.constant 0 : index
    %c0_19 = arith.constant 0 : index
    %39 = vector.load %arg6[%c0_18, %c0_19] : memref<1x128xf32, #tpu.memory_space<vmem>>, vector<1x128xf32>
    %40 = vector.broadcast %38 : vector<8x1xf32> to vector<8x128xf32>
    %41 = vector.broadcast %39 : vector<1x128xf32> to vector<8x128xf32>
    %42 = arith.addf %40, %41 : vector<8x128xf32>
    %43 = arith.negf %42 : vector<8x128xf32>
    %44 = math.exp %43 : vector<8x128xf32>
    %cst_20 = arith.constant 1.000000e+00 : f32
    %45 = vector.broadcast %cst_20 : f32 to vector<8x128xf32>
    %46 = arith.addf %45, %44 : vector<8x128xf32>
    %47 = arith.divf %45, %46 : vector<8x128xf32>
    %c0_21 = arith.constant 0 : index
    %c0_22 = arith.constant 0 : index
    %48 = vector.load %arg7[%c0_21, %c0_22] : memref<8x128xf32, #tpu.memory_space<vmem>>, vector<8x128xf32>
    tpu.vector_store %arg7[%c0_21, %c0_22], %47 {strides = array<i32>} : memref<8x128xf32, #tpu.memory_space<vmem>>, vector<8x128xf32>,
    return
  }
  func.func @transform_0(%arg0: i32) -> (i32, i32) {
    %c0_i32 = arith.constant 0 : i32
    %c0_i32_0 = arith.constant 0 : i32
    %c0_i32_1 = arith.constant 0 : i32
    return %c0_i32, %c0_i32_0 : i32, i32
  }
  func.func @transform_1(%arg0: i32) -> (i32, i32) {
    %c0_i32 = arith.constant 0 : i32
    %c0_i32_0 = arith.constant 0 : i32
    %c0_i32_1 = arith.constant 0 : i32
    return %c0_i32, %c0_i32_0 : i32, i32
  }
  func.func @transform_2(%arg0: i32) -> (i32, i32) {
    %c0_i32 = arith.constant 0 : i32
    %c0_i32_0 = arith.constant 0 : i32
    %c0_i32_1 = arith.constant 0 : i32
    return %c0_i32, %c0_i32_0 : i32, i32
  }
  func.func @transform_3(%arg0: i32) -> (i32, i32) {
    %c0_i32 = arith.constant 0 : i32
    %c0_i32_0 = arith.constant 0 : i32
    %c0_i32_1 = arith.constant 0 : i32
    return %c0_i32, %c0_i32_0 : i32, i32
  }
  func.func @transform_4(%arg0: i32) -> (i32, i32) {
    %c0_i32 = arith.constant 0 : i32
    %c0_i32_0 = arith.constant 0 : i32
    %c0_i32_1 = arith.constant 0 : i32
    return %c0_i32, %c0_i32_0 : i32, i32
  }
  func.func @transform_5(%arg0: i32) -> (i32, i32) {
    %c0_i32 = arith.constant 0 : i32
    %c0_i32_0 = arith.constant 0 : i32
    %c0_i32_1 = arith.constant 0 : i32
    return %c0_i32, %c0_i32_0 : i32, i32
  }
  func.func @transform_6(%arg0: i32) -> (i32, i32) {
    %c0_i32 = arith.constant 0 : i32
    %c0_i32_0 = arith.constant 0 : i32
    %c0_i32_1 = arith.constant 0 : i32
    return %c0_i32, %c0_i32_0 : i32, i32
  }
}

</mosaic_0001>

<llo_original>
// kernel: discriminator1_forward.5
$region0: #{discriminator1_forward.5}
  #allocation0 [shape = 'u32[]', space=smem, size = 0x4, offset = 0x4, fixed_abs, tag = 'smem constant byte address 0x4 - core index']
  #allocation1 [shape = 'u32[144,128]{1,0:T(1,128)}', space=vmem, size = 0x12000, scoped, tag = 'internal scratch']
  %s0 = inlined_call_operand.vmem [shape: bf16[2048,128], index: 0, kind: input, shape index: {}]
  %s1 = inlined_call_operand.vmem [shape: bf16[128,128], index: 1, kind: input, shape index: {}]
  %s2 = inlined_call_operand.vmem [shape: bf16[2048,128], index: 2, kind: output, shape index: {}]
  %s3 = sld [smem:[#allocation0]]
  $region41: #{discriminator1_forward.5} parent=0
    _
  %s5 = ssub.s32 1, %s3
  %s6 = scalar_select 0, %s5, %s3
  loop: start=0, step=1, limit=4
  $region2: #{discriminator1_forward.5} parent=0 // loop_pre_header
    _
  $region3: #{discriminator1_forward.5} parent=0 // loop_header
    %s8 = sphi 0, %s12
    %p9 = scmp.ge.s32.totalorder %s8, 4
    %s18 = sphi 0, %s20
    %s21 = sphi 0, %s18
    %s22 = sphi 0, %s21
    %s38 = sphi 0, %s22
    %s42 = sphi 0, %s42
    %s44 = sphi 0, %s42
    %s45 = sphi 0, %s44
    %s59 = sphi 0, %s45
    %s65 = sphi 0, %s67
    %s68 = sphi 0, %s65
    %s69 = sphi 0, %s68
    %s85 = sphi 0, %s69
  $region4: #{discriminator1_forward.5} parent=0 // loop_header_branch
    %11 = sbr.rel (%p9) target = $region8
  $region5: #{discriminator1_forward.5} parent=0 // loop_body
    %s13 = ssub.s32 %s8, 1
    %s14 = ssub.s32 %s8, 2
    %s15 = sadd.s32 %s8, 1
    %s16 = ssub.s32 %s8, %s15
    %p17 = scmp.eq.s32.totalorder %s16, 0
    %s19 = sadd.s32 %s18, 1
    %s20 = scalar_select %p17, %s18, %s19
    %p23 = pneg %p17
    %p24 = scmp.eq.s32.totalorder %s8, 1
    %p25 = por %p23, %p24
    %p26 = scmp.ne.s32.totalorder %s18, %s21
    %p27 = scmp.eq.s32.totalorder %s8, 0
    %p28 = por %p26, %p27
    %p29 = scmp.ne.s32.totalorder %s18, %s21
    %p30 = scmp.eq.s32.totalorder %s13, 1
    %p31 = por %p29, %p30
    %p32 = scmp.ne.s32.totalorder %s21, %s22
    %p33 = scmp.eq.s32.totalorder %s13, 0
    %p34 = por %p32, %p33
    %p35 = scmp.ne.s32.totalorder %s21, %s22
    %p36 = scmp.eq.s32.totalorder %s14, 1
    %p37 = por %p35, %p36
    %p39 = scmp.ne.s32.totalorder %s22, %s38
    %p40 = scmp.eq.s32.totalorder %s14, 0
    %p41 = por %p39, %p40
    %s43 = sadd.s32 %s42, 1
    %p46 = scmp.eq.s32.totalorder %s8, 1
    %p47 = scmp.ne.s32.totalorder %s42, %s44
    %p48 = scmp.eq.s32.totalorder %s8, 0
    %p49 = por %p47, %p48
    %p50 = scmp.ne.s32.totalorder %s42, %s44
    %p51 = scmp.eq.s32.totalorder %s13, 1
    %p52 = por %p50, %p51
    %p53 = scmp.ne.s32.totalorder %s44, %s45
    %p54 = scmp.eq.s32.totalorder %s13, 0
    %p55 = por %p53, %p54
    %p56 = scmp.ne.s32.totalorder %s44, %s45
    %p57 = scmp.eq.s32.totalorder %s14, 1
    %p58 = por %p56, %p57
    %p60 = scmp.ne.s32.totalorder %s45, %s59
    %p61 = scmp.eq.s32.totalorder %s14, 0
    %p62 = por %p60, %p61
    %s63 = ssub.s32 %s8, %s15
    %p64 = scmp.eq.s32.totalorder %s63, 0
    %s66 = sadd.s32 %s65, 1
    %s67 = scalar_select %p64, %s65, %s66
    %p70 = pneg %p64
    %p71 = scmp.eq.s32.totalorder %s8, 1
    %p72 = por %p70, %p71
    %p73 = scmp.ne.s32.totalorder %s65, %s68
    %p74 = scmp.eq.s32.totalorder %s8, 0
    %p75 = por %p73, %p74
    %p76 = scmp.ne.s32.totalorder %s65, %s68
    %p77 = scmp.eq.s32.totalorder %s13, 1
    %p78 = por %p76, %p77
    %p79 = scmp.ne.s32.totalorder %s68, %s69
    %p80 = scmp.eq.s32.totalorder %s13, 0
    %p81 = por %p79, %p80
    %p82 = scmp.ne.s32.totalorder %s68, %s69
    %p83 = scmp.eq.s32.totalorder %s14, 1
    %p84 = por %p82, %p83
    %p86 = scmp.ne.s32.totalorder %s69, %s85
    %p87 = scmp.eq.s32.totalorder %s14, 0
    %p88 = por %p86, %p87
    %p89 = scmp.le.s32.totalorder 1, %s8
    %p90 = scmp.lt.s32.totalorder %s8, 3
    %p91 = pnand %p89, %p90
    %p92 = pneg %p91
    // Predicated region
    $region9: #{discriminator1_forward.5} parent=5 // pred_check
      _
    $region10: #{discriminator1_forward.5} parent=5 // pred_check_branch
      %94 = sbr.rel (%p91) target = $region12
    $region11: #{discriminator1_forward.5} parent=5 // pred_region
      %s95 = ssub.s32 %s8, 1
      // Predicated region
      $region13: #{discriminator1_forward.5} parent=11 // pred_check
        %p96 = pneg %p55
      $region14: #{discriminator1_forward.5} parent=11 // pred_check_branch
        %98 = sbr.rel (%p96) target = $region16
      $region15: #{discriminator1_forward.5} parent=11 // pred_region
        _
      $region16: #{discriminator1_forward.5} parent=11 // pred_fallthru
        _
    $region12: #{discriminator1_forward.5} parent=5 // pred_fallthru
      _
    %p99 = scmp.lt.s32.totalorder %s8, 2
    // Predicated region
    $region17: #{discriminator1_forward.5} parent=5 // pred_check
      %p100 = pneg %p99
    $region18: #{discriminator1_forward.5} parent=5 // pred_check_branch
      %102 = sbr.rel (%p100) target = $region20
    $region19: #{discriminator1_forward.5} parent=5 // pred_region
      // Predicated region
      $region21: #{discriminator1_forward.5} parent=19 // pred_check
        %p103 = pneg %p28
      $region22: #{discriminator1_forward.5} parent=19 // pred_check_branch
        %105 = sbr.rel (%p103) target = $region24
      $region23: #{discriminator1_forward.5} parent=19 // pred_region
        %s106 = smul.u32 128, %s8
        %p107 = scmp.lt.s32.totalorder %s106, 255
        %s108 = scalar_select %p107, %s106, 255
        %s109 = smul.addr %s108, 4
        %s110 = scalar_lea.vmem %s0, %s109
        %s111 = smul.u32 128, %s8
      $region24: #{discriminator1_forward.5} parent=19 // pred_fallthru
        _
    $region20: #{discriminator1_forward.5} parent=5 // pred_fallthru
      _
    %p112 = scmp.le.s32.totalorder 1, %s8
    %p113 = scmp.lt.s32.totalorder %s8, 3
    %p114 = pnand %p112, %p113
    %p115 = pneg %p114
    // Predicated region
    $region25: #{discriminator1_forward.5} parent=5 // pred_check
      _
    $region26: #{discriminator1_forward.5} parent=5 // pred_check_branch
      %117 = sbr.rel (%p114) target = $region28
    $region27: #{discriminator1_forward.5} parent=5 // pred_region
      %s118 = ssub.s32 %s8, 1
      %s119 = smul.u32 128, %s13
      %p120 = scmp.lt.s32.totalorder %s119, 255
      %s121 = scalar_select %p120, %s119, 255
      %s122 = smul.addr %s121, 4
      %s123 = scalar_lea.vmem %s0, %s122
      %p124 = pneg %p34
      %p125 = pneg %p31
      %p126 = pneg %p55
      %p127 = pneg %p52
      %p128 = pneg %p81
      %p129 = pneg %p78
      %s130 = smul.u32 128, %s13
      %p131 = scmp.lt.s32.totalorder %s130, 255
      %s132 = scalar_select %p131, %s130, 255
      %s133 = smul.addr %s132, 4
      %s134 = scalar_lea.vmem %s2, %s133
      %s135 = smul.u32 128, %s13
      %p136 = scmp.lt.s32.totalorder %s135, 255
      %s137 = scalar_select %p136, %s135, 255
      %s138 = smul.addr %s137, 4
      %s139 = scalar_lea.vmem %s0, %s138
      %s140 = smul.u32 128, %s13
      %s141 = smul.u32 128, %s13
      %p142 = scmp.lt.s32.totalorder %s141, 255
      %s143 = scalar_select %p142, %s141, 255
      %s144 = smul.addr %s143, 4
      %s145 = scalar_lea.vmem %s2, %s144
      %s146 = smul.u32 128, %s13
      %v148 = vld [vmem:[%s139] sm:$0xf]
      %v149 = vld [vmem:[%s139 + $0x4] sm:$0xf]
      %v150 = vld [vmem:[%s139 + $0x8] sm:$0xf]
      %v151 = vld [vmem:[%s139 + $0xc] sm:$0xf]
      %v152 = vld [vmem:[%s139 + $0x10] sm:$0xf]
      %v153 = vld [vmem:[%s139 + $0x14] sm:$0xf]
      %v154 = vld [vmem:[%s139 + $0x18] sm:$0xf]
      %v155 = vld [vmem:[%s139 + $0x1c] sm:$0xf]
      %v156 = vld [vmem:[%s139 + $0x20] sm:$0xf]
      %v157 = vld [vmem:[%s139 + $0x24] sm:$0xf]
      %v158 = vld [vmem:[%s139 + $0x28] sm:$0xf]
      %v159 = vld [vmem:[%s139 + $0x2c] sm:$0xf]
      %v160 = vld [vmem:[%s139 + $0x30] sm:$0xf]
      %v161 = vld [vmem:[%s139 + $0x34] sm:$0xf]
      %v162 = vld [vmem:[%s139 + $0x38] sm:$0xf]
      %v163 = vld [vmem:[%s139 + $0x3c] sm:$0xf]
      %v164 = vld [vmem:[%s139 + $0x40] sm:$0xf]
      %v165 = vld [vmem:[%s139 + $0x44] sm:$0xf]
      %v166 = vld [vmem:[%s139 + $0x48] sm:$0xf]
      %v167 = vld [vmem:[%s139 + $0x4c] sm:$0xf]
      %v168 = vld [vmem:[%s139 + $0x50] sm:$0xf]
      %v169 = vld [vmem:[%s139 + $0x54] sm:$0xf]
      %v170 = vld [vmem:[%s139 + $0x58] sm:$0xf]
      %v171 = vld [vmem:[%s139 + $0x5c] sm:$0xf]
      %v172 = vld [vmem:[%s139 + $0x60] sm:$0xf]
      %v173 = vld [vmem:[%s139 + $0x64] sm:$0xf]
      %v174 = vld [vmem:[%s139 + $0x68] sm:$0xf]
      %v175 = vld [vmem:[%s139 + $0x6c] sm:$0xf]
      %v176 = vld [vmem:[%s139 + $0x70] sm:$0xf]
      %v177 = vld [vmem:[%s139 + $0x74] sm:$0xf]
      %v178 = vld [vmem:[%s139 + $0x78] sm:$0xf]
      %v179 = vld [vmem:[%s139 + $0x7c] sm:$0xf]
      %v180 = vld [vmem:[%s139 + $0x80] sm:$0xf]
      %v181 = vld [vmem:[%s139 + $0x84] sm:$0xf]
      %v182 = vld [vmem:[%s139 + $0x88] sm:$0xf]
      %v183 = vld [vmem:[%s139 + $0x8c] sm:$0xf]
      %v184 = vld [vmem:[%s139 + $0x90] sm:$0xf]
      %v185 = vld [vmem:[%s139 + $0x94] sm:$0xf]
      %v186 = vld [vmem:[%s139 + $0x98] sm:$0xf]
      %v187 = vld [vmem:[%s139 + $0x9c] sm:$0xf]
      %v188 = vld [vmem:[%s139 + $0xa0] sm:$0xf]
      %v189 = vld [vmem:[%s139 + $0xa4] sm:$0xf]
      %v190 = vld [vmem:[%s139 + $0xa8] sm:$0xf]
      %v191 = vld [vmem:[%s139 + $0xac] sm:$0xf]
      %v192 = vld [vmem:[%s139 + $0xb0] sm:$0xf]
      %v193 = vld [vmem:[%s139 + $0xb4] sm:$0xf]
      %v194 = vld [vmem:[%s139 + $0xb8] sm:$0xf]
      %v195 = vld [vmem:[%s139 + $0xbc] sm:$0xf]
      %v196 = vld [vmem:[%s139 + $0xc0] sm:$0xf]
      %v197 = vld [vmem:[%s139 + $0xc4] sm:$0xf]
      %v198 = vld [vmem:[%s139 + $0xc8] sm:$0xf]
      %v199 = vld [vmem:[%s139 + $0xcc] sm:$0xf]
      %v200 = vld [vmem:[%s139 + $0xd0] sm:$0xf]
      %v201 = vld [vmem:[%s139 + $0xd4] sm:$0xf]
      %v202 = vld [vmem:[%s139 + $0xd8] sm:$0xf]
      %v203 = vld [vmem:[%s139 + $0xdc] sm:$0xf]
      %v204 = vld [vmem:[%s139 + $0xe0] sm:$0xf]
      %v205 = vld [vmem:[%s139 + $0xe4] sm:$0xf]
      %v206 = vld [vmem:[%s139 + $0xe8] sm:$0xf]
      %v207 = vld [vmem:[%s139 + $0xec] sm:$0xf]
      %v208 = vld [vmem:[%s139 + $0xf0] sm:$0xf]
      %v209 = vld [vmem:[%s139 + $0xf4] sm:$0xf]
      %v210 = vld [vmem:[%s139 + $0xf8] sm:$0xf]
      %v211 = vld [vmem:[%s139 + $0xfc] sm:$0xf]
      %v212 = vld [vmem:[%s139 + $0x100] sm:$0xf]
      %v213 = vld [vmem:[%s139 + $0x104] sm:$0xf]
      %v214 = vld [vmem:[%s139 + $0x108] sm:$0xf]
      %v215 = vld [vmem:[%s139 + $0x10c] sm:$0xf]
      %v216 = vld [vmem:[%s139 + $0x110] sm:$0xf]
      %v217 = vld [vmem:[%s139 + $0x114] sm:$0xf]
      %v218 = vld [vmem:[%s139 + $0x118] sm:$0xf]
      %v219 = vld [vmem:[%s139 + $0x11c] sm:$0xf]
      %v220 = vld [vmem:[%s139 + $0x120] sm:$0xf]
      %v221 = vld [vmem:[%s139 + $0x124] sm:$0xf]
      %v222 = vld [vmem:[%s139 + $0x128] sm:$0xf]
      %v223 = vld [vmem:[%s139 + $0x12c] sm:$0xf]
      %v224 = vld [vmem:[%s139 + $0x130] sm:$0xf]
      %v225 = vld [vmem:[%s139 + $0x134] sm:$0xf]
      %v226 = vld [vmem:[%s139 + $0x138] sm:$0xf]
      %v227 = vld [vmem:[%s139 + $0x13c] sm:$0xf]
      %v228 = vld [vmem:[%s139 + $0x140] sm:$0xf]
      %v229 = vld [vmem:[%s139 + $0x144] sm:$0xf]
      %v230 = vld [vmem:[%s139 + $0x148] sm:$0xf]
      %v231 = vld [vmem:[%s139 + $0x14c] sm:$0xf]
      %v232 = vld [vmem:[%s139 + $0x150] sm:$0xf]
      %v233 = vld [vmem:[%s139 + $0x154] sm:$0xf]
      %v234 = vld [vmem:[%s139 + $0x158] sm:$0xf]
      %v235 = vld [vmem:[%s139 + $0x15c] sm:$0xf]
      %v236 = vld [vmem:[%s139 + $0x160] sm:$0xf]
      %v237 = vld [vmem:[%s139 + $0x164] sm:$0xf]
      %v238 = vld [vmem:[%s139 + $0x168] sm:$0xf]
      %v239 = vld [vmem:[%s139 + $0x16c] sm:$0xf]
      %v240 = vld [vmem:[%s139 + $0x170] sm:$0xf]
      %v241 = vld [vmem:[%s139 + $0x174] sm:$0xf]
      %v242 = vld [vmem:[%s139 + $0x178] sm:$0xf]
      %v243 = vld [vmem:[%s139 + $0x17c] sm:$0xf]
      %v244 = vld [vmem:[%s139 + $0x180] sm:$0xf]
      %v245 = vld [vmem:[%s139 + $0x184] sm:$0xf]
      %v246 = vld [vmem:[%s139 + $0x188] sm:$0xf]
      %v247 = vld [vmem:[%s139 + $0x18c] sm:$0xf]
      %v248 = vld [vmem:[%s139 + $0x190] sm:$0xf]
      %v249 = vld [vmem:[%s139 + $0x194] sm:$0xf]
      %v250 = vld [vmem:[%s139 + $0x198] sm:$0xf]
      %v251 = vld [vmem:[%s139 + $0x19c] sm:$0xf]
      %v252 = vld [vmem:[%s139 + $0x1a0] sm:$0xf]
      %v253 = vld [vmem:[%s139 + $0x1a4] sm:$0xf]
      %v254 = vld [vmem:[%s139 + $0x1a8] sm:$0xf]
      %v255 = vld [vmem:[%s139 + $0x1ac] sm:$0xf]
      %v256 = vld [vmem:[%s139 + $0x1b0] sm:$0xf]
      %v257 = vld [vmem:[%s139 + $0x1b4] sm:$0xf]
      %v258 = vld [vmem:[%s139 + $0x1b8] sm:$0xf]
      %v259 = vld [vmem:[%s139 + $0x1bc] sm:$0xf]
      %v260 = vld [vmem:[%s139 + $0x1c0] sm:$0xf]
      %v261 = vld [vmem:[%s139 + $0x1c4] sm:$0xf]
      %v262 = vld [vmem:[%s139 + $0x1c8] sm:$0xf]
      %v263 = vld [vmem:[%s139 + $0x1cc] sm:$0xf]
      %v264 = vld [vmem:[%s139 + $0x1d0] sm:$0xf]
      %v265 = vld [vmem:[%s139 + $0x1d4] sm:$0xf]
      %v266 = vld [vmem:[%s139 + $0x1d8] sm:$0xf]
      %v267 = vld [vmem:[%s139 + $0x1dc] sm:$0xf]
      %v268 = vld [vmem:[%s139 + $0x1e0] sm:$0xf]
      %v269 = vld [vmem:[%s139 + $0x1e4] sm:$0xf]
      %v270 = vld [vmem:[%s139 + $0x1e8] sm:$0xf]
      %v271 = vld [vmem:[%s139 + $0x1ec] sm:$0xf]
      %v272 = vld [vmem:[%s139 + $0x1f0] sm:$0xf]
      %v273 = vld [vmem:[%s139 + $0x1f4] sm:$0xf]
      %v274 = vld [vmem:[%s139 + $0x1f8] sm:$0xf]
      %v275 = vld [vmem:[%s139 + $0x1fc] sm:$0xf]
      %v276 = vld [vmem:[%s1] sm:$0xf]
      %v277 = vld [vmem:[%s1 + $0x4] sm:$0xf]
      %v278 = vld [vmem:[%s1 + $0x8] sm:$0xf]
      %v279 = vld [vmem:[%s1 + $0xc] sm:$0xf]
      %v280 = vld [vmem:[%s1 + $0x10] sm:$0xf]
      %v281 = vld [vmem:[%s1 + $0x14] sm:$0xf]
      %v282 = vld [vmem:[%s1 + $0x18] sm:$0xf]
      %v283 = vld [vmem:[%s1 + $0x1c] sm:$0xf]
      %v284 = vld [vmem:[%s1 + $0x20] sm:$0xf]
      %v285 = vld [vmem:[%s1 + $0x24] sm:$0xf]
      %v286 = vld [vmem:[%s1 + $0x28] sm:$0xf]
      %v287 = vld [vmem:[%s1 + $0x2c] sm:$0xf]
      %v288 = vld [vmem:[%s1 + $0x30] sm:$0xf]
      %v289 = vld [vmem:[%s1 + $0x34] sm:$0xf]
      %v290 = vld [vmem:[%s1 + $0x38] sm:$0xf]
      %v291 = vld [vmem:[%s1 + $0x3c] sm:$0xf]
      %v420 = vunpack.c.l.b16 %v148
      %v421 = vunpack.c.l.b16 %v149
      %v422 = vunpack.c.l.b16 %v150
      %v423 = vunpack.c.l.b16 %v151
      %v424 = vunpack.c.l.b16 %v152
      %v425 = vunpack.c.l.b16 %v153
      %v426 = vunpack.c.l.b16 %v154
      %v427 = vunpack.c.l.b16 %v155
      %v428 = vunpack.c.l.b16 %v156
      %v429 = vunpack.c.l.b16 %v157
      %v430 = vunpack.c.l.b16 %v158
      %v431 = vunpack.c.l.b16 %v159
      %v432 = vunpack.c.l.b16 %v160
      %v433 = vunpack.c.l.b16 %v161
      %v434 = vunpack.c.l.b16 %v162
      %v435 = vunpack.c.l.b16 %v163
      %v436 = vunpack.c.l.b16 %v164
      %v437 = vunpack.c.l.b16 %v165
      %v438 = vunpack.c.l.b16 %v166
      %v439 = vunpack.c.l.b16 %v167
      %v440 = vunpack.c.l.b16 %v168
      %v441 = vunpack.c.l.b16 %v169
      %v442 = vunpack.c.l.b16 %v170
      %v443 = vunpack.c.l.b16 %v171
      %v444 = vunpack.c.l.b16 %v172
      %v445 = vunpack.c.l.b16 %v173
      %v446 = vunpack.c.l.b16 %v174
      %v447 = vunpack.c.l.b16 %v175
      %v448 = vunpack.c.l.b16 %v176
      %v449 = vunpack.c.l.b16 %v177
      %v450 = vunpack.c.l.b16 %v178
      %v451 = vunpack.c.l.b16 %v179
      %v452 = vunpack.c.l.b16 %v180
      %v453 = vunpack.c.l.b16 %v181
      %v454 = vunpack.c.l.b16 %v182
      %v455 = vunpack.c.l.b16 %v183
      %v456 = vunpack.c.l.b16 %v184
      %v457 = vunpack.c.l.b16 %v185
      %v458 = vunpack.c.l.b16 %v186
      %v459 = vunpack.c.l.b16 %v187
      %v460 = vunpack.c.l.b16 %v188
      %v461 = vunpack.c.l.b16 %v189
      %v462 = vunpack.c.l.b16 %v190
      %v463 = vunpack.c.l.b16 %v191
      %v464 = vunpack.c.l.b16 %v192
      %v465 = vunpack.c.l.b16 %v193
      %v466 = vunpack.c.l.b16 %v194
      %v467 = vunpack.c.l.b16 %v195
      %v468 = vunpack.c.l.b16 %v196
      %v469 = vunpack.c.l.b16 %v197
      %v470 = vunpack.c.l.b16 %v198
      %v471 = vunpack.c.l.b16 %v199
      %v472 = vunpack.c.l.b16 %v200
      %v473 = vunpack.c.l.b16 %v201
      %v474 = vunpack.c.l.b16 %v202
      %v475 = vunpack.c.l.b16 %v203
      %v476 = vunpack.c.l.b16 %v204
      %v477 = vunpack.c.l.b16 %v205
      %v478 = vunpack.c.l.b16 %v206
      %v479 = vunpack.c.l.b16 %v207
      %v480 = vunpack.c.l.b16 %v208
      %v481 = vunpack.c.l.b16 %v209
      %v482 = vunpack.c.l.b16 %v210
      %v483 = vunpack.c.l.b16 %v211
      %v484 = vunpack.c.l.b16 %v212
      %v485 = vunpack.c.l.b16 %v213
      %v486 = vunpack.c.l.b16 %v214
      %v487 = vunpack.c.l.b16 %v215
      %v488 = vunpack.c.l.b16 %v216
      %v489 = vunpack.c.l.b16 %v217
      %v490 = vunpack.c.l.b16 %v218
      %v491 = vunpack.c.l.b16 %v219
      %v492 = vunpack.c.l.b16 %v220
      %v493 = vunpack.c.l.b16 %v221
      %v494 = vunpack.c.l.b16 %v222
      %v495 = vunpack.c.l.b16 %v223
      %v496 = vunpack.c.l.b16 %v224
      %v497 = vunpack.c.l.b16 %v225
      %v498 = vunpack.c.l.b16 %v226
      %v499 = vunpack.c.l.b16 %v227
      %v500 = vunpack.c.l.b16 %v228
      %v501 = vunpack.c.l.b16 %v229
      %v502 = vunpack.c.l.b16 %v230
      %v503 = vunpack.c.l.b16 %v231
      %v504 = vunpack.c.l.b16 %v232
      %v505 = vunpack.c.l.b16 %v233
      %v506 = vunpack.c.l.b16 %v234
      %v507 = vunpack.c.l.b16 %v235
      %v508 = vunpack.c.l.b16 %v236
      %v509 = vunpack.c.l.b16 %v237
      %v510 = vunpack.c.l.b16 %v238
      %v511 = vunpack.c.l.b16 %v239
      %v512 = vunpack.c.l.b16 %v240
      %v513 = vunpack.c.l.b16 %v241
      %v514 = vunpack.c.l.b16 %v242
      %v515 = vunpack.c.l.b16 %v243
      %v516 = vunpack.c.l.b16 %v244
      %v517 = vunpack.c.l.b16 %v245
      %v518 = vunpack.c.l.b16 %v246
      %v519 = vunpack.c.l.b16 %v247
      %v520 = vunpack.c.l.b16 %v248
      %v521 = vunpack.c.l.b16 %v249
      %v522 = vunpack.c.l.b16 %v250
      %v523 = vunpack.c.l.b16 %v251
      %v524 = vunpack.c.l.b16 %v252
      %v525 = vunpack.c.l.b16 %v253
      %v526 = vunpack.c.l.b16 %v254
      %v527 = vunpack.c.l.b16 %v255
      %v528 = vunpack.c.l.b16 %v256
      %v529 = vunpack.c.l.b16 %v257
      %v530 = vunpack.c.l.b16 %v258
      %v531 = vunpack.c.l.b16 %v259
      %v532 = vunpack.c.l.b16 %v260
      %v533 = vunpack.c.l.b16 %v261
      %v534 = vunpack.c.l.b16 %v262
      %v535 = vunpack.c.l.b16 %v263
      %v536 = vunpack.c.l.b16 %v264
      %v537 = vunpack.c.l.b16 %v265
      %v538 = vunpack.c.l.b16 %v266
      %v539 = vunpack.c.l.b16 %v267
      %v540 = vunpack.c.l.b16 %v268
      %v541 = vunpack.c.l.b16 %v269
      %v542 = vunpack.c.l.b16 %v270
      %v543 = vunpack.c.l.b16 %v271
      %v544 = vunpack.c.l.b16 %v272
      %v545 = vunpack.c.l.b16 %v273
      %v546 = vunpack.c.l.b16 %v274
      %v547 = vunpack.c.l.b16 %v275
      %v548 = vpack.c.b16 %v421, %v420
      %v549 = vpack.c.b16 %v423, %v422
      %v550 = vpack.c.b16 %v425, %v424
      %v551 = vpack.c.b16 %v427, %v426
      %v552 = vpack.c.b16 %v429, %v428
      %v553 = vpack.c.b16 %v431, %v430
      %v554 = vpack.c.b16 %v433, %v432
      %v555 = vpack.c.b16 %v435, %v434
      %v556 = vpack.c.b16 %v437, %v436
      %v557 = vpack.c.b16 %v439, %v438
      %v558 = vpack.c.b16 %v441, %v440
      %v559 = vpack.c.b16 %v443, %v442
      %v560 = vpack.c.b16 %v445, %v444
      %v561 = vpack.c.b16 %v447, %v446
      %v562 = vpack.c.b16 %v449, %v448
      %v563 = vpack.c.b16 %v451, %v450
      %v564 = vpack.c.b16 %v453, %v452
      %v565 = vpack.c.b16 %v455, %v454
      %v566 = vpack.c.b16 %v457, %v456
      %v567 = vpack.c.b16 %v459, %v458
      %v568 = vpack.c.b16 %v461, %v460
      %v569 = vpack.c.b16 %v463, %v462
      %v570 = vpack.c.b16 %v465, %v464
      %v571 = vpack.c.b16 %v467, %v466
      %v572 = vpack.c.b16 %v469, %v468
      %v573 = vpack.c.b16 %v471, %v470
      %v574 = vpack.c.b16 %v473, %v472
      %v575 = vpack.c.b16 %v475, %v474
      %v576 = vpack.c.b16 %v477, %v476
      %v577 = vpack.c.b16 %v479, %v478
      %v578 = vpack.c.b16 %v481, %v480
      %v579 = vpack.c.b16 %v483, %v482
      %v580 = vpack.c.b16 %v485, %v484
      %v581 = vpack.c.b16 %v487, %v486
      %v582 = vpack.c.b16 %v489, %v488
      %v583 = vpack.c.b16 %v491, %v490
      %v584 = vpack.c.b16 %v493, %v492
      %v585 = vpack.c.b16 %v495, %v494
      %v586 = vpack.c.b16 %v497, %v496
      %v587 = vpack.c.b16 %v499, %v498
      %v588 = vpack.c.b16 %v501, %v500
      %v589 = vpack.c.b16 %v503, %v502
      %v590 = vpack.c.b16 %v505, %v504
      %v591 = vpack.c.b16 %v507, %v506
      %v592 = vpack.c.b16 %v509, %v508
      %v593 = vpack.c.b16 %v511, %v510
      %v594 = vpack.c.b16 %v513, %v512
      %v595 = vpack.c.b16 %v515, %v514
      %v596 = vpack.c.b16 %v517, %v516
      %v597 = vpack.c.b16 %v519, %v518
      %v598 = vpack.c.b16 %v521, %v520
      %v599 = vpack.c.b16 %v523, %v522
      %v600 = vpack.c.b16 %v525, %v524
      %v601 = vpack.c.b16 %v527, %v526
      %v602 = vpack.c.b16 %v529, %v528
      %v603 = vpack.c.b16 %v531, %v530
      %v604 = vpack.c.b16 %v533, %v532
      %v605 = vpack.c.b16 %v535, %v534
      %v606 = vpack.c.b16 %v537, %v536
      %v607 = vpack.c.b16 %v539, %v538
      %v608 = vpack.c.b16 %v541, %v540
      %v609 = vpack.c.b16 %v543, %v542
      %v610 = vpack.c.b16 %v545, %v544
      %v611 = vpack.c.b16 %v547, %v546
      %v692 = vunpack.c.l.b16 %v276
      %v693 = vunpack.c.l.b16 %v277
      %v694 = vunpack.c.l.b16 %v278
      %v695 = vunpack.c.l.b16 %v279
      %v696 = vunpack.c.l.b16 %v280
      %v697 = vunpack.c.l.b16 %v281
      %v698 = vunpack.c.l.b16 %v282
      %v699 = vunpack.c.l.b16 %v283
      %v700 = vunpack.c.l.b16 %v284
      %v701 = vunpack.c.l.b16 %v285
      %v702 = vunpack.c.l.b16 %v286
      %v703 = vunpack.c.l.b16 %v287
      %v704 = vunpack.c.l.b16 %v288
      %v705 = vunpack.c.l.b16 %v289
      %v706 = vunpack.c.l.b16 %v290
      %v707 = vunpack.c.l.b16 %v291
      %v708 = vpack.c.b16 %v693, %v692
      %v709 = vpack.c.b16 %v695, %v694
      %v710 = vpack.c.b16 %v697, %v696
      %v711 = vpack.c.b16 %v699, %v698
      %v712 = vpack.c.b16 %v701, %v700
      %v713 = vpack.c.b16 %v703, %v702
      %v714 = vpack.c.b16 %v705, %v704
      %v715 = vpack.c.b16 %v707, %v706
      %724 = vmatprep.subr.bf16.mxu0 0
      %725 = vmatpush1.bf16.msra.mxu0 %v708
      %726 = vmatprep.subr.bf16.mxu0 0
      %727 = vmatpush1.bf16.msra.mxu0 %v709
      %728 = vmatprep.subr.bf16.mxu0 0
      %729 = vmatpush1.bf16.msra.mxu0 %v710
      %730 = vmatprep.subr.bf16.mxu0 0
      %731 = vmatpush1.bf16.msra.mxu0 %v711
      %732 = vmatprep.subr.bf16.mxu0 0
      %733 = vmatpush1.bf16.msra.mxu0 %v712
      %734 = vmatprep.subr.bf16.mxu0 0
      %735 = vmatpush1.bf16.msra.mxu0 %v713
      %736 = vmatprep.subr.bf16.mxu0 0
      %737 = vmatpush1.bf16.msra.mxu0 %v714
      %738 = vmatprep.subr.bf16.mxu0 0
      %739 = vmatpush1.bf16.msra.mxu0 %v715
      %740 = vmatprep.subr.bf16.mxu0 0
      %741 = vmatpush1.bf16.msra.mxu0 0
      %742 = vmatprep.subr.bf16.mxu0 0
      %743 = vmatpush1.bf16.msra.mxu0 0
      %744 = vmatprep.subr.bf16.mxu0 0
      %745 = vmatpush1.bf16.msra.mxu0 0
      %746 = vmatprep.subr.bf16.mxu0 0
      %747 = vmatpush1.bf16.msra.mxu0 0
      %748 = vmatprep.subr.bf16.mxu0 0
      %749 = vmatpush1.bf16.msra.mxu0 0
      %750 = vmatprep.subr.bf16.mxu0 0
      %751 = vmatpush1.bf16.msra.mxu0 0
      %752 = vmatprep.subr.bf16.mxu0 0
      %753 = vmatpush1.bf16.msra.mxu0 0
      %754 = vmatprep.subr.bf16.mxu0 0
      %755 = vmatpush1.bf16.msra.mxu0 0
      %756 = vmatprep.mubr.bf16.mxu0 0
      %757 = vmatmul.mubr.bf16.gmra.mrb[0].mxu0 %v548
      %v758 = vpop.f32.mrb[0].mxu0
      %v759 = vadd.f32 0.0, %v758
      %v760 = vpop.f32.mrb[0].mxu0
      %v761 = vpop.f32.mrb[0].mxu0
      %v762 = vadd.f32 0.0, %v761
      %v763 = vpop.f32.mrb[0].mxu0
      %764 = vmatprep.mubr.bf16.mxu0 0
      %765 = vmatmul.mubr.bf16.gmra.mrb[0].mxu0 %v549
      %v766 = vpop.f32.mrb[0].mxu0
      %v767 = vadd.f32 0.0, %v766
      %v768 = vpop.f32.mrb[0].mxu0
      %v769 = vpop.f32.mrb[0].mxu0
      %v770 = vadd.f32 0.0, %v769
      %v771 = vpop.f32.mrb[0].mxu0
      %772 = vmatprep.mubr.bf16.mxu0 0
      %773 = vmatmul.mubr.bf16.gmra.mrb[0].mxu0 %v550
      %v774 = vpop.f32.mrb[0].mxu0
      %v775 = vadd.f32 0.0, %v774
      %v776 = vpop.f32.mrb[0].mxu0
      %v777 = vpop.f32.mrb[0].mxu0
      %v778 = vadd.f32 0.0, %v777
      %v779 = vpop.f32.mrb[0].mxu0
      %780 = vmatprep.mubr.bf16.mxu0 0
      %781 = vmatmul.mubr.bf16.gmra.mrb[0].mxu0 %v551
      %v782 = vpop.f32.mrb[0].mxu0
      %v783 = vadd.f32 0.0, %v782
      %v784 = vpop.f32.mrb[0].mxu0
      %v785 = vpop.f32.mrb[0].mxu0
      %v786 = vadd.f32 0.0, %v785
      %v787 = vpop.f32.mrb[0].mxu0
      %788 = vmatprep.mubr.bf16.mxu0 0
      %789 = vmatmul.mubr.bf16.gmra.mrb[0].mxu0 %v552
      %v790 = vpop.f32.mrb[0].mxu0
      %v791 = vadd.f32 0.0, %v790
      %v792 = vpop.f32.mrb[0].mxu0
      %v793 = vpop.f32.mrb[0].mxu0
      %v794 = vadd.f32 0.0, %v793
      %v795 = vpop.f32.mrb[0].mxu0
      %796 = vmatprep.mubr.bf16.mxu0 0
      %797 = vmatmul.mubr.bf16.gmra.mrb[0].mxu0 %v553
      %v798 = vpop.f32.mrb[0].mxu0
      %v799 = vadd.f32 0.0, %v798
      %v800 = vpop.f32.mrb[0].mxu0
      %v801 = vpop.f32.mrb[0].mxu0
      %v802 = vadd.f32 0.0, %v801
      %v803 = vpop.f32.mrb[0].mxu0
      %804 = vmatprep.mubr.bf16.mxu0 0
      %805 = vmatmul.mubr.bf16.gmra.mrb[0].mxu0 %v554
      %v806 = vpop.f32.mrb[0].mxu0
      %v807 = vadd.f32 0.0, %v806
      %v808 = vpop.f32.mrb[0].mxu0
      %v809 = vpop.f32.mrb[0].mxu0
      %v810 = vadd.f32 0.0, %v809
      %v811 = vpop.f32.mrb[0].mxu0
      %812 = vmatprep.mubr.bf16.mxu0 0
      %813 = vmatmul.mubr.bf16.gmra.mrb[0].mxu0 %v555
      %v814 = vpop.f32.mrb[0].mxu0
      %v815 = vadd.f32 0.0, %v814
      %v816 = vpop.f32.mrb[0].mxu0
      %v817 = vpop.f32.mrb[0].mxu0
      %v818 = vadd.f32 0.0, %v817
      %v819 = vpop.f32.mrb[0].mxu0
      %820 = vmatprep.mubr.bf16.mxu0 0
      %821 = vmatmul.mubr.bf16.gmra.mrb[0].mxu0 %v556
      %v822 = vpop.f32.mrb[0].mxu0
      %v823 = vadd.f32 0.0, %v822
      %v824 = vpop.f32.mrb[0].mxu0
      %v825 = vpop.f32.mrb[0].mxu0
      %v826 = vadd.f32 0.0, %v825
      %v827 = vpop.f32.mrb[0].mxu0
      %828 = vmatprep.mubr.bf16.mxu0 0
      %829 = vmatmul.mubr.bf16.gmra.mrb[0].mxu0 %v557
      %v830 = vpop.f32.mrb[0].mxu0
      %v831 = vadd.f32 0.0, %v830
      %v832 = vpop.f32.mrb[0].mxu0
      %v833 = vpop.f32.mrb[0].mxu0
      %v834 = vadd.f32 0.0, %v833
      %v835 = vpop.f32.mrb[0].mxu0
      %836 = vmatprep.mubr.bf16.mxu0 0
      %837 = vmatmul.mubr.bf16.gmra.mrb[0].mxu0 %v558
      %v838 = vpop.f32.mrb[0].mxu0
      %v839 = vadd.f32 0.0, %v838
      %v840 = vpop.f32.mrb[0].mxu0
      %v841 = vpop.f32.mrb[0].mxu0
      %v842 = vadd.f32 0.0, %v841
      %v843 = vpop.f32.mrb[0].mxu0
      %844 = vmatprep.mubr.bf16.mxu0 0
      %845 = vmatmul.mubr.bf16.gmra.mrb[0].mxu0 %v559
      %v846 = vpop.f32.mrb[0].mxu0
      %v847 = vadd.f32 0.0, %v846
      %v848 = vpop.f32.mrb[0].mxu0
      %v849 = vpop.f32.mrb[0].mxu0
      %v850 = vadd.f32 0.0, %v849
      %v851 = vpop.f32.mrb[0].mxu0
      %852 = vmatprep.mubr.bf16.mxu0 0
      %853 = vmatmul.mubr.bf16.gmra.mrb[0].mxu0 %v560
      %v854 = vpop.f32.mrb[0].mxu0
      %v855 = vadd.f32 0.0, %v854
      %v856 = vpop.f32.mrb[0].mxu0
      %v857 = vpop.f32.mrb[0].mxu0
      %v858 = vadd.f32 0.0, %v857
      %v859 = vpop.f32.mrb[0].mxu0
      %860 = vmatprep.mubr.bf16.mxu0 0
      %861 = vmatmul.mubr.bf16.gmra.mrb[0].mxu0 %v561
      %v862 = vpop.f32.mrb[0].mxu0
      %v863 = vadd.f32 0.0, %v862
      %v864 = vpop.f32.mrb[0].mxu0
      %v865 = vpop.f32.mrb[0].mxu0
      %v866 = vadd.f32 0.0, %v865
      %v867 = vpop.f32.mrb[0].mxu0
      %868 = vmatprep.mubr.bf16.mxu0 0
      %869 = vmatmul.mubr.bf16.gmra.mrb[0].mxu0 %v562
      %v870 = vpop.f32.mrb[0].mxu0
      %v871 = vadd.f32 0.0, %v870
      %v872 = vpop.f32.mrb[0].mxu0
      %v873 = vpop.f32.mrb[0].mxu0
      %v874 = vadd.f32 0.0, %v873
      %v875 = vpop.f32.mrb[0].mxu0
      %876 = vmatprep.mubr.bf16.mxu0 0
      %877 = vmatmul.mubr.bf16.gmra.mrb[0].mxu0 %v563
      %v878 = vpop.f32.mrb[0].mxu0
      %v879 = vadd.f32 0.0, %v878
      %v880 = vpop.f32.mrb[0].mxu0
      %v881 = vpop.f32.mrb[0].mxu0
      %v882 = vadd.f32 0.0, %v881
      %v883 = vpop.f32.mrb[0].mxu0
      %884 = vmatprep.mubr.bf16.mxu0 0
      %885 = vmatmul.mubr.bf16.gmra.mrb[0].mxu0 %v564
      %v886 = vpop.f32.mrb[0].mxu0
      %v887 = vadd.f32 0.0, %v886
      %v888 = vpop.f32.mrb[0].mxu0
      %v889 = vpop.f32.mrb[0].mxu0
      %v890 = vadd.f32 0.0, %v889
      %v891 = vpop.f32.mrb[0].mxu0
      %892 = vmatprep.mubr.bf16.mxu0 0
      %893 = vmatmul.mubr.bf16.gmra.mrb[0].mxu0 %v565
      %v894 = vpop.f32.mrb[0].mxu0
      %v895 = vadd.f32 0.0, %v894
      %v896 = vpop.f32.mrb[0].mxu0
      %v897 = vpop.f32.mrb[0].mxu0
      %v898 = vadd.f32 0.0, %v897
      %v899 = vpop.f32.mrb[0].mxu0
      %900 = vmatprep.mubr.bf16.mxu0 0
      %901 = vmatmul.mubr.bf16.gmra.mrb[0].mxu0 %v566
      %v902 = vpop.f32.mrb[0].mxu0
      %v903 = vadd.f32 0.0, %v902
      %v904 = vpop.f32.mrb[0].mxu0
      %v905 = vpop.f32.mrb[0].mxu0
      %v906 = vadd.f32 0.0, %v905
      %v907 = vpop.f32.mrb[0].mxu0
      %908 = vmatprep.mubr.bf16.mxu0 0
      %909 = vmatmul.mubr.bf16.gmra.mrb[0].mxu0 %v567
      %v910 = vpop.f32.mrb[0].mxu0
      %v911 = vadd.f32 0.0, %v910
      %v912 = vpop.f32.mrb[0].mxu0
      %v913 = vpop.f32.mrb[0].mxu0
      %v914 = vadd.f32 0.0, %v913
      %v915 = vpop.f32.mrb[0].mxu0
      %916 = vmatprep.mubr.bf16.mxu0 0
      %917 = vmatmul.mubr.bf16.gmra.mrb[0].mxu0 %v568
      %v918 = vpop.f32.mrb[0].mxu0
      %v919 = vadd.f32 0.0, %v918
      %v920 = vpop.f32.mrb[0].mxu0
      %v921 = vpop.f32.mrb[0].mxu0
      %v922 = vadd.f32 0.0, %v921
      %v923 = vpop.f32.mrb[0].mxu0
      %924 = vmatprep.mubr.bf16.mxu0 0
      %925 = vmatmul.mubr.bf16.gmra.mrb[0].mxu0 %v569
      %v926 = vpop.f32.mrb[0].mxu0
      %v927 = vadd.f32 0.0, %v926
      %v928 = vpop.f32.mrb[0].mxu0
      %v929 = vpop.f32.mrb[0].mxu0
      %v930 = vadd.f32 0.0, %v929
      %v931 = vpop.f32.mrb[0].mxu0
      %932 = vmatprep.mubr.bf16.mxu0 0
      %933 = vmatmul.mubr.bf16.gmra.mrb[0].mxu0 %v570
      %v934 = vpop.f32.mrb[0].mxu0
      %v935 = vadd.f32 0.0, %v934
      %v936 = vpop.f32.mrb[0].mxu0
      %v937 = vpop.f32.mrb[0].mxu0
      %v938 = vadd.f32 0.0, %v937
      %v939 = vpop.f32.mrb[0].mxu0
      %940 = vmatprep.mubr.bf16.mxu0 0
      %941 = vmatmul.mubr.bf16.gmra.mrb[0].mxu0 %v571
      %v942 = vpop.f32.mrb[0].mxu0
      %v943 = vadd.f32 0.0, %v942
      %v944 = vpop.f32.mrb[0].mxu0
      %v945 = vpop.f32.mrb[0].mxu0
      %v946 = vadd.f32 0.0, %v945
      %v947 = vpop.f32.mrb[0].mxu0
      %948 = vmatprep.mubr.bf16.mxu0 0
      %949 = vmatmul.mubr.bf16.gmra.mrb[0].mxu0 %v572
      %v950 = vpop.f32.mrb[0].mxu0
      %v951 = vadd.f32 0.0, %v950
      %v952 = vpop.f32.mrb[0].mxu0
      %v953 = vpop.f32.mrb[0].mxu0
      %v954 = vadd.f32 0.0, %v953
      %v955 = vpop.f32.mrb[0].mxu0
      %956 = vmatprep.mubr.bf16.mxu0 0
      %957 = vmatmul.mubr.bf16.gmra.mrb[0].mxu0 %v573
      %v958 = vpop.f32.mrb[0].mxu0
      %v959 = vadd.f32 0.0, %v958
      %v960 = vpop.f32.mrb[0].mxu0
      %v961 = vpop.f32.mrb[0].mxu0
      %v962 = vadd.f32 0.0, %v961
      %v963 = vpop.f32.mrb[0].mxu0
      %964 = vmatprep.mubr.bf16.mxu0 0
      %965 = vmatmul.mubr.bf16.gmra.mrb[0].mxu0 %v574
      %v966 = vpop.f32.mrb[0].mxu0
      %v967 = vadd.f32 0.0, %v966
      %v968 = vpop.f32.mrb[0].mxu0
      %v969 = vpop.f32.mrb[0].mxu0
      %v970 = vadd.f32 0.0, %v969
      %v971 = vpop.f32.mrb[0].mxu0
      %972 = vmatprep.mubr.bf16.mxu0 0
      %973 = vmatmul.mubr.bf16.gmra.mrb[0].mxu0 %v575
      %v974 = vpop.f32.mrb[0].mxu0
      %v975 = vadd.f32 0.0, %v974
      %v976 = vpop.f32.mrb[0].mxu0
      %v977 = vpop.f32.mrb[0].mxu0
      %v978 = vadd.f32 0.0, %v977
      %v979 = vpop.f32.mrb[0].mxu0
      %980 = vmatprep.mubr.bf16.mxu0 0
      %981 = vmatmul.mubr.bf16.gmra.mrb[0].mxu0 %v576
      %v982 = vpop.f32.mrb[0].mxu0
      %v983 = vadd.f32 0.0, %v982
      %v984 = vpop.f32.mrb[0].mxu0
      %v985 = vpop.f32.mrb[0].mxu0
      %v986 = vadd.f32 0.0, %v985
      %v987 = vpop.f32.mrb[0].mxu0
      %988 = vmatprep.mubr.bf16.mxu0 0
      %989 = vmatmul.mubr.bf16.gmra.mrb[0].mxu0 %v577
      %v990 = vpop.f32.mrb[0].mxu0
      %v991 = vadd.f32 0.0, %v990
      %v992 = vpop.f32.mrb[0].mxu0
      %v993 = vpop.f32.mrb[0].mxu0
      %v994 = vadd.f32 0.0, %v993
      %v995 = vpop.f32.mrb[0].mxu0
      %996 = vmatprep.mubr.bf16.mxu0 0
      %997 = vmatmul.mubr.bf16.gmra.mrb[0].mxu0 %v578
      %v998 = vpop.f32.mrb[0].mxu0
      %v999 = vadd.f32 0.0, %v998
      %v1000 = vpop.f32.mrb[0].mxu0
      %v1001 = vpop.f32.mrb[0].mxu0
      %v1002 = vadd.f32 0.0, %v1001
      %v1003 = vpop.f32.mrb[0].mxu0
      %1004 = vmatprep.mubr.bf16.mxu0 0
      %1005 = vmatmul.mubr.bf16.gmra.mrb[0].mxu0 %v579
      %v1006 = vpop.f32.mrb[0].mxu0
      %v1007 = vadd.f32 0.0, %v1006
      %v1008 = vpop.f32.mrb[0].mxu0
      %v1009 = vpop.f32.mrb[0].mxu0
      %v1010 = vadd.f32 0.0, %v1009
      %v1011 = vpop.f32.mrb[0].mxu0
      %1012 = vmatprep.mubr.bf16.mxu0 0
      %1013 = vmatmul.mubr.bf16.gmra.mrb[0].mxu0 %v580
      %v1014 = vpop.f32.mrb[0].mxu0
      %v1015 = vadd.f32 0.0, %v1014
      %v1016 = vpop.f32.mrb[0].mxu0
      %v1017 = vpop.f32.mrb[0].mxu0
      %v1018 = vadd.f32 0.0, %v1017
      %v1019 = vpop.f32.mrb[0].mxu0
      %1020 = vmatprep.mubr.bf16.mxu0 0
      %1021 = vmatmul.mubr.bf16.gmra.mrb[0].mxu0 %v581
      %v1022 = vpop.f32.mrb[0].mxu0
      %v1023 = vadd.f32 0.0, %v1022
      %v1024 = vpop.f32.mrb[0].mxu0
      %v1025 = vpop.f32.mrb[0].mxu0
      %v1026 = vadd.f32 0.0, %v1025
      %v1027 = vpop.f32.mrb[0].mxu0
      %1028 = vmatprep.mubr.bf16.mxu0 0
      %1029 = vmatmul.mubr.bf16.gmra.mrb[0].mxu0 %v582
      %v1030 = vpop.f32.mrb[0].mxu0
      %v1031 = vadd.f32 0.0, %v1030
      %v1032 = vpop.f32.mrb[0].mxu0
      %v1033 = vpop.f32.mrb[0].mxu0
      %v1034 = vadd.f32 0.0, %v1033
      %v1035 = vpop.f32.mrb[0].mxu0
      %1036 = vmatprep.mubr.bf16.mxu0 0
      %1037 = vmatmul.mubr.bf16.gmra.mrb[0].mxu0 %v583
      %v1038 = vpop.f32.mrb[0].mxu0
      %v1039 = vadd.f32 0.0, %v1038
      %v1040 = vpop.f32.mrb[0].mxu0
      %v1041 = vpop.f32.mrb[0].mxu0
      %v1042 = vadd.f32 0.0, %v1041
      %v1043 = vpop.f32.mrb[0].mxu0
      %1044 = vmatprep.mubr.bf16.mxu0 0
      %1045 = vmatmul.mubr.bf16.gmra.mrb[0].mxu0 %v584
      %v1046 = vpop.f32.mrb[0].mxu0
      %v1047 = vadd.f32 0.0, %v1046
      %v1048 = vpop.f32.mrb[0].mxu0
      %v1049 = vpop.f32.mrb[0].mxu0
      %v1050 = vadd.f32 0.0, %v1049
      %v1051 = vpop.f32.mrb[0].mxu0
      %1052 = vmatprep.mubr.bf16.mxu0 0
      %1053 = vmatmul.mubr.bf16.gmra.mrb[0].mxu0 %v585
      %v1054 = vpop.f32.mrb[0].mxu0
      %v1055 = vadd.f32 0.0, %v1054
      %v1056 = vpop.f32.mrb[0].mxu0
      %v1057 = vpop.f32.mrb[0].mxu0
      %v1058 = vadd.f32 0.0, %v1057
      %v1059 = vpop.f32.mrb[0].mxu0
      %1060 = vmatprep.mubr.bf16.mxu0 0
      %1061 = vmatmul.mubr.bf16.gmra.mrb[0].mxu0 %v586
      %v1062 = vpop.f32.mrb[0].mxu0
      %v1063 = vadd.f32 0.0, %v1062
      %v1064 = vpop.f32.mrb[0].mxu0
      %v1065 = vpop.f32.mrb[0].mxu0
      %v1066 = vadd.f32 0.0, %v1065
      %v1067 = vpop.f32.mrb[0].mxu0
      %1068 = vmatprep.mubr.bf16.mxu0 0
      %1069 = vmatmul.mubr.bf16.gmra.mrb[0].mxu0 %v587
      %v1070 = vpop.f32.mrb[0].mxu0
      %v1071 = vadd.f32 0.0, %v1070
      %v1072 = vpop.f32.mrb[0].mxu0
      %v1073 = vpop.f32.mrb[0].mxu0
      %v1074 = vadd.f32 0.0, %v1073
      %v1075 = vpop.f32.mrb[0].mxu0
      %1076 = vmatprep.mubr.bf16.mxu0 0
      %1077 = vmatmul.mubr.bf16.gmra.mrb[0].mxu0 %v588
      %v1078 = vpop.f32.mrb[0].mxu0
      %v1079 = vadd.f32 0.0, %v1078
      %v1080 = vpop.f32.mrb[0].mxu0
      %v1081 = vpop.f32.mrb[0].mxu0
      %v1082 = vadd.f32 0.0, %v1081
      %v1083 = vpop.f32.mrb[0].mxu0
      %1084 = vmatprep.mubr.bf16.mxu0 0
      %1085 = vmatmul.mubr.bf16.gmra.mrb[0].mxu0 %v589
      %v1086 = vpop.f32.mrb[0].mxu0
      %v1087 = vadd.f32 0.0, %v1086
      %v1088 = vpop.f32.mrb[0].mxu0
      %v1089 = vpop.f32.mrb[0].mxu0
      %v1090 = vadd.f32 0.0, %v1089
      %v1091 = vpop.f32.mrb[0].mxu0
      %1092 = vmatprep.mubr.bf16.mxu0 0
      %1093 = vmatmul.mubr.bf16.gmra.mrb[0].mxu0 %v590
      %v1094 = vpop.f32.mrb[0].mxu0
      %v1095 = vadd.f32 0.0, %v1094
      %v1096 = vpop.f32.mrb[0].mxu0
      %v1097 = vpop.f32.mrb[0].mxu0
      %v1098 = vadd.f32 0.0, %v1097
      %v1099 = vpop.f32.mrb[0].mxu0
      %1100 = vmatprep.mubr.bf16.mxu0 0
      %1101 = vmatmul.mubr.bf16.gmra.mrb[0].mxu0 %v591
      %v1102 = vpop.f32.mrb[0].mxu0
      %v1103 = vadd.f32 0.0, %v1102
      %v1104 = vpop.f32.mrb[0].mxu0
      %v1105 = vpop.f32.mrb[0].mxu0
      %v1106 = vadd.f32 0.0, %v1105
      %v1107 = vpop.f32.mrb[0].mxu0
      %1108 = vmatprep.mubr.bf16.mxu0 0
      %1109 = vmatmul.mubr.bf16.gmra.mrb[0].mxu0 %v592
      %v1110 = vpop.f32.mrb[0].mxu0
      %v1111 = vadd.f32 0.0, %v1110
      %v1112 = vpop.f32.mrb[0].mxu0
      %v1113 = vpop.f32.mrb[0].mxu0
      %v1114 = vadd.f32 0.0, %v1113
      %v1115 = vpop.f32.mrb[0].mxu0
      %1116 = vmatprep.mubr.bf16.mxu0 0
      %1117 = vmatmul.mubr.bf16.gmra.mrb[0].mxu0 %v593
      %v1118 = vpop.f32.mrb[0].mxu0
      %v1119 = vadd.f32 0.0, %v1118
      %v1120 = vpop.f32.mrb[0].mxu0
      %v1121 = vpop.f32.mrb[0].mxu0
      %v1122 = vadd.f32 0.0, %v1121
      %v1123 = vpop.f32.mrb[0].mxu0
      %1124 = vmatprep.mubr.bf16.mxu0 0
      %1125 = vmatmul.mubr.bf16.gmra.mrb[0].mxu0 %v594
      %v1126 = vpop.f32.mrb[0].mxu0
      %v1127 = vadd.f32 0.0, %v1126
      %v1128 = vpop.f32.mrb[0].mxu0
      %v1129 = vpop.f32.mrb[0].mxu0
      %v1130 = vadd.f32 0.0, %v1129
      %v1131 = vpop.f32.mrb[0].mxu0
      %1132 = vmatprep.mubr.bf16.mxu0 0
      %1133 = vmatmul.mubr.bf16.gmra.mrb[0].mxu0 %v595
      %v1134 = vpop.f32.mrb[0].mxu0
      %v1135 = vadd.f32 0.0, %v1134
      %v1136 = vpop.f32.mrb[0].mxu0
      %v1137 = vpop.f32.mrb[0].mxu0
      %v1138 = vadd.f32 0.0, %v1137
      %v1139 = vpop.f32.mrb[0].mxu0
      %1140 = vmatprep.mubr.bf16.mxu0 0
      %1141 = vmatmul.mubr.bf16.gmra.mrb[0].mxu0 %v596
      %v1142 = vpop.f32.mrb[0].mxu0
      %v1143 = vadd.f32 0.0, %v1142
      %v1144 = vpop.f32.mrb[0].mxu0
      %v1145 = vpop.f32.mrb[0].mxu0
      %v1146 = vadd.f32 0.0, %v1145
      %v1147 = vpop.f32.mrb[0].mxu0
      %1148 = vmatprep.mubr.bf16.mxu0 0
      %1149 = vmatmul.mubr.bf16.gmra.mrb[0].mxu0 %v597
      %v1150 = vpop.f32.mrb[0].mxu0
      %v1151 = vadd.f32 0.0, %v1150
      %v1152 = vpop.f32.mrb[0].mxu0
      %v1153 = vpop.f32.mrb[0].mxu0
      %v1154 = vadd.f32 0.0, %v1153
      %v1155 = vpop.f32.mrb[0].mxu0
      %1156 = vmatprep.mubr.bf16.mxu0 0
      %1157 = vmatmul.mubr.bf16.gmra.mrb[0].mxu0 %v598
      %v1158 = vpop.f32.mrb[0].mxu0
      %v1159 = vadd.f32 0.0, %v1158
      %v1160 = vpop.f32.mrb[0].mxu0
      %v1161 = vpop.f32.mrb[0].mxu0
      %v1162 = vadd.f32 0.0, %v1161
      %v1163 = vpop.f32.mrb[0].mxu0
      %1164 = vmatprep.mubr.bf16.mxu0 0
      %1165 = vmatmul.mubr.bf16.gmra.mrb[0].mxu0 %v599
      %v1166 = vpop.f32.mrb[0].mxu0
      %v1167 = vadd.f32 0.0, %v1166
      %v1168 = vpop.f32.mrb[0].mxu0
      %v1169 = vpop.f32.mrb[0].mxu0
      %v1170 = vadd.f32 0.0, %v1169
      %v1171 = vpop.f32.mrb[0].mxu0
      %1172 = vmatprep.mubr.bf16.mxu0 0
      %1173 = vmatmul.mubr.bf16.gmra.mrb[0].mxu0 %v600
      %v1174 = vpop.f32.mrb[0].mxu0
      %v1175 = vadd.f32 0.0, %v1174
      %v1176 = vpop.f32.mrb[0].mxu0
      %v1177 = vpop.f32.mrb[0].mxu0
      %v1178 = vadd.f32 0.0, %v1177
      %v1179 = vpop.f32.mrb[0].mxu0
      %1180 = vmatprep.mubr.bf16.mxu0 0
      %1181 = vmatmul.mubr.bf16.gmra.mrb[0].mxu0 %v601
      %v1182 = vpop.f32.mrb[0].mxu0
      %v1183 = vadd.f32 0.0, %v1182
      %v1184 = vpop.f32.mrb[0].mxu0
      %v1185 = vpop.f32.mrb[0].mxu0
      %v1186 = vadd.f32 0.0, %v1185
      %v1187 = vpop.f32.mrb[0].mxu0
      %1188 = vmatprep.mubr.bf16.mxu0 0
      %1189 = vmatmul.mubr.bf16.gmra.mrb[0].mxu0 %v602
      %v1190 = vpop.f32.mrb[0].mxu0
      %v1191 = vadd.f32 0.0, %v1190
      %v1192 = vpop.f32.mrb[0].mxu0
      %v1193 = vpop.f32.mrb[0].mxu0
      %v1194 = vadd.f32 0.0, %v1193
      %v1195 = vpop.f32.mrb[0].mxu0
      %1196 = vmatprep.mubr.bf16.mxu0 0
      %1197 = vmatmul.mubr.bf16.gmra.mrb[0].mxu0 %v603
      %v1198 = vpop.f32.mrb[0].mxu0
      %v1199 = vadd.f32 0.0, %v1198
      %v1200 = vpop.f32.mrb[0].mxu0
      %v1201 = vpop.f32.mrb[0].mxu0
      %v1202 = vadd.f32 0.0, %v1201
      %v1203 = vpop.f32.mrb[0].mxu0
      %1204 = vmatprep.mubr.bf16.mxu0 0
      %1205 = vmatmul.mubr.bf16.gmra.mrb[0].mxu0 %v604
      %v1206 = vpop.f32.mrb[0].mxu0
      %v1207 = vadd.f32 0.0, %v1206
      %v1208 = vpop.f32.mrb[0].mxu0
      %v1209 = vpop.f32.mrb[0].mxu0
      %v1210 = vadd.f32 0.0, %v1209
      %v1211 = vpop.f32.mrb[0].mxu0
      %1212 = vmatprep.mubr.bf16.mxu0 0
      %1213 = vmatmul.mubr.bf16.gmra.mrb[0].mxu0 %v605
      %v1214 = vpop.f32.mrb[0].mxu0
      %v1215 = vadd.f32 0.0, %v1214
      %v1216 = vpop.f32.mrb[0].mxu0
      %v1217 = vpop.f32.mrb[0].mxu0
      %v1218 = vadd.f32 0.0, %v1217
      %v1219 = vpop.f32.mrb[0].mxu0
      %1220 = vmatprep.mubr.bf16.mxu0 0
      %1221 = vmatmul.mubr.bf16.gmra.mrb[0].mxu0 %v606
      %v1222 = vpop.f32.mrb[0].mxu0
      %v1223 = vadd.f32 0.0, %v1222
      %v1224 = vpop.f32.mrb[0].mxu0
      %v1225 = vpop.f32.mrb[0].mxu0
      %v1226 = vadd.f32 0.0, %v1225
      %v1227 = vpop.f32.mrb[0].mxu0
      %1228 = vmatprep.mubr.bf16.mxu0 0
      %1229 = vmatmul.mubr.bf16.gmra.mrb[0].mxu0 %v607
      %v1230 = vpop.f32.mrb[0].mxu0
      %v1231 = vadd.f32 0.0, %v1230
      %v1232 = vpop.f32.mrb[0].mxu0
      %v1233 = vpop.f32.mrb[0].mxu0
      %v1234 = vadd.f32 0.0, %v1233
      %v1235 = vpop.f32.mrb[0].mxu0
      %1236 = vmatprep.mubr.bf16.mxu0 0
      %1237 = vmatmul.mubr.bf16.gmra.mrb[0].mxu0 %v608
      %v1238 = vpop.f32.mrb[0].mxu0
      %v1239 = vadd.f32 0.0, %v1238
      %v1240 = vpop.f32.mrb[0].mxu0
      %v1241 = vpop.f32.mrb[0].mxu0
      %v1242 = vadd.f32 0.0, %v1241
      %v1243 = vpop.f32.mrb[0].mxu0
      %1244 = vmatprep.mubr.bf16.mxu0 0
      %1245 = vmatmul.mubr.bf16.gmra.mrb[0].mxu0 %v609
      %v1246 = vpop.f32.mrb[0].mxu0
      %v1247 = vadd.f32 0.0, %v1246
      %v1248 = vpop.f32.mrb[0].mxu0
      %v1249 = vpop.f32.mrb[0].mxu0
      %v1250 = vadd.f32 0.0, %v1249
      %v1251 = vpop.f32.mrb[0].mxu0
      %1252 = vmatprep.mubr.bf16.mxu0 0
      %1253 = vmatmul.mubr.bf16.gmra.mrb[0].mxu0 %v610
      %v1254 = vpop.f32.mrb[0].mxu0
      %v1255 = vadd.f32 0.0, %v1254
      %v1256 = vpop.f32.mrb[0].mxu0
      %v1257 = vpop.f32.mrb[0].mxu0
      %v1258 = vadd.f32 0.0, %v1257
      %v1259 = vpop.f32.mrb[0].mxu0
      %1260 = vmatprep.mubr.bf16.mxu0 0
      %1261 = vmatmul.mubr.bf16.gmra.mrb[0].mxu0 %v611
      %v1262 = vpop.f32.mrb[0].mxu0
      %v1263 = vadd.f32 0.0, %v1262
      %v1264 = vpop.f32.mrb[0].mxu0
      %v1265 = vpop.f32.mrb[0].mxu0
      %v1266 = vadd.f32 0.0, %v1265
      %v1267 = vpop.f32.mrb[0].mxu0
      %1268 = vdwg.mxu0
      %v1269 = vmul.f32 %v759, 0.2
      %v1270 = vmul.f32 %v762, 0.2
      %v1271 = vmul.f32 %v767, 0.2
      %v1272 = vmul.f32 %v770, 0.2
      %v1273 = vmul.f32 %v775, 0.2
      %v1274 = vmul.f32 %v778, 0.2
      %v1275 = vmul.f32 %v783, 0.2
      %v1276 = vmul.f32 %v786, 0.2
      %v1277 = vmul.f32 %v791, 0.2
      %v1278 = vmul.f32 %v794, 0.2
      %v1279 = vmul.f32 %v799, 0.2
      %v1280 = vmul.f32 %v802, 0.2
      %v1281 = vmul.f32 %v807, 0.2
      %v1282 = vmul.f32 %v810, 0.2
      %v1283 = vmul.f32 %v815, 0.2
      %v1284 = vmul.f32 %v818, 0.2
      %v1285 = vmul.f32 %v823, 0.2
      %v1286 = vmul.f32 %v826, 0.2
      %v1287 = vmul.f32 %v831, 0.2
      %v1288 = vmul.f32 %v834, 0.2
      %v1289 = vmul.f32 %v839, 0.2
      %v1290 = vmul.f32 %v842, 0.2
      %v1291 = vmul.f32 %v847, 0.2
      %v1292 = vmul.f32 %v850, 0.2
      %v1293 = vmul.f32 %v855, 0.2
      %v1294 = vmul.f32 %v858, 0.2
      %v1295 = vmul.f32 %v863, 0.2
      %v1296 = vmul.f32 %v866, 0.2
      %v1297 = vmul.f32 %v871, 0.2
      %v1298 = vmul.f32 %v874, 0.2
      %v1299 = vmul.f32 %v879, 0.2
      %v1300 = vmul.f32 %v882, 0.2
      %v1301 = vmul.f32 %v887, 0.2
      %v1302 = vmul.f32 %v890, 0.2
      %v1303 = vmul.f32 %v895, 0.2
      %v1304 = vmul.f32 %v898, 0.2
      %v1305 = vmul.f32 %v903, 0.2
      %v1306 = vmul.f32 %v906, 0.2
      %v1307 = vmul.f32 %v911, 0.2
      %v1308 = vmul.f32 %v914, 0.2
      %v1309 = vmul.f32 %v919, 0.2
      %v1310 = vmul.f32 %v922, 0.2
      %v1311 = vmul.f32 %v927, 0.2
      %v1312 = vmul.f32 %v930, 0.2
      %v1313 = vmul.f32 %v935, 0.2
      %v1314 = vmul.f32 %v938, 0.2
      %v1315 = vmul.f32 %v943, 0.2
      %v1316 = vmul.f32 %v946, 0.2
      %v1317 = vmul.f32 %v951, 0.2
      %v1318 = vmul.f32 %v954, 0.2
      %v1319 = vmul.f32 %v959, 0.2
      %v1320 = vmul.f32 %v962, 0.2
      %v1321 = vmul.f32 %v967, 0.2
      %v1322 = vmul.f32 %v970, 0.2
      %v1323 = vmul.f32 %v975, 0.2
      %v1324 = vmul.f32 %v978, 0.2
      %v1325 = vmul.f32 %v983, 0.2
      %v1326 = vmul.f32 %v986, 0.2
      %v1327 = vmul.f32 %v991, 0.2
      %v1328 = vmul.f32 %v994, 0.2
      %v1329 = vmul.f32 %v999, 0.2
      %v1330 = vmul.f32 %v1002, 0.2
      %v1331 = vmul.f32 %v1007, 0.2
      %v1332 = vmul.f32 %v1010, 0.2
      %v1333 = vmul.f32 %v1015, 0.2
      %v1334 = vmul.f32 %v1018, 0.2
      %v1335 = vmul.f32 %v1023, 0.2
      %v1336 = vmul.f32 %v1026, 0.2
      %v1337 = vmul.f32 %v1031, 0.2
      %v1338 = vmul.f32 %v1034, 0.2
      %v1339 = vmul.f32 %v1039, 0.2
      %v1340 = vmul.f32 %v1042, 0.2
      %v1341 = vmul.f32 %v1047, 0.2
      %v1342 = vmul.f32 %v1050, 0.2
      %v1343 = vmul.f32 %v1055, 0.2
      %v1344 = vmul.f32 %v1058, 0.2
      %v1345 = vmul.f32 %v1063, 0.2
      %v1346 = vmul.f32 %v1066, 0.2
      %v1347 = vmul.f32 %v1071, 0.2
      %v1348 = vmul.f32 %v1074, 0.2
      %v1349 = vmul.f32 %v1079, 0.2
      %v1350 = vmul.f32 %v1082, 0.2
      %v1351 = vmul.f32 %v1087, 0.2
      %v1352 = vmul.f32 %v1090, 0.2
      %v1353 = vmul.f32 %v1095, 0.2
      %v1354 = vmul.f32 %v1098, 0.2
      %v1355 = vmul.f32 %v1103, 0.2
      %v1356 = vmul.f32 %v1106, 0.2
      %v1357 = vmul.f32 %v1111, 0.2
      %v1358 = vmul.f32 %v1114, 0.2
      %v1359 = vmul.f32 %v1119, 0.2
      %v1360 = vmul.f32 %v1122, 0.2
      %v1361 = vmul.f32 %v1127, 0.2
      %v1362 = vmul.f32 %v1130, 0.2
      %v1363 = vmul.f32 %v1135, 0.2
      %v1364 = vmul.f32 %v1138, 0.2
      %v1365 = vmul.f32 %v1143, 0.2
      %v1366 = vmul.f32 %v1146, 0.2
      %v1367 = vmul.f32 %v1151, 0.2
      %v1368 = vmul.f32 %v1154, 0.2
      %v1369 = vmul.f32 %v1159, 0.2
      %v1370 = vmul.f32 %v1162, 0.2
      %v1371 = vmul.f32 %v1167, 0.2
      %v1372 = vmul.f32 %v1170, 0.2
      %v1373 = vmul.f32 %v1175, 0.2
      %v1374 = vmul.f32 %v1178, 0.2
      %v1375 = vmul.f32 %v1183, 0.2
      %v1376 = vmul.f32 %v1186, 0.2
      %v1377 = vmul.f32 %v1191, 0.2
      %v1378 = vmul.f32 %v1194, 0.2
      %v1379 = vmul.f32 %v1199, 0.2
      %v1380 = vmul.f32 %v1202, 0.2
      %v1381 = vmul.f32 %v1207, 0.2
      %v1382 = vmul.f32 %v1210, 0.2
      %v1383 = vmul.f32 %v1215, 0.2
      %v1384 = vmul.f32 %v1218, 0.2
      %v1385 = vmul.f32 %v1223, 0.2
      %v1386 = vmul.f32 %v1226, 0.2
      %v1387 = vmul.f32 %v1231, 0.2
      %v1388 = vmul.f32 %v1234, 0.2
      %v1389 = vmul.f32 %v1239, 0.2
      %v1390 = vmul.f32 %v1242, 0.2
      %v1391 = vmul.f32 %v1247, 0.2
      %v1392 = vmul.f32 %v1250, 0.2
      %v1393 = vmul.f32 %v1255, 0.2
      %v1394 = vmul.f32 %v1258, 0.2
      %v1395 = vmul.f32 %v1263, 0.2
      %v1396 = vmul.f32 %v1266, 0.2
      %v1397 = vmax.f32 %v759, %v1269
      %v1398 = vmax.f32 %v762, %v1270
      %v1399 = vmax.f32 %v767, %v1271
      %v1400 = vmax.f32 %v770, %v1272
      %v1401 = vmax.f32 %v775, %v1273
      %v1402 = vmax.f32 %v778, %v1274
      %v1403 = vmax.f32 %v783, %v1275
      %v1404 = vmax.f32 %v786, %v1276
      %v1405 = vmax.f32 %v791, %v1277
      %v1406 = vmax.f32 %v794, %v1278
      %v1407 = vmax.f32 %v799, %v1279
      %v1408 = vmax.f32 %v802, %v1280
      %v1409 = vmax.f32 %v807, %v1281
      %v1410 = vmax.f32 %v810, %v1282
      %v1411 = vmax.f32 %v815, %v1283
      %v1412 = vmax.f32 %v818, %v1284
      %v1413 = vmax.f32 %v823, %v1285
      %v1414 = vmax.f32 %v826, %v1286
      %v1415 = vmax.f32 %v831, %v1287
      %v1416 = vmax.f32 %v834, %v1288
      %v1417 = vmax.f32 %v839, %v1289
      %v1418 = vmax.f32 %v842, %v1290
      %v1419 = vmax.f32 %v847, %v1291
      %v1420 = vmax.f32 %v850, %v1292
      %v1421 = vmax.f32 %v855, %v1293
      %v1422 = vmax.f32 %v858, %v1294
      %v1423 = vmax.f32 %v863, %v1295
      %v1424 = vmax.f32 %v866, %v1296
      %v1425 = vmax.f32 %v871, %v1297
      %v1426 = vmax.f32 %v874, %v1298
      %v1427 = vmax.f32 %v879, %v1299
      %v1428 = vmax.f32 %v882, %v1300
      %v1429 = vmax.f32 %v887, %v1301
      %v1430 = vmax.f32 %v890, %v1302
      %v1431 = vmax.f32 %v895, %v1303
      %v1432 = vmax.f32 %v898, %v1304
      %v1433 = vmax.f32 %v903, %v1305
      %v1434 = vmax.f32 %v906, %v1306
      %v1435 = vmax.f32 %v911, %v1307
      %v1436 = vmax.f32 %v914, %v1308
      %v1437 = vmax.f32 %v919, %v1309
      %v1438 = vmax.f32 %v922, %v1310
      %v1439 = vmax.f32 %v927, %v1311
      %v1440 = vmax.f32 %v930, %v1312
      %v1441 = vmax.f32 %v935, %v1313
      %v1442 = vmax.f32 %v938, %v1314
      %v1443 = vmax.f32 %v943, %v1315
      %v1444 = vmax.f32 %v946, %v1316
      %v1445 = vmax.f32 %v951, %v1317
      %v1446 = vmax.f32 %v954, %v1318
      %v1447 = vmax.f32 %v959, %v1319
      %v1448 = vmax.f32 %v962, %v1320
      %v1449 = vmax.f32 %v967, %v1321
      %v1450 = vmax.f32 %v970, %v1322
      %v1451 = vmax.f32 %v975, %v1323
      %v1452 = vmax.f32 %v978, %v1324
      %v1453 = vmax.f32 %v983, %v1325
      %v1454 = vmax.f32 %v986, %v1326
      %v1455 = vmax.f32 %v991, %v1327
      %v1456 = vmax.f32 %v994, %v1328
      %v1457 = vmax.f32 %v999, %v1329
      %v1458 = vmax.f32 %v1002, %v1330
      %v1459 = vmax.f32 %v1007, %v1331
      %v1460 = vmax.f32 %v1010, %v1332
      %v1461 = vmax.f32 %v1015, %v1333
      %v1462 = vmax.f32 %v1018, %v1334
      %v1463 = vmax.f32 %v1023, %v1335
      %v1464 = vmax.f32 %v1026, %v1336
      %v1465 = vmax.f32 %v1031, %v1337
      %v1466 = vmax.f32 %v1034, %v1338
      %v1467 = vmax.f32 %v1039, %v1339
      %v1468 = vmax.f32 %v1042, %v1340
      %v1469 = vmax.f32 %v1047, %v1341
      %v1470 = vmax.f32 %v1050, %v1342
      %v1471 = vmax.f32 %v1055, %v1343
      %v1472 = vmax.f32 %v1058, %v1344
      %v1473 = vmax.f32 %v1063, %v1345
      %v1474 = vmax.f32 %v1066, %v1346
      %v1475 = vmax.f32 %v1071, %v1347
      %v1476 = vmax.f32 %v1074, %v1348
      %v1477 = vmax.f32 %v1079, %v1349
      %v1478 = vmax.f32 %v1082, %v1350
      %v1479 = vmax.f32 %v1087, %v1351
      %v1480 = vmax.f32 %v1090, %v1352
      %v1481 = vmax.f32 %v1095, %v1353
      %v1482 = vmax.f32 %v1098, %v1354
      %v1483 = vmax.f32 %v1103, %v1355
      %v1484 = vmax.f32 %v1106, %v1356
      %v1485 = vmax.f32 %v1111, %v1357
      %v1486 = vmax.f32 %v1114, %v1358
      %v1487 = vmax.f32 %v1119, %v1359
      %v1488 = vmax.f32 %v1122, %v1360
      %v1489 = vmax.f32 %v1127, %v1361
      %v1490 = vmax.f32 %v1130, %v1362
      %v1491 = vmax.f32 %v1135, %v1363
      %v1492 = vmax.f32 %v1138, %v1364
      %v1493 = vmax.f32 %v1143, %v1365
      %v1494 = vmax.f32 %v1146, %v1366
      %v1495 = vmax.f32 %v1151, %v1367
      %v1496 = vmax.f32 %v1154, %v1368
      %v1497 = vmax.f32 %v1159, %v1369
      %v1498 = vmax.f32 %v1162, %v1370
      %v1499 = vmax.f32 %v1167, %v1371
      %v1500 = vmax.f32 %v1170, %v1372
      %v1501 = vmax.f32 %v1175, %v1373
      %v1502 = vmax.f32 %v1178, %v1374
      %v1503 = vmax.f32 %v1183, %v1375
      %v1504 = vmax.f32 %v1186, %v1376
      %v1505 = vmax.f32 %v1191, %v1377
      %v1506 = vmax.f32 %v1194, %v1378
      %v1507 = vmax.f32 %v1199, %v1379
      %v1508 = vmax.f32 %v1202, %v1380
      %v1509 = vmax.f32 %v1207, %v1381
      %v1510 = vmax.f32 %v1210, %v1382
      %v1511 = vmax.f32 %v1215, %v1383
      %v1512 = vmax.f32 %v1218, %v1384
      %v1513 = vmax.f32 %v1223, %v1385
      %v1514 = vmax.f32 %v1226, %v1386
      %v1515 = vmax.f32 %v1231, %v1387
      %v1516 = vmax.f32 %v1234, %v1388
      %v1517 = vmax.f32 %v1239, %v1389
      %v1518 = vmax.f32 %v1242, %v1390
      %v1519 = vmax.f32 %v1247, %v1391
      %v1520 = vmax.f32 %v1250, %v1392
      %v1521 = vmax.f32 %v1255, %v1393
      %v1522 = vmax.f32 %v1258, %v1394
      %v1523 = vmax.f32 %v1263, %v1395
      %v1524 = vmax.f32 %v1266, %v1396
      %v1525 = vpack.c.bf16 %v1398, %v1397
      %v1526 = vpack.c.bf16 %v1400, %v1399
      %v1527 = vpack.c.bf16 %v1402, %v1401
      %v1528 = vpack.c.bf16 %v1404, %v1403
      %v1529 = vpack.c.bf16 %v1406, %v1405
      %v1530 = vpack.c.bf16 %v1408, %v1407
      %v1531 = vpack.c.bf16 %v1410, %v1409
      %v1532 = vpack.c.bf16 %v1412, %v1411
      %v1533 = vpack.c.bf16 %v1414, %v1413
      %v1534 = vpack.c.bf16 %v1416, %v1415
      %v1535 = vpack.c.bf16 %v1418, %v1417
      %v1536 = vpack.c.bf16 %v1420, %v1419
      %v1537 = vpack.c.bf16 %v1422, %v1421
      %v1538 = vpack.c.bf16 %v1424, %v1423
      %v1539 = vpack.c.bf16 %v1426, %v1425
      %v1540 = vpack.c.bf16 %v1428, %v1427
      %v1541 = vpack.c.bf16 %v1430, %v1429
      %v1542 = vpack.c.bf16 %v1432, %v1431
      %v1543 = vpack.c.bf16 %v1434, %v1433
      %v1544 = vpack.c.bf16 %v1436, %v1435
      %v1545 = vpack.c.bf16 %v1438, %v1437
      %v1546 = vpack.c.bf16 %v1440, %v1439
      %v1547 = vpack.c.bf16 %v1442, %v1441
      %v1548 = vpack.c.bf16 %v1444, %v1443
      %v1549 = vpack.c.bf16 %v1446, %v1445
      %v1550 = vpack.c.bf16 %v1448, %v1447
      %v1551 = vpack.c.bf16 %v1450, %v1449
      %v1552 = vpack.c.bf16 %v1452, %v1451
      %v1553 = vpack.c.bf16 %v1454, %v1453
      %v1554 = vpack.c.bf16 %v1456, %v1455
      %v1555 = vpack.c.bf16 %v1458, %v1457
      %v1556 = vpack.c.bf16 %v1460, %v1459
      %v1557 = vpack.c.bf16 %v1462, %v1461
      %v1558 = vpack.c.bf16 %v1464, %v1463
      %v1559 = vpack.c.bf16 %v1466, %v1465
      %v1560 = vpack.c.bf16 %v1468, %v1467
      %v1561 = vpack.c.bf16 %v1470, %v1469
      %v1562 = vpack.c.bf16 %v1472, %v1471
      %v1563 = vpack.c.bf16 %v1474, %v1473
      %v1564 = vpack.c.bf16 %v1476, %v1475
      %v1565 = vpack.c.bf16 %v1478, %v1477
      %v1566 = vpack.c.bf16 %v1480, %v1479
      %v1567 = vpack.c.bf16 %v1482, %v1481
      %v1568 = vpack.c.bf16 %v1484, %v1483
      %v1569 = vpack.c.bf16 %v1486, %v1485
      %v1570 = vpack.c.bf16 %v1488, %v1487
      %v1571 = vpack.c.bf16 %v1490, %v1489
      %v1572 = vpack.c.bf16 %v1492, %v1491
      %v1573 = vpack.c.bf16 %v1494, %v1493
      %v1574 = vpack.c.bf16 %v1496, %v1495
      %v1575 = vpack.c.bf16 %v1498, %v1497
      %v1576 = vpack.c.bf16 %v1500, %v1499
      %v1577 = vpack.c.bf16 %v1502, %v1501
      %v1578 = vpack.c.bf16 %v1504, %v1503
      %v1579 = vpack.c.bf16 %v1506, %v1505
      %v1580 = vpack.c.bf16 %v1508, %v1507
      %v1581 = vpack.c.bf16 %v1510, %v1509
      %v1582 = vpack.c.bf16 %v1512, %v1511
      %v1583 = vpack.c.bf16 %v1514, %v1513
      %v1584 = vpack.c.bf16 %v1516, %v1515
      %v1585 = vpack.c.bf16 %v1518, %v1517
      %v1586 = vpack.c.bf16 %v1520, %v1519
      %v1587 = vpack.c.bf16 %v1522, %v1521
      %v1588 = vpack.c.bf16 %v1524, %v1523
      %v1653 = vunpack.c.l.b16 %v1525
      %v1654 = vunpack.c.h.b16 %v1525
      %v1655 = vunpack.c.l.b16 %v1526
      %v1656 = vunpack.c.h.b16 %v1526
      %v1657 = vunpack.c.l.b16 %v1527
      %v1658 = vunpack.c.h.b16 %v1527
      %v1659 = vunpack.c.l.b16 %v1528
      %v1660 = vunpack.c.h.b16 %v1528
      %v1661 = vunpack.c.l.b16 %v1529
      %v1662 = vunpack.c.h.b16 %v1529
      %v1663 = vunpack.c.l.b16 %v1530
      %v1664 = vunpack.c.h.b16 %v1530
      %v1665 = vunpack.c.l.b16 %v1531
      %v1666 = vunpack.c.h.b16 %v1531
      %v1667 = vunpack.c.l.b16 %v1532
      %v1668 = vunpack.c.h.b16 %v1532
      %v1669 = vunpack.c.l.b16 %v1533
      %v1670 = vunpack.c.h.b16 %v1533
      %v1671 = vunpack.c.l.b16 %v1534
      %v1672 = vunpack.c.h.b16 %v1534
      %v1673 = vunpack.c.l.b16 %v1535
      %v1674 = vunpack.c.h.b16 %v1535
      %v1675 = vunpack.c.l.b16 %v1536
      %v1676 = vunpack.c.h.b16 %v1536
      %v1677 = vunpack.c.l.b16 %v1537
      %v1678 = vunpack.c.h.b16 %v1537
      %v1679 = vunpack.c.l.b16 %v1538
      %v1680 = vunpack.c.h.b16 %v1538
      %v1681 = vunpack.c.l.b16 %v1539
      %v1682 = vunpack.c.h.b16 %v1539
      %v1683 = vunpack.c.l.b16 %v1540
      %v1684 = vunpack.c.h.b16 %v1540
      %v1685 = vunpack.c.l.b16 %v1541
      %v1686 = vunpack.c.h.b16 %v1541
      %v1687 = vunpack.c.l.b16 %v1542
      %v1688 = vunpack.c.h.b16 %v1542
      %v1689 = vunpack.c.l.b16 %v1543
      %v1690 = vunpack.c.h.b16 %v1543
      %v1691 = vunpack.c.l.b16 %v1544
      %v1692 = vunpack.c.h.b16 %v1544
      %v1693 = vunpack.c.l.b16 %v1545
      %v1694 = vunpack.c.h.b16 %v1545
      %v1695 = vunpack.c.l.b16 %v1546
      %v1696 = vunpack.c.h.b16 %v1546
      %v1697 = vunpack.c.l.b16 %v1547
      %v1698 = vunpack.c.h.b16 %v1547
      %v1699 = vunpack.c.l.b16 %v1548
      %v1700 = vunpack.c.h.b16 %v1548
      %v1701 = vunpack.c.l.b16 %v1549
      %v1702 = vunpack.c.h.b16 %v1549
      %v1703 = vunpack.c.l.b16 %v1550
      %v1704 = vunpack.c.h.b16 %v1550
      %v1705 = vunpack.c.l.b16 %v1551
      %v1706 = vunpack.c.h.b16 %v1551
      %v1707 = vunpack.c.l.b16 %v1552
      %v1708 = vunpack.c.h.b16 %v1552
      %v1709 = vunpack.c.l.b16 %v1553
      %v1710 = vunpack.c.h.b16 %v1553
      %v1711 = vunpack.c.l.b16 %v1554
      %v1712 = vunpack.c.h.b16 %v1554
      %v1713 = vunpack.c.l.b16 %v1555
      %v1714 = vunpack.c.h.b16 %v1555
      %v1715 = vunpack.c.l.b16 %v1556
      %v1716 = vunpack.c.h.b16 %v1556
      %v1717 = vunpack.c.l.b16 %v1557
      %v1718 = vunpack.c.h.b16 %v1557
      %v1719 = vunpack.c.l.b16 %v1558
      %v1720 = vunpack.c.h.b16 %v1558
      %v1721 = vunpack.c.l.b16 %v1559
      %v1722 = vunpack.c.h.b16 %v1559
      %v1723 = vunpack.c.l.b16 %v1560
      %v1724 = vunpack.c.h.b16 %v1560
      %v1725 = vunpack.c.l.b16 %v1561
      %v1726 = vunpack.c.h.b16 %v1561
      %v1727 = vunpack.c.l.b16 %v1562
      %v1728 = vunpack.c.h.b16 %v1562
      %v1729 = vunpack.c.l.b16 %v1563
      %v1730 = vunpack.c.h.b16 %v1563
      %v1731 = vunpack.c.l.b16 %v1564
      %v1732 = vunpack.c.h.b16 %v1564
      %v1733 = vunpack.c.l.b16 %v1565
      %v1734 = vunpack.c.h.b16 %v1565
      %v1735 = vunpack.c.l.b16 %v1566
      %v1736 = vunpack.c.h.b16 %v1566
      %v1737 = vunpack.c.l.b16 %v1567
      %v1738 = vunpack.c.h.b16 %v1567
      %v1739 = vunpack.c.l.b16 %v1568
      %v1740 = vunpack.c.h.b16 %v1568
      %v1741 = vunpack.c.l.b16 %v1569
      %v1742 = vunpack.c.h.b16 %v1569
      %v1743 = vunpack.c.l.b16 %v1570
      %v1744 = vunpack.c.h.b16 %v1570
      %v1745 = vunpack.c.l.b16 %v1571
      %v1746 = vunpack.c.h.b16 %v1571
      %v1747 = vunpack.c.l.b16 %v1572
      %v1748 = vunpack.c.h.b16 %v1572
      %v1749 = vunpack.c.l.b16 %v1573
      %v1750 = vunpack.c.h.b16 %v1573
      %v1751 = vunpack.c.l.b16 %v1574
      %v1752 = vunpack.c.h.b16 %v1574
      %v1753 = vunpack.c.l.b16 %v1575
      %v1754 = vunpack.c.h.b16 %v1575
      %v1755 = vunpack.c.l.b16 %v1576
      %v1756 = vunpack.c.h.b16 %v1576
      %v1757 = vunpack.c.l.b16 %v1577
      %v1758 = vunpack.c.h.b16 %v1577
      %v1759 = vunpack.c.l.b16 %v1578
      %v1760 = vunpack.c.h.b16 %v1578
      %v1761 = vunpack.c.l.b16 %v1579
      %v1762 = vunpack.c.h.b16 %v1579
      %v1763 = vunpack.c.l.b16 %v1580
      %v1764 = vunpack.c.h.b16 %v1580
      %v1765 = vunpack.c.l.b16 %v1581
      %v1766 = vunpack.c.h.b16 %v1581
      %v1767 = vunpack.c.l.b16 %v1582
      %v1768 = vunpack.c.h.b16 %v1582
      %v1769 = vunpack.c.l.b16 %v1583
      %v1770 = vunpack.c.h.b16 %v1583
      %v1771 = vunpack.c.l.b16 %v1584
      %v1772 = vunpack.c.h.b16 %v1584
      %v1773 = vunpack.c.l.b16 %v1585
      %v1774 = vunpack.c.h.b16 %v1585
      %v1775 = vunpack.c.l.b16 %v1586
      %v1776 = vunpack.c.h.b16 %v1586
      %v1777 = vunpack.c.l.b16 %v1587
      %v1778 = vunpack.c.h.b16 %v1587
      %v1779 = vunpack.c.l.b16 %v1588
      %v1780 = vunpack.c.h.b16 %v1588
      %v1781 = vpack.c.b16 %v1653, %v1653
      %v1782 = vpack.c.b16 %v1654, %v1654
      %v1783 = vpack.c.b16 %v1655, %v1655
      %v1784 = vpack.c.b16 %v1656, %v1656
      %v1785 = vpack.c.b16 %v1657, %v1657
      %v1786 = vpack.c.b16 %v1658, %v1658
      %v1787 = vpack.c.b16 %v1659, %v1659
      %v1788 = vpack.c.b16 %v1660, %v1660
      %v1789 = vpack.c.b16 %v1661, %v1661
      %v1790 = vpack.c.b16 %v1662, %v1662
      %v1791 = vpack.c.b16 %v1663, %v1663
      %v1792 = vpack.c.b16 %v1664, %v1664
      %v1793 = vpack.c.b16 %v1665, %v1665
      %v1794 = vpack.c.b16 %v1666, %v1666
      %v1795 = vpack.c.b16 %v1667, %v1667
      %v1796 = vpack.c.b16 %v1668, %v1668
      %v1797 = vpack.c.b16 %v1669, %v1669
      %v1798 = vpack.c.b16 %v1670, %v1670
      %v1799 = vpack.c.b16 %v1671, %v1671
      %v1800 = vpack.c.b16 %v1672, %v1672
      %v1801 = vpack.c.b16 %v1673, %v1673
      %v1802 = vpack.c.b16 %v1674, %v1674
      %v1803 = vpack.c.b16 %v1675, %v1675
      %v1804 = vpack.c.b16 %v1676, %v1676
      %v1805 = vpack.c.b16 %v1677, %v1677
      %v1806 = vpack.c.b16 %v1678, %v1678
      %v1807 = vpack.c.b16 %v1679, %v1679
      %v1808 = vpack.c.b16 %v1680, %v1680
      %v1809 = vpack.c.b16 %v1681, %v1681
      %v1810 = vpack.c.b16 %v1682, %v1682
      %v1811 = vpack.c.b16 %v1683, %v1683
      %v1812 = vpack.c.b16 %v1684, %v1684
      %v1813 = vpack.c.b16 %v1685, %v1685
      %v1814 = vpack.c.b16 %v1686, %v1686
      %v1815 = vpack.c.b16 %v1687, %v1687
      %v1816 = vpack.c.b16 %v1688, %v1688
      %v1817 = vpack.c.b16 %v1689, %v1689
      %v1818 = vpack.c.b16 %v1690, %v1690
      %v1819 = vpack.c.b16 %v1691, %v1691
      %v1820 = vpack.c.b16 %v1692, %v1692
      %v1821 = vpack.c.b16 %v1693, %v1693
      %v1822 = vpack.c.b16 %v1694, %v1694
      %v1823 = vpack.c.b16 %v1695, %v1695
      %v1824 = vpack.c.b16 %v1696, %v1696
      %v1825 = vpack.c.b16 %v1697, %v1697
      %v1826 = vpack.c.b16 %v1698, %v1698
      %v1827 = vpack.c.b16 %v1699, %v1699
      %v1828 = vpack.c.b16 %v1700, %v1700
      %v1829 = vpack.c.b16 %v1701, %v1701
      %v1830 = vpack.c.b16 %v1702, %v1702
      %v1831 = vpack.c.b16 %v1703, %v1703
      %v1832 = vpack.c.b16 %v1704, %v1704
      %v1833 = vpack.c.b16 %v1705, %v1705
      %v1834 = vpack.c.b16 %v1706, %v1706
      %v1835 = vpack.c.b16 %v1707, %v1707
      %v1836 = vpack.c.b16 %v1708, %v1708
      %v1837 = vpack.c.b16 %v1709, %v1709
      %v1838 = vpack.c.b16 %v1710, %v1710
      %v1839 = vpack.c.b16 %v1711, %v1711
      %v1840 = vpack.c.b16 %v1712, %v1712
      %v1841 = vpack.c.b16 %v1713, %v1713
      %v1842 = vpack.c.b16 %v1714, %v1714
      %v1843 = vpack.c.b16 %v1715, %v1715
      %v1844 = vpack.c.b16 %v1716, %v1716
      %v1845 = vpack.c.b16 %v1717, %v1717
      %v1846 = vpack.c.b16 %v1718, %v1718
      %v1847 = vpack.c.b16 %v1719, %v1719
      %v1848 = vpack.c.b16 %v1720, %v1720
      %v1849 = vpack.c.b16 %v1721, %v1721
      %v1850 = vpack.c.b16 %v1722, %v1722
      %v1851 = vpack.c.b16 %v1723, %v1723
      %v1852 = vpack.c.b16 %v1724, %v1724
      %v1853 = vpack.c.b16 %v1725, %v1725
      %v1854 = vpack.c.b16 %v1726, %v1726
      %v1855 = vpack.c.b16 %v1727, %v1727
      %v1856 = vpack.c.b16 %v1728, %v1728
      %v1857 = vpack.c.b16 %v1729, %v1729
      %v1858 = vpack.c.b16 %v1730, %v1730
      %v1859 = vpack.c.b16 %v1731, %v1731
      %v1860 = vpack.c.b16 %v1732, %v1732
      %v1861 = vpack.c.b16 %v1733, %v1733
      %v1862 = vpack.c.b16 %v1734, %v1734
      %v1863 = vpack.c.b16 %v1735, %v1735
      %v1864 = vpack.c.b16 %v1736, %v1736
      %v1865 = vpack.c.b16 %v1737, %v1737
      %v1866 = vpack.c.b16 %v1738, %v1738
      %v1867 = vpack.c.b16 %v1739, %v1739
      %v1868 = vpack.c.b16 %v1740, %v1740
      %v1869 = vpack.c.b16 %v1741, %v1741
      %v1870 = vpack.c.b16 %v1742, %v1742
      %v1871 = vpack.c.b16 %v1743, %v1743
      %v1872 = vpack.c.b16 %v1744, %v1744
      %v1873 = vpack.c.b16 %v1745, %v1745
      %v1874 = vpack.c.b16 %v1746, %v1746
      %v1875 = vpack.c.b16 %v1747, %v1747
      %v1876 = vpack.c.b16 %v1748, %v1748
      %v1877 = vpack.c.b16 %v1749, %v1749
      %v1878 = vpack.c.b16 %v1750, %v1750
      %v1879 = vpack.c.b16 %v1751, %v1751
      %v1880 = vpack.c.b16 %v1752, %v1752
      %v1881 = vpack.c.b16 %v1753, %v1753
      %v1882 = vpack.c.b16 %v1754, %v1754
      %v1883 = vpack.c.b16 %v1755, %v1755
      %v1884 = vpack.c.b16 %v1756, %v1756
      %v1885 = vpack.c.b16 %v1757, %v1757
      %v1886 = vpack.c.b16 %v1758, %v1758
      %v1887 = vpack.c.b16 %v1759, %v1759
      %v1888 = vpack.c.b16 %v1760, %v1760
      %v1889 = vpack.c.b16 %v1761, %v1761
      %v1890 = vpack.c.b16 %v1762, %v1762
      %v1891 = vpack.c.b16 %v1763, %v1763
      %v1892 = vpack.c.b16 %v1764, %v1764
      %v1893 = vpack.c.b16 %v1765, %v1765
      %v1894 = vpack.c.b16 %v1766, %v1766
      %v1895 = vpack.c.b16 %v1767, %v1767
      %v1896 = vpack.c.b16 %v1768, %v1768
      %v1897 = vpack.c.b16 %v1769, %v1769
      %v1898 = vpack.c.b16 %v1770, %v1770
      %v1899 = vpack.c.b16 %v1771, %v1771
      %v1900 = vpack.c.b16 %v1772, %v1772
      %v1901 = vpack.c.b16 %v1773, %v1773
      %v1902 = vpack.c.b16 %v1774, %v1774
      %v1903 = vpack.c.b16 %v1775, %v1775
      %v1904 = vpack.c.b16 %v1776, %v1776
      %v1905 = vpack.c.b16 %v1777, %v1777
      %v1906 = vpack.c.b16 %v1778, %v1778
      %v1907 = vpack.c.b16 %v1779, %v1779
      %v1908 = vpack.c.b16 %v1780, %v1780
      %2037 = vst [vmem:[%s145] sm:$0xf] %v1781
      %2038 = vst [vmem:[%s145 + $0x4] sm:$0xf] %v1782
      %2039 = vst [vmem:[%s145 + $0x8] sm:$0xf] %v1783
      %2040 = vst [vmem:[%s145 + $0xc] sm:$0xf] %v1784
      %2041 = vst [vmem:[%s145 + $0x10] sm:$0xf] %v1785
      %2042 = vst [vmem:[%s145 + $0x14] sm:$0xf] %v1786
      %2043 = vst [vmem:[%s145 + $0x18] sm:$0xf] %v1787
      %2044 = vst [vmem:[%s145 + $0x1c] sm:$0xf] %v1788
      %2045 = vst [vmem:[%s145 + $0x20] sm:$0xf] %v1789
      %2046 = vst [vmem:[%s145 + $0x24] sm:$0xf] %v1790
      %2047 = vst [vmem:[%s145 + $0x28] sm:$0xf] %v1791
      %2048 = vst [vmem:[%s145 + $0x2c] sm:$0xf] %v1792
      %2049 = vst [vmem:[%s145 + $0x30] sm:$0xf] %v1793
      %2050 = vst [vmem:[%s145 + $0x34] sm:$0xf] %v1794
      %2051 = vst [vmem:[%s145 + $0x38] sm:$0xf] %v1795
      %2052 = vst [vmem:[%s145 + $0x3c] sm:$0xf] %v1796
      %2053 = vst [vmem:[%s145 + $0x40] sm:$0xf] %v1797
      %2054 = vst [vmem:[%s145 + $0x44] sm:$0xf] %v1798
      %2055 = vst [vmem:[%s145 + $0x48] sm:$0xf] %v1799
      %2056 = vst [vmem:[%s145 + $0x4c] sm:$0xf] %v1800
      %2057 = vst [vmem:[%s145 + $0x50] sm:$0xf] %v1801
      %2058 = vst [vmem:[%s145 + $0x54] sm:$0xf] %v1802
      %2059 = vst [vmem:[%s145 + $0x58] sm:$0xf] %v1803
      %2060 = vst [vmem:[%s145 + $0x5c] sm:$0xf] %v1804
      %2061 = vst [vmem:[%s145 + $0x60] sm:$0xf] %v1805
      %2062 = vst [vmem:[%s145 + $0x64] sm:$0xf] %v1806
      %2063 = vst [vmem:[%s145 + $0x68] sm:$0xf] %v1807
      %2064 = vst [vmem:[%s145 + $0x6c] sm:$0xf] %v1808
      %2065 = vst [vmem:[%s145 + $0x70] sm:$0xf] %v1809
      %2066 = vst [vmem:[%s145 + $0x74] sm:$0xf] %v1810
      %2067 = vst [vmem:[%s145 + $0x78] sm:$0xf] %v1811
      %2068 = vst [vmem:[%s145 + $0x7c] sm:$0xf] %v1812
      %2069 = vst [vmem:[%s145 + $0x80] sm:$0xf] %v1813
      %2070 = vst [vmem:[%s145 + $0x84] sm:$0xf] %v1814
      %2071 = vst [vmem:[%s145 + $0x88] sm:$0xf] %v1815
      %2072 = vst [vmem:[%s145 + $0x8c] sm:$0xf] %v1816
      %2073 = vst [vmem:[%s145 + $0x90] sm:$0xf] %v1817
      %2074 = vst [vmem:[%s145 + $0x94] sm:$0xf] %v1818
      %2075 = vst [vmem:[%s145 + $0x98] sm:$0xf] %v1819
      %2076 = vst [vmem:[%s145 + $0x9c] sm:$0xf] %v1820
      %2077 = vst [vmem:[%s145 + $0xa0] sm:$0xf] %v1821
      %2078 = vst [vmem:[%s145 + $0xa4] sm:$0xf] %v1822
      %2079 = vst [vmem:[%s145 + $0xa8] sm:$0xf] %v1823
      %2080 = vst [vmem:[%s145 + $0xac] sm:$0xf] %v1824
      %2081 = vst [vmem:[%s145 + $0xb0] sm:$0xf] %v1825
      %2082 = vst [vmem:[%s145 + $0xb4] sm:$0xf] %v1826
      %2083 = vst [vmem:[%s145 + $0xb8] sm:$0xf] %v1827
      %2084 = vst [vmem:[%s145 + $0xbc] sm:$0xf] %v1828
      %2085 = vst [vmem:[%s145 + $0xc0] sm:$0xf] %v1829
      %2086 = vst [vmem:[%s145 + $0xc4] sm:$0xf] %v1830
      %2087 = vst [vmem:[%s145 + $0xc8] sm:$0xf] %v1831
      %2088 = vst [vmem:[%s145 + $0xcc] sm:$0xf] %v1832
      %2089 = vst [vmem:[%s145 + $0xd0] sm:$0xf] %v1833
      %2090 = vst [vmem:[%s145 + $0xd4] sm:$0xf] %v1834
      %2091 = vst [vmem:[%s145 + $0xd8] sm:$0xf] %v1835
      %2092 = vst [vmem:[%s145 + $0xdc] sm:$0xf] %v1836
      %2093 = vst [vmem:[%s145 + $0xe0] sm:$0xf] %v1837
      %2094 = vst [vmem:[%s145 + $0xe4] sm:$0xf] %v1838
      %2095 = vst [vmem:[%s145 + $0xe8] sm:$0xf] %v1839
      %2096 = vst [vmem:[%s145 + $0xec] sm:$0xf] %v1840
      %2097 = vst [vmem:[%s145 + $0xf0] sm:$0xf] %v1841
      %2098 = vst [vmem:[%s145 + $0xf4] sm:$0xf] %v1842
      %2099 = vst [vmem:[%s145 + $0xf8] sm:$0xf] %v1843
      %2100 = vst [vmem:[%s145 + $0xfc] sm:$0xf] %v1844
      %2101 = vst [vmem:[%s145 + $0x100] sm:$0xf] %v1845
      %2102 = vst [vmem:[%s145 + $0x104] sm:$0xf] %v1846
      %2103 = vst [vmem:[%s145 + $0x108] sm:$0xf] %v1847
      %2104 = vst [vmem:[%s145 + $0x10c] sm:$0xf] %v1848
      %2105 = vst [vmem:[%s145 + $0x110] sm:$0xf] %v1849
      %2106 = vst [vmem:[%s145 + $0x114] sm:$0xf] %v1850
      %2107 = vst [vmem:[%s145 + $0x118] sm:$0xf] %v1851
      %2108 = vst [vmem:[%s145 + $0x11c] sm:$0xf] %v1852
      %2109 = vst [vmem:[%s145 + $0x120] sm:$0xf] %v1853
      %2110 = vst [vmem:[%s145 + $0x124] sm:$0xf] %v1854
      %2111 = vst [vmem:[%s145 + $0x128] sm:$0xf] %v1855
      %2112 = vst [vmem:[%s145 + $0x12c] sm:$0xf] %v1856
      %2113 = vst [vmem:[%s145 + $0x130] sm:$0xf] %v1857
      %2114 = vst [vmem:[%s145 + $0x134] sm:$0xf] %v1858
      %2115 = vst [vmem:[%s145 + $0x138] sm:$0xf] %v1859
      %2116 = vst [vmem:[%s145 + $0x13c] sm:$0xf] %v1860
      %2117 = vst [vmem:[%s145 + $0x140] sm:$0xf] %v1861
      %2118 = vst [vmem:[%s145 + $0x144] sm:$0xf] %v1862
      %2119 = vst [vmem:[%s145 + $0x148] sm:$0xf] %v1863
      %2120 = vst [vmem:[%s145 + $0x14c] sm:$0xf] %v1864
      %2121 = vst [vmem:[%s145 + $0x150] sm:$0xf] %v1865
      %2122 = vst [vmem:[%s145 + $0x154] sm:$0xf] %v1866
      %2123 = vst [vmem:[%s145 + $0x158] sm:$0xf] %v1867
      %2124 = vst [vmem:[%s145 + $0x15c] sm:$0xf] %v1868
      %2125 = vst [vmem:[%s145 + $0x160] sm:$0xf] %v1869
      %2126 = vst [vmem:[%s145 + $0x164] sm:$0xf] %v1870
      %2127 = vst [vmem:[%s145 + $0x168] sm:$0xf] %v1871
      %2128 = vst [vmem:[%s145 + $0x16c] sm:$0xf] %v1872
      %2129 = vst [vmem:[%s145 + $0x170] sm:$0xf] %v1873
      %2130 = vst [vmem:[%s145 + $0x174] sm:$0xf] %v1874
      %2131 = vst [vmem:[%s145 + $0x178] sm:$0xf] %v1875
      %2132 = vst [vmem:[%s145 + $0x17c] sm:$0xf] %v1876
      %2133 = vst [vmem:[%s145 + $0x180] sm:$0xf] %v1877
      %2134 = vst [vmem:[%s145 + $0x184] sm:$0xf] %v1878
      %2135 = vst [vmem:[%s145 + $0x188] sm:$0xf] %v1879
      %2136 = vst [vmem:[%s145 + $0x18c] sm:$0xf] %v1880
      %2137 = vst [vmem:[%s145 + $0x190] sm:$0xf] %v1881
      %2138 = vst [vmem:[%s145 + $0x194] sm:$0xf] %v1882
      %2139 = vst [vmem:[%s145 + $0x198] sm:$0xf] %v1883
      %2140 = vst [vmem:[%s145 + $0x19c] sm:$0xf] %v1884
      %2141 = vst [vmem:[%s145 + $0x1a0] sm:$0xf] %v1885
      %2142 = vst [vmem:[%s145 + $0x1a4] sm:$0xf] %v1886
      %2143 = vst [vmem:[%s145 + $0x1a8] sm:$0xf] %v1887
      %2144 = vst [vmem:[%s145 + $0x1ac] sm:$0xf] %v1888
      %2145 = vst [vmem:[%s145 + $0x1b0] sm:$0xf] %v1889
      %2146 = vst [vmem:[%s145 + $0x1b4] sm:$0xf] %v1890
      %2147 = vst [vmem:[%s145 + $0x1b8] sm:$0xf] %v1891
      %2148 = vst [vmem:[%s145 + $0x1bc] sm:$0xf] %v1892
      %2149 = vst [vmem:[%s145 + $0x1c0] sm:$0xf] %v1893
      %2150 = vst [vmem:[%s145 + $0x1c4] sm:$0xf] %v1894
      %2151 = vst [vmem:[%s145 + $0x1c8] sm:$0xf] %v1895
      %2152 = vst [vmem:[%s145 + $0x1cc] sm:$0xf] %v1896
      %2153 = vst [vmem:[%s145 + $0x1d0] sm:$0xf] %v1897
      %2154 = vst [vmem:[%s145 + $0x1d4] sm:$0xf] %v1898
      %2155 = vst [vmem:[%s145 + $0x1d8] sm:$0xf] %v1899
      %2156 = vst [vmem:[%s145 + $0x1dc] sm:$0xf] %v1900
      %2157 = vst [vmem:[%s145 + $0x1e0] sm:$0xf] %v1901
      %2158 = vst [vmem:[%s145 + $0x1e4] sm:$0xf] %v1902
      %2159 = vst [vmem:[%s145 + $0x1e8] sm:$0xf] %v1903
      %2160 = vst [vmem:[%s145 + $0x1ec] sm:$0xf] %v1904
      %2161 = vst [vmem:[%s145 + $0x1f0] sm:$0xf] %v1905
      %2162 = vst [vmem:[%s145 + $0x1f4] sm:$0xf] %v1906
      %2163 = vst [vmem:[%s145 + $0x1f8] sm:$0xf] %v1907
      %2164 = vst [vmem:[%s145 + $0x1fc] sm:$0xf] %v1908
      %s2165 = smul.u32 128, %s13
      %p2166 = scmp.lt.s32.totalorder %s2165, 255
      %s2167 = scalar_select %p2166, %s2165, 255
      %s2168 = smul.addr %s2167, 4
      %s2169 = scalar_lea.vmem %s2, %s2168
      // Predicated region
      $region29: #{discriminator1_forward.5} parent=27 // pred_check
        %p2170 = pneg %p78
      $region30: #{discriminator1_forward.5} parent=27 // pred_check_branch
        %2172 = sbr.rel (%p2170) target = $region32
      $region31: #{discriminator1_forward.5} parent=27 // pred_region
        %s2173 = smul.u32 128, %s13
      $region32: #{discriminator1_forward.5} parent=27 // pred_fallthru
        _
    $region28: #{discriminator1_forward.5} parent=5 // pred_fallthru
      _
    %p2174 = scmp.le.s32.totalorder 2, %s8
    // Predicated region
    $region33: #{discriminator1_forward.5} parent=5 // pred_check
      %p2175 = pneg %p2174
    $region34: #{discriminator1_forward.5} parent=5 // pred_check_branch
      %2177 = sbr.rel (%p2175) target = $region36
    $region35: #{discriminator1_forward.5} parent=5 // pred_region
      %s2178 = ssub.s32 %s8, 2
      // Predicated region
      $region37: #{discriminator1_forward.5} parent=35 // pred_check
        %p2179 = pneg %p84
      $region38: #{discriminator1_forward.5} parent=35 // pred_check_branch
        %2181 = sbr.rel (%p2179) target = $region40
      $region39: #{discriminator1_forward.5} parent=35 // pred_region
        %s2182 = smul.u32 128, %s14
        %p2183 = scmp.lt.s32.totalorder %s2182, 255
        %s2184 = scalar_select %p2183, %s2182, 255
        %s2185 = smul.addr %s2184, 4
        %s2186 = scalar_lea.vmem %s2, %s2185
      $region40: #{discriminator1_forward.5} parent=35 // pred_fallthru
        _
    $region36: #{discriminator1_forward.5} parent=5 // pred_fallthru
      _
  $region6: #{discriminator1_forward.5} parent=0 // loop_footer
    %s12 = sadd.s32 1, %s8
  $region7: #{discriminator1_forward.5} parent=0 // loop_footer_branch
    %7 = sbr.rel target = $region3
  $region8: #{discriminator1_forward.5} parent=0 // loop_exit
    _

// kernel: discriminator1_forward.6
$region0: #{discriminator1_forward.6}
  #allocation0 [shape = 'u32[]', space=smem, size = 0x4, offset = 0x4, fixed_abs, tag = 'smem constant byte address 0x4 - core index']
  #allocation1 [shape = 'u32[144,128]{1,0:T(1,128)}', space=vmem, size = 0x12000, scoped, tag = 'internal scratch']
  %s0 = inlined_call_operand.vmem [shape: bf16[512,128], index: 0, kind: input, shape index: {}]
  %s1 = inlined_call_operand.vmem [shape: bf16[128,128], index: 1, kind: input, shape index: {}]
  %s2 = inlined_call_operand.vmem [shape: f32[1,128], index: 2, kind: input, shape index: {}]
  %s3 = inlined_call_operand.vmem [shape: f32[1,128], index: 3, kind: input, shape index: {}]
  %s4 = inlined_call_operand.vmem [shape: bf16[512,128], index: 4, kind: output, shape index: {}]
  %s5 = sld [smem:[#allocation0]]
  $region26: #{discriminator1_forward.6} parent=0
    _
  %s7 = ssub.s32 1, %s5
  %s8 = scalar_select 0, %s7, %s5
  // Predicated region
  $region2: #{discriminator1_forward.6} parent=0 // pred_check
    _
  $region3: #{discriminator1_forward.6} parent=0 // pred_check_branch
    %10 = sbr.rel (0) target = $region5
  $region4: #{discriminator1_forward.6} parent=0 // pred_region
    _
  $region5: #{discriminator1_forward.6} parent=0 // pred_fallthru
    _
  // Predicated region
  $region6: #{discriminator1_forward.6} parent=0 // pred_check
    _
  $region7: #{discriminator1_forward.6} parent=0 // pred_check_branch
    %12 = sbr.rel (0) target = $region9
  $region8: #{discriminator1_forward.6} parent=0 // pred_region
    _
  $region9: #{discriminator1_forward.6} parent=0 // pred_fallthru
    _
  // Predicated region
  $region10: #{discriminator1_forward.6} parent=0 // pred_check
    _
  $region11: #{discriminator1_forward.6} parent=0 // pred_check_branch
    %14 = sbr.rel (0) target = $region13
  $region12: #{discriminator1_forward.6} parent=0 // pred_region
    _
  $region13: #{discriminator1_forward.6} parent=0 // pred_fallthru
    _
  // Predicated region
  $region14: #{discriminator1_forward.6} parent=0 // pred_check
    _
  $region15: #{discriminator1_forward.6} parent=0 // pred_check_branch
    %16 = sbr.rel (0) target = $region17
  $region16: #{discriminator1_forward.6} parent=0 // pred_region
    _
  $region17: #{discriminator1_forward.6} parent=0 // pred_fallthru
    _
  %v18 = vld [vmem:[%s0] sm:$0xf]
  %v19 = vld [vmem:[%s0 + $0x4] sm:$0xf]
  %v20 = vld [vmem:[%s0 + $0x8] sm:$0xf]
  %v21 = vld [vmem:[%s0 + $0xc] sm:$0xf]
  %v22 = vld [vmem:[%s0 + $0x10] sm:$0xf]
  %v23 = vld [vmem:[%s0 + $0x14] sm:$0xf]
  %v24 = vld [vmem:[%s0 + $0x18] sm:$0xf]
  %v25 = vld [vmem:[%s0 + $0x1c] sm:$0xf]
  %v26 = vld [vmem:[%s0 + $0x20] sm:$0xf]
  %v27 = vld [vmem:[%s0 + $0x24] sm:$0xf]
  %v28 = vld [vmem:[%s0 + $0x28] sm:$0xf]
  %v29 = vld [vmem:[%s0 + $0x2c] sm:$0xf]
  %v30 = vld [vmem:[%s0 + $0x30] sm:$0xf]
  %v31 = vld [vmem:[%s0 + $0x34] sm:$0xf]
  %v32 = vld [vmem:[%s0 + $0x38] sm:$0xf]
  %v33 = vld [vmem:[%s0 + $0x3c] sm:$0xf]
  %v34 = vld [vmem:[%s0 + $0x40] sm:$0xf]
  %v35 = vld [vmem:[%s0 + $0x44] sm:$0xf]
  %v36 = vld [vmem:[%s0 + $0x48] sm:$0xf]
  %v37 = vld [vmem:[%s0 + $0x4c] sm:$0xf]
  %v38 = vld [vmem:[%s0 + $0x50] sm:$0xf]
  %v39 = vld [vmem:[%s0 + $0x54] sm:$0xf]
  %v40 = vld [vmem:[%s0 + $0x58] sm:$0xf]
  %v41 = vld [vmem:[%s0 + $0x5c] sm:$0xf]
  %v42 = vld [vmem:[%s0 + $0x60] sm:$0xf]
  %v43 = vld [vmem:[%s0 + $0x64] sm:$0xf]
  %v44 = vld [vmem:[%s0 + $0x68] sm:$0xf]
  %v45 = vld [vmem:[%s0 + $0x6c] sm:$0xf]
  %v46 = vld [vmem:[%s0 + $0x70] sm:$0xf]
  %v47 = vld [vmem:[%s0 + $0x74] sm:$0xf]
  %v48 = vld [vmem:[%s0 + $0x78] sm:$0xf]
  %v49 = vld [vmem:[%s0 + $0x7c] sm:$0xf]
  %v50 = vld [vmem:[%s0 + $0x80] sm:$0xf]
  %v51 = vld [vmem:[%s0 + $0x84] sm:$0xf]
  %v52 = vld [vmem:[%s0 + $0x88] sm:$0xf]
  %v53 = vld [vmem:[%s0 + $0x8c] sm:$0xf]
  %v54 = vld [vmem:[%s0 + $0x90] sm:$0xf]
  %v55 = vld [vmem:[%s0 + $0x94] sm:$0xf]
  %v56 = vld [vmem:[%s0 + $0x98] sm:$0xf]
  %v57 = vld [vmem:[%s0 + $0x9c] sm:$0xf]
  %v58 = vld [vmem:[%s0 + $0xa0] sm:$0xf]
  %v59 = vld [vmem:[%s0 + $0xa4] sm:$0xf]
  %v60 = vld [vmem:[%s0 + $0xa8] sm:$0xf]
  %v61 = vld [vmem:[%s0 + $0xac] sm:$0xf]
  %v62 = vld [vmem:[%s0 + $0xb0] sm:$0xf]
  %v63 = vld [vmem:[%s0 + $0xb4] sm:$0xf]
  %v64 = vld [vmem:[%s0 + $0xb8] sm:$0xf]
  %v65 = vld [vmem:[%s0 + $0xbc] sm:$0xf]
  %v66 = vld [vmem:[%s0 + $0xc0] sm:$0xf]
  %v67 = vld [vmem:[%s0 + $0xc4] sm:$0xf]
  %v68 = vld [vmem:[%s0 + $0xc8] sm:$0xf]
  %v69 = vld [vmem:[%s0 + $0xcc] sm:$0xf]
  %v70 = vld [vmem:[%s0 + $0xd0] sm:$0xf]
  %v71 = vld [vmem:[%s0 + $0xd4] sm:$0xf]
  %v72 = vld [vmem:[%s0 + $0xd8] sm:$0xf]
  %v73 = vld [vmem:[%s0 + $0xdc] sm:$0xf]
  %v74 = vld [vmem:[%s0 + $0xe0] sm:$0xf]
  %v75 = vld [vmem:[%s0 + $0xe4] sm:$0xf]
  %v76 = vld [vmem:[%s0 + $0xe8] sm:$0xf]
  %v77 = vld [vmem:[%s0 + $0xec] sm:$0xf]
  %v78 = vld [vmem:[%s0 + $0xf0] sm:$0xf]
  %v79 = vld [vmem:[%s0 + $0xf4] sm:$0xf]
  %v80 = vld [vmem:[%s0 + $0xf8] sm:$0xf]
  %v81 = vld [vmem:[%s0 + $0xfc] sm:$0xf]
  %v82 = vld [vmem:[%s1] sm:$0xf]
  %v83 = vld [vmem:[%s1 + $0x4] sm:$0xf]
  %v84 = vld [vmem:[%s1 + $0x8] sm:$0xf]
  %v85 = vld [vmem:[%s1 + $0xc] sm:$0xf]
  %v86 = vld [vmem:[%s1 + $0x10] sm:$0xf]
  %v87 = vld [vmem:[%s1 + $0x14] sm:$0xf]
  %v88 = vld [vmem:[%s1 + $0x18] sm:$0xf]
  %v89 = vld [vmem:[%s1 + $0x1c] sm:$0xf]
  %v90 = vld [vmem:[%s1 + $0x20] sm:$0xf]
  %v91 = vld [vmem:[%s1 + $0x24] sm:$0xf]
  %v92 = vld [vmem:[%s1 + $0x28] sm:$0xf]
  %v93 = vld [vmem:[%s1 + $0x2c] sm:$0xf]
  %v94 = vld [vmem:[%s1 + $0x30] sm:$0xf]
  %v95 = vld [vmem:[%s1 + $0x34] sm:$0xf]
  %v96 = vld [vmem:[%s1 + $0x38] sm:$0xf]
  %v97 = vld [vmem:[%s1 + $0x3c] sm:$0xf]
  %v162 = vunpack.c.l.b16 %v18
  %v163 = vunpack.c.l.b16 %v19
  %v164 = vunpack.c.l.b16 %v20
  %v165 = vunpack.c.l.b16 %v21
  %v166 = vunpack.c.l.b16 %v22
  %v167 = vunpack.c.l.b16 %v23
  %v168 = vunpack.c.l.b16 %v24
  %v169 = vunpack.c.l.b16 %v25
  %v170 = vunpack.c.l.b16 %v26
  %v171 = vunpack.c.l.b16 %v27
  %v172 = vunpack.c.l.b16 %v28
  %v173 = vunpack.c.l.b16 %v29
  %v174 = vunpack.c.l.b16 %v30
  %v175 = vunpack.c.l.b16 %v31
  %v176 = vunpack.c.l.b16 %v32
  %v177 = vunpack.c.l.b16 %v33
  %v178 = vunpack.c.l.b16 %v34
  %v179 = vunpack.c.l.b16 %v35
  %v180 = vunpack.c.l.b16 %v36
  %v181 = vunpack.c.l.b16 %v37
  %v182 = vunpack.c.l.b16 %v38
  %v183 = vunpack.c.l.b16 %v39
  %v184 = vunpack.c.l.b16 %v40
  %v185 = vunpack.c.l.b16 %v41
  %v186 = vunpack.c.l.b16 %v42
  %v187 = vunpack.c.l.b16 %v43
  %v188 = vunpack.c.l.b16 %v44
  %v189 = vunpack.c.l.b16 %v45
  %v190 = vunpack.c.l.b16 %v46
  %v191 = vunpack.c.l.b16 %v47
  %v192 = vunpack.c.l.b16 %v48
  %v193 = vunpack.c.l.b16 %v49
  %v194 = vunpack.c.l.b16 %v50
  %v195 = vunpack.c.l.b16 %v51
  %v196 = vunpack.c.l.b16 %v52
  %v197 = vunpack.c.l.b16 %v53
  %v198 = vunpack.c.l.b16 %v54
  %v199 = vunpack.c.l.b16 %v55
  %v200 = vunpack.c.l.b16 %v56
  %v201 = vunpack.c.l.b16 %v57
  %v202 = vunpack.c.l.b16 %v58
  %v203 = vunpack.c.l.b16 %v59
  %v204 = vunpack.c.l.b16 %v60
  %v205 = vunpack.c.l.b16 %v61
  %v206 = vunpack.c.l.b16 %v62
  %v207 = vunpack.c.l.b16 %v63
  %v208 = vunpack.c.l.b16 %v64
  %v209 = vunpack.c.l.b16 %v65
  %v210 = vunpack.c.l.b16 %v66
  %v211 = vunpack.c.l.b16 %v67
  %v212 = vunpack.c.l.b16 %v68
  %v213 = vunpack.c.l.b16 %v69
  %v214 = vunpack.c.l.b16 %v70
  %v215 = vunpack.c.l.b16 %v71
  %v216 = vunpack.c.l.b16 %v72
  %v217 = vunpack.c.l.b16 %v73
  %v218 = vunpack.c.l.b16 %v74
  %v219 = vunpack.c.l.b16 %v75
  %v220 = vunpack.c.l.b16 %v76
  %v221 = vunpack.c.l.b16 %v77
  %v222 = vunpack.c.l.b16 %v78
  %v223 = vunpack.c.l.b16 %v79
  %v224 = vunpack.c.l.b16 %v80
  %v225 = vunpack.c.l.b16 %v81
  %v226 = vpack.c.b16 %v163, %v162
  %v227 = vpack.c.b16 %v165, %v164
  %v228 = vpack.c.b16 %v167, %v166
  %v229 = vpack.c.b16 %v169, %v168
  %v230 = vpack.c.b16 %v171, %v170
  %v231 = vpack.c.b16 %v173, %v172
  %v232 = vpack.c.b16 %v175, %v174
  %v233 = vpack.c.b16 %v177, %v176
  %v234 = vpack.c.b16 %v179, %v178
  %v235 = vpack.c.b16 %v181, %v180
  %v236 = vpack.c.b16 %v183, %v182
  %v237 = vpack.c.b16 %v185, %v184
  %v238 = vpack.c.b16 %v187, %v186
  %v239 = vpack.c.b16 %v189, %v188
  %v240 = vpack.c.b16 %v191, %v190
  %v241 = vpack.c.b16 %v193, %v192
  %v242 = vpack.c.b16 %v195, %v194
  %v243 = vpack.c.b16 %v197, %v196
  %v244 = vpack.c.b16 %v199, %v198
  %v245 = vpack.c.b16 %v201, %v200
  %v246 = vpack.c.b16 %v203, %v202
  %v247 = vpack.c.b16 %v205, %v204
  %v248 = vpack.c.b16 %v207, %v206
  %v249 = vpack.c.b16 %v209, %v208
  %v250 = vpack.c.b16 %v211, %v210
  %v251 = vpack.c.b16 %v213, %v212
  %v252 = vpack.c.b16 %v215, %v214
  %v253 = vpack.c.b16 %v217, %v216
  %v254 = vpack.c.b16 %v219, %v218
  %v255 = vpack.c.b16 %v221, %v220
  %v256 = vpack.c.b16 %v223, %v222
  %v257 = vpack.c.b16 %v225, %v224
  %v306 = vunpack.c.l.b16 %v82
  %v307 = vunpack.c.l.b16 %v83
  %v308 = vunpack.c.l.b16 %v84
  %v309 = vunpack.c.l.b16 %v85
  %v310 = vunpack.c.l.b16 %v86
  %v311 = vunpack.c.l.b16 %v87
  %v312 = vunpack.c.l.b16 %v88
  %v313 = vunpack.c.l.b16 %v89
  %v314 = vunpack.c.l.b16 %v90
  %v315 = vunpack.c.l.b16 %v91
  %v316 = vunpack.c.l.b16 %v92
  %v317 = vunpack.c.l.b16 %v93
  %v318 = vunpack.c.l.b16 %v94
  %v319 = vunpack.c.l.b16 %v95
  %v320 = vunpack.c.l.b16 %v96
  %v321 = vunpack.c.l.b16 %v97
  %v322 = vpack.c.b16 %v307, %v306
  %v323 = vpack.c.b16 %v309, %v308
  %v324 = vpack.c.b16 %v311, %v310
  %v325 = vpack.c.b16 %v313, %v312
  %v326 = vpack.c.b16 %v315, %v314
  %v327 = vpack.c.b16 %v317, %v316
  %v328 = vpack.c.b16 %v319, %v318
  %v329 = vpack.c.b16 %v321, %v320
  %338 = vmatprep.subr.bf16.mxu0 0
  %339 = vmatpush1.bf16.msra.mxu0 %v322
  %340 = vmatprep.subr.bf16.mxu0 0
  %341 = vmatpush1.bf16.msra.mxu0 %v323
  %342 = vmatprep.subr.bf16.mxu0 0
  %343 = vmatpush1.bf16.msra.mxu0 %v324
  %344 = vmatprep.subr.bf16.mxu0 0
  %345 = vmatpush1.bf16.msra.mxu0 %v325
  %346 = vmatprep.subr.bf16.mxu0 0
  %347 = vmatpush1.bf16.msra.mxu0 %v326
  %348 = vmatprep.subr.bf16.mxu0 0
  %349 = vmatpush1.bf16.msra.mxu0 %v327
  %350 = vmatprep.subr.bf16.mxu0 0
  %351 = vmatpush1.bf16.msra.mxu0 %v328
  %352 = vmatprep.subr.bf16.mxu0 0
  %353 = vmatpush1.bf16.msra.mxu0 %v329
  %354 = vmatprep.subr.bf16.mxu0 0
  %355 = vmatpush1.bf16.msra.mxu0 0
  %356 = vmatprep.subr.bf16.mxu0 0
  %357 = vmatpush1.bf16.msra.mxu0 0
  %358 = vmatprep.subr.bf16.mxu0 0
  %359 = vmatpush1.bf16.msra.mxu0 0
  %360 = vmatprep.subr.bf16.mxu0 0
  %361 = vmatpush1.bf16.msra.mxu0 0
  %362 = vmatprep.subr.bf16.mxu0 0
  %363 = vmatpush1.bf16.msra.mxu0 0
  %364 = vmatprep.subr.bf16.mxu0 0
  %365 = vmatpush1.bf16.msra.mxu0 0
  %366 = vmatprep.subr.bf16.mxu0 0
  %367 = vmatpush1.bf16.msra.mxu0 0
  %368 = vmatprep.subr.bf16.mxu0 0
  %369 = vmatpush1.bf16.msra.mxu0 0
  %370 = vmatprep.mubr.bf16.mxu0 0
  %371 = vmatmul.mubr.bf16.gmra.mrb[0].mxu0 %v226
  %v372 = vpop.f32.mrb[0].mxu0
  %v373 = vadd.f32 0.0, %v372
  %v374 = vpop.f32.mrb[0].mxu0
  %v375 = vpop.f32.mrb[0].mxu0
  %v376 = vadd.f32 0.0, %v375
  %v377 = vpop.f32.mrb[0].mxu0
  %378 = vmatprep.mubr.bf16.mxu0 0
  %379 = vmatmul.mubr.bf16.gmra.mrb[0].mxu0 %v227
  %v380 = vpop.f32.mrb[0].mxu0
  %v381 = vadd.f32 0.0, %v380
  %v382 = vpop.f32.mrb[0].mxu0
  %v383 = vpop.f32.mrb[0].mxu0
  %v384 = vadd.f32 0.0, %v383
  %v385 = vpop.f32.mrb[0].mxu0
  %386 = vmatprep.mubr.bf16.mxu0 0
  %387 = vmatmul.mubr.bf16.gmra.mrb[0].mxu0 %v228
  %v388 = vpop.f32.mrb[0].mxu0
  %v389 = vadd.f32 0.0, %v388
  %v390 = vpop.f32.mrb[0].mxu0
  %v391 = vpop.f32.mrb[0].mxu0
  %v392 = vadd.f32 0.0, %v391
  %v393 = vpop.f32.mrb[0].mxu0
  %394 = vmatprep.mubr.bf16.mxu0 0
  %395 = vmatmul.mubr.bf16.gmra.mrb[0].mxu0 %v229
  %v396 = vpop.f32.mrb[0].mxu0
  %v397 = vadd.f32 0.0, %v396
  %v398 = vpop.f32.mrb[0].mxu0
  %v399 = vpop.f32.mrb[0].mxu0
  %v400 = vadd.f32 0.0, %v399
  %v401 = vpop.f32.mrb[0].mxu0
  %402 = vmatprep.mubr.bf16.mxu0 0
  %403 = vmatmul.mubr.bf16.gmra.mrb[0].mxu0 %v230
  %v404 = vpop.f32.mrb[0].mxu0
  %v405 = vadd.f32 0.0, %v404
  %v406 = vpop.f32.mrb[0].mxu0
  %v407 = vpop.f32.mrb[0].mxu0
  %v408 = vadd.f32 0.0, %v407
  %v409 = vpop.f32.mrb[0].mxu0
  %410 = vmatprep.mubr.bf16.mxu0 0
  %411 = vmatmul.mubr.bf16.gmra.mrb[0].mxu0 %v231
  %v412 = vpop.f32.mrb[0].mxu0
  %v413 = vadd.f32 0.0, %v412
  %v414 = vpop.f32.mrb[0].mxu0
  %v415 = vpop.f32.mrb[0].mxu0
  %v416 = vadd.f32 0.0, %v415
  %v417 = vpop.f32.mrb[0].mxu0
  %418 = vmatprep.mubr.bf16.mxu0 0
  %419 = vmatmul.mubr.bf16.gmra.mrb[0].mxu0 %v232
  %v420 = vpop.f32.mrb[0].mxu0
  %v421 = vadd.f32 0.0, %v420
  %v422 = vpop.f32.mrb[0].mxu0
  %v423 = vpop.f32.mrb[0].mxu0
  %v424 = vadd.f32 0.0, %v423
  %v425 = vpop.f32.mrb[0].mxu0
  %426 = vmatprep.mubr.bf16.mxu0 0
  %427 = vmatmul.mubr.bf16.gmra.mrb[0].mxu0 %v233
  %v428 = vpop.f32.mrb[0].mxu0
  %v429 = vadd.f32 0.0, %v428
  %v430 = vpop.f32.mrb[0].mxu0
  %v431 = vpop.f32.mrb[0].mxu0
  %v432 = vadd.f32 0.0, %v431
  %v433 = vpop.f32.mrb[0].mxu0
  %434 = vmatprep.mubr.bf16.mxu0 0
  %435 = vmatmul.mubr.bf16.gmra.mrb[0].mxu0 %v234
  %v436 = vpop.f32.mrb[0].mxu0
  %v437 = vadd.f32 0.0, %v436
  %v438 = vpop.f32.mrb[0].mxu0
  %v439 = vpop.f32.mrb[0].mxu0
  %v440 = vadd.f32 0.0, %v439
  %v441 = vpop.f32.mrb[0].mxu0
  %442 = vmatprep.mubr.bf16.mxu0 0
  %443 = vmatmul.mubr.bf16.gmra.mrb[0].mxu0 %v235
  %v444 = vpop.f32.mrb[0].mxu0
  %v445 = vadd.f32 0.0, %v444
  %v446 = vpop.f32.mrb[0].mxu0
  %v447 = vpop.f32.mrb[0].mxu0
  %v448 = vadd.f32 0.0, %v447
  %v449 = vpop.f32.mrb[0].mxu0
  %450 = vmatprep.mubr.bf16.mxu0 0
  %451 = vmatmul.mubr.bf16.gmra.mrb[0].mxu0 %v236
  %v452 = vpop.f32.mrb[0].mxu0
  %v453 = vadd.f32 0.0, %v452
  %v454 = vpop.f32.mrb[0].mxu0
  %v455 = vpop.f32.mrb[0].mxu0
  %v456 = vadd.f32 0.0, %v455
  %v457 = vpop.f32.mrb[0].mxu0
  %458 = vmatprep.mubr.bf16.mxu0 0
  %459 = vmatmul.mubr.bf16.gmra.mrb[0].mxu0 %v237
  %v460 = vpop.f32.mrb[0].mxu0
  %v461 = vadd.f32 0.0, %v460
  %v462 = vpop.f32.mrb[0].mxu0
  %v463 = vpop.f32.mrb[0].mxu0
  %v464 = vadd.f32 0.0, %v463
  %v465 = vpop.f32.mrb[0].mxu0
  %466 = vmatprep.mubr.bf16.mxu0 0
  %467 = vmatmul.mubr.bf16.gmra.mrb[0].mxu0 %v238
  %v468 = vpop.f32.mrb[0].mxu0
  %v469 = vadd.f32 0.0, %v468
  %v470 = vpop.f32.mrb[0].mxu0
  %v471 = vpop.f32.mrb[0].mxu0
  %v472 = vadd.f32 0.0, %v471
  %v473 = vpop.f32.mrb[0].mxu0
  %474 = vmatprep.mubr.bf16.mxu0 0
  %475 = vmatmul.mubr.bf16.gmra.mrb[0].mxu0 %v239
  %v476 = vpop.f32.mrb[0].mxu0
  %v477 = vadd.f32 0.0, %v476
  %v478 = vpop.f32.mrb[0].mxu0
  %v479 = vpop.f32.mrb[0].mxu0
  %v480 = vadd.f32 0.0, %v479
  %v481 = vpop.f32.mrb[0].mxu0
  %482 = vmatprep.mubr.bf16.mxu0 0
  %483 = vmatmul.mubr.bf16.gmra.mrb[0].mxu0 %v240
  %v484 = vpop.f32.mrb[0].mxu0
  %v485 = vadd.f32 0.0, %v484
  %v486 = vpop.f32.mrb[0].mxu0
  %v487 = vpop.f32.mrb[0].mxu0
  %v488 = vadd.f32 0.0, %v487
  %v489 = vpop.f32.mrb[0].mxu0
  %490 = vmatprep.mubr.bf16.mxu0 0
  %491 = vmatmul.mubr.bf16.gmra.mrb[0].mxu0 %v241
  %v492 = vpop.f32.mrb[0].mxu0
  %v493 = vadd.f32 0.0, %v492
  %v494 = vpop.f32.mrb[0].mxu0
  %v495 = vpop.f32.mrb[0].mxu0
  %v496 = vadd.f32 0.0, %v495
  %v497 = vpop.f32.mrb[0].mxu0
  %498 = vmatprep.mubr.bf16.mxu0 0
  %499 = vmatmul.mubr.bf16.gmra.mrb[0].mxu0 %v242
  %v500 = vpop.f32.mrb[0].mxu0
  %v501 = vadd.f32 0.0, %v500
  %v502 = vpop.f32.mrb[0].mxu0
  %v503 = vpop.f32.mrb[0].mxu0
  %v504 = vadd.f32 0.0, %v503
  %v505 = vpop.f32.mrb[0].mxu0
  %506 = vmatprep.mubr.bf16.mxu0 0
  %507 = vmatmul.mubr.bf16.gmra.mrb[0].mxu0 %v243
  %v508 = vpop.f32.mrb[0].mxu0
  %v509 = vadd.f32 0.0, %v508
  %v510 = vpop.f32.mrb[0].mxu0
  %v511 = vpop.f32.mrb[0].mxu0
  %v512 = vadd.f32 0.0, %v511
  %v513 = vpop.f32.mrb[0].mxu0
  %514 = vmatprep.mubr.bf16.mxu0 0
  %515 = vmatmul.mubr.bf16.gmra.mrb[0].mxu0 %v244
  %v516 = vpop.f32.mrb[0].mxu0
  %v517 = vadd.f32 0.0, %v516
  %v518 = vpop.f32.mrb[0].mxu0
  %v519 = vpop.f32.mrb[0].mxu0
  %v520 = vadd.f32 0.0, %v519
  %v521 = vpop.f32.mrb[0].mxu0
  %522 = vmatprep.mubr.bf16.mxu0 0
  %523 = vmatmul.mubr.bf16.gmra.mrb[0].mxu0 %v245
  %v524 = vpop.f32.mrb[0].mxu0
  %v525 = vadd.f32 0.0, %v524
  %v526 = vpop.f32.mrb[0].mxu0
  %v527 = vpop.f32.mrb[0].mxu0
  %v528 = vadd.f32 0.0, %v527
  %v529 = vpop.f32.mrb[0].mxu0
  %530 = vmatprep.mubr.bf16.mxu0 0
  %531 = vmatmul.mubr.bf16.gmra.mrb[0].mxu0 %v246
  %v532 = vpop.f32.mrb[0].mxu0
  %v533 = vadd.f32 0.0, %v532
  %v534 = vpop.f32.mrb[0].mxu0
  %v535 = vpop.f32.mrb[0].mxu0
  %v536 = vadd.f32 0.0, %v535
  %v537 = vpop.f32.mrb[0].mxu0
  %538 = vmatprep.mubr.bf16.mxu0 0
  %539 = vmatmul.mubr.bf16.gmra.mrb[0].mxu0 %v247
  %v540 = vpop.f32.mrb[0].mxu0
  %v541 = vadd.f32 0.0, %v540
  %v542 = vpop.f32.mrb[0].mxu0
  %v543 = vpop.f32.mrb[0].mxu0
  %v544 = vadd.f32 0.0, %v543
  %v545 = vpop.f32.mrb[0].mxu0
  %546 = vmatprep.mubr.bf16.mxu0 0
  %547 = vmatmul.mubr.bf16.gmra.mrb[0].mxu0 %v248
  %v548 = vpop.f32.mrb[0].mxu0
  %v549 = vadd.f32 0.0, %v548
  %v550 = vpop.f32.mrb[0].mxu0
  %v551 = vpop.f32.mrb[0].mxu0
  %v552 = vadd.f32 0.0, %v551
  %v553 = vpop.f32.mrb[0].mxu0
  %554 = vmatprep.mubr.bf16.mxu0 0
  %555 = vmatmul.mubr.bf16.gmra.mrb[0].mxu0 %v249
  %v556 = vpop.f32.mrb[0].mxu0
  %v557 = vadd.f32 0.0, %v556
  %v558 = vpop.f32.mrb[0].mxu0
  %v559 = vpop.f32.mrb[0].mxu0
  %v560 = vadd.f32 0.0, %v559
  %v561 = vpop.f32.mrb[0].mxu0
  %562 = vmatprep.mubr.bf16.mxu0 0
  %563 = vmatmul.mubr.bf16.gmra.mrb[0].mxu0 %v250
  %v564 = vpop.f32.mrb[0].mxu0
  %v565 = vadd.f32 0.0, %v564
  %v566 = vpop.f32.mrb[0].mxu0
  %v567 = vpop.f32.mrb[0].mxu0
  %v568 = vadd.f32 0.0, %v567
  %v569 = vpop.f32.mrb[0].mxu0
  %570 = vmatprep.mubr.bf16.mxu0 0
  %571 = vmatmul.mubr.bf16.gmra.mrb[0].mxu0 %v251
  %v572 = vpop.f32.mrb[0].mxu0
  %v573 = vadd.f32 0.0, %v572
  %v574 = vpop.f32.mrb[0].mxu0
  %v575 = vpop.f32.mrb[0].mxu0
  %v576 = vadd.f32 0.0, %v575
  %v577 = vpop.f32.mrb[0].mxu0
  %578 = vmatprep.mubr.bf16.mxu0 0
  %579 = vmatmul.mubr.bf16.gmra.mrb[0].mxu0 %v252
  %v580 = vpop.f32.mrb[0].mxu0
  %v581 = vadd.f32 0.0, %v580
  %v582 = vpop.f32.mrb[0].mxu0
  %v583 = vpop.f32.mrb[0].mxu0
  %v584 = vadd.f32 0.0, %v583
  %v585 = vpop.f32.mrb[0].mxu0
  %586 = vmatprep.mubr.bf16.mxu0 0
  %587 = vmatmul.mubr.bf16.gmra.mrb[0].mxu0 %v253
  %v588 = vpop.f32.mrb[0].mxu0
  %v589 = vadd.f32 0.0, %v588
  %v590 = vpop.f32.mrb[0].mxu0
  %v591 = vpop.f32.mrb[0].mxu0
  %v592 = vadd.f32 0.0, %v591
  %v593 = vpop.f32.mrb[0].mxu0
  %594 = vmatprep.mubr.bf16.mxu0 0
  %595 = vmatmul.mubr.bf16.gmra.mrb[0].mxu0 %v254
  %v596 = vpop.f32.mrb[0].mxu0
  %v597 = vadd.f32 0.0, %v596
  %v598 = vpop.f32.mrb[0].mxu0
  %v599 = vpop.f32.mrb[0].mxu0
  %v600 = vadd.f32 0.0, %v599
  %v601 = vpop.f32.mrb[0].mxu0
  %602 = vmatprep.mubr.bf16.mxu0 0
  %603 = vmatmul.mubr.bf16.gmra.mrb[0].mxu0 %v255
  %v604 = vpop.f32.mrb[0].mxu0
  %v605 = vadd.f32 0.0, %v604
  %v606 = vpop.f32.mrb[0].mxu0
  %v607 = vpop.f32.mrb[0].mxu0
  %v608 = vadd.f32 0.0, %v607
  %v609 = vpop.f32.mrb[0].mxu0
  %610 = vmatprep.mubr.bf16.mxu0 0
  %611 = vmatmul.mubr.bf16.gmra.mrb[0].mxu0 %v256
  %v612 = vpop.f32.mrb[0].mxu0
  %v613 = vadd.f32 0.0, %v612
  %v614 = vpop.f32.mrb[0].mxu0
  %v615 = vpop.f32.mrb[0].mxu0
  %v616 = vadd.f32 0.0, %v615
  %v617 = vpop.f32.mrb[0].mxu0
  %618 = vmatprep.mubr.bf16.mxu0 0
  %619 = vmatmul.mubr.bf16.gmra.mrb[0].mxu0 %v257
  %v620 = vpop.f32.mrb[0].mxu0
  %v621 = vadd.f32 0.0, %v620
  %v622 = vpop.f32.mrb[0].mxu0
  %v623 = vpop.f32.mrb[0].mxu0
  %v624 = vadd.f32 0.0, %v623
  %v625 = vpop.f32.mrb[0].mxu0
  %626 = vdwg.mxu0
  %v627 = vadd.f32 %v373, %v376
  %v628 = vadd.f32 %v627, %v381
  %v629 = vadd.f32 %v628, %v384
  %v630 = vadd.f32 %v629, %v389
  %v631 = vadd.f32 %v630, %v392
  %v632 = vadd.f32 %v631, %v397
  %v633 = vadd.f32 %v632, %v400
  %v634 = vadd.f32 %v633, %v405
  %v635 = vadd.f32 %v634, %v408
  %v636 = vadd.f32 %v635, %v413
  %v637 = vadd.f32 %v636, %v416
  %v638 = vadd.f32 %v637, %v421
  %v639 = vadd.f32 %v638, %v424
  %v640 = vadd.f32 %v639, %v429
  %v641 = vadd.f32 %v640, %v432
  %v642 = vadd.f32 %v641, %v437
  %v643 = vadd.f32 %v642, %v440
  %v644 = vadd.f32 %v643, %v445
  %v645 = vadd.f32 %v644, %v448
  %v646 = vadd.f32 %v645, %v453
  %v647 = vadd.f32 %v646, %v456
  %v648 = vadd.f32 %v647, %v461
  %v649 = vadd.f32 %v648, %v464
  %v650 = vadd.f32 %v649, %v469
  %v651 = vadd.f32 %v650, %v472
  %v652 = vadd.f32 %v651, %v477
  %v653 = vadd.f32 %v652, %v480
  %v654 = vadd.f32 %v653, %v485
  %v655 = vadd.f32 %v654, %v488
  %v656 = vadd.f32 %v655, %v493
  %v657 = vadd.f32 %v656, %v496
  %v658 = vadd.f32 %v657, %v501
  %v659 = vadd.f32 %v658, %v504
  %v660 = vadd.f32 %v659, %v509
  %v661 = vadd.f32 %v660, %v512
  %v662 = vadd.f32 %v661, %v517
  %v663 = vadd.f32 %v662, %v520
  %v664 = vadd.f32 %v663, %v525
  %v665 = vadd.f32 %v664, %v528
  %v666 = vadd.f32 %v665, %v533
  %v667 = vadd.f32 %v666, %v536
  %v668 = vadd.f32 %v667, %v541
  %v669 = vadd.f32 %v668, %v544
  %v670 = vadd.f32 %v669, %v549
  %v671 = vadd.f32 %v670, %v552
  %v672 = vadd.f32 %v671, %v557
  %v673 = vadd.f32 %v672, %v560
  %v674 = vadd.f32 %v673, %v565
  %v675 = vadd.f32 %v674, %v568
  %v676 = vadd.f32 %v675, %v573
  %v677 = vadd.f32 %v676, %v576
  %v678 = vadd.f32 %v677, %v581
  %v679 = vadd.f32 %v678, %v584
  %v680 = vadd.f32 %v679, %v589
  %v681 = vadd.f32 %v680, %v592
  %v682 = vadd.f32 %v681, %v597
  %v683 = vadd.f32 %v682, %v600
  %v684 = vadd.f32 %v683, %v605
  %v685 = vadd.f32 %v684, %v608
  %v686 = vadd.f32 %v685, %v613
  %v687 = vadd.f32 %v686, %v616
  %v688 = vadd.f32 %v687, %v621
  %v689 = vadd.f32 %v688, %v624
  %v690 = vrot.slane %v689, 4
  %v691 = vadd.f32 %v689, %v690
  %v692 = vrot.slane %v691, 2
  %v693 = vadd.f32 %v691, %v692
  %v694 = vrot.slane %v693, 1
  %v695 = vadd.f32 %v693, %v694
  %v696 = vmul.f32 %v695, 0.001953125
  %v697 = vmul.f32 %v373, %v373
  %v698 = vmul.f32 %v376, %v376
  %v699 = vmul.f32 %v381, %v381
  %v700 = vmul.f32 %v384, %v384
  %v701 = vmul.f32 %v389, %v389
  %v702 = vmul.f32 %v392, %v392
  %v703 = vmul.f32 %v397, %v397
  %v704 = vmul.f32 %v400, %v400
  %v705 = vmul.f32 %v405, %v405
  %v706 = vmul.f32 %v408, %v408
  %v707 = vmul.f32 %v413, %v413
  %v708 = vmul.f32 %v416, %v416
  %v709 = vmul.f32 %v421, %v421
  %v710 = vmul.f32 %v424, %v424
  %v711 = vmul.f32 %v429, %v429
  %v712 = vmul.f32 %v432, %v432
  %v713 = vmul.f32 %v437, %v437
  %v714 = vmul.f32 %v440, %v440
  %v715 = vmul.f32 %v445, %v445
  %v716 = vmul.f32 %v448, %v448
  %v717 = vmul.f32 %v453, %v453
  %v718 = vmul.f32 %v456, %v456
  %v719 = vmul.f32 %v461, %v461
  %v720 = vmul.f32 %v464, %v464
  %v721 = vmul.f32 %v469, %v469
  %v722 = vmul.f32 %v472, %v472
  %v723 = vmul.f32 %v477, %v477
  %v724 = vmul.f32 %v480, %v480
  %v725 = vmul.f32 %v485, %v485
  %v726 = vmul.f32 %v488, %v488
  %v727 = vmul.f32 %v493, %v493
  %v728 = vmul.f32 %v496, %v496
  %v729 = vmul.f32 %v501, %v501
  %v730 = vmul.f32 %v504, %v504
  %v731 = vmul.f32 %v509, %v509
  %v732 = vmul.f32 %v512, %v512
  %v733 = vmul.f32 %v517, %v517
  %v734 = vmul.f32 %v520, %v520
  %v735 = vmul.f32 %v525, %v525
  %v736 = vmul.f32 %v528, %v528
  %v737 = vmul.f32 %v533, %v533
  %v738 = vmul.f32 %v536, %v536
  %v739 = vmul.f32 %v541, %v541
  %v740 = vmul.f32 %v544, %v544
  %v741 = vmul.f32 %v549, %v549
  %v742 = vmul.f32 %v552, %v552
  %v743 = vmul.f32 %v557, %v557
  %v744 = vmul.f32 %v560, %v560
  %v745 = vmul.f32 %v565, %v565
  %v746 = vmul.f32 %v568, %v568
  %v747 = vmul.f32 %v573, %v573
  %v748 = vmul.f32 %v576, %v576
  %v749 = vmul.f32 %v581, %v581
  %v750 = vmul.f32 %v584, %v584
  %v751 = vmul.f32 %v589, %v589
  %v752 = vmul.f32 %v592, %v592
  %v753 = vmul.f32 %v597, %v597
  %v754 = vmul.f32 %v600, %v600
  %v755 = vmul.f32 %v605, %v605
  %v756 = vmul.f32 %v608, %v608
  %v757 = vmul.f32 %v613, %v613
  %v758 = vmul.f32 %v616, %v616
  %v759 = vmul.f32 %v621, %v621
  %v760 = vmul.f32 %v624, %v624
  %v761 = vadd.f32 %v697, %v698
  %v762 = vadd.f32 %v761, %v699
  %v763 = vadd.f32 %v762, %v700
  %v764 = vadd.f32 %v763, %v701
  %v765 = vadd.f32 %v764, %v702
  %v766 = vadd.f32 %v765, %v703
  %v767 = vadd.f32 %v766, %v704
  %v768 = vadd.f32 %v767, %v705
  %v769 = vadd.f32 %v768, %v706
  %v770 = vadd.f32 %v769, %v707
  %v771 = vadd.f32 %v770, %v708
  %v772 = vadd.f32 %v771, %v709
  %v773 = vadd.f32 %v772, %v710
  %v774 = vadd.f32 %v773, %v711
  %v775 = vadd.f32 %v774, %v712
  %v776 = vadd.f32 %v775, %v713
  %v777 = vadd.f32 %v776, %v714
  %v778 = vadd.f32 %v777, %v715
  %v779 = vadd.f32 %v778, %v716
  %v780 = vadd.f32 %v779, %v717
  %v781 = vadd.f32 %v780, %v718
  %v782 = vadd.f32 %v781, %v719
  %v783 = vadd.f32 %v782, %v720
  %v784 = vadd.f32 %v783, %v721
  %v785 = vadd.f32 %v784, %v722
  %v786 = vadd.f32 %v785, %v723
  %v787 = vadd.f32 %v786, %v724
  %v788 = vadd.f32 %v787, %v725
  %v789 = vadd.f32 %v788, %v726
  %v790 = vadd.f32 %v789, %v727
  %v791 = vadd.f32 %v790, %v728
  %v792 = vadd.f32 %v791, %v729
  %v793 = vadd.f32 %v792, %v730
  %v794 = vadd.f32 %v793, %v731
  %v795 = vadd.f32 %v794, %v732
  %v796 = vadd.f32 %v795, %v733
  %v797 = vadd.f32 %v796, %v734
  %v798 = vadd.f32 %v797, %v735
  %v799 = vadd.f32 %v798, %v736
  %v800 = vadd.f32 %v799, %v737
  %v801 = vadd.f32 %v800, %v738
  %v802 = vadd.f32 %v801, %v739
  %v803 = vadd.f32 %v802, %v740
  %v804 = vadd.f32 %v803, %v741
  %v805 = vadd.f32 %v804, %v742
  %v806 = vadd.f32 %v805, %v743
  %v807 = vadd.f32 %v806, %v744
  %v808 = vadd.f32 %v807, %v745
  %v809 = vadd.f32 %v808, %v746
  %v810 = vadd.f32 %v809, %v747
  %v811 = vadd.f32 %v810, %v748
  %v812 = vadd.f32 %v811, %v749
  %v813 = vadd.f32 %v812, %v750
  %v814 = vadd.f32 %v813, %v751
  %v815 = vadd.f32 %v814, %v752
  %v816 = vadd.f32 %v815, %v753
  %v817 = vadd.f32 %v816, %v754
  %v818 = vadd.f32 %v817, %v755
  %v819 = vadd.f32 %v818, %v756
  %v820 = vadd.f32 %v819, %v757
  %v821 = vadd.f32 %v820, %v758
  %v822 = vadd.f32 %v821, %v759
  %v823 = vadd.f32 %v822, %v760
  %v824 = vrot.slane %v823, 4
  %v825 = vadd.f32 %v823, %v824
  %v826 = vrot.slane %v825, 2
  %v827 = vadd.f32 %v825, %v826
  %v828 = vrot.slane %v827, 1
  %v829 = vadd.f32 %v827, %v828
  %v830 = vmul.f32 %v829, 0.001953125
  %v831 = vmul.f32 %v696, %v696
  %v832 = vsub.f32 %v830, %v831
  %v833 = vmax.f32 %v832, 0.0
  %v834 = vld [vmem:[%s2] sm:$0x1]
  %v835 = vadd.f32 %v833, 1e-05
  %v836 = vrsqrt.pop %v835
  %v837 = vmul.f32 %v834, %v836
  %v838 = vld [vmem:[%s3] sm:$0x1]
  %v839 = vmul.f32 %v696, %v837
  %v840 = vsub.f32 %v838, %v839
  %v842 = vlaneseq
  %v843 = vshrl.u32 %v842, 7
  %v844 = vsub.s32 0, %v843
  %v845 = vrot.slane %v837, %v844
  %v847 = vmul.f32 %v373, %v845
  %v848 = vmul.f32 %v376, %v845
  %v849 = vmul.f32 %v381, %v845
  %v850 = vmul.f32 %v384, %v845
  %v851 = vmul.f32 %v389, %v845
  %v852 = vmul.f32 %v392, %v845
  %v853 = vmul.f32 %v397, %v845
  %v854 = vmul.f32 %v400, %v845
  %v855 = vmul.f32 %v405, %v845
  %v856 = vmul.f32 %v408, %v845
  %v857 = vmul.f32 %v413, %v845
  %v858 = vmul.f32 %v416, %v845
  %v859 = vmul.f32 %v421, %v845
  %v860 = vmul.f32 %v424, %v845
  %v861 = vmul.f32 %v429, %v845
  %v862 = vmul.f32 %v432, %v845
  %v863 = vmul.f32 %v437, %v845
  %v864 = vmul.f32 %v440, %v845
  %v865 = vmul.f32 %v445, %v845
  %v866 = vmul.f32 %v448, %v845
  %v867 = vmul.f32 %v453, %v845
  %v868 = vmul.f32 %v456, %v845
  %v869 = vmul.f32 %v461, %v845
  %v870 = vmul.f32 %v464, %v845
  %v871 = vmul.f32 %v469, %v845
  %v872 = vmul.f32 %v472, %v845
  %v873 = vmul.f32 %v477, %v845
  %v874 = vmul.f32 %v480, %v845
  %v875 = vmul.f32 %v485, %v845
  %v876 = vmul.f32 %v488, %v845
  %v877 = vmul.f32 %v493, %v845
  %v878 = vmul.f32 %v496, %v845
  %v879 = vmul.f32 %v501, %v845
  %v880 = vmul.f32 %v504, %v845
  %v881 = vmul.f32 %v509, %v845
  %v882 = vmul.f32 %v512, %v845
  %v883 = vmul.f32 %v517, %v845
  %v884 = vmul.f32 %v520, %v845
  %v885 = vmul.f32 %v525, %v845
  %v886 = vmul.f32 %v528, %v845
  %v887 = vmul.f32 %v533, %v845
  %v888 = vmul.f32 %v536, %v845
  %v889 = vmul.f32 %v541, %v845
  %v890 = vmul.f32 %v544, %v845
  %v891 = vmul.f32 %v549, %v845
  %v892 = vmul.f32 %v552, %v845
  %v893 = vmul.f32 %v557, %v845
  %v894 = vmul.f32 %v560, %v845
  %v895 = vmul.f32 %v565, %v845
  %v896 = vmul.f32 %v568, %v845
  %v897 = vmul.f32 %v573, %v845
  %v898 = vmul.f32 %v576, %v845
  %v899 = vmul.f32 %v581, %v845
  %v900 = vmul.f32 %v584, %v845
  %v901 = vmul.f32 %v589, %v845
  %v902 = vmul.f32 %v592, %v845
  %v903 = vmul.f32 %v597, %v845
  %v904 = vmul.f32 %v600, %v845
  %v905 = vmul.f32 %v605, %v845
  %v906 = vmul.f32 %v608, %v845
  %v907 = vmul.f32 %v613, %v845
  %v908 = vmul.f32 %v616, %v845
  %v909 = vmul.f32 %v621, %v845
  %v910 = vmul.f32 %v624, %v845
  %v912 = vlaneseq
  %v913 = vshrl.u32 %v912, 7
  %v914 = vsub.s32 0, %v913
  %v915 = vrot.slane %v840, %v914
  %v917 = vadd.f32 %v847, %v915
  %v918 = vadd.f32 %v848, %v915
  %v919 = vadd.f32 %v849, %v915
  %v920 = vadd.f32 %v850, %v915
  %v921 = vadd.f32 %v851, %v915
  %v922 = vadd.f32 %v852, %v915
  %v923 = vadd.f32 %v853, %v915
  %v924 = vadd.f32 %v854, %v915
  %v925 = vadd.f32 %v855, %v915
  %v926 = vadd.f32 %v856, %v915
  %v927 = vadd.f32 %v857, %v915
  %v928 = vadd.f32 %v858, %v915
  %v929 = vadd.f32 %v859, %v915
  %v930 = vadd.f32 %v860, %v915
  %v931 = vadd.f32 %v861, %v915
  %v932 = vadd.f32 %v862, %v915
  %v933 = vadd.f32 %v863, %v915
  %v934 = vadd.f32 %v864, %v915
  %v935 = vadd.f32 %v865, %v915
  %v936 = vadd.f32 %v866, %v915
  %v937 = vadd.f32 %v867, %v915
  %v938 = vadd.f32 %v868, %v915
  %v939 = vadd.f32 %v869, %v915
  %v940 = vadd.f32 %v870, %v915
  %v941 = vadd.f32 %v871, %v915
  %v942 = vadd.f32 %v872, %v915
  %v943 = vadd.f32 %v873, %v915
  %v944 = vadd.f32 %v874, %v915
  %v945 = vadd.f32 %v875, %v915
  %v946 = vadd.f32 %v876, %v915
  %v947 = vadd.f32 %v877, %v915
  %v948 = vadd.f32 %v878, %v915
  %v949 = vadd.f32 %v879, %v915
  %v950 = vadd.f32 %v880, %v915
  %v951 = vadd.f32 %v881, %v915
  %v952 = vadd.f32 %v882, %v915
  %v953 = vadd.f32 %v883, %v915
  %v954 = vadd.f32 %v884, %v915
  %v955 = vadd.f32 %v885, %v915
  %v956 = vadd.f32 %v886, %v915
  %v957 = vadd.f32 %v887, %v915
  %v958 = vadd.f32 %v888, %v915
  %v959 = vadd.f32 %v889, %v915
  %v960 = vadd.f32 %v890, %v915
  %v961 = vadd.f32 %v891, %v915
  %v962 = vadd.f32 %v892, %v915
  %v963 = vadd.f32 %v893, %v915
  %v964 = vadd.f32 %v894, %v915
  %v965 = vadd.f32 %v895, %v915
  %v966 = vadd.f32 %v896, %v915
  %v967 = vadd.f32 %v897, %v915
  %v968 = vadd.f32 %v898, %v915
  %v969 = vadd.f32 %v899, %v915
  %v970 = vadd.f32 %v900, %v915
  %v971 = vadd.f32 %v901, %v915
  %v972 = vadd.f32 %v902, %v915
  %v973 = vadd.f32 %v903, %v915
  %v974 = vadd.f32 %v904, %v915
  %v975 = vadd.f32 %v905, %v915
  %v976 = vadd.f32 %v906, %v915
  %v977 = vadd.f32 %v907, %v915
  %v978 = vadd.f32 %v908, %v915
  %v979 = vadd.f32 %v909, %v915
  %v980 = vadd.f32 %v910, %v915
  %v981 = vmul.f32 %v917, 0.2
  %v982 = vmul.f32 %v918, 0.2
  %v983 = vmul.f32 %v919, 0.2
  %v984 = vmul.f32 %v920, 0.2
  %v985 = vmul.f32 %v921, 0.2
  %v986 = vmul.f32 %v922, 0.2
  %v987 = vmul.f32 %v923, 0.2
  %v988 = vmul.f32 %v924, 0.2
  %v989 = vmul.f32 %v925, 0.2
  %v990 = vmul.f32 %v926, 0.2
  %v991 = vmul.f32 %v927, 0.2
  %v992 = vmul.f32 %v928, 0.2
  %v993 = vmul.f32 %v929, 0.2
  %v994 = vmul.f32 %v930, 0.2
  %v995 = vmul.f32 %v931, 0.2
  %v996 = vmul.f32 %v932, 0.2
  %v997 = vmul.f32 %v933, 0.2
  %v998 = vmul.f32 %v934, 0.2
  %v999 = vmul.f32 %v935, 0.2
  %v1000 = vmul.f32 %v936, 0.2
  %v1001 = vmul.f32 %v937, 0.2
  %v1002 = vmul.f32 %v938, 0.2
  %v1003 = vmul.f32 %v939, 0.2
  %v1004 = vmul.f32 %v940, 0.2
  %v1005 = vmul.f32 %v941, 0.2
  %v1006 = vmul.f32 %v942, 0.2
  %v1007 = vmul.f32 %v943, 0.2
  %v1008 = vmul.f32 %v944, 0.2
  %v1009 = vmul.f32 %v945, 0.2
  %v1010 = vmul.f32 %v946, 0.2
  %v1011 = vmul.f32 %v947, 0.2
  %v1012 = vmul.f32 %v948, 0.2
  %v1013 = vmul.f32 %v949, 0.2
  %v1014 = vmul.f32 %v950, 0.2
  %v1015 = vmul.f32 %v951, 0.2
  %v1016 = vmul.f32 %v952, 0.2
  %v1017 = vmul.f32 %v953, 0.2
  %v1018 = vmul.f32 %v954, 0.2
  %v1019 = vmul.f32 %v955, 0.2
  %v1020 = vmul.f32 %v956, 0.2
  %v1021 = vmul.f32 %v957, 0.2
  %v1022 = vmul.f32 %v958, 0.2
  %v1023 = vmul.f32 %v959, 0.2
  %v1024 = vmul.f32 %v960, 0.2
  %v1025 = vmul.f32 %v961, 0.2
  %v1026 = vmul.f32 %v962, 0.2
  %v1027 = vmul.f32 %v963, 0.2
  %v1028 = vmul.f32 %v964, 0.2
  %v1029 = vmul.f32 %v965, 0.2
  %v1030 = vmul.f32 %v966, 0.2
  %v1031 = vmul.f32 %v967, 0.2
  %v1032 = vmul.f32 %v968, 0.2
  %v1033 = vmul.f32 %v969, 0.2
  %v1034 = vmul.f32 %v970, 0.2
  %v1035 = vmul.f32 %v971, 0.2
  %v1036 = vmul.f32 %v972, 0.2
  %v1037 = vmul.f32 %v973, 0.2
  %v1038 = vmul.f32 %v974, 0.2
  %v1039 = vmul.f32 %v975, 0.2
  %v1040 = vmul.f32 %v976, 0.2
  %v1041 = vmul.f32 %v977, 0.2
  %v1042 = vmul.f32 %v978, 0.2
  %v1043 = vmul.f32 %v979, 0.2
  %v1044 = vmul.f32 %v980, 0.2
  %v1045 = vmax.f32 %v917, %v981
  %v1046 = vmax.f32 %v918, %v982
  %v1047 = vmax.f32 %v919, %v983
  %v1048 = vmax.f32 %v920, %v984
  %v1049 = vmax.f32 %v921, %v985
  %v1050 = vmax.f32 %v922, %v986
  %v1051 = vmax.f32 %v923, %v987
  %v1052 = vmax.f32 %v924, %v988
  %v1053 = vmax.f32 %v925, %v989
  %v1054 = vmax.f32 %v926, %v990
  %v1055 = vmax.f32 %v927, %v991
  %v1056 = vmax.f32 %v928, %v992
  %v1057 = vmax.f32 %v929, %v993
  %v1058 = vmax.f32 %v930, %v994
  %v1059 = vmax.f32 %v931, %v995
  %v1060 = vmax.f32 %v932, %v996
  %v1061 = vmax.f32 %v933, %v997
  %v1062 = vmax.f32 %v934, %v998
  %v1063 = vmax.f32 %v935, %v999
  %v1064 = vmax.f32 %v936, %v1000
  %v1065 = vmax.f32 %v937, %v1001
  %v1066 = vmax.f32 %v938, %v1002
  %v1067 = vmax.f32 %v939, %v1003
  %v1068 = vmax.f32 %v940, %v1004
  %v1069 = vmax.f32 %v941, %v1005
  %v1070 = vmax.f32 %v942, %v1006
  %v1071 = vmax.f32 %v943, %v1007
  %v1072 = vmax.f32 %v944, %v1008
  %v1073 = vmax.f32 %v945, %v1009
  %v1074 = vmax.f32 %v946, %v1010
  %v1075 = vmax.f32 %v947, %v1011
  %v1076 = vmax.f32 %v948, %v1012
  %v1077 = vmax.f32 %v949, %v1013
  %v1078 = vmax.f32 %v950, %v1014
  %v1079 = vmax.f32 %v951, %v1015
  %v1080 = vmax.f32 %v952, %v1016
  %v1081 = vmax.f32 %v953, %v1017
  %v1082 = vmax.f32 %v954, %v1018
  %v1083 = vmax.f32 %v955, %v1019
  %v1084 = vmax.f32 %v956, %v1020
  %v1085 = vmax.f32 %v957, %v1021
  %v1086 = vmax.f32 %v958, %v1022
  %v1087 = vmax.f32 %v959, %v1023
  %v1088 = vmax.f32 %v960, %v1024
  %v1089 = vmax.f32 %v961, %v1025
  %v1090 = vmax.f32 %v962, %v1026
  %v1091 = vmax.f32 %v963, %v1027
  %v1092 = vmax.f32 %v964, %v1028
  %v1093 = vmax.f32 %v965, %v1029
  %v1094 = vmax.f32 %v966, %v1030
  %v1095 = vmax.f32 %v967, %v1031
  %v1096 = vmax.f32 %v968, %v1032
  %v1097 = vmax.f32 %v969, %v1033
  %v1098 = vmax.f32 %v970, %v1034
  %v1099 = vmax.f32 %v971, %v1035
  %v1100 = vmax.f32 %v972, %v1036
  %v1101 = vmax.f32 %v973, %v1037
  %v1102 = vmax.f32 %v974, %v1038
  %v1103 = vmax.f32 %v975, %v1039
  %v1104 = vmax.f32 %v976, %v1040
  %v1105 = vmax.f32 %v977, %v1041
  %v1106 = vmax.f32 %v978, %v1042
  %v1107 = vmax.f32 %v979, %v1043
  %v1108 = vmax.f32 %v980, %v1044
  %v1109 = vpack.c.bf16 %v1046, %v1045
  %v1110 = vpack.c.bf16 %v1048, %v1047
  %v1111 = vpack.c.bf16 %v1050, %v1049
  %v1112 = vpack.c.bf16 %v1052, %v1051
  %v1113 = vpack.c.bf16 %v1054, %v1053
  %v1114 = vpack.c.bf16 %v1056, %v1055
  %v1115 = vpack.c.bf16 %v1058, %v1057
  %v1116 = vpack.c.bf16 %v1060, %v1059
  %v1117 = vpack.c.bf16 %v1062, %v1061
  %v1118 = vpack.c.bf16 %v1064, %v1063
  %v1119 = vpack.c.bf16 %v1066, %v1065
  %v1120 = vpack.c.bf16 %v1068, %v1067
  %v1121 = vpack.c.bf16 %v1070, %v1069
  %v1122 = vpack.c.bf16 %v1072, %v1071
  %v1123 = vpack.c.bf16 %v1074, %v1073
  %v1124 = vpack.c.bf16 %v1076, %v1075
  %v1125 = vpack.c.bf16 %v1078, %v1077
  %v1126 = vpack.c.bf16 %v1080, %v1079
  %v1127 = vpack.c.bf16 %v1082, %v1081
  %v1128 = vpack.c.bf16 %v1084, %v1083
  %v1129 = vpack.c.bf16 %v1086, %v1085
  %v1130 = vpack.c.bf16 %v1088, %v1087
  %v1131 = vpack.c.bf16 %v1090, %v1089
  %v1132 = vpack.c.bf16 %v1092, %v1091
  %v1133 = vpack.c.bf16 %v1094, %v1093
  %v1134 = vpack.c.bf16 %v1096, %v1095
  %v1135 = vpack.c.bf16 %v1098, %v1097
  %v1136 = vpack.c.bf16 %v1100, %v1099
  %v1137 = vpack.c.bf16 %v1102, %v1101
  %v1138 = vpack.c.bf16 %v1104, %v1103
  %v1139 = vpack.c.bf16 %v1106, %v1105
  %v1140 = vpack.c.bf16 %v1108, %v1107
  %v1173 = vunpack.c.l.b16 %v1109
  %v1174 = vunpack.c.h.b16 %v1109
  %v1175 = vunpack.c.l.b16 %v1110
  %v1176 = vunpack.c.h.b16 %v1110
  %v1177 = vunpack.c.l.b16 %v1111
  %v1178 = vunpack.c.h.b16 %v1111
  %v1179 = vunpack.c.l.b16 %v1112
  %v1180 = vunpack.c.h.b16 %v1112
  %v1181 = vunpack.c.l.b16 %v1113
  %v1182 = vunpack.c.h.b16 %v1113
  %v1183 = vunpack.c.l.b16 %v1114
  %v1184 = vunpack.c.h.b16 %v1114
  %v1185 = vunpack.c.l.b16 %v1115
  %v1186 = vunpack.c.h.b16 %v1115
  %v1187 = vunpack.c.l.b16 %v1116
  %v1188 = vunpack.c.h.b16 %v1116
  %v1189 = vunpack.c.l.b16 %v1117
  %v1190 = vunpack.c.h.b16 %v1117
  %v1191 = vunpack.c.l.b16 %v1118
  %v1192 = vunpack.c.h.b16 %v1118
  %v1193 = vunpack.c.l.b16 %v1119
  %v1194 = vunpack.c.h.b16 %v1119
  %v1195 = vunpack.c.l.b16 %v1120
  %v1196 = vunpack.c.h.b16 %v1120
  %v1197 = vunpack.c.l.b16 %v1121
  %v1198 = vunpack.c.h.b16 %v1121
  %v1199 = vunpack.c.l.b16 %v1122
  %v1200 = vunpack.c.h.b16 %v1122
  %v1201 = vunpack.c.l.b16 %v1123
  %v1202 = vunpack.c.h.b16 %v1123
  %v1203 = vunpack.c.l.b16 %v1124
  %v1204 = vunpack.c.h.b16 %v1124
  %v1205 = vunpack.c.l.b16 %v1125
  %v1206 = vunpack.c.h.b16 %v1125
  %v1207 = vunpack.c.l.b16 %v1126
  %v1208 = vunpack.c.h.b16 %v1126
  %v1209 = vunpack.c.l.b16 %v1127
  %v1210 = vunpack.c.h.b16 %v1127
  %v1211 = vunpack.c.l.b16 %v1128
  %v1212 = vunpack.c.h.b16 %v1128
  %v1213 = vunpack.c.l.b16 %v1129
  %v1214 = vunpack.c.h.b16 %v1129
  %v1215 = vunpack.c.l.b16 %v1130
  %v1216 = vunpack.c.h.b16 %v1130
  %v1217 = vunpack.c.l.b16 %v1131
  %v1218 = vunpack.c.h.b16 %v1131
  %v1219 = vunpack.c.l.b16 %v1132
  %v1220 = vunpack.c.h.b16 %v1132
  %v1221 = vunpack.c.l.b16 %v1133
  %v1222 = vunpack.c.h.b16 %v1133
  %v1223 = vunpack.c.l.b16 %v1134
  %v1224 = vunpack.c.h.b16 %v1134
  %v1225 = vunpack.c.l.b16 %v1135
  %v1226 = vunpack.c.h.b16 %v1135
  %v1227 = vunpack.c.l.b16 %v1136
  %v1228 = vunpack.c.h.b16 %v1136
  %v1229 = vunpack.c.l.b16 %v1137
  %v1230 = vunpack.c.h.b16 %v1137
  %v1231 = vunpack.c.l.b16 %v1138
  %v1232 = vunpack.c.h.b16 %v1138
  %v1233 = vunpack.c.l.b16 %v1139
  %v1234 = vunpack.c.h.b16 %v1139
  %v1235 = vunpack.c.l.b16 %v1140
  %v1236 = vunpack.c.h.b16 %v1140
  %v1237 = vpack.c.b16 %v1173, %v1173
  %v1238 = vpack.c.b16 %v1174, %v1174
  %v1239 = vpack.c.b16 %v1175, %v1175
  %v1240 = vpack.c.b16 %v1176, %v1176
  %v1241 = vpack.c.b16 %v1177, %v1177
  %v1242 = vpack.c.b16 %v1178, %v1178
  %v1243 = vpack.c.b16 %v1179, %v1179
  %v1244 = vpack.c.b16 %v1180, %v1180
  %v1245 = vpack.c.b16 %v1181, %v1181
  %v1246 = vpack.c.b16 %v1182, %v1182
  %v1247 = vpack.c.b16 %v1183, %v1183
  %v1248 = vpack.c.b16 %v1184, %v1184
  %v1249 = vpack.c.b16 %v1185, %v1185
  %v1250 = vpack.c.b16 %v1186, %v1186
  %v1251 = vpack.c.b16 %v1187, %v1187
  %v1252 = vpack.c.b16 %v1188, %v1188
  %v1253 = vpack.c.b16 %v1189, %v1189
  %v1254 = vpack.c.b16 %v1190, %v1190
  %v1255 = vpack.c.b16 %v1191, %v1191
  %v1256 = vpack.c.b16 %v1192, %v1192
  %v1257 = vpack.c.b16 %v1193, %v1193
  %v1258 = vpack.c.b16 %v1194, %v1194
  %v1259 = vpack.c.b16 %v1195, %v1195
  %v1260 = vpack.c.b16 %v1196, %v1196
  %v1261 = vpack.c.b16 %v1197, %v1197
  %v1262 = vpack.c.b16 %v1198, %v1198
  %v1263 = vpack.c.b16 %v1199, %v1199
  %v1264 = vpack.c.b16 %v1200, %v1200
  %v1265 = vpack.c.b16 %v1201, %v1201
  %v1266 = vpack.c.b16 %v1202, %v1202
  %v1267 = vpack.c.b16 %v1203, %v1203
  %v1268 = vpack.c.b16 %v1204, %v1204
  %v1269 = vpack.c.b16 %v1205, %v1205
  %v1270 = vpack.c.b16 %v1206, %v1206
  %v1271 = vpack.c.b16 %v1207, %v1207
  %v1272 = vpack.c.b16 %v1208, %v1208
  %v1273 = vpack.c.b16 %v1209, %v1209
  %v1274 = vpack.c.b16 %v1210, %v1210
  %v1275 = vpack.c.b16 %v1211, %v1211
  %v1276 = vpack.c.b16 %v1212, %v1212
  %v1277 = vpack.c.b16 %v1213, %v1213
  %v1278 = vpack.c.b16 %v1214, %v1214
  %v1279 = vpack.c.b16 %v1215, %v1215
  %v1280 = vpack.c.b16 %v1216, %v1216
  %v1281 = vpack.c.b16 %v1217, %v1217
  %v1282 = vpack.c.b16 %v1218, %v1218
  %v1283 = vpack.c.b16 %v1219, %v1219
  %v1284 = vpack.c.b16 %v1220, %v1220
  %v1285 = vpack.c.b16 %v1221, %v1221
  %v1286 = vpack.c.b16 %v1222, %v1222
  %v1287 = vpack.c.b16 %v1223, %v1223
  %v1288 = vpack.c.b16 %v1224, %v1224
  %v1289 = vpack.c.b16 %v1225, %v1225
  %v1290 = vpack.c.b16 %v1226, %v1226
  %v1291 = vpack.c.b16 %v1227, %v1227
  %v1292 = vpack.c.b16 %v1228, %v1228
  %v1293 = vpack.c.b16 %v1229, %v1229
  %v1294 = vpack.c.b16 %v1230, %v1230
  %v1295 = vpack.c.b16 %v1231, %v1231
  %v1296 = vpack.c.b16 %v1232, %v1232
  %v1297 = vpack.c.b16 %v1233, %v1233
  %v1298 = vpack.c.b16 %v1234, %v1234
  %v1299 = vpack.c.b16 %v1235, %v1235
  %v1300 = vpack.c.b16 %v1236, %v1236
  %1365 = vst [vmem:[%s4] sm:$0xf] %v1237
  %1366 = vst [vmem:[%s4 + $0x4] sm:$0xf] %v1238
  %1367 = vst [vmem:[%s4 + $0x8] sm:$0xf] %v1239
  %1368 = vst [vmem:[%s4 + $0xc] sm:$0xf] %v1240
  %1369 = vst [vmem:[%s4 + $0x10] sm:$0xf] %v1241
  %1370 = vst [vmem:[%s4 + $0x14] sm:$0xf] %v1242
  %1371 = vst [vmem:[%s4 + $0x18] sm:$0xf] %v1243
  %1372 = vst [vmem:[%s4 + $0x1c] sm:$0xf] %v1244
  %1373 = vst [vmem:[%s4 + $0x20] sm:$0xf] %v1245
  %1374 = vst [vmem:[%s4 + $0x24] sm:$0xf] %v1246
  %1375 = vst [vmem:[%s4 + $0x28] sm:$0xf] %v1247
  %1376 = vst [vmem:[%s4 + $0x2c] sm:$0xf] %v1248
  %1377 = vst [vmem:[%s4 + $0x30] sm:$0xf] %v1249
  %1378 = vst [vmem:[%s4 + $0x34] sm:$0xf] %v1250
  %1379 = vst [vmem:[%s4 + $0x38] sm:$0xf] %v1251
  %1380 = vst [vmem:[%s4 + $0x3c] sm:$0xf] %v1252
  %1381 = vst [vmem:[%s4 + $0x40] sm:$0xf] %v1253
  %1382 = vst [vmem:[%s4 + $0x44] sm:$0xf] %v1254
  %1383 = vst [vmem:[%s4 + $0x48] sm:$0xf] %v1255
  %1384 = vst [vmem:[%s4 + $0x4c] sm:$0xf] %v1256
  %1385 = vst [vmem:[%s4 + $0x50] sm:$0xf] %v1257
  %1386 = vst [vmem:[%s4 + $0x54] sm:$0xf] %v1258
  %1387 = vst [vmem:[%s4 + $0x58] sm:$0xf] %v1259
  %1388 = vst [vmem:[%s4 + $0x5c] sm:$0xf] %v1260
  %1389 = vst [vmem:[%s4 + $0x60] sm:$0xf] %v1261
  %1390 = vst [vmem:[%s4 + $0x64] sm:$0xf] %v1262
  %1391 = vst [vmem:[%s4 + $0x68] sm:$0xf] %v1263
  %1392 = vst [vmem:[%s4 + $0x6c] sm:$0xf] %v1264
  %1393 = vst [vmem:[%s4 + $0x70] sm:$0xf] %v1265
  %1394 = vst [vmem:[%s4 + $0x74] sm:$0xf] %v1266
  %1395 = vst [vmem:[%s4 + $0x78] sm:$0xf] %v1267
  %1396 = vst [vmem:[%s4 + $0x7c] sm:$0xf] %v1268
  %1397 = vst [vmem:[%s4 + $0x80] sm:$0xf] %v1269
  %1398 = vst [vmem:[%s4 + $0x84] sm:$0xf] %v1270
  %1399 = vst [vmem:[%s4 + $0x88] sm:$0xf] %v1271
  %1400 = vst [vmem:[%s4 + $0x8c] sm:$0xf] %v1272
  %1401 = vst [vmem:[%s4 + $0x90] sm:$0xf] %v1273
  %1402 = vst [vmem:[%s4 + $0x94] sm:$0xf] %v1274
  %1403 = vst [vmem:[%s4 + $0x98] sm:$0xf] %v1275
  %1404 = vst [vmem:[%s4 + $0x9c] sm:$0xf] %v1276
  %1405 = vst [vmem:[%s4 + $0xa0] sm:$0xf] %v1277
  %1406 = vst [vmem:[%s4 + $0xa4] sm:$0xf] %v1278
  %1407 = vst [vmem:[%s4 + $0xa8] sm:$0xf] %v1279
  %1408 = vst [vmem:[%s4 + $0xac] sm:$0xf] %v1280
  %1409 = vst [vmem:[%s4 + $0xb0] sm:$0xf] %v1281
  %1410 = vst [vmem:[%s4 + $0xb4] sm:$0xf] %v1282
  %1411 = vst [vmem:[%s4 + $0xb8] sm:$0xf] %v1283
  %1412 = vst [vmem:[%s4 + $0xbc] sm:$0xf] %v1284
  %1413 = vst [vmem:[%s4 + $0xc0] sm:$0xf] %v1285
  %1414 = vst [vmem:[%s4 + $0xc4] sm:$0xf] %v1286
  %1415 = vst [vmem:[%s4 + $0xc8] sm:$0xf] %v1287
  %1416 = vst [vmem:[%s4 + $0xcc] sm:$0xf] %v1288
  %1417 = vst [vmem:[%s4 + $0xd0] sm:$0xf] %v1289
  %1418 = vst [vmem:[%s4 + $0xd4] sm:$0xf] %v1290
  %1419 = vst [vmem:[%s4 + $0xd8] sm:$0xf] %v1291
  %1420 = vst [vmem:[%s4 + $0xdc] sm:$0xf] %v1292
  %1421 = vst [vmem:[%s4 + $0xe0] sm:$0xf] %v1293
  %1422 = vst [vmem:[%s4 + $0xe4] sm:$0xf] %v1294
  %1423 = vst [vmem:[%s4 + $0xe8] sm:$0xf] %v1295
  %1424 = vst [vmem:[%s4 + $0xec] sm:$0xf] %v1296
  %1425 = vst [vmem:[%s4 + $0xf0] sm:$0xf] %v1297
  %1426 = vst [vmem:[%s4 + $0xf4] sm:$0xf] %v1298
  %1427 = vst [vmem:[%s4 + $0xf8] sm:$0xf] %v1299
  %1428 = vst [vmem:[%s4 + $0xfc] sm:$0xf] %v1300
  // Predicated region
  $region18: #{discriminator1_forward.6} parent=0 // pred_check
    _
  $region19: #{discriminator1_forward.6} parent=0 // pred_check_branch
    %1430 = sbr.rel (0) target = $region21
  $region20: #{discriminator1_forward.6} parent=0 // pred_region
    _
  $region21: #{discriminator1_forward.6} parent=0 // pred_fallthru
    _
  // Predicated region
  $region22: #{discriminator1_forward.6} parent=0 // pred_check
    _
  $region23: #{discriminator1_forward.6} parent=0 // pred_check_branch
    %1432 = sbr.rel (0) target = $region25
  $region24: #{discriminator1_forward.6} parent=0 // pred_region
    _
  $region25: #{discriminator1_forward.6} parent=0 // pred_fallthru
    _

// kernel: discriminator1_forward.7
$region0: #{discriminator1_forward.7}
  #allocation0 [shape = 'u32[]', space=smem, size = 0x4, offset = 0x4, fixed_abs, tag = 'smem constant byte address 0x4 - core index']
  #allocation1 [shape = 'u32[144,128]{1,0:T(1,128)}', space=vmem, size = 0x12000, scoped, tag = 'internal scratch']
  %s0 = inlined_call_operand.vmem [shape: bf16[128,256], index: 0, kind: input, shape index: {}]
  %s1 = inlined_call_operand.vmem [shape: bf16[256,128], index: 1, kind: input, shape index: {}]
  %s2 = inlined_call_operand.vmem [shape: f32[1,128], index: 2, kind: input, shape index: {}]
  %s3 = inlined_call_operand.vmem [shape: f32[1,128], index: 3, kind: input, shape index: {}]
  %s4 = inlined_call_operand.vmem [shape: bf16[128,128], index: 4, kind: output, shape index: {}]
  %s5 = sld [smem:[#allocation0]]
  $region26: #{discriminator1_forward.7} parent=0
    _
  %s7 = ssub.s32 1, %s5
  %s8 = scalar_select 0, %s7, %s5
  // Predicated region
  $region2: #{discriminator1_forward.7} parent=0 // pred_check
    _
  $region3: #{discriminator1_forward.7} parent=0 // pred_check_branch
    %10 = sbr.rel (0) target = $region5
  $region4: #{discriminator1_forward.7} parent=0 // pred_region
    _
  $region5: #{discriminator1_forward.7} parent=0 // pred_fallthru
    _
  // Predicated region
  $region6: #{discriminator1_forward.7} parent=0 // pred_check
    _
  $region7: #{discriminator1_forward.7} parent=0 // pred_check_branch
    %12 = sbr.rel (0) target = $region9
  $region8: #{discriminator1_forward.7} parent=0 // pred_region
    _
  $region9: #{discriminator1_forward.7} parent=0 // pred_fallthru
    _
  // Predicated region
  $region10: #{discriminator1_forward.7} parent=0 // pred_check
    _
  $region11: #{discriminator1_forward.7} parent=0 // pred_check_branch
    %14 = sbr.rel (0) target = $region13
  $region12: #{discriminator1_forward.7} parent=0 // pred_region
    _
  $region13: #{discriminator1_forward.7} parent=0 // pred_fallthru
    _
  // Predicated region
  $region14: #{discriminator1_forward.7} parent=0 // pred_check
    _
  $region15: #{discriminator1_forward.7} parent=0 // pred_check_branch
    %16 = sbr.rel (0) target = $region17
  $region16: #{discriminator1_forward.7} parent=0 // pred_region
    _
  $region17: #{discriminator1_forward.7} parent=0 // pred_fallthru
    _
  %v18 = vld [vmem:[%s0] sm:$0xff]
  %v19 = vld [vmem:[%s0 + $0x8] sm:$0xff]
  %v20 = vld [vmem:[%s0 + $0x10] sm:$0xff]
  %v21 = vld [vmem:[%s0 + $0x18] sm:$0xff]
  %v22 = vld [vmem:[%s0 + $0x20] sm:$0xff]
  %v23 = vld [vmem:[%s0 + $0x28] sm:$0xff]
  %v24 = vld [vmem:[%s0 + $0x30] sm:$0xff]
  %v25 = vld [vmem:[%s0 + $0x38] sm:$0xff]
  %v26 = vld [vmem:[%s0 + $0x40] sm:$0xff]
  %v27 = vld [vmem:[%s0 + $0x48] sm:$0xff]
  %v28 = vld [vmem:[%s0 + $0x50] sm:$0xff]
  %v29 = vld [vmem:[%s0 + $0x58] sm:$0xff]
  %v30 = vld [vmem:[%s0 + $0x60] sm:$0xff]
  %v31 = vld [vmem:[%s0 + $0x68] sm:$0xff]
  %v32 = vld [vmem:[%s0 + $0x70] sm:$0xff]
  %v33 = vld [vmem:[%s0 + $0x78] sm:$0xff]
  %v34 = vld [vmem:[%s1] sm:$0xf]
  %v35 = vld [vmem:[%s1 + $0x4] sm:$0xf]
  %v36 = vld [vmem:[%s1 + $0x8] sm:$0xf]
  %v37 = vld [vmem:[%s1 + $0xc] sm:$0xf]
  %v38 = vld [vmem:[%s1 + $0x10] sm:$0xf]
  %v39 = vld [vmem:[%s1 + $0x14] sm:$0xf]
  %v40 = vld [vmem:[%s1 + $0x18] sm:$0xf]
  %v41 = vld [vmem:[%s1 + $0x1c] sm:$0xf]
  %v42 = vld [vmem:[%s1 + $0x20] sm:$0xf]
  %v43 = vld [vmem:[%s1 + $0x24] sm:$0xf]
  %v44 = vld [vmem:[%s1 + $0x28] sm:$0xf]
  %v45 = vld [vmem:[%s1 + $0x2c] sm:$0xf]
  %v46 = vld [vmem:[%s1 + $0x30] sm:$0xf]
  %v47 = vld [vmem:[%s1 + $0x34] sm:$0xf]
  %v48 = vld [vmem:[%s1 + $0x38] sm:$0xf]
  %v49 = vld [vmem:[%s1 + $0x3c] sm:$0xf]
  %v50 = vld [vmem:[%s1 + $0x40] sm:$0xf]
  %v51 = vld [vmem:[%s1 + $0x44] sm:$0xf]
  %v52 = vld [vmem:[%s1 + $0x48] sm:$0xf]
  %v53 = vld [vmem:[%s1 + $0x4c] sm:$0xf]
  %v54 = vld [vmem:[%s1 + $0x50] sm:$0xf]
  %v55 = vld [vmem:[%s1 + $0x54] sm:$0xf]
  %v56 = vld [vmem:[%s1 + $0x58] sm:$0xf]
  %v57 = vld [vmem:[%s1 + $0x5c] sm:$0xf]
  %v58 = vld [vmem:[%s1 + $0x60] sm:$0xf]
  %v59 = vld [vmem:[%s1 + $0x64] sm:$0xf]
  %v60 = vld [vmem:[%s1 + $0x68] sm:$0xf]
  %v61 = vld [vmem:[%s1 + $0x6c] sm:$0xf]
  %v62 = vld [vmem:[%s1 + $0x70] sm:$0xf]
  %v63 = vld [vmem:[%s1 + $0x74] sm:$0xf]
  %v64 = vld [vmem:[%s1 + $0x78] sm:$0xf]
  %v65 = vld [vmem:[%s1 + $0x7c] sm:$0xf]
  %v82 = vunpack.c.l.b16 %v18
  %v83 = vunpack.c.h.b16 %v18
  %v84 = vunpack.c.l.b16 %v19
  %v85 = vunpack.c.h.b16 %v19
  %v86 = vunpack.c.l.b16 %v20
  %v87 = vunpack.c.h.b16 %v20
  %v88 = vunpack.c.l.b16 %v21
  %v89 = vunpack.c.h.b16 %v21
  %v90 = vunpack.c.l.b16 %v22
  %v91 = vunpack.c.h.b16 %v22
  %v92 = vunpack.c.l.b16 %v23
  %v93 = vunpack.c.h.b16 %v23
  %v94 = vunpack.c.l.b16 %v24
  %v95 = vunpack.c.h.b16 %v24
  %v96 = vunpack.c.l.b16 %v25
  %v97 = vunpack.c.h.b16 %v25
  %v98 = vunpack.c.l.b16 %v26
  %v99 = vunpack.c.h.b16 %v26
  %v100 = vunpack.c.l.b16 %v27
  %v101 = vunpack.c.h.b16 %v27
  %v102 = vunpack.c.l.b16 %v28
  %v103 = vunpack.c.h.b16 %v28
  %v104 = vunpack.c.l.b16 %v29
  %v105 = vunpack.c.h.b16 %v29
  %v106 = vunpack.c.l.b16 %v30
  %v107 = vunpack.c.h.b16 %v30
  %v108 = vunpack.c.l.b16 %v31
  %v109 = vunpack.c.h.b16 %v31
  %v110 = vunpack.c.l.b16 %v32
  %v111 = vunpack.c.h.b16 %v32
  %v112 = vunpack.c.l.b16 %v33
  %v113 = vunpack.c.h.b16 %v33
  %v114 = vpack.c.b16 %v84, %v82
  %v115 = vpack.c.b16 %v85, %v83
  %v116 = vpack.c.b16 %v88, %v86
  %v117 = vpack.c.b16 %v89, %v87
  %v118 = vpack.c.b16 %v92, %v90
  %v119 = vpack.c.b16 %v93, %v91
  %v120 = vpack.c.b16 %v96, %v94
  %v121 = vpack.c.b16 %v97, %v95
  %v122 = vpack.c.b16 %v100, %v98
  %v123 = vpack.c.b16 %v101, %v99
  %v124 = vpack.c.b16 %v104, %v102
  %v125 = vpack.c.b16 %v105, %v103
  %v126 = vpack.c.b16 %v108, %v106
  %v127 = vpack.c.b16 %v109, %v107
  %v128 = vpack.c.b16 %v112, %v110
  %v129 = vpack.c.b16 %v113, %v111
  %v178 = vunpack.c.l.b16 %v34
  %v179 = vunpack.c.l.b16 %v35
  %v180 = vunpack.c.l.b16 %v36
  %v181 = vunpack.c.l.b16 %v37
  %v182 = vunpack.c.l.b16 %v38
  %v183 = vunpack.c.l.b16 %v39
  %v184 = vunpack.c.l.b16 %v40
  %v185 = vunpack.c.l.b16 %v41
  %v186 = vunpack.c.l.b16 %v42
  %v187 = vunpack.c.l.b16 %v43
  %v188 = vunpack.c.l.b16 %v44
  %v189 = vunpack.c.l.b16 %v45
  %v190 = vunpack.c.l.b16 %v46
  %v191 = vunpack.c.l.b16 %v47
  %v192 = vunpack.c.l.b16 %v48
  %v193 = vunpack.c.l.b16 %v49
  %v194 = vunpack.c.l.b16 %v50
  %v195 = vunpack.c.l.b16 %v51
  %v196 = vunpack.c.l.b16 %v52
  %v197 = vunpack.c.l.b16 %v53
  %v198 = vunpack.c.l.b16 %v54
  %v199 = vunpack.c.l.b16 %v55
  %v200 = vunpack.c.l.b16 %v56
  %v201 = vunpack.c.l.b16 %v57
  %v202 = vunpack.c.l.b16 %v58
  %v203 = vunpack.c.l.b16 %v59
  %v204 = vunpack.c.l.b16 %v60
  %v205 = vunpack.c.l.b16 %v61
  %v206 = vunpack.c.l.b16 %v62
  %v207 = vunpack.c.l.b16 %v63
  %v208 = vunpack.c.l.b16 %v64
  %v209 = vunpack.c.l.b16 %v65
  %v210 = vpack.c.b16 %v179, %v178
  %v211 = vpack.c.b16 %v181, %v180
  %v212 = vpack.c.b16 %v183, %v182
  %v213 = vpack.c.b16 %v185, %v184
  %v214 = vpack.c.b16 %v187, %v186
  %v215 = vpack.c.b16 %v189, %v188
  %v216 = vpack.c.b16 %v191, %v190
  %v217 = vpack.c.b16 %v193, %v192
  %v218 = vpack.c.b16 %v195, %v194
  %v219 = vpack.c.b16 %v197, %v196
  %v220 = vpack.c.b16 %v199, %v198
  %v221 = vpack.c.b16 %v201, %v200
  %v222 = vpack.c.b16 %v203, %v202
  %v223 = vpack.c.b16 %v205, %v204
  %v224 = vpack.c.b16 %v207, %v206
  %v225 = vpack.c.b16 %v209, %v208
  %242 = vmatprep.subr.bf16.mxu0 0
  %243 = vmatpush1.bf16.msra.mxu0 %v210
  %244 = vmatprep.subr.bf16.mxu0 0
  %245 = vmatpush1.bf16.msra.mxu0 %v211
  %246 = vmatprep.subr.bf16.mxu0 0
  %247 = vmatpush1.bf16.msra.mxu0 %v212
  %248 = vmatprep.subr.bf16.mxu0 0
  %249 = vmatpush1.bf16.msra.mxu0 %v213
  %250 = vmatprep.subr.bf16.mxu0 0
  %251 = vmatpush1.bf16.msra.mxu0 %v214
  %252 = vmatprep.subr.bf16.mxu0 0
  %253 = vmatpush1.bf16.msra.mxu0 %v215
  %254 = vmatprep.subr.bf16.mxu0 0
  %255 = vmatpush1.bf16.msra.mxu0 %v216
  %256 = vmatprep.subr.bf16.mxu0 0
  %257 = vmatpush1.bf16.msra.mxu0 %v217
  %258 = vmatprep.subr.bf16.mxu0 0
  %259 = vmatpush1.bf16.msra.mxu0 %v218
  %260 = vmatprep.subr.bf16.mxu0 0
  %261 = vmatpush1.bf16.msra.mxu0 %v219
  %262 = vmatprep.subr.bf16.mxu0 0
  %263 = vmatpush1.bf16.msra.mxu0 %v220
  %264 = vmatprep.subr.bf16.mxu0 0
  %265 = vmatpush1.bf16.msra.mxu0 %v221
  %266 = vmatprep.subr.bf16.mxu0 0
  %267 = vmatpush1.bf16.msra.mxu0 %v222
  %268 = vmatprep.subr.bf16.mxu0 0
  %269 = vmatpush1.bf16.msra.mxu0 %v223
  %270 = vmatprep.subr.bf16.mxu0 0
  %271 = vmatpush1.bf16.msra.mxu0 %v224
  %272 = vmatprep.subr.bf16.mxu0 0
  %273 = vmatpush1.bf16.msra.mxu0 %v225
  %274 = vmatprep.mubr.bf16.mxu0 %v115
  %275 = vmatmul.mubr.bf16.gmra.mrb[0].mxu0 %v114
  %v276 = vpop.f32.mrb[0].mxu0
  %v277 = vadd.f32 0.0, %v276
  %v278 = vpop.f32.mrb[0].mxu0
  %v279 = vpop.f32.mrb[0].mxu0
  %v280 = vadd.f32 0.0, %v279
  %v281 = vpop.f32.mrb[0].mxu0
  %282 = vmatprep.mubr.bf16.mxu0 %v117
  %283 = vmatmul.mubr.bf16.gmra.mrb[0].mxu0 %v116
  %v284 = vpop.f32.mrb[0].mxu0
  %v285 = vadd.f32 0.0, %v284
  %v286 = vpop.f32.mrb[0].mxu0
  %v287 = vpop.f32.mrb[0].mxu0
  %v288 = vadd.f32 0.0, %v287
  %v289 = vpop.f32.mrb[0].mxu0
  %290 = vmatprep.mubr.bf16.mxu0 %v119
  %291 = vmatmul.mubr.bf16.gmra.mrb[0].mxu0 %v118
  %v292 = vpop.f32.mrb[0].mxu0
  %v293 = vadd.f32 0.0, %v292
  %v294 = vpop.f32.mrb[0].mxu0
  %v295 = vpop.f32.mrb[0].mxu0
  %v296 = vadd.f32 0.0, %v295
  %v297 = vpop.f32.mrb[0].mxu0
  %298 = vmatprep.mubr.bf16.mxu0 %v121
  %299 = vmatmul.mubr.bf16.gmra.mrb[0].mxu0 %v120
  %v300 = vpop.f32.mrb[0].mxu0
  %v301 = vadd.f32 0.0, %v300
  %v302 = vpop.f32.mrb[0].mxu0
  %v303 = vpop.f32.mrb[0].mxu0
  %v304 = vadd.f32 0.0, %v303
  %v305 = vpop.f32.mrb[0].mxu0
  %306 = vmatprep.mubr.bf16.mxu0 %v123
  %307 = vmatmul.mubr.bf16.gmra.mrb[0].mxu0 %v122
  %v308 = vpop.f32.mrb[0].mxu0
  %v309 = vadd.f32 0.0, %v308
  %v310 = vpop.f32.mrb[0].mxu0
  %v311 = vpop.f32.mrb[0].mxu0
  %v312 = vadd.f32 0.0, %v311
  %v313 = vpop.f32.mrb[0].mxu0
  %314 = vmatprep.mubr.bf16.mxu0 %v125
  %315 = vmatmul.mubr.bf16.gmra.mrb[0].mxu0 %v124
  %v316 = vpop.f32.mrb[0].mxu0
  %v317 = vadd.f32 0.0, %v316
  %v318 = vpop.f32.mrb[0].mxu0
  %v319 = vpop.f32.mrb[0].mxu0
  %v320 = vadd.f32 0.0, %v319
  %v321 = vpop.f32.mrb[0].mxu0
  %322 = vmatprep.mubr.bf16.mxu0 %v127
  %323 = vmatmul.mubr.bf16.gmra.mrb[0].mxu0 %v126
  %v324 = vpop.f32.mrb[0].mxu0
  %v325 = vadd.f32 0.0, %v324
  %v326 = vpop.f32.mrb[0].mxu0
  %v327 = vpop.f32.mrb[0].mxu0
  %v328 = vadd.f32 0.0, %v327
  %v329 = vpop.f32.mrb[0].mxu0
  %330 = vmatprep.mubr.bf16.mxu0 %v129
  %331 = vmatmul.mubr.bf16.gmra.mrb[0].mxu0 %v128
  %v332 = vpop.f32.mrb[0].mxu0
  %v333 = vadd.f32 0.0, %v332
  %v334 = vpop.f32.mrb[0].mxu0
  %v335 = vpop.f32.mrb[0].mxu0
  %v336 = vadd.f32 0.0, %v335
  %v337 = vpop.f32.mrb[0].mxu0
  %338 = vdwg.mxu0
  %v339 = vadd.f32 %v277, %v280
  %v340 = vadd.f32 %v339, %v285
  %v341 = vadd.f32 %v340, %v288
  %v342 = vadd.f32 %v341, %v293
  %v343 = vadd.f32 %v342, %v296
  %v344 = vadd.f32 %v343, %v301
  %v345 = vadd.f32 %v344, %v304
  %v346 = vadd.f32 %v345, %v309
  %v347 = vadd.f32 %v346, %v312
  %v348 = vadd.f32 %v347, %v317
  %v349 = vadd.f32 %v348, %v320
  %v350 = vadd.f32 %v349, %v325
  %v351 = vadd.f32 %v350, %v328
  %v352 = vadd.f32 %v351, %v333
  %v353 = vadd.f32 %v352, %v336
  %v354 = vrot.slane %v353, 4
  %v355 = vadd.f32 %v353, %v354
  %v356 = vrot.slane %v355, 2
  %v357 = vadd.f32 %v355, %v356
  %v358 = vrot.slane %v357, 1
  %v359 = vadd.f32 %v357, %v358
  %v360 = vmul.f32 %v359, 0.0078125
  %v361 = vmul.f32 %v277, %v277
  %v362 = vmul.f32 %v280, %v280
  %v363 = vmul.f32 %v285, %v285
  %v364 = vmul.f32 %v288, %v288
  %v365 = vmul.f32 %v293, %v293
  %v366 = vmul.f32 %v296, %v296
  %v367 = vmul.f32 %v301, %v301
  %v368 = vmul.f32 %v304, %v304
  %v369 = vmul.f32 %v309, %v309
  %v370 = vmul.f32 %v312, %v312
  %v371 = vmul.f32 %v317, %v317
  %v372 = vmul.f32 %v320, %v320
  %v373 = vmul.f32 %v325, %v325
  %v374 = vmul.f32 %v328, %v328
  %v375 = vmul.f32 %v333, %v333
  %v376 = vmul.f32 %v336, %v336
  %v377 = vadd.f32 %v361, %v362
  %v378 = vadd.f32 %v377, %v363
  %v379 = vadd.f32 %v378, %v364
  %v380 = vadd.f32 %v379, %v365
  %v381 = vadd.f32 %v380, %v366
  %v382 = vadd.f32 %v381, %v367
  %v383 = vadd.f32 %v382, %v368
  %v384 = vadd.f32 %v383, %v369
  %v385 = vadd.f32 %v384, %v370
  %v386 = vadd.f32 %v385, %v371
  %v387 = vadd.f32 %v386, %v372
  %v388 = vadd.f32 %v387, %v373
  %v389 = vadd.f32 %v388, %v374
  %v390 = vadd.f32 %v389, %v375
  %v391 = vadd.f32 %v390, %v376
  %v392 = vrot.slane %v391, 4
  %v393 = vadd.f32 %v391, %v392
  %v394 = vrot.slane %v393, 2
  %v395 = vadd.f32 %v393, %v394
  %v396 = vrot.slane %v395, 1
  %v397 = vadd.f32 %v395, %v396
  %v398 = vmul.f32 %v397, 0.0078125
  %v399 = vmul.f32 %v360, %v360
  %v400 = vsub.f32 %v398, %v399
  %v401 = vmax.f32 %v400, 0.0
  %v402 = vld [vmem:[%s2] sm:$0x1]
  %v403 = vadd.f32 %v401, 1e-05
  %v404 = vrsqrt.pop %v403
  %v405 = vmul.f32 %v402, %v404
  %v406 = vld [vmem:[%s3] sm:$0x1]
  %v407 = vmul.f32 %v360, %v405
  %v408 = vsub.f32 %v406, %v407
  %v410 = vlaneseq
  %v411 = vshrl.u32 %v410, 7
  %v412 = vsub.s32 0, %v411
  %v413 = vrot.slane %v405, %v412
  %v415 = vmul.f32 %v277, %v413
  %v416 = vmul.f32 %v280, %v413
  %v417 = vmul.f32 %v285, %v413
  %v418 = vmul.f32 %v288, %v413
  %v419 = vmul.f32 %v293, %v413
  %v420 = vmul.f32 %v296, %v413
  %v421 = vmul.f32 %v301, %v413
  %v422 = vmul.f32 %v304, %v413
  %v423 = vmul.f32 %v309, %v413
  %v424 = vmul.f32 %v312, %v413
  %v425 = vmul.f32 %v317, %v413
  %v426 = vmul.f32 %v320, %v413
  %v427 = vmul.f32 %v325, %v413
  %v428 = vmul.f32 %v328, %v413
  %v429 = vmul.f32 %v333, %v413
  %v430 = vmul.f32 %v336, %v413
  %v432 = vlaneseq
  %v433 = vshrl.u32 %v432, 7
  %v434 = vsub.s32 0, %v433
  %v435 = vrot.slane %v408, %v434
  %v437 = vadd.f32 %v415, %v435
  %v438 = vadd.f32 %v416, %v435
  %v439 = vadd.f32 %v417, %v435
  %v440 = vadd.f32 %v418, %v435
  %v441 = vadd.f32 %v419, %v435
  %v442 = vadd.f32 %v420, %v435
  %v443 = vadd.f32 %v421, %v435
  %v444 = vadd.f32 %v422, %v435
  %v445 = vadd.f32 %v423, %v435
  %v446 = vadd.f32 %v424, %v435
  %v447 = vadd.f32 %v425, %v435
  %v448 = vadd.f32 %v426, %v435
  %v449 = vadd.f32 %v427, %v435
  %v450 = vadd.f32 %v428, %v435
  %v451 = vadd.f32 %v429, %v435
  %v452 = vadd.f32 %v430, %v435
  %v453 = vmul.f32 %v437, 0.2
  %v454 = vmul.f32 %v438, 0.2
  %v455 = vmul.f32 %v439, 0.2
  %v456 = vmul.f32 %v440, 0.2
  %v457 = vmul.f32 %v441, 0.2
  %v458 = vmul.f32 %v442, 0.2
  %v459 = vmul.f32 %v443, 0.2
  %v460 = vmul.f32 %v444, 0.2
  %v461 = vmul.f32 %v445, 0.2
  %v462 = vmul.f32 %v446, 0.2
  %v463 = vmul.f32 %v447, 0.2
  %v464 = vmul.f32 %v448, 0.2
  %v465 = vmul.f32 %v449, 0.2
  %v466 = vmul.f32 %v450, 0.2
  %v467 = vmul.f32 %v451, 0.2
  %v468 = vmul.f32 %v452, 0.2
  %v469 = vmax.f32 %v437, %v453
  %v470 = vmax.f32 %v438, %v454
  %v471 = vmax.f32 %v439, %v455
  %v472 = vmax.f32 %v440, %v456
  %v473 = vmax.f32 %v441, %v457
  %v474 = vmax.f32 %v442, %v458
  %v475 = vmax.f32 %v443, %v459
  %v476 = vmax.f32 %v444, %v460
  %v477 = vmax.f32 %v445, %v461
  %v478 = vmax.f32 %v446, %v462
  %v479 = vmax.f32 %v447, %v463
  %v480 = vmax.f32 %v448, %v464
  %v481 = vmax.f32 %v449, %v465
  %v482 = vmax.f32 %v450, %v466
  %v483 = vmax.f32 %v451, %v467
  %v484 = vmax.f32 %v452, %v468
  %v485 = vpack.c.bf16 %v470, %v469
  %v486 = vpack.c.bf16 %v472, %v471
  %v487 = vpack.c.bf16 %v474, %v473
  %v488 = vpack.c.bf16 %v476, %v475
  %v489 = vpack.c.bf16 %v478, %v477
  %v490 = vpack.c.bf16 %v480, %v479
  %v491 = vpack.c.bf16 %v482, %v481
  %v492 = vpack.c.bf16 %v484, %v483
  %v501 = vunpack.c.l.b16 %v485
  %v502 = vunpack.c.h.b16 %v485
  %v503 = vunpack.c.l.b16 %v486
  %v504 = vunpack.c.h.b16 %v486
  %v505 = vunpack.c.l.b16 %v487
  %v506 = vunpack.c.h.b16 %v487
  %v507 = vunpack.c.l.b16 %v488
  %v508 = vunpack.c.h.b16 %v488
  %v509 = vunpack.c.l.b16 %v489
  %v510 = vunpack.c.h.b16 %v489
  %v511 = vunpack.c.l.b16 %v490
  %v512 = vunpack.c.h.b16 %v490
  %v513 = vunpack.c.l.b16 %v491
  %v514 = vunpack.c.h.b16 %v491
  %v515 = vunpack.c.l.b16 %v492
  %v516 = vunpack.c.h.b16 %v492
  %v517 = vpack.c.b16 %v501, %v501
  %v518 = vpack.c.b16 %v502, %v502
  %v519 = vpack.c.b16 %v503, %v503
  %v520 = vpack.c.b16 %v504, %v504
  %v521 = vpack.c.b16 %v505, %v505
  %v522 = vpack.c.b16 %v506, %v506
  %v523 = vpack.c.b16 %v507, %v507
  %v524 = vpack.c.b16 %v508, %v508
  %v525 = vpack.c.b16 %v509, %v509
  %v526 = vpack.c.b16 %v510, %v510
  %v527 = vpack.c.b16 %v511, %v511
  %v528 = vpack.c.b16 %v512, %v512
  %v529 = vpack.c.b16 %v513, %v513
  %v530 = vpack.c.b16 %v514, %v514
  %v531 = vpack.c.b16 %v515, %v515
  %v532 = vpack.c.b16 %v516, %v516
  %549 = vst [vmem:[%s4] sm:$0xf] %v517
  %550 = vst [vmem:[%s4 + $0x4] sm:$0xf] %v518
  %551 = vst [vmem:[%s4 + $0x8] sm:$0xf] %v519
  %552 = vst [vmem:[%s4 + $0xc] sm:$0xf] %v520
  %553 = vst [vmem:[%s4 + $0x10] sm:$0xf] %v521
  %554 = vst [vmem:[%s4 + $0x14] sm:$0xf] %v522
  %555 = vst [vmem:[%s4 + $0x18] sm:$0xf] %v523
  %556 = vst [vmem:[%s4 + $0x1c] sm:$0xf] %v524
  %557 = vst [vmem:[%s4 + $0x20] sm:$0xf] %v525
  %558 = vst [vmem:[%s4 + $0x24] sm:$0xf] %v526
  %559 = vst [vmem:[%s4 + $0x28] sm:$0xf] %v527
  %560 = vst [vmem:[%s4 + $0x2c] sm:$0xf] %v528
  %561 = vst [vmem:[%s4 + $0x30] sm:$0xf] %v529
  %562 = vst [vmem:[%s4 + $0x34] sm:$0xf] %v530
  %563 = vst [vmem:[%s4 + $0x38] sm:$0xf] %v531
  %564 = vst [vmem:[%s4 + $0x3c] sm:$0xf] %v532
  // Predicated region
  $region18: #{discriminator1_forward.7} parent=0 // pred_check
    _
  $region19: #{discriminator1_forward.7} parent=0 // pred_check_branch
    %566 = sbr.rel (0) target = $region21
  $region20: #{discriminator1_forward.7} parent=0 // pred_region
    _
  $region21: #{discriminator1_forward.7} parent=0 // pred_fallthru
    _
  // Predicated region
  $region22: #{discriminator1_forward.7} parent=0 // pred_check
    _
  $region23: #{discriminator1_forward.7} parent=0 // pred_check_branch
    %568 = sbr.rel (0) target = $region25
  $region24: #{discriminator1_forward.7} parent=0 // pred_region
    _
  $region25: #{discriminator1_forward.7} parent=0 // pred_fallthru
    _

// kernel: discriminator1_forward.8
$region0: #{discriminator1_forward.8}
  #allocation0 [shape = 'u32[]', space=smem, size = 0x4, offset = 0x4, fixed_abs, tag = 'smem constant byte address 0x4 - core index']
  #allocation1 [shape = 'u32[144,128]{1,0:T(1,128)}', space=vmem, size = 0x12000, scoped, tag = 'internal scratch']
  %s0 = inlined_call_operand.vmem [shape: bf16[32,512], index: 0, kind: input, shape index: {}]
  %s1 = inlined_call_operand.vmem [shape: bf16[512,128], index: 1, kind: input, shape index: {}]
  %s2 = inlined_call_operand.vmem [shape: f32[1,128], index: 2, kind: input, shape index: {}]
  %s3 = inlined_call_operand.vmem [shape: f32[1,128], index: 3, kind: input, shape index: {}]
  %s4 = inlined_call_operand.vmem [shape: bf16[32,128], index: 4, kind: output, shape index: {}]
  %s5 = sld [smem:[#allocation0]]
  $region26: #{discriminator1_forward.8} parent=0
    _
  %s7 = ssub.s32 1, %s5
  %s8 = scalar_select 0, %s7, %s5
  // Predicated region
  $region2: #{discriminator1_forward.8} parent=0 // pred_check
    _
  $region3: #{discriminator1_forward.8} parent=0 // pred_check_branch
    %10 = sbr.rel (0) target = $region5
  $region4: #{discriminator1_forward.8} parent=0 // pred_region
    _
  $region5: #{discriminator1_forward.8} parent=0 // pred_fallthru
    _
  // Predicated region
  $region6: #{discriminator1_forward.8} parent=0 // pred_check
    _
  $region7: #{discriminator1_forward.8} parent=0 // pred_check_branch
    %12 = sbr.rel (0) target = $region9
  $region8: #{discriminator1_forward.8} parent=0 // pred_region
    _
  $region9: #{discriminator1_forward.8} parent=0 // pred_fallthru
    _
  // Predicated region
  $region10: #{discriminator1_forward.8} parent=0 // pred_check
    _
  $region11: #{discriminator1_forward.8} parent=0 // pred_check_branch
    %14 = sbr.rel (0) target = $region13
  $region12: #{discriminator1_forward.8} parent=0 // pred_region
    _
  $region13: #{discriminator1_forward.8} parent=0 // pred_fallthru
    _
  // Predicated region
  $region14: #{discriminator1_forward.8} parent=0 // pred_check
    _
  $region15: #{discriminator1_forward.8} parent=0 // pred_check_branch
    %16 = sbr.rel (0) target = $region17
  $region16: #{discriminator1_forward.8} parent=0 // pred_region
    _
  $region17: #{discriminator1_forward.8} parent=0 // pred_fallthru
    _
  %v18 = vld [vmem:[%s0] sm:$0xff]
  %v19 = vld [vmem:[%s0 + $0x8] sm:$0xff]
  %v20 = vld [vmem:[%s0 + $0x10] sm:$0xff]
  %v21 = vld [vmem:[%s0 + $0x18] sm:$0xff]
  %v22 = vld [vmem:[%s0 + $0x20] sm:$0xff]
  %v23 = vld [vmem:[%s0 + $0x28] sm:$0xff]
  %v24 = vld [vmem:[%s0 + $0x30] sm:$0xff]
  %v25 = vld [vmem:[%s0 + $0x38] sm:$0xff]
  %v26 = vld [vmem:[%s1] sm:$0xf]
  %v27 = vld [vmem:[%s1 + $0x4] sm:$0xf]
  %v28 = vld [vmem:[%s1 + $0x8] sm:$0xf]
  %v29 = vld [vmem:[%s1 + $0xc] sm:$0xf]
  %v30 = vld [vmem:[%s1 + $0x10] sm:$0xf]
  %v31 = vld [vmem:[%s1 + $0x14] sm:$0xf]
  %v32 = vld [vmem:[%s1 + $0x18] sm:$0xf]
  %v33 = vld [vmem:[%s1 + $0x1c] sm:$0xf]
  %v34 = vld [vmem:[%s1 + $0x20] sm:$0xf]
  %v35 = vld [vmem:[%s1 + $0x24] sm:$0xf]
  %v36 = vld [vmem:[%s1 + $0x28] sm:$0xf]
  %v37 = vld [vmem:[%s1 + $0x2c] sm:$0xf]
  %v38 = vld [vmem:[%s1 + $0x30] sm:$0xf]
  %v39 = vld [vmem:[%s1 + $0x34] sm:$0xf]
  %v40 = vld [vmem:[%s1 + $0x38] sm:$0xf]
  %v41 = vld [vmem:[%s1 + $0x3c] sm:$0xf]
  %v42 = vld [vmem:[%s1 + $0x40] sm:$0xf]
  %v43 = vld [vmem:[%s1 + $0x44] sm:$0xf]
  %v44 = vld [vmem:[%s1 + $0x48] sm:$0xf]
  %v45 = vld [vmem:[%s1 + $0x4c] sm:$0xf]
  %v46 = vld [vmem:[%s1 + $0x50] sm:$0xf]
  %v47 = vld [vmem:[%s1 + $0x54] sm:$0xf]
  %v48 = vld [vmem:[%s1 + $0x58] sm:$0xf]
  %v49 = vld [vmem:[%s1 + $0x5c] sm:$0xf]
  %v50 = vld [vmem:[%s1 + $0x60] sm:$0xf]
  %v51 = vld [vmem:[%s1 + $0x64] sm:$0xf]
  %v52 = vld [vmem:[%s1 + $0x68] sm:$0xf]
  %v53 = vld [vmem:[%s1 + $0x6c] sm:$0xf]
  %v54 = vld [vmem:[%s1 + $0x70] sm:$0xf]
  %v55 = vld [vmem:[%s1 + $0x74] sm:$0xf]
  %v56 = vld [vmem:[%s1 + $0x78] sm:$0xf]
  %v57 = vld [vmem:[%s1 + $0x7c] sm:$0xf]
  %v58 = vld [vmem:[%s1 + $0x80] sm:$0xf]
  %v59 = vld [vmem:[%s1 + $0x84] sm:$0xf]
  %v60 = vld [vmem:[%s1 + $0x88] sm:$0xf]
  %v61 = vld [vmem:[%s1 + $0x8c] sm:$0xf]
  %v62 = vld [vmem:[%s1 + $0x90] sm:$0xf]
  %v63 = vld [vmem:[%s1 + $0x94] sm:$0xf]
  %v64 = vld [vmem:[%s1 + $0x98] sm:$0xf]
  %v65 = vld [vmem:[%s1 + $0x9c] sm:$0xf]
  %v66 = vld [vmem:[%s1 + $0xa0] sm:$0xf]
  %v67 = vld [vmem:[%s1 + $0xa4] sm:$0xf]
  %v68 = vld [vmem:[%s1 + $0xa8] sm:$0xf]
  %v69 = vld [vmem:[%s1 + $0xac] sm:$0xf]
  %v70 = vld [vmem:[%s1 + $0xb0] sm:$0xf]
  %v71 = vld [vmem:[%s1 + $0xb4] sm:$0xf]
  %v72 = vld [vmem:[%s1 + $0xb8] sm:$0xf]
  %v73 = vld [vmem:[%s1 + $0xbc] sm:$0xf]
  %v74 = vld [vmem:[%s1 + $0xc0] sm:$0xf]
  %v75 = vld [vmem:[%s1 + $0xc4] sm:$0xf]
  %v76 = vld [vmem:[%s1 + $0xc8] sm:$0xf]
  %v77 = vld [vmem:[%s1 + $0xcc] sm:$0xf]
  %v78 = vld [vmem:[%s1 + $0xd0] sm:$0xf]
  %v79 = vld [vmem:[%s1 + $0xd4] sm:$0xf]
  %v80 = vld [vmem:[%s1 + $0xd8] sm:$0xf]
  %v81 = vld [vmem:[%s1 + $0xdc] sm:$0xf]
  %v82 = vld [vmem:[%s1 + $0xe0] sm:$0xf]
  %v83 = vld [vmem:[%s1 + $0xe4] sm:$0xf]
  %v84 = vld [vmem:[%s1 + $0xe8] sm:$0xf]
  %v85 = vld [vmem:[%s1 + $0xec] sm:$0xf]
  %v86 = vld [vmem:[%s1 + $0xf0] sm:$0xf]
  %v87 = vld [vmem:[%s1 + $0xf4] sm:$0xf]
  %v88 = vld [vmem:[%s1 + $0xf8] sm:$0xf]
  %v89 = vld [vmem:[%s1 + $0xfc] sm:$0xf]
  %v98 = vunpack.c.l.b16 %v18
  %v99 = vunpack.c.h.b16 %v18
  %v100 = vunpack.c.l.b16 %v19
  %v101 = vunpack.c.h.b16 %v19
  %v102 = vunpack.c.l.b16 %v20
  %v103 = vunpack.c.h.b16 %v20
  %v104 = vunpack.c.l.b16 %v21
  %v105 = vunpack.c.h.b16 %v21
  %v106 = vunpack.c.l.b16 %v22
  %v107 = vunpack.c.h.b16 %v22
  %v108 = vunpack.c.l.b16 %v23
  %v109 = vunpack.c.h.b16 %v23
  %v110 = vunpack.c.l.b16 %v24
  %v111 = vunpack.c.h.b16 %v24
  %v112 = vunpack.c.l.b16 %v25
  %v113 = vunpack.c.h.b16 %v25
  %v114 = vpack.c.b16 %v102, %v98
  %v115 = vpack.c.b16 %v103, %v99
  %v116 = vpack.c.b16 %v104, %v100
  %v117 = vpack.c.b16 %v105, %v101
  %v118 = vpack.c.b16 %v110, %v106
  %v119 = vpack.c.b16 %v111, %v107
  %v120 = vpack.c.b16 %v112, %v108
  %v121 = vpack.c.b16 %v113, %v109
  %v194 = vunpack.c.l.b16 %v26
  %v195 = vunpack.c.l.b16 %v27
  %v196 = vunpack.c.l.b16 %v28
  %v197 = vunpack.c.l.b16 %v29
  %v198 = vunpack.c.l.b16 %v30
  %v199 = vunpack.c.l.b16 %v31
  %v200 = vunpack.c.l.b16 %v32
  %v201 = vunpack.c.l.b16 %v33
  %v202 = vunpack.c.l.b16 %v34
  %v203 = vunpack.c.l.b16 %v35
  %v204 = vunpack.c.l.b16 %v36
  %v205 = vunpack.c.l.b16 %v37
  %v206 = vunpack.c.l.b16 %v38
  %v207 = vunpack.c.l.b16 %v39
  %v208 = vunpack.c.l.b16 %v40
  %v209 = vunpack.c.l.b16 %v41
  %v210 = vunpack.c.l.b16 %v42
  %v211 = vunpack.c.l.b16 %v43
  %v212 = vunpack.c.l.b16 %v44
  %v213 = vunpack.c.l.b16 %v45
  %v214 = vunpack.c.l.b16 %v46
  %v215 = vunpack.c.l.b16 %v47
  %v216 = vunpack.c.l.b16 %v48
  %v217 = vunpack.c.l.b16 %v49
  %v218 = vunpack.c.l.b16 %v50
  %v219 = vunpack.c.l.b16 %v51
  %v220 = vunpack.c.l.b16 %v52
  %v221 = vunpack.c.l.b16 %v53
  %v222 = vunpack.c.l.b16 %v54
  %v223 = vunpack.c.l.b16 %v55
  %v224 = vunpack.c.l.b16 %v56
  %v225 = vunpack.c.l.b16 %v57
  %v226 = vunpack.c.l.b16 %v58
  %v227 = vunpack.c.l.b16 %v59
  %v228 = vunpack.c.l.b16 %v60
  %v229 = vunpack.c.l.b16 %v61
  %v230 = vunpack.c.l.b16 %v62
  %v231 = vunpack.c.l.b16 %v63
  %v232 = vunpack.c.l.b16 %v64
  %v233 = vunpack.c.l.b16 %v65
  %v234 = vunpack.c.l.b16 %v66
  %v235 = vunpack.c.l.b16 %v67
  %v236 = vunpack.c.l.b16 %v68
  %v237 = vunpack.c.l.b16 %v69
  %v238 = vunpack.c.l.b16 %v70
  %v239 = vunpack.c.l.b16 %v71
  %v240 = vunpack.c.l.b16 %v72
  %v241 = vunpack.c.l.b16 %v73
  %v242 = vunpack.c.l.b16 %v74
  %v243 = vunpack.c.l.b16 %v75
  %v244 = vunpack.c.l.b16 %v76
  %v245 = vunpack.c.l.b16 %v77
  %v246 = vunpack.c.l.b16 %v78
  %v247 = vunpack.c.l.b16 %v79
  %v248 = vunpack.c.l.b16 %v80
  %v249 = vunpack.c.l.b16 %v81
  %v250 = vunpack.c.l.b16 %v82
  %v251 = vunpack.c.l.b16 %v83
  %v252 = vunpack.c.l.b16 %v84
  %v253 = vunpack.c.l.b16 %v85
  %v254 = vunpack.c.l.b16 %v86
  %v255 = vunpack.c.l.b16 %v87
  %v256 = vunpack.c.l.b16 %v88
  %v257 = vunpack.c.l.b16 %v89
  %v258 = vpack.c.b16 %v195, %v194
  %v259 = vpack.c.b16 %v197, %v196
  %v260 = vpack.c.b16 %v199, %v198
  %v261 = vpack.c.b16 %v201, %v200
  %v262 = vpack.c.b16 %v203, %v202
  %v263 = vpack.c.b16 %v205, %v204
  %v264 = vpack.c.b16 %v207, %v206
  %v265 = vpack.c.b16 %v209, %v208
  %v266 = vpack.c.b16 %v211, %v210
  %v267 = vpack.c.b16 %v213, %v212
  %v268 = vpack.c.b16 %v215, %v214
  %v269 = vpack.c.b16 %v217, %v216
  %v270 = vpack.c.b16 %v219, %v218
  %v271 = vpack.c.b16 %v221, %v220
  %v272 = vpack.c.b16 %v223, %v222
  %v273 = vpack.c.b16 %v225, %v224
  %v274 = vpack.c.b16 %v227, %v226
  %v275 = vpack.c.b16 %v229, %v228
  %v276 = vpack.c.b16 %v231, %v230
  %v277 = vpack.c.b16 %v233, %v232
  %v278 = vpack.c.b16 %v235, %v234
  %v279 = vpack.c.b16 %v237, %v236
  %v280 = vpack.c.b16 %v239, %v238
  %v281 = vpack.c.b16 %v241, %v240
  %v282 = vpack.c.b16 %v243, %v242
  %v283 = vpack.c.b16 %v245, %v244
  %v284 = vpack.c.b16 %v247, %v246
  %v285 = vpack.c.b16 %v249, %v248
  %v286 = vpack.c.b16 %v251, %v250
  %v287 = vpack.c.b16 %v253, %v252
  %v288 = vpack.c.b16 %v255, %v254
  %v289 = vpack.c.b16 %v257, %v256
  %322 = vmatprep.subr.bf16.mxu0 0
  %323 = vmatpush1.bf16.msra.mxu0 %v258
  %324 = vmatprep.subr.bf16.mxu0 0
  %325 = vmatpush1.bf16.msra.mxu0 %v259
  %326 = vmatprep.subr.bf16.mxu0 0
  %327 = vmatpush1.bf16.msra.mxu0 %v260
  %328 = vmatprep.subr.bf16.mxu0 0
  %329 = vmatpush1.bf16.msra.mxu0 %v261
  %330 = vmatprep.subr.bf16.mxu0 0
  %331 = vmatpush1.bf16.msra.mxu0 %v262
  %332 = vmatprep.subr.bf16.mxu0 0
  %333 = vmatpush1.bf16.msra.mxu0 %v263
  %334 = vmatprep.subr.bf16.mxu0 0
  %335 = vmatpush1.bf16.msra.mxu0 %v264
  %336 = vmatprep.subr.bf16.mxu0 0
  %337 = vmatpush1.bf16.msra.mxu0 %v265
  %338 = vmatprep.subr.bf16.mxu0 0
  %339 = vmatpush1.bf16.msra.mxu0 %v266
  %340 = vmatprep.subr.bf16.mxu0 0
  %341 = vmatpush1.bf16.msra.mxu0 %v267
  %342 = vmatprep.subr.bf16.mxu0 0
  %343 = vmatpush1.bf16.msra.mxu0 %v268
  %344 = vmatprep.subr.bf16.mxu0 0
  %345 = vmatpush1.bf16.msra.mxu0 %v269
  %346 = vmatprep.subr.bf16.mxu0 0
  %347 = vmatpush1.bf16.msra.mxu0 %v270
  %348 = vmatprep.subr.bf16.mxu0 0
  %349 = vmatpush1.bf16.msra.mxu0 %v271
  %350 = vmatprep.subr.bf16.mxu0 0
  %351 = vmatpush1.bf16.msra.mxu0 %v272
  %352 = vmatprep.subr.bf16.mxu0 0
  %353 = vmatpush1.bf16.msra.mxu0 %v273
  %354 = vmatprep.mubr.bf16.mxu0 %v115
  %355 = vmatmul.mubr.bf16.gmra.mrb[0].mxu0 %v114
  %v356 = vpop.f32.mrb[0].mxu0
  %v357 = vadd.f32 0.0, %v356
  %v358 = vpop.f32.mrb[0].mxu0
  %v359 = vpop.f32.mrb[0].mxu0
  %v360 = vadd.f32 0.0, %v359
  %v361 = vpop.f32.mrb[0].mxu0
  %362 = vmatprep.mubr.bf16.mxu0 %v119
  %363 = vmatmul.mubr.bf16.gmra.mrb[0].mxu0 %v118
  %v364 = vpop.f32.mrb[0].mxu0
  %v365 = vadd.f32 0.0, %v364
  %v366 = vpop.f32.mrb[0].mxu0
  %v367 = vpop.f32.mrb[0].mxu0
  %v368 = vadd.f32 0.0, %v367
  %v369 = vpop.f32.mrb[0].mxu0
  %370 = vdwg.mxu0
  %371 = vmatprep.subr.bf16.mxu0 0
  %372 = vmatpush1.bf16.msra.mxu0 %v274
  %373 = vmatprep.subr.bf16.mxu0 0
  %374 = vmatpush1.bf16.msra.mxu0 %v275
  %375 = vmatprep.subr.bf16.mxu0 0
  %376 = vmatpush1.bf16.msra.mxu0 %v276
  %377 = vmatprep.subr.bf16.mxu0 0
  %378 = vmatpush1.bf16.msra.mxu0 %v277
  %379 = vmatprep.subr.bf16.mxu0 0
  %380 = vmatpush1.bf16.msra.mxu0 %v278
  %381 = vmatprep.subr.bf16.mxu0 0
  %382 = vmatpush1.bf16.msra.mxu0 %v279
  %383 = vmatprep.subr.bf16.mxu0 0
  %384 = vmatpush1.bf16.msra.mxu0 %v280
  %385 = vmatprep.subr.bf16.mxu0 0
  %386 = vmatpush1.bf16.msra.mxu0 %v281
  %387 = vmatprep.subr.bf16.mxu0 0
  %388 = vmatpush1.bf16.msra.mxu0 %v282
  %389 = vmatprep.subr.bf16.mxu0 0
  %390 = vmatpush1.bf16.msra.mxu0 %v283
  %391 = vmatprep.subr.bf16.mxu0 0
  %392 = vmatpush1.bf16.msra.mxu0 %v284
  %393 = vmatprep.subr.bf16.mxu0 0
  %394 = vmatpush1.bf16.msra.mxu0 %v285
  %395 = vmatprep.subr.bf16.mxu0 0
  %396 = vmatpush1.bf16.msra.mxu0 %v286
  %397 = vmatprep.subr.bf16.mxu0 0
  %398 = vmatpush1.bf16.msra.mxu0 %v287
  %399 = vmatprep.subr.bf16.mxu0 0
  %400 = vmatpush1.bf16.msra.mxu0 %v288
  %401 = vmatprep.subr.bf16.mxu0 0
  %402 = vmatpush1.bf16.msra.mxu0 %v289
  %403 = vmatprep.mubr.bf16.mxu0 %v117
  %404 = vmatmul.mubr.bf16.gmra.mrb[0].mxu0 %v116
  %v405 = vpop.f32.mrb[0].mxu0
  %v406 = vadd.f32 %v357, %v405
  %v407 = vpop.f32.mrb[0].mxu0
  %v408 = vpop.f32.mrb[0].mxu0
  %v409 = vadd.f32 %v360, %v408
  %v410 = vpop.f32.mrb[0].mxu0
  %411 = vmatprep.mubr.bf16.mxu0 %v121
  %412 = vmatmul.mubr.bf16.gmra.mrb[0].mxu0 %v120
  %v413 = vpop.f32.mrb[0].mxu0
  %v414 = vadd.f32 %v365, %v413
  %v415 = vpop.f32.mrb[0].mxu0
  %v416 = vpop.f32.mrb[0].mxu0
  %v417 = vadd.f32 %v368, %v416
  %v418 = vpop.f32.mrb[0].mxu0
  %419 = vdwg.mxu0
  %v420 = vadd.f32 %v406, %v409
  %v421 = vadd.f32 %v420, %v414
  %v422 = vadd.f32 %v421, %v417
  %v423 = vrot.slane %v422, 4
  %v424 = vadd.f32 %v422, %v423
  %v425 = vrot.slane %v424, 2
  %v426 = vadd.f32 %v424, %v425
  %v427 = vrot.slane %v426, 1
  %v428 = vadd.f32 %v426, %v427
  %v429 = vmul.f32 %v428, 0.03125
  %v430 = vmul.f32 %v406, %v406
  %v431 = vmul.f32 %v409, %v409
  %v432 = vmul.f32 %v414, %v414
  %v433 = vmul.f32 %v417, %v417
  %v434 = vadd.f32 %v430, %v431
  %v435 = vadd.f32 %v434, %v432
  %v436 = vadd.f32 %v435, %v433
  %v437 = vrot.slane %v436, 4
  %v438 = vadd.f32 %v436, %v437
  %v439 = vrot.slane %v438, 2
  %v440 = vadd.f32 %v438, %v439
  %v441 = vrot.slane %v440, 1
  %v442 = vadd.f32 %v440, %v441
  %v443 = vmul.f32 %v442, 0.03125
  %v444 = vmul.f32 %v429, %v429
  %v445 = vsub.f32 %v443, %v444
  %v446 = vmax.f32 %v445, 0.0
  %v447 = vld [vmem:[%s2] sm:$0x1]
  %v448 = vadd.f32 %v446, 1e-05
  %v449 = vrsqrt.pop %v448
  %v450 = vmul.f32 %v447, %v449
  %v451 = vld [vmem:[%s3] sm:$0x1]
  %v452 = vmul.f32 %v429, %v450
  %v453 = vsub.f32 %v451, %v452
  %v455 = vlaneseq
  %v456 = vshrl.u32 %v455, 7
  %v457 = vsub.s32 0, %v456
  %v458 = vrot.slane %v450, %v457
  %v460 = vmul.f32 %v406, %v458
  %v461 = vmul.f32 %v409, %v458
  %v462 = vmul.f32 %v414, %v458
  %v463 = vmul.f32 %v417, %v458
  %v465 = vlaneseq
  %v466 = vshrl.u32 %v465, 7
  %v467 = vsub.s32 0, %v466
  %v468 = vrot.slane %v453, %v467
  %v470 = vadd.f32 %v460, %v468
  %v471 = vadd.f32 %v461, %v468
  %v472 = vadd.f32 %v462, %v468
  %v473 = vadd.f32 %v463, %v468
  %v474 = vmul.f32 %v470, 0.2
  %v475 = vmul.f32 %v471, 0.2
  %v476 = vmul.f32 %v472, 0.2
  %v477 = vmul.f32 %v473, 0.2
  %v478 = vmax.f32 %v470, %v474
  %v479 = vmax.f32 %v471, %v475
  %v480 = vmax.f32 %v472, %v476
  %v481 = vmax.f32 %v473, %v477
  %v482 = vpack.c.bf16 %v479, %v478
  %v483 = vpack.c.bf16 %v481, %v480
  %v486 = vunpack.c.l.b16 %v482
  %v487 = vunpack.c.h.b16 %v482
  %v488 = vunpack.c.l.b16 %v483
  %v489 = vunpack.c.h.b16 %v483
  %v490 = vpack.c.b16 %v486, %v486
  %v491 = vpack.c.b16 %v487, %v487
  %v492 = vpack.c.b16 %v488, %v488
  %v493 = vpack.c.b16 %v489, %v489
  %498 = vst [vmem:[%s4] sm:$0xf] %v490
  %499 = vst [vmem:[%s4 + $0x4] sm:$0xf] %v491
  %500 = vst [vmem:[%s4 + $0x8] sm:$0xf] %v492
  %501 = vst [vmem:[%s4 + $0xc] sm:$0xf] %v493
  // Predicated region
  $region18: #{discriminator1_forward.8} parent=0 // pred_check
    _
  $region19: #{discriminator1_forward.8} parent=0 // pred_check_branch
    %503 = sbr.rel (0) target = $region21
  $region20: #{discriminator1_forward.8} parent=0 // pred_region
    _
  $region21: #{discriminator1_forward.8} parent=0 // pred_fallthru
    _
  // Predicated region
  $region22: #{discriminator1_forward.8} parent=0 // pred_check
    _
  $region23: #{discriminator1_forward.8} parent=0 // pred_check_branch
    %505 = sbr.rel (0) target = $region25
  $region24: #{discriminator1_forward.8} parent=0 // pred_region
    _
  $region25: #{discriminator1_forward.8} parent=0 // pred_fallthru
    _

// kernel: discriminator1_forward.9
$region0: #{discriminator1_forward.9}
  #allocation0 [shape = 'u32[]', space=smem, size = 0x4, offset = 0x4, fixed_abs, tag = 'smem constant byte address 0x4 - core index']
  #allocation1 [shape = 'u32[144,128]{1,0:T(1,128)}', space=vmem, size = 0x12000, scoped, tag = 'internal scratch']
  %s0 = inlined_call_operand.vmem [shape: bf16[128,1792], index: 0, kind: input, shape index: {}]
  %s1 = inlined_call_operand.vmem [shape: bf16[1792,128], index: 1, kind: input, shape index: {}]
  %s2 = inlined_call_operand.vmem [shape: f32[1,128], index: 2, kind: input, shape index: {}]
  %s3 = inlined_call_operand.vmem [shape: f32[1,128], index: 3, kind: input, shape index: {}]
  %s4 = inlined_call_operand.vmem [shape: f32[16,128], index: 4, kind: input, shape index: {}]
  %s5 = inlined_call_operand.vmem [shape: f32[1,128], index: 5, kind: input, shape index: {}]
  %s6 = inlined_call_operand.vmem [shape: f32[8,128], index: 6, kind: output, shape index: {}]
  %s7 = sld [smem:[#allocation0]]
  $region34: #{discriminator1_forward.9} parent=0
    _
  %s9 = ssub.s32 1, %s7
  %s10 = scalar_select 0, %s9, %s7
  // Predicated region
  $region2: #{discriminator1_forward.9} parent=0 // pred_check
    _
  $region3: #{discriminator1_forward.9} parent=0 // pred_check_branch
    %12 = sbr.rel (0) target = $region5
  $region4: #{discriminator1_forward.9} parent=0 // pred_region
    _
  $region5: #{discriminator1_forward.9} parent=0 // pred_fallthru
    _
  // Predicated region
  $region6: #{discriminator1_forward.9} parent=0 // pred_check
    _
  $region7: #{discriminator1_forward.9} parent=0 // pred_check_branch
    %14 = sbr.rel (0) target = $region9
  $region8: #{discriminator1_forward.9} parent=0 // pred_region
    _
  $region9: #{discriminator1_forward.9} parent=0 // pred_fallthru
    _
  // Predicated region
  $region10: #{discriminator1_forward.9} parent=0 // pred_check
    _
  $region11: #{discriminator1_forward.9} parent=0 // pred_check_branch
    %16 = sbr.rel (0) target = $region13
  $region12: #{discriminator1_forward.9} parent=0 // pred_region
    _
  $region13: #{discriminator1_forward.9} parent=0 // pred_fallthru
    _
  // Predicated region
  $region14: #{discriminator1_forward.9} parent=0 // pred_check
    _
  $region15: #{discriminator1_forward.9} parent=0 // pred_check_branch
    %18 = sbr.rel (0) target = $region17
  $region16: #{discriminator1_forward.9} parent=0 // pred_region
    _
  $region17: #{discriminator1_forward.9} parent=0 // pred_fallthru
    _
  // Predicated region
  $region18: #{discriminator1_forward.9} parent=0 // pred_check
    _
  $region19: #{discriminator1_forward.9} parent=0 // pred_check_branch
    %20 = sbr.rel (0) target = $region21
  $region20: #{discriminator1_forward.9} parent=0 // pred_region
    _
  $region21: #{discriminator1_forward.9} parent=0 // pred_fallthru
    _
  // Predicated region
  $region22: #{discriminator1_forward.9} parent=0 // pred_check
    _
  $region23: #{discriminator1_forward.9} parent=0 // pred_check_branch
    %22 = sbr.rel (0) target = $region25
  $region24: #{discriminator1_forward.9} parent=0 // pred_region
    _
  $region25: #{discriminator1_forward.9} parent=0 // pred_fallthru
    _
  %v24 = vld [vmem:[%s0] sm:$0xff]
  %v25 = vld [vmem:[%s0 + $0x8] sm:$0xff]
  %v26 = vld [vmem:[%s0 + $0x10] sm:$0xff]
  %v27 = vld [vmem:[%s0 + $0x18] sm:$0xff]
  %v28 = vld [vmem:[%s0 + $0x20] sm:$0xff]
  %v29 = vld [vmem:[%s0 + $0x28] sm:$0xff]
  %v30 = vld [vmem:[%s0 + $0x30] sm:$0xff]
  %v31 = vld [vmem:[%s0 + $0x38] sm:$0xff]
  %v32 = vld [vmem:[%s0 + $0x40] sm:$0xff]
  %v33 = vld [vmem:[%s0 + $0x48] sm:$0xff]
  %v34 = vld [vmem:[%s0 + $0x50] sm:$0xff]
  %v35 = vld [vmem:[%s0 + $0x58] sm:$0xff]
  %v36 = vld [vmem:[%s0 + $0x60] sm:$0xff]
  %v37 = vld [vmem:[%s0 + $0x68] sm:$0xff]
  %v38 = vld [vmem:[%s0 + $0x70] sm:$0xff]
  %v39 = vld [vmem:[%s0 + $0x78] sm:$0xff]
  %v40 = vld [vmem:[%s0 + $0x80] sm:$0xff]
  %v41 = vld [vmem:[%s0 + $0x88] sm:$0xff]
  %v42 = vld [vmem:[%s0 + $0x90] sm:$0xff]
  %v43 = vld [vmem:[%s0 + $0x98] sm:$0xff]
  %v44 = vld [vmem:[%s0 + $0xa0] sm:$0xff]
  %v45 = vld [vmem:[%s0 + $0xa8] sm:$0xff]
  %v46 = vld [vmem:[%s0 + $0xb0] sm:$0xff]
  %v47 = vld [vmem:[%s0 + $0xb8] sm:$0xff]
  %v48 = vld [vmem:[%s0 + $0xc0] sm:$0xff]
  %v49 = vld [vmem:[%s0 + $0xc8] sm:$0xff]
  %v50 = vld [vmem:[%s0 + $0xd0] sm:$0xff]
  %v51 = vld [vmem:[%s0 + $0xd8] sm:$0xff]
  %v52 = vld [vmem:[%s0 + $0xe0] sm:$0xff]
  %v53 = vld [vmem:[%s0 + $0xe8] sm:$0xff]
  %v54 = vld [vmem:[%s0 + $0xf0] sm:$0xff]
  %v55 = vld [vmem:[%s0 + $0xf8] sm:$0xff]
  %v56 = vld [vmem:[%s0 + $0x100] sm:$0xff]
  %v57 = vld [vmem:[%s0 + $0x108] sm:$0xff]
  %v58 = vld [vmem:[%s0 + $0x110] sm:$0xff]
  %v59 = vld [vmem:[%s0 + $0x118] sm:$0xff]
  %v60 = vld [vmem:[%s0 + $0x120] sm:$0xff]
  %v61 = vld [vmem:[%s0 + $0x128] sm:$0xff]
  %v62 = vld [vmem:[%s0 + $0x130] sm:$0xff]
  %v63 = vld [vmem:[%s0 + $0x138] sm:$0xff]
  %v64 = vld [vmem:[%s0 + $0x140] sm:$0xff]
  %v65 = vld [vmem:[%s0 + $0x148] sm:$0xff]
  %v66 = vld [vmem:[%s0 + $0x150] sm:$0xff]
  %v67 = vld [vmem:[%s0 + $0x158] sm:$0xff]
  %v68 = vld [vmem:[%s0 + $0x160] sm:$0xff]
  %v69 = vld [vmem:[%s0 + $0x168] sm:$0xff]
  %v70 = vld [vmem:[%s0 + $0x170] sm:$0xff]
  %v71 = vld [vmem:[%s0 + $0x178] sm:$0xff]
  %v72 = vld [vmem:[%s0 + $0x180] sm:$0xff]
  %v73 = vld [vmem:[%s0 + $0x188] sm:$0xff]
  %v74 = vld [vmem:[%s0 + $0x190] sm:$0xff]
  %v75 = vld [vmem:[%s0 + $0x198] sm:$0xff]
  %v76 = vld [vmem:[%s0 + $0x1a0] sm:$0xff]
  %v77 = vld [vmem:[%s0 + $0x1a8] sm:$0xff]
  %v78 = vld [vmem:[%s0 + $0x1b0] sm:$0xff]
  %v79 = vld [vmem:[%s0 + $0x1b8] sm:$0xff]
  %v80 = vld [vmem:[%s0 + $0x1c0] sm:$0xff]
  %v81 = vld [vmem:[%s0 + $0x1c8] sm:$0xff]
  %v82 = vld [vmem:[%s0 + $0x1d0] sm:$0xff]
  %v83 = vld [vmem:[%s0 + $0x1d8] sm:$0xff]
  %v84 = vld [vmem:[%s0 + $0x1e0] sm:$0xff]
  %v85 = vld [vmem:[%s0 + $0x1e8] sm:$0xff]
  %v86 = vld [vmem:[%s0 + $0x1f0] sm:$0xff]
  %v87 = vld [vmem:[%s0 + $0x1f8] sm:$0xff]
  %v88 = vld [vmem:[%s0 + $0x200] sm:$0xff]
  %v89 = vld [vmem:[%s0 + $0x208] sm:$0xff]
  %v90 = vld [vmem:[%s0 + $0x210] sm:$0xff]
  %v91 = vld [vmem:[%s0 + $0x218] sm:$0xff]
  %v92 = vld [vmem:[%s0 + $0x220] sm:$0xff]
  %v93 = vld [vmem:[%s0 + $0x228] sm:$0xff]
  %v94 = vld [vmem:[%s0 + $0x230] sm:$0xff]
  %v95 = vld [vmem:[%s0 + $0x238] sm:$0xff]
  %v96 = vld [vmem:[%s0 + $0x240] sm:$0xff]
  %v97 = vld [vmem:[%s0 + $0x248] sm:$0xff]
  %v98 = vld [vmem:[%s0 + $0x250] sm:$0xff]
  %v99 = vld [vmem:[%s0 + $0x258] sm:$0xff]
  %v100 = vld [vmem:[%s0 + $0x260] sm:$0xff]
  %v101 = vld [vmem:[%s0 + $0x268] sm:$0xff]
  %v102 = vld [vmem:[%s0 + $0x270] sm:$0xff]
  %v103 = vld [vmem:[%s0 + $0x278] sm:$0xff]
  %v104 = vld [vmem:[%s0 + $0x280] sm:$0xff]
  %v105 = vld [vmem:[%s0 + $0x288] sm:$0xff]
  %v106 = vld [vmem:[%s0 + $0x290] sm:$0xff]
  %v107 = vld [vmem:[%s0 + $0x298] sm:$0xff]
  %v108 = vld [vmem:[%s0 + $0x2a0] sm:$0xff]
  %v109 = vld [vmem:[%s0 + $0x2a8] sm:$0xff]
  %v110 = vld [vmem:[%s0 + $0x2b0] sm:$0xff]
  %v111 = vld [vmem:[%s0 + $0x2b8] sm:$0xff]
  %v112 = vld [vmem:[%s0 + $0x2c0] sm:$0xff]
  %v113 = vld [vmem:[%s0 + $0x2c8] sm:$0xff]
  %v114 = vld [vmem:[%s0 + $0x2d0] sm:$0xff]
  %v115 = vld [vmem:[%s0 + $0x2d8] sm:$0xff]
  %v116 = vld [vmem:[%s0 + $0x2e0] sm:$0xff]
  %v117 = vld [vmem:[%s0 + $0x2e8] sm:$0xff]
  %v118 = vld [vmem:[%s0 + $0x2f0] sm:$0xff]
  %v119 = vld [vmem:[%s0 + $0x2f8] sm:$0xff]
  %v120 = vld [vmem:[%s0 + $0x300] sm:$0xff]
  %v121 = vld [vmem:[%s0 + $0x308] sm:$0xff]
  %v122 = vld [vmem:[%s0 + $0x310] sm:$0xff]
  %v123 = vld [vmem:[%s0 + $0x318] sm:$0xff]
  %v124 = vld [vmem:[%s0 + $0x320] sm:$0xff]
  %v125 = vld [vmem:[%s0 + $0x328] sm:$0xff]
  %v126 = vld [vmem:[%s0 + $0x330] sm:$0xff]
  %v127 = vld [vmem:[%s0 + $0x338] sm:$0xff]
  %v128 = vld [vmem:[%s0 + $0x340] sm:$0xff]
  %v129 = vld [vmem:[%s0 + $0x348] sm:$0xff]
  %v130 = vld [vmem:[%s0 + $0x350] sm:$0xff]
  %v131 = vld [vmem:[%s0 + $0x358] sm:$0xff]
  %v132 = vld [vmem:[%s0 + $0x360] sm:$0xff]
  %v133 = vld [vmem:[%s0 + $0x368] sm:$0xff]
  %v134 = vld [vmem:[%s0 + $0x370] sm:$0xff]
  %v135 = vld [vmem:[%s0 + $0x378] sm:$0xff]
  %v136 = vld [vmem:[%s1] sm:$0xf]
  %v137 = vld [vmem:[%s1 + $0x4] sm:$0xf]
  %v138 = vld [vmem:[%s1 + $0x8] sm:$0xf]
  %v139 = vld [vmem:[%s1 + $0xc] sm:$0xf]
  %v140 = vld [vmem:[%s1 + $0x10] sm:$0xf]
  %v141 = vld [vmem:[%s1 + $0x14] sm:$0xf]
  %v142 = vld [vmem:[%s1 + $0x18] sm:$0xf]
  %v143 = vld [vmem:[%s1 + $0x1c] sm:$0xf]
  %v144 = vld [vmem:[%s1 + $0x20] sm:$0xf]
  %v145 = vld [vmem:[%s1 + $0x24] sm:$0xf]
  %v146 = vld [vmem:[%s1 + $0x28] sm:$0xf]
  %v147 = vld [vmem:[%s1 + $0x2c] sm:$0xf]
  %v148 = vld [vmem:[%s1 + $0x30] sm:$0xf]
  %v149 = vld [vmem:[%s1 + $0x34] sm:$0xf]
  %v150 = vld [vmem:[%s1 + $0x38] sm:$0xf]
  %v151 = vld [vmem:[%s1 + $0x3c] sm:$0xf]
  %v152 = vld [vmem:[%s1 + $0x40] sm:$0xf]
  %v153 = vld [vmem:[%s1 + $0x44] sm:$0xf]
  %v154 = vld [vmem:[%s1 + $0x48] sm:$0xf]
  %v155 = vld [vmem:[%s1 + $0x4c] sm:$0xf]
  %v156 = vld [vmem:[%s1 + $0x50] sm:$0xf]
  %v157 = vld [vmem:[%s1 + $0x54] sm:$0xf]
  %v158 = vld [vmem:[%s1 + $0x58] sm:$0xf]
  %v159 = vld [vmem:[%s1 + $0x5c] sm:$0xf]
  %v160 = vld [vmem:[%s1 + $0x60] sm:$0xf]
  %v161 = vld [vmem:[%s1 + $0x64] sm:$0xf]
  %v162 = vld [vmem:[%s1 + $0x68] sm:$0xf]
  %v163 = vld [vmem:[%s1 + $0x6c] sm:$0xf]
  %v164 = vld [vmem:[%s1 + $0x70] sm:$0xf]
  %v165 = vld [vmem:[%s1 + $0x74] sm:$0xf]
  %v166 = vld [vmem:[%s1 + $0x78] sm:$0xf]
  %v167 = vld [vmem:[%s1 + $0x7c] sm:$0xf]
  %v168 = vld [vmem:[%s1 + $0x80] sm:$0xf]
  %v169 = vld [vmem:[%s1 + $0x84] sm:$0xf]
  %v170 = vld [vmem:[%s1 + $0x88] sm:$0xf]
  %v171 = vld [vmem:[%s1 + $0x8c] sm:$0xf]
  %v172 = vld [vmem:[%s1 + $0x90] sm:$0xf]
  %v173 = vld [vmem:[%s1 + $0x94] sm:$0xf]
  %v174 = vld [vmem:[%s1 + $0x98] sm:$0xf]
  %v175 = vld [vmem:[%s1 + $0x9c] sm:$0xf]
  %v176 = vld [vmem:[%s1 + $0xa0] sm:$0xf]
  %v177 = vld [vmem:[%s1 + $0xa4] sm:$0xf]
  %v178 = vld [vmem:[%s1 + $0xa8] sm:$0xf]
  %v179 = vld [vmem:[%s1 + $0xac] sm:$0xf]
  %v180 = vld [vmem:[%s1 + $0xb0] sm:$0xf]
  %v181 = vld [vmem:[%s1 + $0xb4] sm:$0xf]
  %v182 = vld [vmem:[%s1 + $0xb8] sm:$0xf]
  %v183 = vld [vmem:[%s1 + $0xbc] sm:$0xf]
  %v184 = vld [vmem:[%s1 + $0xc0] sm:$0xf]
  %v185 = vld [vmem:[%s1 + $0xc4] sm:$0xf]
  %v186 = vld [vmem:[%s1 + $0xc8] sm:$0xf]
  %v187 = vld [vmem:[%s1 + $0xcc] sm:$0xf]
  %v188 = vld [vmem:[%s1 + $0xd0] sm:$0xf]
  %v189 = vld [vmem:[%s1 + $0xd4] sm:$0xf]
  %v190 = vld [vmem:[%s1 + $0xd8] sm:$0xf]
  %v191 = vld [vmem:[%s1 + $0xdc] sm:$0xf]
  %v192 = vld [vmem:[%s1 + $0xe0] sm:$0xf]
  %v193 = vld [vmem:[%s1 + $0xe4] sm:$0xf]
  %v194 = vld [vmem:[%s1 + $0xe8] sm:$0xf]
  %v195 = vld [vmem:[%s1 + $0xec] sm:$0xf]
  %v196 = vld [vmem:[%s1 + $0xf0] sm:$0xf]
  %v197 = vld [vmem:[%s1 + $0xf4] sm:$0xf]
  %v198 = vld [vmem:[%s1 + $0xf8] sm:$0xf]
  %v199 = vld [vmem:[%s1 + $0xfc] sm:$0xf]
  %v200 = vld [vmem:[%s1 + $0x100] sm:$0xf]
  %v201 = vld [vmem:[%s1 + $0x104] sm:$0xf]
  %v202 = vld [vmem:[%s1 + $0x108] sm:$0xf]
  %v203 = vld [vmem:[%s1 + $0x10c] sm:$0xf]
  %v204 = vld [vmem:[%s1 + $0x110] sm:$0xf]
  %v205 = vld [vmem:[%s1 + $0x114] sm:$0xf]
  %v206 = vld [vmem:[%s1 + $0x118] sm:$0xf]
  %v207 = vld [vmem:[%s1 + $0x11c] sm:$0xf]
  %v208 = vld [vmem:[%s1 + $0x120] sm:$0xf]
  %v209 = vld [vmem:[%s1 + $0x124] sm:$0xf]
  %v210 = vld [vmem:[%s1 + $0x128] sm:$0xf]
  %v211 = vld [vmem:[%s1 + $0x12c] sm:$0xf]
  %v212 = vld [vmem:[%s1 + $0x130] sm:$0xf]
  %v213 = vld [vmem:[%s1 + $0x134] sm:$0xf]
  %v214 = vld [vmem:[%s1 + $0x138] sm:$0xf]
  %v215 = vld [vmem:[%s1 + $0x13c] sm:$0xf]
  %v216 = vld [vmem:[%s1 + $0x140] sm:$0xf]
  %v217 = vld [vmem:[%s1 + $0x144] sm:$0xf]
  %v218 = vld [vmem:[%s1 + $0x148] sm:$0xf]
  %v219 = vld [vmem:[%s1 + $0x14c] sm:$0xf]
  %v220 = vld [vmem:[%s1 + $0x150] sm:$0xf]
  %v221 = vld [vmem:[%s1 + $0x154] sm:$0xf]
  %v222 = vld [vmem:[%s1 + $0x158] sm:$0xf]
  %v223 = vld [vmem:[%s1 + $0x15c] sm:$0xf]
  %v224 = vld [vmem:[%s1 + $0x160] sm:$0xf]
  %v225 = vld [vmem:[%s1 + $0x164] sm:$0xf]
  %v226 = vld [vmem:[%s1 + $0x168] sm:$0xf]
  %v227 = vld [vmem:[%s1 + $0x16c] sm:$0xf]
  %v228 = vld [vmem:[%s1 + $0x170] sm:$0xf]
  %v229 = vld [vmem:[%s1 + $0x174] sm:$0xf]
  %v230 = vld [vmem:[%s1 + $0x178] sm:$0xf]
  %v231 = vld [vmem:[%s1 + $0x17c] sm:$0xf]
  %v232 = vld [vmem:[%s1 + $0x180] sm:$0xf]
  %v233 = vld [vmem:[%s1 + $0x184] sm:$0xf]
  %v234 = vld [vmem:[%s1 + $0x188] sm:$0xf]
  %v235 = vld [vmem:[%s1 + $0x18c] sm:$0xf]
  %v236 = vld [vmem:[%s1 + $0x190] sm:$0xf]
  %v237 = vld [vmem:[%s1 + $0x194] sm:$0xf]
  %v238 = vld [vmem:[%s1 + $0x198] sm:$0xf]
  %v239 = vld [vmem:[%s1 + $0x19c] sm:$0xf]
  %v240 = vld [vmem:[%s1 + $0x1a0] sm:$0xf]
  %v241 = vld [vmem:[%s1 + $0x1a4] sm:$0xf]
  %v242 = vld [vmem:[%s1 + $0x1a8] sm:$0xf]
  %v243 = vld [vmem:[%s1 + $0x1ac] sm:$0xf]
  %v244 = vld [vmem:[%s1 + $0x1b0] sm:$0xf]
  %v245 = vld [vmem:[%s1 + $0x1b4] sm:$0xf]
  %v246 = vld [vmem:[%s1 + $0x1b8] sm:$0xf]
  %v247 = vld [vmem:[%s1 + $0x1bc] sm:$0xf]
  %v248 = vld [vmem:[%s1 + $0x1c0] sm:$0xf]
  %v249 = vld [vmem:[%s1 + $0x1c4] sm:$0xf]
  %v250 = vld [vmem:[%s1 + $0x1c8] sm:$0xf]
  %v251 = vld [vmem:[%s1 + $0x1cc] sm:$0xf]
  %v252 = vld [vmem:[%s1 + $0x1d0] sm:$0xf]
  %v253 = vld [vmem:[%s1 + $0x1d4] sm:$0xf]
  %v254 = vld [vmem:[%s1 + $0x1d8] sm:$0xf]
  %v255 = vld [vmem:[%s1 + $0x1dc] sm:$0xf]
  %v256 = vld [vmem:[%s1 + $0x1e0] sm:$0xf]
  %v257 = vld [vmem:[%s1 + $0x1e4] sm:$0xf]
  %v258 = vld [vmem:[%s1 + $0x1e8] sm:$0xf]
  %v259 = vld [vmem:[%s1 + $0x1ec] sm:$0xf]
  %v260 = vld [vmem:[%s1 + $0x1f0] sm:$0xf]
  %v261 = vld [vmem:[%s1 + $0x1f4] sm:$0xf]
  %v262 = vld [vmem:[%s1 + $0x1f8] sm:$0xf]
  %v263 = vld [vmem:[%s1 + $0x1fc] sm:$0xf]
  %v264 = vld [vmem:[%s1 + $0x200] sm:$0xf]
  %v265 = vld [vmem:[%s1 + $0x204] sm:$0xf]
  %v266 = vld [vmem:[%s1 + $0x208] sm:$0xf]
  %v267 = vld [vmem:[%s1 + $0x20c] sm:$0xf]
  %v268 = vld [vmem:[%s1 + $0x210] sm:$0xf]
  %v269 = vld [vmem:[%s1 + $0x214] sm:$0xf]
  %v270 = vld [vmem:[%s1 + $0x218] sm:$0xf]
  %v271 = vld [vmem:[%s1 + $0x21c] sm:$0xf]
  %v272 = vld [vmem:[%s1 + $0x220] sm:$0xf]
  %v273 = vld [vmem:[%s1 + $0x224] sm:$0xf]
  %v274 = vld [vmem:[%s1 + $0x228] sm:$0xf]
  %v275 = vld [vmem:[%s1 + $0x22c] sm:$0xf]
  %v276 = vld [vmem:[%s1 + $0x230] sm:$0xf]
  %v277 = vld [vmem:[%s1 + $0x234] sm:$0xf]
  %v278 = vld [vmem:[%s1 + $0x238] sm:$0xf]
  %v279 = vld [vmem:[%s1 + $0x23c] sm:$0xf]
  %v280 = vld [vmem:[%s1 + $0x240] sm:$0xf]
  %v281 = vld [vmem:[%s1 + $0x244] sm:$0xf]
  %v282 = vld [vmem:[%s1 + $0x248] sm:$0xf]
  %v283 = vld [vmem:[%s1 + $0x24c] sm:$0xf]
  %v284 = vld [vmem:[%s1 + $0x250] sm:$0xf]
  %v285 = vld [vmem:[%s1 + $0x254] sm:$0xf]
  %v286 = vld [vmem:[%s1 + $0x258] sm:$0xf]
  %v287 = vld [vmem:[%s1 + $0x25c] sm:$0xf]
  %v288 = vld [vmem:[%s1 + $0x260] sm:$0xf]
  %v289 = vld [vmem:[%s1 + $0x264] sm:$0xf]
  %v290 = vld [vmem:[%s1 + $0x268] sm:$0xf]
  %v291 = vld [vmem:[%s1 + $0x26c] sm:$0xf]
  %v292 = vld [vmem:[%s1 + $0x270] sm:$0xf]
  %v293 = vld [vmem:[%s1 + $0x274] sm:$0xf]
  %v294 = vld [vmem:[%s1 + $0x278] sm:$0xf]
  %v295 = vld [vmem:[%s1 + $0x27c] sm:$0xf]
  %v296 = vld [vmem:[%s1 + $0x280] sm:$0xf]
  %v297 = vld [vmem:[%s1 + $0x284] sm:$0xf]
  %v298 = vld [vmem:[%s1 + $0x288] sm:$0xf]
  %v299 = vld [vmem:[%s1 + $0x28c] sm:$0xf]
  %v300 = vld [vmem:[%s1 + $0x290] sm:$0xf]
  %v301 = vld [vmem:[%s1 + $0x294] sm:$0xf]
  %v302 = vld [vmem:[%s1 + $0x298] sm:$0xf]
  %v303 = vld [vmem:[%s1 + $0x29c] sm:$0xf]
  %v304 = vld [vmem:[%s1 + $0x2a0] sm:$0xf]
  %v305 = vld [vmem:[%s1 + $0x2a4] sm:$0xf]
  %v306 = vld [vmem:[%s1 + $0x2a8] sm:$0xf]
  %v307 = vld [vmem:[%s1 + $0x2ac] sm:$0xf]
  %v308 = vld [vmem:[%s1 + $0x2b0] sm:$0xf]
  %v309 = vld [vmem:[%s1 + $0x2b4] sm:$0xf]
  %v310 = vld [vmem:[%s1 + $0x2b8] sm:$0xf]
  %v311 = vld [vmem:[%s1 + $0x2bc] sm:$0xf]
  %v312 = vld [vmem:[%s1 + $0x2c0] sm:$0xf]
  %v313 = vld [vmem:[%s1 + $0x2c4] sm:$0xf]
  %v314 = vld [vmem:[%s1 + $0x2c8] sm:$0xf]
  %v315 = vld [vmem:[%s1 + $0x2cc] sm:$0xf]
  %v316 = vld [vmem:[%s1 + $0x2d0] sm:$0xf]
  %v317 = vld [vmem:[%s1 + $0x2d4] sm:$0xf]
  %v318 = vld [vmem:[%s1 + $0x2d8] sm:$0xf]
  %v319 = vld [vmem:[%s1 + $0x2dc] sm:$0xf]
  %v320 = vld [vmem:[%s1 + $0x2e0] sm:$0xf]
  %v321 = vld [vmem:[%s1 + $0x2e4] sm:$0xf]
  %v322 = vld [vmem:[%s1 + $0x2e8] sm:$0xf]
  %v323 = vld [vmem:[%s1 + $0x2ec] sm:$0xf]
  %v324 = vld [vmem:[%s1 + $0x2f0] sm:$0xf]
  %v325 = vld [vmem:[%s1 + $0x2f4] sm:$0xf]
  %v326 = vld [vmem:[%s1 + $0x2f8] sm:$0xf]
  %v327 = vld [vmem:[%s1 + $0x2fc] sm:$0xf]
  %v328 = vld [vmem:[%s1 + $0x300] sm:$0xf]
  %v329 = vld [vmem:[%s1 + $0x304] sm:$0xf]
  %v330 = vld [vmem:[%s1 + $0x308] sm:$0xf]
  %v331 = vld [vmem:[%s1 + $0x30c] sm:$0xf]
  %v332 = vld [vmem:[%s1 + $0x310] sm:$0xf]
  %v333 = vld [vmem:[%s1 + $0x314] sm:$0xf]
  %v334 = vld [vmem:[%s1 + $0x318] sm:$0xf]
  %v335 = vld [vmem:[%s1 + $0x31c] sm:$0xf]
  %v336 = vld [vmem:[%s1 + $0x320] sm:$0xf]
  %v337 = vld [vmem:[%s1 + $0x324] sm:$0xf]
  %v338 = vld [vmem:[%s1 + $0x328] sm:$0xf]
  %v339 = vld [vmem:[%s1 + $0x32c] sm:$0xf]
  %v340 = vld [vmem:[%s1 + $0x330] sm:$0xf]
  %v341 = vld [vmem:[%s1 + $0x334] sm:$0xf]
  %v342 = vld [vmem:[%s1 + $0x338] sm:$0xf]
  %v343 = vld [vmem:[%s1 + $0x33c] sm:$0xf]
  %v344 = vld [vmem:[%s1 + $0x340] sm:$0xf]
  %v345 = vld [vmem:[%s1 + $0x344] sm:$0xf]
  %v346 = vld [vmem:[%s1 + $0x348] sm:$0xf]
  %v347 = vld [vmem:[%s1 + $0x34c] sm:$0xf]
  %v348 = vld [vmem:[%s1 + $0x350] sm:$0xf]
  %v349 = vld [vmem:[%s1 + $0x354] sm:$0xf]
  %v350 = vld [vmem:[%s1 + $0x358] sm:$0xf]
  %v351 = vld [vmem:[%s1 + $0x35c] sm:$0xf]
  %v352 = vld [vmem:[%s1 + $0x360] sm:$0xf]
  %v353 = vld [vmem:[%s1 + $0x364] sm:$0xf]
  %v354 = vld [vmem:[%s1 + $0x368] sm:$0xf]
  %v355 = vld [vmem:[%s1 + $0x36c] sm:$0xf]
  %v356 = vld [vmem:[%s1 + $0x370] sm:$0xf]
  %v357 = vld [vmem:[%s1 + $0x374] sm:$0xf]
  %v358 = vld [vmem:[%s1 + $0x378] sm:$0xf]
  %v359 = vld [vmem:[%s1 + $0x37c] sm:$0xf]
  %v472 = vunpack.c.l.b16 %v24
  %v473 = vunpack.c.h.b16 %v24
  %v474 = vunpack.c.l.b16 %v25
  %v475 = vunpack.c.h.b16 %v25
  %v476 = vunpack.c.l.b16 %v26
  %v477 = vunpack.c.h.b16 %v26
  %v478 = vunpack.c.l.b16 %v27
  %v479 = vunpack.c.h.b16 %v27
  %v480 = vunpack.c.l.b16 %v28
  %v481 = vunpack.c.h.b16 %v28
  %v482 = vunpack.c.l.b16 %v29
  %v483 = vunpack.c.h.b16 %v29
  %v484 = vunpack.c.l.b16 %v30
  %v485 = vunpack.c.h.b16 %v30
  %v486 = vunpack.c.l.b16 %v31
  %v487 = vunpack.c.h.b16 %v31
  %v488 = vunpack.c.l.b16 %v32
  %v489 = vunpack.c.h.b16 %v32
  %v490 = vunpack.c.l.b16 %v33
  %v491 = vunpack.c.h.b16 %v33
  %v492 = vunpack.c.l.b16 %v34
  %v493 = vunpack.c.h.b16 %v34
  %v494 = vunpack.c.l.b16 %v35
  %v495 = vunpack.c.h.b16 %v35
  %v496 = vunpack.c.l.b16 %v36
  %v497 = vunpack.c.h.b16 %v36
  %v498 = vunpack.c.l.b16 %v37
  %v499 = vunpack.c.h.b16 %v37
  %v500 = vunpack.c.l.b16 %v38
  %v501 = vunpack.c.h.b16 %v38
  %v502 = vunpack.c.l.b16 %v39
  %v503 = vunpack.c.h.b16 %v39
  %v504 = vunpack.c.l.b16 %v40
  %v505 = vunpack.c.h.b16 %v40
  %v506 = vunpack.c.l.b16 %v41
  %v507 = vunpack.c.h.b16 %v41
  %v508 = vunpack.c.l.b16 %v42
  %v509 = vunpack.c.h.b16 %v42
  %v510 = vunpack.c.l.b16 %v43
  %v511 = vunpack.c.h.b16 %v43
  %v512 = vunpack.c.l.b16 %v44
  %v513 = vunpack.c.h.b16 %v44
  %v514 = vunpack.c.l.b16 %v45
  %v515 = vunpack.c.h.b16 %v45
  %v516 = vunpack.c.l.b16 %v46
  %v517 = vunpack.c.h.b16 %v46
  %v518 = vunpack.c.l.b16 %v47
  %v519 = vunpack.c.h.b16 %v47
  %v520 = vunpack.c.l.b16 %v48
  %v521 = vunpack.c.h.b16 %v48
  %v522 = vunpack.c.l.b16 %v49
  %v523 = vunpack.c.h.b16 %v49
  %v524 = vunpack.c.l.b16 %v50
  %v525 = vunpack.c.h.b16 %v50
  %v526 = vunpack.c.l.b16 %v51
  %v527 = vunpack.c.h.b16 %v51
  %v528 = vunpack.c.l.b16 %v52
  %v529 = vunpack.c.h.b16 %v52
  %v530 = vunpack.c.l.b16 %v53
  %v531 = vunpack.c.h.b16 %v53
  %v532 = vunpack.c.l.b16 %v54
  %v533 = vunpack.c.h.b16 %v54
  %v534 = vunpack.c.l.b16 %v55
  %v535 = vunpack.c.h.b16 %v55
  %v536 = vunpack.c.l.b16 %v56
  %v537 = vunpack.c.h.b16 %v56
  %v538 = vunpack.c.l.b16 %v57
  %v539 = vunpack.c.h.b16 %v57
  %v540 = vunpack.c.l.b16 %v58
  %v541 = vunpack.c.h.b16 %v58
  %v542 = vunpack.c.l.b16 %v59
  %v543 = vunpack.c.h.b16 %v59
  %v544 = vunpack.c.l.b16 %v60
  %v545 = vunpack.c.h.b16 %v60
  %v546 = vunpack.c.l.b16 %v61
  %v547 = vunpack.c.h.b16 %v61
  %v548 = vunpack.c.l.b16 %v62
  %v549 = vunpack.c.h.b16 %v62
  %v550 = vunpack.c.l.b16 %v63
  %v551 = vunpack.c.h.b16 %v63
  %v552 = vunpack.c.l.b16 %v64
  %v553 = vunpack.c.h.b16 %v64
  %v554 = vunpack.c.l.b16 %v65
  %v555 = vunpack.c.h.b16 %v65
  %v556 = vunpack.c.l.b16 %v66
  %v557 = vunpack.c.h.b16 %v66
  %v558 = vunpack.c.l.b16 %v67
  %v559 = vunpack.c.h.b16 %v67
  %v560 = vunpack.c.l.b16 %v68
  %v561 = vunpack.c.h.b16 %v68
  %v562 = vunpack.c.l.b16 %v69
  %v563 = vunpack.c.h.b16 %v69
  %v564 = vunpack.c.l.b16 %v70
  %v565 = vunpack.c.h.b16 %v70
  %v566 = vunpack.c.l.b16 %v71
  %v567 = vunpack.c.h.b16 %v71
  %v568 = vunpack.c.l.b16 %v72
  %v569 = vunpack.c.h.b16 %v72
  %v570 = vunpack.c.l.b16 %v73
  %v571 = vunpack.c.h.b16 %v73
  %v572 = vunpack.c.l.b16 %v74
  %v573 = vunpack.c.h.b16 %v74
  %v574 = vunpack.c.l.b16 %v75
  %v575 = vunpack.c.h.b16 %v75
  %v576 = vunpack.c.l.b16 %v76
  %v577 = vunpack.c.h.b16 %v76
  %v578 = vunpack.c.l.b16 %v77
  %v579 = vunpack.c.h.b16 %v77
  %v580 = vunpack.c.l.b16 %v78
  %v581 = vunpack.c.h.b16 %v78
  %v582 = vunpack.c.l.b16 %v79
  %v583 = vunpack.c.h.b16 %v79
  %v584 = vunpack.c.l.b16 %v80
  %v585 = vunpack.c.h.b16 %v80
  %v586 = vunpack.c.l.b16 %v81
  %v587 = vunpack.c.h.b16 %v81
  %v588 = vunpack.c.l.b16 %v82
  %v589 = vunpack.c.h.b16 %v82
  %v590 = vunpack.c.l.b16 %v83
  %v591 = vunpack.c.h.b16 %v83
  %v592 = vunpack.c.l.b16 %v84
  %v593 = vunpack.c.h.b16 %v84
  %v594 = vunpack.c.l.b16 %v85
  %v595 = vunpack.c.h.b16 %v85
  %v596 = vunpack.c.l.b16 %v86
  %v597 = vunpack.c.h.b16 %v86
  %v598 = vunpack.c.l.b16 %v87
  %v599 = vunpack.c.h.b16 %v87
  %v600 = vunpack.c.l.b16 %v88
  %v601 = vunpack.c.h.b16 %v88
  %v602 = vunpack.c.l.b16 %v89
  %v603 = vunpack.c.h.b16 %v89
  %v604 = vunpack.c.l.b16 %v90
  %v605 = vunpack.c.h.b16 %v90
  %v606 = vunpack.c.l.b16 %v91
  %v607 = vunpack.c.h.b16 %v91
  %v608 = vunpack.c.l.b16 %v92
  %v609 = vunpack.c.h.b16 %v92
  %v610 = vunpack.c.l.b16 %v93
  %v611 = vunpack.c.h.b16 %v93
  %v612 = vunpack.c.l.b16 %v94
  %v613 = vunpack.c.h.b16 %v94
  %v614 = vunpack.c.l.b16 %v95
  %v615 = vunpack.c.h.b16 %v95
  %v616 = vunpack.c.l.b16 %v96
  %v617 = vunpack.c.h.b16 %v96
  %v618 = vunpack.c.l.b16 %v97
  %v619 = vunpack.c.h.b16 %v97
  %v620 = vunpack.c.l.b16 %v98
  %v621 = vunpack.c.h.b16 %v98
  %v622 = vunpack.c.l.b16 %v99
  %v623 = vunpack.c.h.b16 %v99
  %v624 = vunpack.c.l.b16 %v100
  %v625 = vunpack.c.h.b16 %v100
  %v626 = vunpack.c.l.b16 %v101
  %v627 = vunpack.c.h.b16 %v101
  %v628 = vunpack.c.l.b16 %v102
  %v629 = vunpack.c.h.b16 %v102
  %v630 = vunpack.c.l.b16 %v103
  %v631 = vunpack.c.h.b16 %v103
  %v632 = vunpack.c.l.b16 %v104
  %v633 = vunpack.c.h.b16 %v104
  %v634 = vunpack.c.l.b16 %v105
  %v635 = vunpack.c.h.b16 %v105
  %v636 = vunpack.c.l.b16 %v106
  %v637 = vunpack.c.h.b16 %v106
  %v638 = vunpack.c.l.b16 %v107
  %v639 = vunpack.c.h.b16 %v107
  %v640 = vunpack.c.l.b16 %v108
  %v641 = vunpack.c.h.b16 %v108
  %v642 = vunpack.c.l.b16 %v109
  %v643 = vunpack.c.h.b16 %v109
  %v644 = vunpack.c.l.b16 %v110
  %v645 = vunpack.c.h.b16 %v110
  %v646 = vunpack.c.l.b16 %v111
  %v647 = vunpack.c.h.b16 %v111
  %v648 = vunpack.c.l.b16 %v112
  %v649 = vunpack.c.h.b16 %v112
  %v650 = vunpack.c.l.b16 %v113
  %v651 = vunpack.c.h.b16 %v113
  %v652 = vunpack.c.l.b16 %v114
  %v653 = vunpack.c.h.b16 %v114
  %v654 = vunpack.c.l.b16 %v115
  %v655 = vunpack.c.h.b16 %v115
  %v656 = vunpack.c.l.b16 %v116
  %v657 = vunpack.c.h.b16 %v116
  %v658 = vunpack.c.l.b16 %v117
  %v659 = vunpack.c.h.b16 %v117
  %v660 = vunpack.c.l.b16 %v118
  %v661 = vunpack.c.h.b16 %v118
  %v662 = vunpack.c.l.b16 %v119
  %v663 = vunpack.c.h.b16 %v119
  %v664 = vunpack.c.l.b16 %v120
  %v665 = vunpack.c.h.b16 %v120
  %v666 = vunpack.c.l.b16 %v121
  %v667 = vunpack.c.h.b16 %v121
  %v668 = vunpack.c.l.b16 %v122
  %v669 = vunpack.c.h.b16 %v122
  %v670 = vunpack.c.l.b16 %v123
  %v671 = vunpack.c.h.b16 %v123
  %v672 = vunpack.c.l.b16 %v124
  %v673 = vunpack.c.h.b16 %v124
  %v674 = vunpack.c.l.b16 %v125
  %v675 = vunpack.c.h.b16 %v125
  %v676 = vunpack.c.l.b16 %v126
  %v677 = vunpack.c.h.b16 %v126
  %v678 = vunpack.c.l.b16 %v127
  %v679 = vunpack.c.h.b16 %v127
  %v680 = vunpack.c.l.b16 %v128
  %v681 = vunpack.c.h.b16 %v128
  %v682 = vunpack.c.l.b16 %v129
  %v683 = vunpack.c.h.b16 %v129
  %v684 = vunpack.c.l.b16 %v130
  %v685 = vunpack.c.h.b16 %v130
  %v686 = vunpack.c.l.b16 %v131
  %v687 = vunpack.c.h.b16 %v131
  %v688 = vunpack.c.l.b16 %v132
  %v689 = vunpack.c.h.b16 %v132
  %v690 = vunpack.c.l.b16 %v133
  %v691 = vunpack.c.h.b16 %v133
  %v692 = vunpack.c.l.b16 %v134
  %v693 = vunpack.c.h.b16 %v134
  %v694 = vunpack.c.l.b16 %v135
  %v695 = vunpack.c.h.b16 %v135
  %v696 = vpack.c.b16 %v486, %v472
  %v697 = vpack.c.b16 %v487, %v473
  %v698 = vpack.c.b16 %v488, %v474
  %v699 = vpack.c.b16 %v489, %v475
  %v700 = vpack.c.b16 %v490, %v476
  %v701 = vpack.c.b16 %v491, %v477
  %v702 = vpack.c.b16 %v492, %v478
  %v703 = vpack.c.b16 %v493, %v479
  %v704 = vpack.c.b16 %v494, %v480
  %v705 = vpack.c.b16 %v495, %v481
  %v706 = vpack.c.b16 %v496, %v482
  %v707 = vpack.c.b16 %v497, %v483
  %v708 = vpack.c.b16 %v498, %v484
  %v709 = vpack.c.b16 %v499, %v485
  %v710 = vpack.c.b16 %v514, %v500
  %v711 = vpack.c.b16 %v515, %v501
  %v712 = vpack.c.b16 %v516, %v502
  %v713 = vpack.c.b16 %v517, %v503
  %v714 = vpack.c.b16 %v518, %v504
  %v715 = vpack.c.b16 %v519, %v505
  %v716 = vpack.c.b16 %v520, %v506
  %v717 = vpack.c.b16 %v521, %v507
  %v718 = vpack.c.b16 %v522, %v508
  %v719 = vpack.c.b16 %v523, %v509
  %v720 = vpack.c.b16 %v524, %v510
  %v721 = vpack.c.b16 %v525, %v511
  %v722 = vpack.c.b16 %v526, %v512
  %v723 = vpack.c.b16 %v527, %v513
  %v724 = vpack.c.b16 %v542, %v528
  %v725 = vpack.c.b16 %v543, %v529
  %v726 = vpack.c.b16 %v544, %v530
  %v727 = vpack.c.b16 %v545, %v531
  %v728 = vpack.c.b16 %v546, %v532
  %v729 = vpack.c.b16 %v547, %v533
  %v730 = vpack.c.b16 %v548, %v534
  %v731 = vpack.c.b16 %v549, %v535
  %v732 = vpack.c.b16 %v550, %v536
  %v733 = vpack.c.b16 %v551, %v537
  %v734 = vpack.c.b16 %v552, %v538
  %v735 = vpack.c.b16 %v553, %v539
  %v736 = vpack.c.b16 %v554, %v540
  %v737 = vpack.c.b16 %v555, %v541
  %v738 = vpack.c.b16 %v570, %v556
  %v739 = vpack.c.b16 %v571, %v557
  %v740 = vpack.c.b16 %v572, %v558
  %v741 = vpack.c.b16 %v573, %v559
  %v742 = vpack.c.b16 %v574, %v560
  %v743 = vpack.c.b16 %v575, %v561
  %v744 = vpack.c.b16 %v576, %v562
  %v745 = vpack.c.b16 %v577, %v563
  %v746 = vpack.c.b16 %v578, %v564
  %v747 = vpack.c.b16 %v579, %v565
  %v748 = vpack.c.b16 %v580, %v566
  %v749 = vpack.c.b16 %v581, %v567
  %v750 = vpack.c.b16 %v582, %v568
  %v751 = vpack.c.b16 %v583, %v569
  %v752 = vpack.c.b16 %v598, %v584
  %v753 = vpack.c.b16 %v599, %v585
  %v754 = vpack.c.b16 %v600, %v586
  %v755 = vpack.c.b16 %v601, %v587
  %v756 = vpack.c.b16 %v602, %v588
  %v757 = vpack.c.b16 %v603, %v589
  %v758 = vpack.c.b16 %v604, %v590
  %v759 = vpack.c.b16 %v605, %v591
  %v760 = vpack.c.b16 %v606, %v592
  %v761 = vpack.c.b16 %v607, %v593
  %v762 = vpack.c.b16 %v608, %v594
  %v763 = vpack.c.b16 %v609, %v595
  %v764 = vpack.c.b16 %v610, %v596
  %v765 = vpack.c.b16 %v611, %v597
  %v766 = vpack.c.b16 %v626, %v612
  %v767 = vpack.c.b16 %v627, %v613
  %v768 = vpack.c.b16 %v628, %v614
  %v769 = vpack.c.b16 %v629, %v615
  %v770 = vpack.c.b16 %v630, %v616
  %v771 = vpack.c.b16 %v631, %v617
  %v772 = vpack.c.b16 %v632, %v618
  %v773 = vpack.c.b16 %v633, %v619
  %v774 = vpack.c.b16 %v634, %v620
  %v775 = vpack.c.b16 %v635, %v621
  %v776 = vpack.c.b16 %v636, %v622
  %v777 = vpack.c.b16 %v637, %v623
  %v778 = vpack.c.b16 %v638, %v624
  %v779 = vpack.c.b16 %v639, %v625
  %v780 = vpack.c.b16 %v654, %v640
  %v781 = vpack.c.b16 %v655, %v641
  %v782 = vpack.c.b16 %v656, %v642
  %v783 = vpack.c.b16 %v657, %v643
  %v784 = vpack.c.b16 %v658, %v644
  %v785 = vpack.c.b16 %v659, %v645
  %v786 = vpack.c.b16 %v660, %v646
  %v787 = vpack.c.b16 %v661, %v647
  %v788 = vpack.c.b16 %v662, %v648
  %v789 = vpack.c.b16 %v663, %v649
  %v790 = vpack.c.b16 %v664, %v650
  %v791 = vpack.c.b16 %v665, %v651
  %v792 = vpack.c.b16 %v666, %v652
  %v793 = vpack.c.b16 %v667, %v653
  %v794 = vpack.c.b16 %v682, %v668
  %v795 = vpack.c.b16 %v683, %v669
  %v796 = vpack.c.b16 %v684, %v670
  %v797 = vpack.c.b16 %v685, %v671
  %v798 = vpack.c.b16 %v686, %v672
  %v799 = vpack.c.b16 %v687, %v673
  %v800 = vpack.c.b16 %v688, %v674
  %v801 = vpack.c.b16 %v689, %v675
  %v802 = vpack.c.b16 %v690, %v676
  %v803 = vpack.c.b16 %v691, %v677
  %v804 = vpack.c.b16 %v692, %v678
  %v805 = vpack.c.b16 %v693, %v679
  %v806 = vpack.c.b16 %v694, %v680
  %v807 = vpack.c.b16 %v695, %v681
  %v1144 = vunpack.c.l.b16 %v136
  %v1145 = vunpack.c.l.b16 %v137
  %v1146 = vunpack.c.l.b16 %v138
  %v1147 = vunpack.c.l.b16 %v139
  %v1148 = vunpack.c.l.b16 %v140
  %v1149 = vunpack.c.l.b16 %v141
  %v1150 = vunpack.c.l.b16 %v142
  %v1151 = vunpack.c.l.b16 %v143
  %v1152 = vunpack.c.l.b16 %v144
  %v1153 = vunpack.c.l.b16 %v145
  %v1154 = vunpack.c.l.b16 %v146
  %v1155 = vunpack.c.l.b16 %v147
  %v1156 = vunpack.c.l.b16 %v148
  %v1157 = vunpack.c.l.b16 %v149
  %v1158 = vunpack.c.l.b16 %v150
  %v1159 = vunpack.c.l.b16 %v151
  %v1160 = vunpack.c.l.b16 %v152
  %v1161 = vunpack.c.l.b16 %v153
  %v1162 = vunpack.c.l.b16 %v154
  %v1163 = vunpack.c.l.b16 %v155
  %v1164 = vunpack.c.l.b16 %v156
  %v1165 = vunpack.c.l.b16 %v157
  %v1166 = vunpack.c.l.b16 %v158
  %v1167 = vunpack.c.l.b16 %v159
  %v1168 = vunpack.c.l.b16 %v160
  %v1169 = vunpack.c.l.b16 %v161
  %v1170 = vunpack.c.l.b16 %v162
  %v1171 = vunpack.c.l.b16 %v163
  %v1172 = vunpack.c.l.b16 %v164
  %v1173 = vunpack.c.l.b16 %v165
  %v1174 = vunpack.c.l.b16 %v166
  %v1175 = vunpack.c.l.b16 %v167
  %v1176 = vunpack.c.l.b16 %v168
  %v1177 = vunpack.c.l.b16 %v169
  %v1178 = vunpack.c.l.b16 %v170
  %v1179 = vunpack.c.l.b16 %v171
  %v1180 = vunpack.c.l.b16 %v172
  %v1181 = vunpack.c.l.b16 %v173
  %v1182 = vunpack.c.l.b16 %v174
  %v1183 = vunpack.c.l.b16 %v175
  %v1184 = vunpack.c.l.b16 %v176
  %v1185 = vunpack.c.l.b16 %v177
  %v1186 = vunpack.c.l.b16 %v178
  %v1187 = vunpack.c.l.b16 %v179
  %v1188 = vunpack.c.l.b16 %v180
  %v1189 = vunpack.c.l.b16 %v181
  %v1190 = vunpack.c.l.b16 %v182
  %v1191 = vunpack.c.l.b16 %v183
  %v1192 = vunpack.c.l.b16 %v184
  %v1193 = vunpack.c.l.b16 %v185
  %v1194 = vunpack.c.l.b16 %v186
  %v1195 = vunpack.c.l.b16 %v187
  %v1196 = vunpack.c.l.b16 %v188
  %v1197 = vunpack.c.l.b16 %v189
  %v1198 = vunpack.c.l.b16 %v190
  %v1199 = vunpack.c.l.b16 %v191
  %v1200 = vunpack.c.l.b16 %v192
  %v1201 = vunpack.c.l.b16 %v193
  %v1202 = vunpack.c.l.b16 %v194
  %v1203 = vunpack.c.l.b16 %v195
  %v1204 = vunpack.c.l.b16 %v196
  %v1205 = vunpack.c.l.b16 %v197
  %v1206 = vunpack.c.l.b16 %v198
  %v1207 = vunpack.c.l.b16 %v199
  %v1208 = vunpack.c.l.b16 %v200
  %v1209 = vunpack.c.l.b16 %v201
  %v1210 = vunpack.c.l.b16 %v202
  %v1211 = vunpack.c.l.b16 %v203
  %v1212 = vunpack.c.l.b16 %v204
  %v1213 = vunpack.c.l.b16 %v205
  %v1214 = vunpack.c.l.b16 %v206
  %v1215 = vunpack.c.l.b16 %v207
  %v1216 = vunpack.c.l.b16 %v208
  %v1217 = vunpack.c.l.b16 %v209
  %v1218 = vunpack.c.l.b16 %v210
  %v1219 = vunpack.c.l.b16 %v211
  %v1220 = vunpack.c.l.b16 %v212
  %v1221 = vunpack.c.l.b16 %v213
  %v1222 = vunpack.c.l.b16 %v214
  %v1223 = vunpack.c.l.b16 %v215
  %v1224 = vunpack.c.l.b16 %v216
  %v1225 = vunpack.c.l.b16 %v217
  %v1226 = vunpack.c.l.b16 %v218
  %v1227 = vunpack.c.l.b16 %v219
  %v1228 = vunpack.c.l.b16 %v220
  %v1229 = vunpack.c.l.b16 %v221
  %v1230 = vunpack.c.l.b16 %v222
  %v1231 = vunpack.c.l.b16 %v223
  %v1232 = vunpack.c.l.b16 %v224
  %v1233 = vunpack.c.l.b16 %v225
  %v1234 = vunpack.c.l.b16 %v226
  %v1235 = vunpack.c.l.b16 %v227
  %v1236 = vunpack.c.l.b16 %v228
  %v1237 = vunpack.c.l.b16 %v229
  %v1238 = vunpack.c.l.b16 %v230
  %v1239 = vunpack.c.l.b16 %v231
  %v1240 = vunpack.c.l.b16 %v232
  %v1241 = vunpack.c.l.b16 %v233
  %v1242 = vunpack.c.l.b16 %v234
  %v1243 = vunpack.c.l.b16 %v235
  %v1244 = vunpack.c.l.b16 %v236
  %v1245 = vunpack.c.l.b16 %v237
  %v1246 = vunpack.c.l.b16 %v238
  %v1247 = vunpack.c.l.b16 %v239
  %v1248 = vunpack.c.l.b16 %v240
  %v1249 = vunpack.c.l.b16 %v241
  %v1250 = vunpack.c.l.b16 %v242
  %v1251 = vunpack.c.l.b16 %v243
  %v1252 = vunpack.c.l.b16 %v244
  %v1253 = vunpack.c.l.b16 %v245
  %v1254 = vunpack.c.l.b16 %v246
  %v1255 = vunpack.c.l.b16 %v247
  %v1256 = vunpack.c.l.b16 %v248
  %v1257 = vunpack.c.l.b16 %v249
  %v1258 = vunpack.c.l.b16 %v250
  %v1259 = vunpack.c.l.b16 %v251
  %v1260 = vunpack.c.l.b16 %v252
  %v1261 = vunpack.c.l.b16 %v253
  %v1262 = vunpack.c.l.b16 %v254
  %v1263 = vunpack.c.l.b16 %v255
  %v1264 = vunpack.c.l.b16 %v256
  %v1265 = vunpack.c.l.b16 %v257
  %v1266 = vunpack.c.l.b16 %v258
  %v1267 = vunpack.c.l.b16 %v259
  %v1268 = vunpack.c.l.b16 %v260
  %v1269 = vunpack.c.l.b16 %v261
  %v1270 = vunpack.c.l.b16 %v262
  %v1271 = vunpack.c.l.b16 %v263
  %v1272 = vunpack.c.l.b16 %v264
  %v1273 = vunpack.c.l.b16 %v265
  %v1274 = vunpack.c.l.b16 %v266
  %v1275 = vunpack.c.l.b16 %v267
  %v1276 = vunpack.c.l.b16 %v268
  %v1277 = vunpack.c.l.b16 %v269
  %v1278 = vunpack.c.l.b16 %v270
  %v1279 = vunpack.c.l.b16 %v271
  %v1280 = vunpack.c.l.b16 %v272
  %v1281 = vunpack.c.l.b16 %v273
  %v1282 = vunpack.c.l.b16 %v274
  %v1283 = vunpack.c.l.b16 %v275
  %v1284 = vunpack.c.l.b16 %v276
  %v1285 = vunpack.c.l.b16 %v277
  %v1286 = vunpack.c.l.b16 %v278
  %v1287 = vunpack.c.l.b16 %v279
  %v1288 = vunpack.c.l.b16 %v280
  %v1289 = vunpack.c.l.b16 %v281
  %v1290 = vunpack.c.l.b16 %v282
  %v1291 = vunpack.c.l.b16 %v283
  %v1292 = vunpack.c.l.b16 %v284
  %v1293 = vunpack.c.l.b16 %v285
  %v1294 = vunpack.c.l.b16 %v286
  %v1295 = vunpack.c.l.b16 %v287
  %v1296 = vunpack.c.l.b16 %v288
  %v1297 = vunpack.c.l.b16 %v289
  %v1298 = vunpack.c.l.b16 %v290
  %v1299 = vunpack.c.l.b16 %v291
  %v1300 = vunpack.c.l.b16 %v292
  %v1301 = vunpack.c.l.b16 %v293
  %v1302 = vunpack.c.l.b16 %v294
  %v1303 = vunpack.c.l.b16 %v295
  %v1304 = vunpack.c.l.b16 %v296
  %v1305 = vunpack.c.l.b16 %v297
  %v1306 = vunpack.c.l.b16 %v298
  %v1307 = vunpack.c.l.b16 %v299
  %v1308 = vunpack.c.l.b16 %v300
  %v1309 = vunpack.c.l.b16 %v301
  %v1310 = vunpack.c.l.b16 %v302
  %v1311 = vunpack.c.l.b16 %v303
  %v1312 = vunpack.c.l.b16 %v304
  %v1313 = vunpack.c.l.b16 %v305
  %v1314 = vunpack.c.l.b16 %v306
  %v1315 = vunpack.c.l.b16 %v307
  %v1316 = vunpack.c.l.b16 %v308
  %v1317 = vunpack.c.l.b16 %v309
  %v1318 = vunpack.c.l.b16 %v310
  %v1319 = vunpack.c.l.b16 %v311
  %v1320 = vunpack.c.l.b16 %v312
  %v1321 = vunpack.c.l.b16 %v313
  %v1322 = vunpack.c.l.b16 %v314
  %v1323 = vunpack.c.l.b16 %v315
  %v1324 = vunpack.c.l.b16 %v316
  %v1325 = vunpack.c.l.b16 %v317
  %v1326 = vunpack.c.l.b16 %v318
  %v1327 = vunpack.c.l.b16 %v319
  %v1328 = vunpack.c.l.b16 %v320
  %v1329 = vunpack.c.l.b16 %v321
  %v1330 = vunpack.c.l.b16 %v322
  %v1331 = vunpack.c.l.b16 %v323
  %v1332 = vunpack.c.l.b16 %v324
  %v1333 = vunpack.c.l.b16 %v325
  %v1334 = vunpack.c.l.b16 %v326
  %v1335 = vunpack.c.l.b16 %v327
  %v1336 = vunpack.c.l.b16 %v328
  %v1337 = vunpack.c.l.b16 %v329
  %v1338 = vunpack.c.l.b16 %v330
  %v1339 = vunpack.c.l.b16 %v331
  %v1340 = vunpack.c.l.b16 %v332
  %v1341 = vunpack.c.l.b16 %v333
  %v1342 = vunpack.c.l.b16 %v334
  %v1343 = vunpack.c.l.b16 %v335
  %v1344 = vunpack.c.l.b16 %v336
  %v1345 = vunpack.c.l.b16 %v337
  %v1346 = vunpack.c.l.b16 %v338
  %v1347 = vunpack.c.l.b16 %v339
  %v1348 = vunpack.c.l.b16 %v340
  %v1349 = vunpack.c.l.b16 %v341
  %v1350 = vunpack.c.l.b16 %v342
  %v1351 = vunpack.c.l.b16 %v343
  %v1352 = vunpack.c.l.b16 %v344
  %v1353 = vunpack.c.l.b16 %v345
  %v1354 = vunpack.c.l.b16 %v346
  %v1355 = vunpack.c.l.b16 %v347
  %v1356 = vunpack.c.l.b16 %v348
  %v1357 = vunpack.c.l.b16 %v349
  %v1358 = vunpack.c.l.b16 %v350
  %v1359 = vunpack.c.l.b16 %v351
  %v1360 = vunpack.c.l.b16 %v352
  %v1361 = vunpack.c.l.b16 %v353
  %v1362 = vunpack.c.l.b16 %v354
  %v1363 = vunpack.c.l.b16 %v355
  %v1364 = vunpack.c.l.b16 %v356
  %v1365 = vunpack.c.l.b16 %v357
  %v1366 = vunpack.c.l.b16 %v358
  %v1367 = vunpack.c.l.b16 %v359
  %v1368 = vpack.c.b16 %v1145, %v1144
  %v1369 = vpack.c.b16 %v1147, %v1146
  %v1370 = vpack.c.b16 %v1149, %v1148
  %v1371 = vpack.c.b16 %v1151, %v1150
  %v1372 = vpack.c.b16 %v1153, %v1152
  %v1373 = vpack.c.b16 %v1155, %v1154
  %v1374 = vpack.c.b16 %v1157, %v1156
  %v1375 = vpack.c.b16 %v1159, %v1158
  %v1376 = vpack.c.b16 %v1161, %v1160
  %v1377 = vpack.c.b16 %v1163, %v1162
  %v1378 = vpack.c.b16 %v1165, %v1164
  %v1379 = vpack.c.b16 %v1167, %v1166
  %v1380 = vpack.c.b16 %v1169, %v1168
  %v1381 = vpack.c.b16 %v1171, %v1170
  %v1382 = vpack.c.b16 %v1173, %v1172
  %v1383 = vpack.c.b16 %v1175, %v1174
  %v1384 = vpack.c.b16 %v1177, %v1176
  %v1385 = vpack.c.b16 %v1179, %v1178
  %v1386 = vpack.c.b16 %v1181, %v1180
  %v1387 = vpack.c.b16 %v1183, %v1182
  %v1388 = vpack.c.b16 %v1185, %v1184
  %v1389 = vpack.c.b16 %v1187, %v1186
  %v1390 = vpack.c.b16 %v1189, %v1188
  %v1391 = vpack.c.b16 %v1191, %v1190
  %v1392 = vpack.c.b16 %v1193, %v1192
  %v1393 = vpack.c.b16 %v1195, %v1194
  %v1394 = vpack.c.b16 %v1197, %v1196
  %v1395 = vpack.c.b16 %v1199, %v1198
  %v1396 = vpack.c.b16 %v1201, %v1200
  %v1397 = vpack.c.b16 %v1203, %v1202
  %v1398 = vpack.c.b16 %v1205, %v1204
  %v1399 = vpack.c.b16 %v1207, %v1206
  %v1400 = vpack.c.b16 %v1209, %v1208
  %v1401 = vpack.c.b16 %v1211, %v1210
  %v1402 = vpack.c.b16 %v1213, %v1212
  %v1403 = vpack.c.b16 %v1215, %v1214
  %v1404 = vpack.c.b16 %v1217, %v1216
  %v1405 = vpack.c.b16 %v1219, %v1218
  %v1406 = vpack.c.b16 %v1221, %v1220
  %v1407 = vpack.c.b16 %v1223, %v1222
  %v1408 = vpack.c.b16 %v1225, %v1224
  %v1409 = vpack.c.b16 %v1227, %v1226
  %v1410 = vpack.c.b16 %v1229, %v1228
  %v1411 = vpack.c.b16 %v1231, %v1230
  %v1412 = vpack.c.b16 %v1233, %v1232
  %v1413 = vpack.c.b16 %v1235, %v1234
  %v1414 = vpack.c.b16 %v1237, %v1236
  %v1415 = vpack.c.b16 %v1239, %v1238
  %v1416 = vpack.c.b16 %v1241, %v1240
  %v1417 = vpack.c.b16 %v1243, %v1242
  %v1418 = vpack.c.b16 %v1245, %v1244
  %v1419 = vpack.c.b16 %v1247, %v1246
  %v1420 = vpack.c.b16 %v1249, %v1248
  %v1421 = vpack.c.b16 %v1251, %v1250
  %v1422 = vpack.c.b16 %v1253, %v1252
  %v1423 = vpack.c.b16 %v1255, %v1254
  %v1424 = vpack.c.b16 %v1257, %v1256
  %v1425 = vpack.c.b16 %v1259, %v1258
  %v1426 = vpack.c.b16 %v1261, %v1260
  %v1427 = vpack.c.b16 %v1263, %v1262
  %v1428 = vpack.c.b16 %v1265, %v1264
  %v1429 = vpack.c.b16 %v1267, %v1266
  %v1430 = vpack.c.b16 %v1269, %v1268
  %v1431 = vpack.c.b16 %v1271, %v1270
  %v1432 = vpack.c.b16 %v1273, %v1272
  %v1433 = vpack.c.b16 %v1275, %v1274
  %v1434 = vpack.c.b16 %v1277, %v1276
  %v1435 = vpack.c.b16 %v1279, %v1278
  %v1436 = vpack.c.b16 %v1281, %v1280
  %v1437 = vpack.c.b16 %v1283, %v1282
  %v1438 = vpack.c.b16 %v1285, %v1284
  %v1439 = vpack.c.b16 %v1287, %v1286
  %v1440 = vpack.c.b16 %v1289, %v1288
  %v1441 = vpack.c.b16 %v1291, %v1290
  %v1442 = vpack.c.b16 %v1293, %v1292
  %v1443 = vpack.c.b16 %v1295, %v1294
  %v1444 = vpack.c.b16 %v1297, %v1296
  %v1445 = vpack.c.b16 %v1299, %v1298
  %v1446 = vpack.c.b16 %v1301, %v1300
  %v1447 = vpack.c.b16 %v1303, %v1302
  %v1448 = vpack.c.b16 %v1305, %v1304
  %v1449 = vpack.c.b16 %v1307, %v1306
  %v1450 = vpack.c.b16 %v1309, %v1308
  %v1451 = vpack.c.b16 %v1311, %v1310
  %v1452 = vpack.c.b16 %v1313, %v1312
  %v1453 = vpack.c.b16 %v1315, %v1314
  %v1454 = vpack.c.b16 %v1317, %v1316
  %v1455 = vpack.c.b16 %v1319, %v1318
  %v1456 = vpack.c.b16 %v1321, %v1320
  %v1457 = vpack.c.b16 %v1323, %v1322
  %v1458 = vpack.c.b16 %v1325, %v1324
  %v1459 = vpack.c.b16 %v1327, %v1326
  %v1460 = vpack.c.b16 %v1329, %v1328
  %v1461 = vpack.c.b16 %v1331, %v1330
  %v1462 = vpack.c.b16 %v1333, %v1332
  %v1463 = vpack.c.b16 %v1335, %v1334
  %v1464 = vpack.c.b16 %v1337, %v1336
  %v1465 = vpack.c.b16 %v1339, %v1338
  %v1466 = vpack.c.b16 %v1341, %v1340
  %v1467 = vpack.c.b16 %v1343, %v1342
  %v1468 = vpack.c.b16 %v1345, %v1344
  %v1469 = vpack.c.b16 %v1347, %v1346
  %v1470 = vpack.c.b16 %v1349, %v1348
  %v1471 = vpack.c.b16 %v1351, %v1350
  %v1472 = vpack.c.b16 %v1353, %v1352
  %v1473 = vpack.c.b16 %v1355, %v1354
  %v1474 = vpack.c.b16 %v1357, %v1356
  %v1475 = vpack.c.b16 %v1359, %v1358
  %v1476 = vpack.c.b16 %v1361, %v1360
  %v1477 = vpack.c.b16 %v1363, %v1362
  %v1478 = vpack.c.b16 %v1365, %v1364
  %v1479 = vpack.c.b16 %v1367, %v1366
  %1592 = vmatprep.subr.bf16.mxu0 0
  %1593 = vmatpush1.bf16.msra.mxu0 %v1368
  %1594 = vmatprep.subr.bf16.mxu0 0
  %1595 = vmatpush1.bf16.msra.mxu0 %v1369
  %1596 = vmatprep.subr.bf16.mxu0 0
  %1597 = vmatpush1.bf16.msra.mxu0 %v1370
  %1598 = vmatprep.subr.bf16.mxu0 0
  %1599 = vmatpush1.bf16.msra.mxu0 %v1371
  %1600 = vmatprep.subr.bf16.mxu0 0
  %1601 = vmatpush1.bf16.msra.mxu0 %v1372
  %1602 = vmatprep.subr.bf16.mxu0 0
  %1603 = vmatpush1.bf16.msra.mxu0 %v1373
  %1604 = vmatprep.subr.bf16.mxu0 0
  %1605 = vmatpush1.bf16.msra.mxu0 %v1374
  %1606 = vmatprep.subr.bf16.mxu0 0
  %1607 = vmatpush1.bf16.msra.mxu0 %v1375
  %1608 = vmatprep.subr.bf16.mxu0 0
  %1609 = vmatpush1.bf16.msra.mxu0 %v1376
  %1610 = vmatprep.subr.bf16.mxu0 0
  %1611 = vmatpush1.bf16.msra.mxu0 %v1377
  %1612 = vmatprep.subr.bf16.mxu0 0
  %1613 = vmatpush1.bf16.msra.mxu0 %v1378
  %1614 = vmatprep.subr.bf16.mxu0 0
  %1615 = vmatpush1.bf16.msra.mxu0 %v1379
  %1616 = vmatprep.subr.bf16.mxu0 0
  %1617 = vmatpush1.bf16.msra.mxu0 %v1380
  %1618 = vmatprep.subr.bf16.mxu0 0
  %1619 = vmatpush1.bf16.msra.mxu0 %v1381
  %1620 = vmatprep.subr.bf16.mxu0 0
  %1621 = vmatpush1.bf16.msra.mxu0 %v1382
  %1622 = vmatprep.subr.bf16.mxu0 0
  %1623 = vmatpush1.bf16.msra.mxu0 %v1383
  %1624 = vmatprep.mubr.bf16.mxu0 %v697
  %1625 = vmatmul.mubr.bf16.gmra.mrb[0].mxu0 %v696
  %v1626 = vpop.f32.mrb[0].mxu0
  %v1627 = vadd.f32 0.0, %v1626
  %v1628 = vpop.f32.mrb[0].mxu0
  %v1629 = vpop.f32.mrb[0].mxu0
  %v1630 = vadd.f32 0.0, %v1629
  %v1631 = vpop.f32.mrb[0].mxu0
  %1632 = vmatprep.mubr.bf16.mxu0 %v711
  %1633 = vmatmul.mubr.bf16.gmra.mrb[0].mxu0 %v710
  %v1634 = vpop.f32.mrb[0].mxu0
  %v1635 = vadd.f32 0.0, %v1634
  %v1636 = vpop.f32.mrb[0].mxu0
  %v1637 = vpop.f32.mrb[0].mxu0
  %v1638 = vadd.f32 0.0, %v1637
  %v1639 = vpop.f32.mrb[0].mxu0
  %1640 = vmatprep.mubr.bf16.mxu0 %v725
  %1641 = vmatmul.mubr.bf16.gmra.mrb[0].mxu0 %v724
  %v1642 = vpop.f32.mrb[0].mxu0
  %v1643 = vadd.f32 0.0, %v1642
  %v1644 = vpop.f32.mrb[0].mxu0
  %v1645 = vpop.f32.mrb[0].mxu0
  %v1646 = vadd.f32 0.0, %v1645
  %v1647 = vpop.f32.mrb[0].mxu0
  %1648 = vmatprep.mubr.bf16.mxu0 %v739
  %1649 = vmatmul.mubr.bf16.gmra.mrb[0].mxu0 %v738
  %v1650 = vpop.f32.mrb[0].mxu0
  %v1651 = vadd.f32 0.0, %v1650
  %v1652 = vpop.f32.mrb[0].mxu0
  %v1653 = vpop.f32.mrb[0].mxu0
  %v1654 = vadd.f32 0.0, %v1653
  %v1655 = vpop.f32.mrb[0].mxu0
  %1656 = vmatprep.mubr.bf16.mxu0 %v753
  %1657 = vmatmul.mubr.bf16.gmra.mrb[0].mxu0 %v752
  %v1658 = vpop.f32.mrb[0].mxu0
  %v1659 = vadd.f32 0.0, %v1658
  %v1660 = vpop.f32.mrb[0].mxu0
  %v1661 = vpop.f32.mrb[0].mxu0
  %v1662 = vadd.f32 0.0, %v1661
  %v1663 = vpop.f32.mrb[0].mxu0
  %1664 = vmatprep.mubr.bf16.mxu0 %v767
  %1665 = vmatmul.mubr.bf16.gmra.mrb[0].mxu0 %v766
  %v1666 = vpop.f32.mrb[0].mxu0
  %v1667 = vadd.f32 0.0, %v1666
  %v1668 = vpop.f32.mrb[0].mxu0
  %v1669 = vpop.f32.mrb[0].mxu0
  %v1670 = vadd.f32 0.0, %v1669
  %v1671 = vpop.f32.mrb[0].mxu0
  %1672 = vmatprep.mubr.bf16.mxu0 %v781
  %1673 = vmatmul.mubr.bf16.gmra.mrb[0].mxu0 %v780
  %v1674 = vpop.f32.mrb[0].mxu0
  %v1675 = vadd.f32 0.0, %v1674
  %v1676 = vpop.f32.mrb[0].mxu0
  %v1677 = vpop.f32.mrb[0].mxu0
  %v1678 = vadd.f32 0.0, %v1677
  %v1679 = vpop.f32.mrb[0].mxu0
  %1680 = vmatprep.mubr.bf16.mxu0 %v795
  %1681 = vmatmul.mubr.bf16.gmra.mrb[0].mxu0 %v794
  %v1682 = vpop.f32.mrb[0].mxu0
  %v1683 = vadd.f32 0.0, %v1682
  %v1684 = vpop.f32.mrb[0].mxu0
  %v1685 = vpop.f32.mrb[0].mxu0
  %v1686 = vadd.f32 0.0, %v1685
  %v1687 = vpop.f32.mrb[0].mxu0
  %1688 = vdwg.mxu0
  %1689 = vmatprep.subr.bf16.mxu0 0
  %1690 = vmatpush1.bf16.msra.mxu0 %v1384
  %1691 = vmatprep.subr.bf16.mxu0 0
  %1692 = vmatpush1.bf16.msra.mxu0 %v1385
  %1693 = vmatprep.subr.bf16.mxu0 0
  %1694 = vmatpush1.bf16.msra.mxu0 %v1386
  %1695 = vmatprep.subr.bf16.mxu0 0
  %1696 = vmatpush1.bf16.msra.mxu0 %v1387
  %1697 = vmatprep.subr.bf16.mxu0 0
  %1698 = vmatpush1.bf16.msra.mxu0 %v1388
  %1699 = vmatprep.subr.bf16.mxu0 0
  %1700 = vmatpush1.bf16.msra.mxu0 %v1389
  %1701 = vmatprep.subr.bf16.mxu0 0
  %1702 = vmatpush1.bf16.msra.mxu0 %v1390
  %1703 = vmatprep.subr.bf16.mxu0 0
  %1704 = vmatpush1.bf16.msra.mxu0 %v1391
  %1705 = vmatprep.subr.bf16.mxu0 0
  %1706 = vmatpush1.bf16.msra.mxu0 %v1392
  %1707 = vmatprep.subr.bf16.mxu0 0
  %1708 = vmatpush1.bf16.msra.mxu0 %v1393
  %1709 = vmatprep.subr.bf16.mxu0 0
  %1710 = vmatpush1.bf16.msra.mxu0 %v1394
  %1711 = vmatprep.subr.bf16.mxu0 0
  %1712 = vmatpush1.bf16.msra.mxu0 %v1395
  %1713 = vmatprep.subr.bf16.mxu0 0
  %1714 = vmatpush1.bf16.msra.mxu0 %v1396
  %1715 = vmatprep.subr.bf16.mxu0 0
  %1716 = vmatpush1.bf16.msra.mxu0 %v1397
  %1717 = vmatprep.subr.bf16.mxu0 0
  %1718 = vmatpush1.bf16.msra.mxu0 %v1398
  %1719 = vmatprep.subr.bf16.mxu0 0
  %1720 = vmatpush1.bf16.msra.mxu0 %v1399
  %1721 = vmatprep.mubr.bf16.mxu0 %v699
  %1722 = vmatmul.mubr.bf16.gmra.mrb[0].mxu0 %v698
  %v1723 = vpop.f32.mrb[0].mxu0
  %v1724 = vadd.f32 %v1627, %v1723
  %v1725 = vpop.f32.mrb[0].mxu0
  %v1726 = vpop.f32.mrb[0].mxu0
  %v1727 = vadd.f32 %v1630, %v1726
  %v1728 = vpop.f32.mrb[0].mxu0
  %1729 = vmatprep.mubr.bf16.mxu0 %v713
  %1730 = vmatmul.mubr.bf16.gmra.mrb[0].mxu0 %v712
  %v1731 = vpop.f32.mrb[0].mxu0
  %v1732 = vadd.f32 %v1635, %v1731
  %v1733 = vpop.f32.mrb[0].mxu0
  %v1734 = vpop.f32.mrb[0].mxu0
  %v1735 = vadd.f32 %v1638, %v1734
  %v1736 = vpop.f32.mrb[0].mxu0
  %1737 = vmatprep.mubr.bf16.mxu0 %v727
  %1738 = vmatmul.mubr.bf16.gmra.mrb[0].mxu0 %v726
  %v1739 = vpop.f32.mrb[0].mxu0
  %v1740 = vadd.f32 %v1643, %v1739
  %v1741 = vpop.f32.mrb[0].mxu0
  %v1742 = vpop.f32.mrb[0].mxu0
  %v1743 = vadd.f32 %v1646, %v1742
  %v1744 = vpop.f32.mrb[0].mxu0
  %1745 = vmatprep.mubr.bf16.mxu0 %v741
  %1746 = vmatmul.mubr.bf16.gmra.mrb[0].mxu0 %v740
  %v1747 = vpop.f32.mrb[0].mxu0
  %v1748 = vadd.f32 %v1651, %v1747
  %v1749 = vpop.f32.mrb[0].mxu0
  %v1750 = vpop.f32.mrb[0].mxu0
  %v1751 = vadd.f32 %v1654, %v1750
  %v1752 = vpop.f32.mrb[0].mxu0
  %1753 = vmatprep.mubr.bf16.mxu0 %v755
  %1754 = vmatmul.mubr.bf16.gmra.mrb[0].mxu0 %v754
  %v1755 = vpop.f32.mrb[0].mxu0
  %v1756 = vadd.f32 %v1659, %v1755
  %v1757 = vpop.f32.mrb[0].mxu0
  %v1758 = vpop.f32.mrb[0].mxu0
  %v1759 = vadd.f32 %v1662, %v1758
  %v1760 = vpop.f32.mrb[0].mxu0
  %1761 = vmatprep.mubr.bf16.mxu0 %v769
  %1762 = vmatmul.mubr.bf16.gmra.mrb[0].mxu0 %v768
  %v1763 = vpop.f32.mrb[0].mxu0
  %v1764 = vadd.f32 %v1667, %v1763
  %v1765 = vpop.f32.mrb[0].mxu0
  %v1766 = vpop.f32.mrb[0].mxu0
  %v1767 = vadd.f32 %v1670, %v1766
  %v1768 = vpop.f32.mrb[0].mxu0
  %1769 = vmatprep.mubr.bf16.mxu0 %v783
  %1770 = vmatmul.mubr.bf16.gmra.mrb[0].mxu0 %v782
  %v1771 = vpop.f32.mrb[0].mxu0
  %v1772 = vadd.f32 %v1675, %v1771
  %v1773 = vpop.f32.mrb[0].mxu0
  %v1774 = vpop.f32.mrb[0].mxu0
  %v1775 = vadd.f32 %v1678, %v1774
  %v1776 = vpop.f32.mrb[0].mxu0
  %1777 = vmatprep.mubr.bf16.mxu0 %v797
  %1778 = vmatmul.mubr.bf16.gmra.mrb[0].mxu0 %v796
  %v1779 = vpop.f32.mrb[0].mxu0
  %v1780 = vadd.f32 %v1683, %v1779
  %v1781 = vpop.f32.mrb[0].mxu0
  %v1782 = vpop.f32.mrb[0].mxu0
  %v1783 = vadd.f32 %v1686, %v1782
  %v1784 = vpop.f32.mrb[0].mxu0
  %1785 = vdwg.mxu0
  %1786 = vmatprep.subr.bf16.mxu0 0
  %1787 = vmatpush1.bf16.msra.mxu0 %v1400
  %1788 = vmatprep.subr.bf16.mxu0 0
  %1789 = vmatpush1.bf16.msra.mxu0 %v1401
  %1790 = vmatprep.subr.bf16.mxu0 0
  %1791 = vmatpush1.bf16.msra.mxu0 %v1402
  %1792 = vmatprep.subr.bf16.mxu0 0
  %1793 = vmatpush1.bf16.msra.mxu0 %v1403
  %1794 = vmatprep.subr.bf16.mxu0 0
  %1795 = vmatpush1.bf16.msra.mxu0 %v1404
  %1796 = vmatprep.subr.bf16.mxu0 0
  %1797 = vmatpush1.bf16.msra.mxu0 %v1405
  %1798 = vmatprep.subr.bf16.mxu0 0
  %1799 = vmatpush1.bf16.msra.mxu0 %v1406
  %1800 = vmatprep.subr.bf16.mxu0 0
  %1801 = vmatpush1.bf16.msra.mxu0 %v1407
  %1802 = vmatprep.subr.bf16.mxu0 0
  %1803 = vmatpush1.bf16.msra.mxu0 %v1408
  %1804 = vmatprep.subr.bf16.mxu0 0
  %1805 = vmatpush1.bf16.msra.mxu0 %v1409
  %1806 = vmatprep.subr.bf16.mxu0 0
  %1807 = vmatpush1.bf16.msra.mxu0 %v1410
  %1808 = vmatprep.subr.bf16.mxu0 0
  %1809 = vmatpush1.bf16.msra.mxu0 %v1411
  %1810 = vmatprep.subr.bf16.mxu0 0
  %1811 = vmatpush1.bf16.msra.mxu0 %v1412
  %1812 = vmatprep.subr.bf16.mxu0 0
  %1813 = vmatpush1.bf16.msra.mxu0 %v1413
  %1814 = vmatprep.subr.bf16.mxu0 0
  %1815 = vmatpush1.bf16.msra.mxu0 %v1414
  %1816 = vmatprep.subr.bf16.mxu0 0
  %1817 = vmatpush1.bf16.msra.mxu0 %v1415
  %1818 = vmatprep.mubr.bf16.mxu0 %v701
  %1819 = vmatmul.mubr.bf16.gmra.mrb[0].mxu0 %v700
  %v1820 = vpop.f32.mrb[0].mxu0
  %v1821 = vadd.f32 %v1724, %v1820
  %v1822 = vpop.f32.mrb[0].mxu0
  %v1823 = vpop.f32.mrb[0].mxu0
  %v1824 = vadd.f32 %v1727, %v1823
  %v1825 = vpop.f32.mrb[0].mxu0
  %1826 = vmatprep.mubr.bf16.mxu0 %v715
  %1827 = vmatmul.mubr.bf16.gmra.mrb[0].mxu0 %v714
  %v1828 = vpop.f32.mrb[0].mxu0
  %v1829 = vadd.f32 %v1732, %v1828
  %v1830 = vpop.f32.mrb[0].mxu0
  %v1831 = vpop.f32.mrb[0].mxu0
  %v1832 = vadd.f32 %v1735, %v1831
  %v1833 = vpop.f32.mrb[0].mxu0
  %1834 = vmatprep.mubr.bf16.mxu0 %v729
  %1835 = vmatmul.mubr.bf16.gmra.mrb[0].mxu0 %v728
  %v1836 = vpop.f32.mrb[0].mxu0
  %v1837 = vadd.f32 %v1740, %v1836
  %v1838 = vpop.f32.mrb[0].mxu0
  %v1839 = vpop.f32.mrb[0].mxu0
  %v1840 = vadd.f32 %v1743, %v1839
  %v1841 = vpop.f32.mrb[0].mxu0
  %1842 = vmatprep.mubr.bf16.mxu0 %v743
  %1843 = vmatmul.mubr.bf16.gmra.mrb[0].mxu0 %v742
  %v1844 = vpop.f32.mrb[0].mxu0
  %v1845 = vadd.f32 %v1748, %v1844
  %v1846 = vpop.f32.mrb[0].mxu0
  %v1847 = vpop.f32.mrb[0].mxu0
  %v1848 = vadd.f32 %v1751, %v1847
  %v1849 = vpop.f32.mrb[0].mxu0
  %1850 = vmatprep.mubr.bf16.mxu0 %v757
  %1851 = vmatmul.mubr.bf16.gmra.mrb[0].mxu0 %v756
  %v1852 = vpop.f32.mrb[0].mxu0
  %v1853 = vadd.f32 %v1756, %v1852
  %v1854 = vpop.f32.mrb[0].mxu0
  %v1855 = vpop.f32.mrb[0].mxu0
  %v1856 = vadd.f32 %v1759, %v1855
  %v1857 = vpop.f32.mrb[0].mxu0
  %1858 = vmatprep.mubr.bf16.mxu0 %v771
  %1859 = vmatmul.mubr.bf16.gmra.mrb[0].mxu0 %v770
  %v1860 = vpop.f32.mrb[0].mxu0
  %v1861 = vadd.f32 %v1764, %v1860
  %v1862 = vpop.f32.mrb[0].mxu0
  %v1863 = vpop.f32.mrb[0].mxu0
  %v1864 = vadd.f32 %v1767, %v1863
  %v1865 = vpop.f32.mrb[0].mxu0
  %1866 = vmatprep.mubr.bf16.mxu0 %v785
  %1867 = vmatmul.mubr.bf16.gmra.mrb[0].mxu0 %v784
  %v1868 = vpop.f32.mrb[0].mxu0
  %v1869 = vadd.f32 %v1772, %v1868
  %v1870 = vpop.f32.mrb[0].mxu0
  %v1871 = vpop.f32.mrb[0].mxu0
  %v1872 = vadd.f32 %v1775, %v1871
  %v1873 = vpop.f32.mrb[0].mxu0
  %1874 = vmatprep.mubr.bf16.mxu0 %v799
  %1875 = vmatmul.mubr.bf16.gmra.mrb[0].mxu0 %v798
  %v1876 = vpop.f32.mrb[0].mxu0
  %v1877 = vadd.f32 %v1780, %v1876
  %v1878 = vpop.f32.mrb[0].mxu0
  %v1879 = vpop.f32.mrb[0].mxu0
  %v1880 = vadd.f32 %v1783, %v1879
  %v1881 = vpop.f32.mrb[0].mxu0
  %1882 = vdwg.mxu0
  %1883 = vmatprep.subr.bf16.mxu0 0
  %1884 = vmatpush1.bf16.msra.mxu0 %v1416
  %1885 = vmatprep.subr.bf16.mxu0 0
  %1886 = vmatpush1.bf16.msra.mxu0 %v1417
  %1887 = vmatprep.subr.bf16.mxu0 0
  %1888 = vmatpush1.bf16.msra.mxu0 %v1418
  %1889 = vmatprep.subr.bf16.mxu0 0
  %1890 = vmatpush1.bf16.msra.mxu0 %v1419
  %1891 = vmatprep.subr.bf16.mxu0 0
  %1892 = vmatpush1.bf16.msra.mxu0 %v1420
  %1893 = vmatprep.subr.bf16.mxu0 0
  %1894 = vmatpush1.bf16.msra.mxu0 %v1421
  %1895 = vmatprep.subr.bf16.mxu0 0
  %1896 = vmatpush1.bf16.msra.mxu0 %v1422
  %1897 = vmatprep.subr.bf16.mxu0 0
  %1898 = vmatpush1.bf16.msra.mxu0 %v1423
  %1899 = vmatprep.subr.bf16.mxu0 0
  %1900 = vmatpush1.bf16.msra.mxu0 %v1424
  %1901 = vmatprep.subr.bf16.mxu0 0
  %1902 = vmatpush1.bf16.msra.mxu0 %v1425
  %1903 = vmatprep.subr.bf16.mxu0 0
  %1904 = vmatpush1.bf16.msra.mxu0 %v1426
  %1905 = vmatprep.subr.bf16.mxu0 0
  %1906 = vmatpush1.bf16.msra.mxu0 %v1427
  %1907 = vmatprep.subr.bf16.mxu0 0
  %1908 = vmatpush1.bf16.msra.mxu0 %v1428
  %1909 = vmatprep.subr.bf16.mxu0 0
  %1910 = vmatpush1.bf16.msra.mxu0 %v1429
  %1911 = vmatprep.subr.bf16.mxu0 0
  %1912 = vmatpush1.bf16.msra.mxu0 %v1430
  %1913 = vmatprep.subr.bf16.mxu0 0
  %1914 = vmatpush1.bf16.msra.mxu0 %v1431
  %1915 = vmatprep.mubr.bf16.mxu0 %v703
  %1916 = vmatmul.mubr.bf16.gmra.mrb[0].mxu0 %v702
  %v1917 = vpop.f32.mrb[0].mxu0
  %v1918 = vadd.f32 %v1821, %v1917
  %v1919 = vpop.f32.mrb[0].mxu0
  %v1920 = vpop.f32.mrb[0].mxu0
  %v1921 = vadd.f32 %v1824, %v1920
  %v1922 = vpop.f32.mrb[0].mxu0
  %1923 = vmatprep.mubr.bf16.mxu0 %v717
  %1924 = vmatmul.mubr.bf16.gmra.mrb[0].mxu0 %v716
  %v1925 = vpop.f32.mrb[0].mxu0
  %v1926 = vadd.f32 %v1829, %v1925
  %v1927 = vpop.f32.mrb[0].mxu0
  %v1928 = vpop.f32.mrb[0].mxu0
  %v1929 = vadd.f32 %v1832, %v1928
  %v1930 = vpop.f32.mrb[0].mxu0
  %1931 = vmatprep.mubr.bf16.mxu0 %v731
  %1932 = vmatmul.mubr.bf16.gmra.mrb[0].mxu0 %v730
  %v1933 = vpop.f32.mrb[0].mxu0
  %v1934 = vadd.f32 %v1837, %v1933
  %v1935 = vpop.f32.mrb[0].mxu0
  %v1936 = vpop.f32.mrb[0].mxu0
  %v1937 = vadd.f32 %v1840, %v1936
  %v1938 = vpop.f32.mrb[0].mxu0
  %1939 = vmatprep.mubr.bf16.mxu0 %v745
  %1940 = vmatmul.mubr.bf16.gmra.mrb[0].mxu0 %v744
  %v1941 = vpop.f32.mrb[0].mxu0
  %v1942 = vadd.f32 %v1845, %v1941
  %v1943 = vpop.f32.mrb[0].mxu0
  %v1944 = vpop.f32.mrb[0].mxu0
  %v1945 = vadd.f32 %v1848, %v1944
  %v1946 = vpop.f32.mrb[0].mxu0
  %1947 = vmatprep.mubr.bf16.mxu0 %v759
  %1948 = vmatmul.mubr.bf16.gmra.mrb[0].mxu0 %v758
  %v1949 = vpop.f32.mrb[0].mxu0
  %v1950 = vadd.f32 %v1853, %v1949
  %v1951 = vpop.f32.mrb[0].mxu0
  %v1952 = vpop.f32.mrb[0].mxu0
  %v1953 = vadd.f32 %v1856, %v1952
  %v1954 = vpop.f32.mrb[0].mxu0
  %1955 = vmatprep.mubr.bf16.mxu0 %v773
  %1956 = vmatmul.mubr.bf16.gmra.mrb[0].mxu0 %v772
  %v1957 = vpop.f32.mrb[0].mxu0
  %v1958 = vadd.f32 %v1861, %v1957
  %v1959 = vpop.f32.mrb[0].mxu0
  %v1960 = vpop.f32.mrb[0].mxu0
  %v1961 = vadd.f32 %v1864, %v1960
  %v1962 = vpop.f32.mrb[0].mxu0
  %1963 = vmatprep.mubr.bf16.mxu0 %v787
  %1964 = vmatmul.mubr.bf16.gmra.mrb[0].mxu0 %v786
  %v1965 = vpop.f32.mrb[0].mxu0
  %v1966 = vadd.f32 %v1869, %v1965
  %v1967 = vpop.f32.mrb[0].mxu0
  %v1968 = vpop.f32.mrb[0].mxu0
  %v1969 = vadd.f32 %v1872, %v1968
  %v1970 = vpop.f32.mrb[0].mxu0
  %1971 = vmatprep.mubr.bf16.mxu0 %v801
  %1972 = vmatmul.mubr.bf16.gmra.mrb[0].mxu0 %v800
  %v1973 = vpop.f32.mrb[0].mxu0
  %v1974 = vadd.f32 %v1877, %v1973
  %v1975 = vpop.f32.mrb[0].mxu0
  %v1976 = vpop.f32.mrb[0].mxu0
  %v1977 = vadd.f32 %v1880, %v1976
  %v1978 = vpop.f32.mrb[0].mxu0
  %1979 = vdwg.mxu0
  %1980 = vmatprep.subr.bf16.mxu0 0
  %1981 = vmatpush1.bf16.msra.mxu0 %v1432
  %1982 = vmatprep.subr.bf16.mxu0 0
  %1983 = vmatpush1.bf16.msra.mxu0 %v1433
  %1984 = vmatprep.subr.bf16.mxu0 0
  %1985 = vmatpush1.bf16.msra.mxu0 %v1434
  %1986 = vmatprep.subr.bf16.mxu0 0
  %1987 = vmatpush1.bf16.msra.mxu0 %v1435
  %1988 = vmatprep.subr.bf16.mxu0 0
  %1989 = vmatpush1.bf16.msra.mxu0 %v1436
  %1990 = vmatprep.subr.bf16.mxu0 0
  %1991 = vmatpush1.bf16.msra.mxu0 %v1437
  %1992 = vmatprep.subr.bf16.mxu0 0
  %1993 = vmatpush1.bf16.msra.mxu0 %v1438
  %1994 = vmatprep.subr.bf16.mxu0 0
  %1995 = vmatpush1.bf16.msra.mxu0 %v1439
  %1996 = vmatprep.subr.bf16.mxu0 0
  %1997 = vmatpush1.bf16.msra.mxu0 %v1440
  %1998 = vmatprep.subr.bf16.mxu0 0
  %1999 = vmatpush1.bf16.msra.mxu0 %v1441
  %2000 = vmatprep.subr.bf16.mxu0 0
  %2001 = vmatpush1.bf16.msra.mxu0 %v1442
  %2002 = vmatprep.subr.bf16.mxu0 0
  %2003 = vmatpush1.bf16.msra.mxu0 %v1443
  %2004 = vmatprep.subr.bf16.mxu0 0
  %2005 = vmatpush1.bf16.msra.mxu0 %v1444
  %2006 = vmatprep.subr.bf16.mxu0 0
  %2007 = vmatpush1.bf16.msra.mxu0 %v1445
  %2008 = vmatprep.subr.bf16.mxu0 0
  %2009 = vmatpush1.bf16.msra.mxu0 %v1446
  %2010 = vmatprep.subr.bf16.mxu0 0
  %2011 = vmatpush1.bf16.msra.mxu0 %v1447
  %2012 = vmatprep.mubr.bf16.mxu0 %v705
  %2013 = vmatmul.mubr.bf16.gmra.mrb[0].mxu0 %v704
  %v2014 = vpop.f32.mrb[0].mxu0
  %v2015 = vadd.f32 %v1918, %v2014
  %v2016 = vpop.f32.mrb[0].mxu0
  %v2017 = vpop.f32.mrb[0].mxu0
  %v2018 = vadd.f32 %v1921, %v2017
  %v2019 = vpop.f32.mrb[0].mxu0
  %2020 = vmatprep.mubr.bf16.mxu0 %v719
  %2021 = vmatmul.mubr.bf16.gmra.mrb[0].mxu0 %v718
  %v2022 = vpop.f32.mrb[0].mxu0
  %v2023 = vadd.f32 %v1926, %v2022
  %v2024 = vpop.f32.mrb[0].mxu0
  %v2025 = vpop.f32.mrb[0].mxu0
  %v2026 = vadd.f32 %v1929, %v2025
  %v2027 = vpop.f32.mrb[0].mxu0
  %2028 = vmatprep.mubr.bf16.mxu0 %v733
  %2029 = vmatmul.mubr.bf16.gmra.mrb[0].mxu0 %v732
  %v2030 = vpop.f32.mrb[0].mxu0
  %v2031 = vadd.f32 %v1934, %v2030
  %v2032 = vpop.f32.mrb[0].mxu0
  %v2033 = vpop.f32.mrb[0].mxu0
  %v2034 = vadd.f32 %v1937, %v2033
  %v2035 = vpop.f32.mrb[0].mxu0
  %2036 = vmatprep.mubr.bf16.mxu0 %v747
  %2037 = vmatmul.mubr.bf16.gmra.mrb[0].mxu0 %v746
  %v2038 = vpop.f32.mrb[0].mxu0
  %v2039 = vadd.f32 %v1942, %v2038
  %v2040 = vpop.f32.mrb[0].mxu0
  %v2041 = vpop.f32.mrb[0].mxu0
  %v2042 = vadd.f32 %v1945, %v2041
  %v2043 = vpop.f32.mrb[0].mxu0
  %2044 = vmatprep.mubr.bf16.mxu0 %v761
  %2045 = vmatmul.mubr.bf16.gmra.mrb[0].mxu0 %v760
  %v2046 = vpop.f32.mrb[0].mxu0
  %v2047 = vadd.f32 %v1950, %v2046
  %v2048 = vpop.f32.mrb[0].mxu0
  %v2049 = vpop.f32.mrb[0].mxu0
  %v2050 = vadd.f32 %v1953, %v2049
  %v2051 = vpop.f32.mrb[0].mxu0
  %2052 = vmatprep.mubr.bf16.mxu0 %v775
  %2053 = vmatmul.mubr.bf16.gmra.mrb[0].mxu0 %v774
  %v2054 = vpop.f32.mrb[0].mxu0
  %v2055 = vadd.f32 %v1958, %v2054
  %v2056 = vpop.f32.mrb[0].mxu0
  %v2057 = vpop.f32.mrb[0].mxu0
  %v2058 = vadd.f32 %v1961, %v2057
  %v2059 = vpop.f32.mrb[0].mxu0
  %2060 = vmatprep.mubr.bf16.mxu0 %v789
  %2061 = vmatmul.mubr.bf16.gmra.mrb[0].mxu0 %v788
  %v2062 = vpop.f32.mrb[0].mxu0
  %v2063 = vadd.f32 %v1966, %v2062
  %v2064 = vpop.f32.mrb[0].mxu0
  %v2065 = vpop.f32.mrb[0].mxu0
  %v2066 = vadd.f32 %v1969, %v2065
  %v2067 = vpop.f32.mrb[0].mxu0
  %2068 = vmatprep.mubr.bf16.mxu0 %v803
  %2069 = vmatmul.mubr.bf16.gmra.mrb[0].mxu0 %v802
  %v2070 = vpop.f32.mrb[0].mxu0
  %v2071 = vadd.f32 %v1974, %v2070
  %v2072 = vpop.f32.mrb[0].mxu0
  %v2073 = vpop.f32.mrb[0].mxu0
  %v2074 = vadd.f32 %v1977, %v2073
  %v2075 = vpop.f32.mrb[0].mxu0
  %2076 = vdwg.mxu0
  %2077 = vmatprep.subr.bf16.mxu0 0
  %2078 = vmatpush1.bf16.msra.mxu0 %v1448
  %2079 = vmatprep.subr.bf16.mxu0 0
  %2080 = vmatpush1.bf16.msra.mxu0 %v1449
  %2081 = vmatprep.subr.bf16.mxu0 0
  %2082 = vmatpush1.bf16.msra.mxu0 %v1450
  %2083 = vmatprep.subr.bf16.mxu0 0
  %2084 = vmatpush1.bf16.msra.mxu0 %v1451
  %2085 = vmatprep.subr.bf16.mxu0 0
  %2086 = vmatpush1.bf16.msra.mxu0 %v1452
  %2087 = vmatprep.subr.bf16.mxu0 0
  %2088 = vmatpush1.bf16.msra.mxu0 %v1453
  %2089 = vmatprep.subr.bf16.mxu0 0
  %2090 = vmatpush1.bf16.msra.mxu0 %v1454
  %2091 = vmatprep.subr.bf16.mxu0 0
  %2092 = vmatpush1.bf16.msra.mxu0 %v1455
  %2093 = vmatprep.subr.bf16.mxu0 0
  %2094 = vmatpush1.bf16.msra.mxu0 %v1456
  %2095 = vmatprep.subr.bf16.mxu0 0
  %2096 = vmatpush1.bf16.msra.mxu0 %v1457
  %2097 = vmatprep.subr.bf16.mxu0 0
  %2098 = vmatpush1.bf16.msra.mxu0 %v1458
  %2099 = vmatprep.subr.bf16.mxu0 0
  %2100 = vmatpush1.bf16.msra.mxu0 %v1459
  %2101 = vmatprep.subr.bf16.mxu0 0
  %2102 = vmatpush1.bf16.msra.mxu0 %v1460
  %2103 = vmatprep.subr.bf16.mxu0 0
  %2104 = vmatpush1.bf16.msra.mxu0 %v1461
  %2105 = vmatprep.subr.bf16.mxu0 0
  %2106 = vmatpush1.bf16.msra.mxu0 %v1462
  %2107 = vmatprep.subr.bf16.mxu0 0
  %2108 = vmatpush1.bf16.msra.mxu0 %v1463
  %2109 = vmatprep.mubr.bf16.mxu0 %v707
  %2110 = vmatmul.mubr.bf16.gmra.mrb[0].mxu0 %v706
  %v2111 = vpop.f32.mrb[0].mxu0
  %v2112 = vadd.f32 %v2015, %v2111
  %v2113 = vpop.f32.mrb[0].mxu0
  %v2114 = vpop.f32.mrb[0].mxu0
  %v2115 = vadd.f32 %v2018, %v2114
  %v2116 = vpop.f32.mrb[0].mxu0
  %2117 = vmatprep.mubr.bf16.mxu0 %v721
  %2118 = vmatmul.mubr.bf16.gmra.mrb[0].mxu0 %v720
  %v2119 = vpop.f32.mrb[0].mxu0
  %v2120 = vadd.f32 %v2023, %v2119
  %v2121 = vpop.f32.mrb[0].mxu0
  %v2122 = vpop.f32.mrb[0].mxu0
  %v2123 = vadd.f32 %v2026, %v2122
  %v2124 = vpop.f32.mrb[0].mxu0
  %2125 = vmatprep.mubr.bf16.mxu0 %v735
  %2126 = vmatmul.mubr.bf16.gmra.mrb[0].mxu0 %v734
  %v2127 = vpop.f32.mrb[0].mxu0
  %v2128 = vadd.f32 %v2031, %v2127
  %v2129 = vpop.f32.mrb[0].mxu0
  %v2130 = vpop.f32.mrb[0].mxu0
  %v2131 = vadd.f32 %v2034, %v2130
  %v2132 = vpop.f32.mrb[0].mxu0
  %2133 = vmatprep.mubr.bf16.mxu0 %v749
  %2134 = vmatmul.mubr.bf16.gmra.mrb[0].mxu0 %v748
  %v2135 = vpop.f32.mrb[0].mxu0
  %v2136 = vadd.f32 %v2039, %v2135
  %v2137 = vpop.f32.mrb[0].mxu0
  %v2138 = vpop.f32.mrb[0].mxu0
  %v2139 = vadd.f32 %v2042, %v2138
  %v2140 = vpop.f32.mrb[0].mxu0
  %2141 = vmatprep.mubr.bf16.mxu0 %v763
  %2142 = vmatmul.mubr.bf16.gmra.mrb[0].mxu0 %v762
  %v2143 = vpop.f32.mrb[0].mxu0
  %v2144 = vadd.f32 %v2047, %v2143
  %v2145 = vpop.f32.mrb[0].mxu0
  %v2146 = vpop.f32.mrb[0].mxu0
  %v2147 = vadd.f32 %v2050, %v2146
  %v2148 = vpop.f32.mrb[0].mxu0
  %2149 = vmatprep.mubr.bf16.mxu0 %v777
  %2150 = vmatmul.mubr.bf16.gmra.mrb[0].mxu0 %v776
  %v2151 = vpop.f32.mrb[0].mxu0
  %v2152 = vadd.f32 %v2055, %v2151
  %v2153 = vpop.f32.mrb[0].mxu0
  %v2154 = vpop.f32.mrb[0].mxu0
  %v2155 = vadd.f32 %v2058, %v2154
  %v2156 = vpop.f32.mrb[0].mxu0
  %2157 = vmatprep.mubr.bf16.mxu0 %v791
  %2158 = vmatmul.mubr.bf16.gmra.mrb[0].mxu0 %v790
  %v2159 = vpop.f32.mrb[0].mxu0
  %v2160 = vadd.f32 %v2063, %v2159
  %v2161 = vpop.f32.mrb[0].mxu0
  %v2162 = vpop.f32.mrb[0].mxu0
  %v2163 = vadd.f32 %v2066, %v2162
  %v2164 = vpop.f32.mrb[0].mxu0
  %2165 = vmatprep.mubr.bf16.mxu0 %v805
  %2166 = vmatmul.mubr.bf16.gmra.mrb[0].mxu0 %v804
  %v2167 = vpop.f32.mrb[0].mxu0
  %v2168 = vadd.f32 %v2071, %v2167
  %v2169 = vpop.f32.mrb[0].mxu0
  %v2170 = vpop.f32.mrb[0].mxu0
  %v2171 = vadd.f32 %v2074, %v2170
  %v2172 = vpop.f32.mrb[0].mxu0
  %2173 = vdwg.mxu0
  %2174 = vmatprep.subr.bf16.mxu0 0
  %2175 = vmatpush1.bf16.msra.mxu0 %v1464
  %2176 = vmatprep.subr.bf16.mxu0 0
  %2177 = vmatpush1.bf16.msra.mxu0 %v1465
  %2178 = vmatprep.subr.bf16.mxu0 0
  %2179 = vmatpush1.bf16.msra.mxu0 %v1466
  %2180 = vmatprep.subr.bf16.mxu0 0
  %2181 = vmatpush1.bf16.msra.mxu0 %v1467
  %2182 = vmatprep.subr.bf16.mxu0 0
  %2183 = vmatpush1.bf16.msra.mxu0 %v1468
  %2184 = vmatprep.subr.bf16.mxu0 0
  %2185 = vmatpush1.bf16.msra.mxu0 %v1469
  %2186 = vmatprep.subr.bf16.mxu0 0
  %2187 = vmatpush1.bf16.msra.mxu0 %v1470
  %2188 = vmatprep.subr.bf16.mxu0 0
  %2189 = vmatpush1.bf16.msra.mxu0 %v1471
  %2190 = vmatprep.subr.bf16.mxu0 0
  %2191 = vmatpush1.bf16.msra.mxu0 %v1472
  %2192 = vmatprep.subr.bf16.mxu0 0
  %2193 = vmatpush1.bf16.msra.mxu0 %v1473
  %2194 = vmatprep.subr.bf16.mxu0 0
  %2195 = vmatpush1.bf16.msra.mxu0 %v1474
  %2196 = vmatprep.subr.bf16.mxu0 0
  %2197 = vmatpush1.bf16.msra.mxu0 %v1475
  %2198 = vmatprep.subr.bf16.mxu0 0
  %2199 = vmatpush1.bf16.msra.mxu0 %v1476
  %2200 = vmatprep.subr.bf16.mxu0 0
  %2201 = vmatpush1.bf16.msra.mxu0 %v1477
  %2202 = vmatprep.subr.bf16.mxu0 0
  %2203 = vmatpush1.bf16.msra.mxu0 %v1478
  %2204 = vmatprep.subr.bf16.mxu0 0
  %2205 = vmatpush1.bf16.msra.mxu0 %v1479
  %2206 = vmatprep.mubr.bf16.mxu0 %v709
  %2207 = vmatmul.mubr.bf16.gmra.mrb[0].mxu0 %v708
  %v2208 = vpop.f32.mrb[0].mxu0
  %v2209 = vadd.f32 %v2112, %v2208
  %v2210 = vpop.f32.mrb[0].mxu0
  %v2211 = vpop.f32.mrb[0].mxu0
  %v2212 = vadd.f32 %v2115, %v2211
  %v2213 = vpop.f32.mrb[0].mxu0
  %2214 = vmatprep.mubr.bf16.mxu0 %v723
  %2215 = vmatmul.mubr.bf16.gmra.mrb[0].mxu0 %v722
  %v2216 = vpop.f32.mrb[0].mxu0
  %v2217 = vadd.f32 %v2120, %v2216
  %v2218 = vpop.f32.mrb[0].mxu0
  %v2219 = vpop.f32.mrb[0].mxu0
  %v2220 = vadd.f32 %v2123, %v2219
  %v2221 = vpop.f32.mrb[0].mxu0
  %2222 = vmatprep.mubr.bf16.mxu0 %v737
  %2223 = vmatmul.mubr.bf16.gmra.mrb[0].mxu0 %v736
  %v2224 = vpop.f32.mrb[0].mxu0
  %v2225 = vadd.f32 %v2128, %v2224
  %v2226 = vpop.f32.mrb[0].mxu0
  %v2227 = vpop.f32.mrb[0].mxu0
  %v2228 = vadd.f32 %v2131, %v2227
  %v2229 = vpop.f32.mrb[0].mxu0
  %2230 = vmatprep.mubr.bf16.mxu0 %v751
  %2231 = vmatmul.mubr.bf16.gmra.mrb[0].mxu0 %v750
  %v2232 = vpop.f32.mrb[0].mxu0
  %v2233 = vadd.f32 %v2136, %v2232
  %v2234 = vpop.f32.mrb[0].mxu0
  %v2235 = vpop.f32.mrb[0].mxu0
  %v2236 = vadd.f32 %v2139, %v2235
  %v2237 = vpop.f32.mrb[0].mxu0
  %2238 = vmatprep.mubr.bf16.mxu0 %v765
  %2239 = vmatmul.mubr.bf16.gmra.mrb[0].mxu0 %v764
  %v2240 = vpop.f32.mrb[0].mxu0
  %v2241 = vadd.f32 %v2144, %v2240
  %v2242 = vpop.f32.mrb[0].mxu0
  %v2243 = vpop.f32.mrb[0].mxu0
  %v2244 = vadd.f32 %v2147, %v2243
  %v2245 = vpop.f32.mrb[0].mxu0
  %2246 = vmatprep.mubr.bf16.mxu0 %v779
  %2247 = vmatmul.mubr.bf16.gmra.mrb[0].mxu0 %v778
  %v2248 = vpop.f32.mrb[0].mxu0
  %v2249 = vadd.f32 %v2152, %v2248
  %v2250 = vpop.f32.mrb[0].mxu0
  %v2251 = vpop.f32.mrb[0].mxu0
  %v2252 = vadd.f32 %v2155, %v2251
  %v2253 = vpop.f32.mrb[0].mxu0
  %2254 = vmatprep.mubr.bf16.mxu0 %v793
  %2255 = vmatmul.mubr.bf16.gmra.mrb[0].mxu0 %v792
  %v2256 = vpop.f32.mrb[0].mxu0
  %v2257 = vadd.f32 %v2160, %v2256
  %v2258 = vpop.f32.mrb[0].mxu0
  %v2259 = vpop.f32.mrb[0].mxu0
  %v2260 = vadd.f32 %v2163, %v2259
  %v2261 = vpop.f32.mrb[0].mxu0
  %2262 = vmatprep.mubr.bf16.mxu0 %v807
  %2263 = vmatmul.mubr.bf16.gmra.mrb[0].mxu0 %v806
  %v2264 = vpop.f32.mrb[0].mxu0
  %v2265 = vadd.f32 %v2168, %v2264
  %v2266 = vpop.f32.mrb[0].mxu0
  %v2267 = vpop.f32.mrb[0].mxu0
  %v2268 = vadd.f32 %v2171, %v2267
  %v2269 = vpop.f32.mrb[0].mxu0
  %2270 = vdwg.mxu0
  %v2271 = vadd.f32 %v2209, %v2212
  %v2272 = vadd.f32 %v2271, %v2217
  %v2273 = vadd.f32 %v2272, %v2220
  %v2274 = vadd.f32 %v2273, %v2225
  %v2275 = vadd.f32 %v2274, %v2228
  %v2276 = vadd.f32 %v2275, %v2233
  %v2277 = vadd.f32 %v2276, %v2236
  %v2278 = vadd.f32 %v2277, %v2241
  %v2279 = vadd.f32 %v2278, %v2244
  %v2280 = vadd.f32 %v2279, %v2249
  %v2281 = vadd.f32 %v2280, %v2252
  %v2282 = vadd.f32 %v2281, %v2257
  %v2283 = vadd.f32 %v2282, %v2260
  %v2284 = vadd.f32 %v2283, %v2265
  %v2285 = vadd.f32 %v2284, %v2268
  %v2286 = vrot.slane %v2285, 4
  %v2287 = vadd.f32 %v2285, %v2286
  %v2288 = vrot.slane %v2287, 2
  %v2289 = vadd.f32 %v2287, %v2288
  %v2290 = vrot.slane %v2289, 1
  %v2291 = vadd.f32 %v2289, %v2290
  %v2292 = vmul.f32 %v2291, 0.03125
  %v2293 = vmul.f32 %v2209, %v2209
  %v2294 = vmul.f32 %v2212, %v2212
  %v2295 = vmul.f32 %v2217, %v2217
  %v2296 = vmul.f32 %v2220, %v2220
  %v2297 = vmul.f32 %v2225, %v2225
  %v2298 = vmul.f32 %v2228, %v2228
  %v2299 = vmul.f32 %v2233, %v2233
  %v2300 = vmul.f32 %v2236, %v2236
  %v2301 = vmul.f32 %v2241, %v2241
  %v2302 = vmul.f32 %v2244, %v2244
  %v2303 = vmul.f32 %v2249, %v2249
  %v2304 = vmul.f32 %v2252, %v2252
  %v2305 = vmul.f32 %v2257, %v2257
  %v2306 = vmul.f32 %v2260, %v2260
  %v2307 = vmul.f32 %v2265, %v2265
  %v2308 = vmul.f32 %v2268, %v2268
  %v2309 = vadd.f32 %v2293, %v2294
  %v2310 = vadd.f32 %v2309, %v2295
  %v2311 = vadd.f32 %v2310, %v2296
  %v2312 = vadd.f32 %v2311, %v2297
  %v2313 = vadd.f32 %v2312, %v2298
  %v2314 = vadd.f32 %v2313, %v2299
  %v2315 = vadd.f32 %v2314, %v2300
  %v2316 = vadd.f32 %v2315, %v2301
  %v2317 = vadd.f32 %v2316, %v2302
  %v2318 = vadd.f32 %v2317, %v2303
  %v2319 = vadd.f32 %v2318, %v2304
  %v2320 = vadd.f32 %v2319, %v2305
  %v2321 = vadd.f32 %v2320, %v2306
  %v2322 = vadd.f32 %v2321, %v2307
  %v2323 = vadd.f32 %v2322, %v2308
  %v2324 = vrot.slane %v2323, 4
  %v2325 = vadd.f32 %v2323, %v2324
  %v2326 = vrot.slane %v2325, 2
  %v2327 = vadd.f32 %v2325, %v2326
  %v2328 = vrot.slane %v2327, 1
  %v2329 = vadd.f32 %v2327, %v2328
  %v2330 = vmul.f32 %v2329, 0.03125
  %v2331 = vmul.f32 %v2292, %v2292
  %v2332 = vsub.f32 %v2330, %v2331
  %v2333 = vmax.f32 %v2332, 0.0
  %v2334 = vld [vmem:[%s2] sm:$0x1]
  %v2335 = vadd.f32 %v2333, 1e-05
  %v2336 = vrsqrt.pop %v2335
  %v2337 = vmul.f32 %v2334, %v2336
  %v2338 = vld [vmem:[%s3] sm:$0x1]
  %v2339 = vmul.f32 %v2292, %v2337
  %v2340 = vsub.f32 %v2338, %v2339
  %v2342 = vlaneseq
  %v2343 = vshrl.u32 %v2342, 7
  %v2344 = vsub.s32 0, %v2343
  %v2345 = vrot.slane %v2337, %v2344
  %v2347 = vmul.f32 %v2209, %v2345
  %v2348 = vmul.f32 %v2212, %v2345
  %v2349 = vmul.f32 %v2217, %v2345
  %v2350 = vmul.f32 %v2220, %v2345
  %v2351 = vmul.f32 %v2225, %v2345
  %v2352 = vmul.f32 %v2228, %v2345
  %v2353 = vmul.f32 %v2233, %v2345
  %v2354 = vmul.f32 %v2236, %v2345
  %v2355 = vmul.f32 %v2241, %v2345
  %v2356 = vmul.f32 %v2244, %v2345
  %v2357 = vmul.f32 %v2249, %v2345
  %v2358 = vmul.f32 %v2252, %v2345
  %v2359 = vmul.f32 %v2257, %v2345
  %v2360 = vmul.f32 %v2260, %v2345
  %v2361 = vmul.f32 %v2265, %v2345
  %v2362 = vmul.f32 %v2268, %v2345
  %v2364 = vlaneseq
  %v2365 = vshrl.u32 %v2364, 7
  %v2366 = vsub.s32 0, %v2365
  %v2367 = vrot.slane %v2340, %v2366
  %v2369 = vadd.f32 %v2347, %v2367
  %v2370 = vadd.f32 %v2348, %v2367
  %v2371 = vadd.f32 %v2349, %v2367
  %v2372 = vadd.f32 %v2350, %v2367
  %v2373 = vadd.f32 %v2351, %v2367
  %v2374 = vadd.f32 %v2352, %v2367
  %v2375 = vadd.f32 %v2353, %v2367
  %v2376 = vadd.f32 %v2354, %v2367
  %v2377 = vadd.f32 %v2355, %v2367
  %v2378 = vadd.f32 %v2356, %v2367
  %v2379 = vadd.f32 %v2357, %v2367
  %v2380 = vadd.f32 %v2358, %v2367
  %v2381 = vadd.f32 %v2359, %v2367
  %v2382 = vadd.f32 %v2360, %v2367
  %v2383 = vadd.f32 %v2361, %v2367
  %v2384 = vadd.f32 %v2362, %v2367
  %v2385 = vmul.f32 %v2369, 0.2
  %v2386 = vmul.f32 %v2370, 0.2
  %v2387 = vmul.f32 %v2371, 0.2
  %v2388 = vmul.f32 %v2372, 0.2
  %v2389 = vmul.f32 %v2373, 0.2
  %v2390 = vmul.f32 %v2374, 0.2
  %v2391 = vmul.f32 %v2375, 0.2
  %v2392 = vmul.f32 %v2376, 0.2
  %v2393 = vmul.f32 %v2377, 0.2
  %v2394 = vmul.f32 %v2378, 0.2
  %v2395 = vmul.f32 %v2379, 0.2
  %v2396 = vmul.f32 %v2380, 0.2
  %v2397 = vmul.f32 %v2381, 0.2
  %v2398 = vmul.f32 %v2382, 0.2
  %v2399 = vmul.f32 %v2383, 0.2
  %v2400 = vmul.f32 %v2384, 0.2
  %v2401 = vmax.f32 %v2369, %v2385
  %v2402 = vmax.f32 %v2370, %v2386
  %v2403 = vmax.f32 %v2371, %v2387
  %v2404 = vmax.f32 %v2372, %v2388
  %v2405 = vmax.f32 %v2373, %v2389
  %v2406 = vmax.f32 %v2374, %v2390
  %v2407 = vmax.f32 %v2375, %v2391
  %v2408 = vmax.f32 %v2376, %v2392
  %v2409 = vmax.f32 %v2377, %v2393
  %v2410 = vmax.f32 %v2378, %v2394
  %v2411 = vmax.f32 %v2379, %v2395
  %v2412 = vmax.f32 %v2380, %v2396
  %v2413 = vmax.f32 %v2381, %v2397
  %v2414 = vmax.f32 %v2382, %v2398
  %v2415 = vmax.f32 %v2383, %v2399
  %v2416 = vmax.f32 %v2384, %v2400
  %v2417 = vld [vmem:[%s4] sm:$0xff]
  %v2418 = vld [vmem:[%s4 + $0x8] sm:$0xff]
  %v2419 = vmul.f32 %v2401, %v2417
  %v2420 = vmul.f32 %v2402, %v2418
  %v2421 = vmul.f32 %v2403, %v2417
  %v2422 = vmul.f32 %v2404, %v2418
  %v2423 = vmul.f32 %v2405, %v2417
  %v2424 = vmul.f32 %v2406, %v2418
  %v2425 = vmul.f32 %v2407, %v2417
  %v2426 = vmul.f32 %v2408, %v2418
  %v2427 = vmul.f32 %v2409, %v2417
  %v2428 = vmul.f32 %v2410, %v2418
  %v2429 = vmul.f32 %v2411, %v2417
  %v2430 = vmul.f32 %v2412, %v2418
  %v2431 = vmul.f32 %v2413, %v2417
  %v2432 = vmul.f32 %v2414, %v2418
  %v2433 = vmul.f32 %v2415, %v2417
  %v2434 = vmul.f32 %v2416, %v2418
  %v2435 = vadd.f32 %v2419, %v2420
  %v2436 = vrot.slane %v2435, 4
  %v2437 = vadd.f32 %v2435, %v2436
  %v2438 = vrot.slane %v2437, 2
  %v2439 = vadd.f32 %v2437, %v2438
  %v2440 = vrot.slane %v2439, 1
  %v2441 = vadd.f32 %v2439, %v2440
  %v2442 = vadd.f32 %v2421, %v2422
  %v2443 = vrot.slane %v2442, 4
  %v2444 = vadd.f32 %v2442, %v2443
  %v2445 = vrot.slane %v2444, 2
  %v2446 = vadd.f32 %v2444, %v2445
  %v2447 = vrot.slane %v2446, 1
  %v2448 = vadd.f32 %v2446, %v2447
  %v2449 = vadd.f32 %v2423, %v2424
  %v2450 = vrot.slane %v2449, 4
  %v2451 = vadd.f32 %v2449, %v2450
  %v2452 = vrot.slane %v2451, 2
  %v2453 = vadd.f32 %v2451, %v2452
  %v2454 = vrot.slane %v2453, 1
  %v2455 = vadd.f32 %v2453, %v2454
  %v2456 = vadd.f32 %v2425, %v2426
  %v2457 = vrot.slane %v2456, 4
  %v2458 = vadd.f32 %v2456, %v2457
  %v2459 = vrot.slane %v2458, 2
  %v2460 = vadd.f32 %v2458, %v2459
  %v2461 = vrot.slane %v2460, 1
  %v2462 = vadd.f32 %v2460, %v2461
  %v2463 = vadd.f32 %v2427, %v2428
  %v2464 = vrot.slane %v2463, 4
  %v2465 = vadd.f32 %v2463, %v2464
  %v2466 = vrot.slane %v2465, 2
  %v2467 = vadd.f32 %v2465, %v2466
  %v2468 = vrot.slane %v2467, 1
  %v2469 = vadd.f32 %v2467, %v2468
  %v2470 = vadd.f32 %v2429, %v2430
  %v2471 = vrot.slane %v2470, 4
  %v2472 = vadd.f32 %v2470, %v2471
  %v2473 = vrot.slane %v2472, 2
  %v2474 = vadd.f32 %v2472, %v2473
  %v2475 = vrot.slane %v2474, 1
  %v2476 = vadd.f32 %v2474, %v2475
  %v2477 = vadd.f32 %v2431, %v2432
  %v2478 = vrot.slane %v2477, 4
  %v2479 = vadd.f32 %v2477, %v2478
  %v2480 = vrot.slane %v2479, 2
  %v2481 = vadd.f32 %v2479, %v2480
  %v2482 = vrot.slane %v2481, 1
  %v2483 = vadd.f32 %v2481, %v2482
  %v2484 = vadd.f32 %v2433, %v2434
  %v2485 = vrot.slane %v2484, 4
  %v2486 = vadd.f32 %v2484, %v2485
  %v2487 = vrot.slane %v2486, 2
  %v2488 = vadd.f32 %v2486, %v2487
  %v2489 = vrot.slane %v2488, 1
  %v2490 = vadd.f32 %v2488, %v2489
  %vm2499 = vcmask 1041409
  %v2500 = vsel %vm2499, %v2448, %v2441
  %vm2501 = vcmask 1042434
  %v2502 = vsel %vm2501, %v2455, %v2500
  %vm2503 = vcmask 1043459
  %v2504 = vsel %vm2503, %v2462, %v2502
  %vm2505 = vcmask 1044484
  %v2506 = vsel %vm2505, %v2469, %v2504
  %vm2507 = vcmask 1045509
  %v2508 = vsel %vm2507, %v2476, %v2506
  %vm2509 = vcmask 1046534
  %v2510 = vsel %vm2509, %v2483, %v2508
  %vm2511 = vcmask 1047559
  %v2512 = vsel %vm2511, %v2490, %v2510
  %2514 = vadd.xlane.f32.xlu0 %v2512
  %v2515 = vpop.xlane.xlu0 %2514
  %v2516 = vld [vmem:[%s5] sm:$0x1]
  %v2518 = vlaneseq
  %v2519 = vshrl.u32 %v2518, 7
  %v2520 = vsub.s32 0, %v2519
  %v2521 = vrot.slane %v2516, %v2520
  %v2523 = vadd.f32 %v2515, %v2521
  %v2524 = vxor.u32 %v2523, 2147483648
  %v2525 = vmul.f32 %v2524, 1.442695
  %v2526 = vpow.pop %v2525
  %v2527 = vadd.f32 %v2526, 1.0
  %v2528 = vrcp.pop %v2527
  %v2529 = vmul.f32 1.0, %v2528
  %2530 = vst [vmem:[%s6] sm:$0xff] %v2529
  // Predicated region
  $region26: #{discriminator1_forward.9} parent=0 // pred_check
    _
  $region27: #{discriminator1_forward.9} parent=0 // pred_check_branch
    %2532 = sbr.rel (0) target = $region29
  $region28: #{discriminator1_forward.9} parent=0 // pred_region
    _
  $region29: #{discriminator1_forward.9} parent=0 // pred_fallthru
    _
  // Predicated region
  $region30: #{discriminator1_forward.9} parent=0 // pred_check
    _
  $region31: #{discriminator1_forward.9} parent=0 // pred_check_branch
    %2534 = sbr.rel (0) target = $region33
  $region32: #{discriminator1_forward.9} parent=0 // pred_region
    _
  $region33: #{discriminator1_forward.9} parent=0 // pred_fallthru
    _

</llo_original>
